<compile_context>
chip_gen: v7x
topology: tpu7x:2x2x1
jax: 0.10.0
libtpu: 0.0.40
codegen_flags: <defaults>
</compile_context>

<pallas_src>
import jax
import jax.numpy as jnp
import numpy as np
from jax.experimental import pallas as pl
from jax.experimental.pallas import tpu as pltpu

EPS = 1e-5
SEQ_LEN = 200       # forced by nn.Linear(1000, 600): 20 channels * (200 / 4) = 1000
BATCH_TILE = 128    # batch elements per grid step (clamped for small batches)
HIGH = jax.lax.Precision.HIGHEST


def _fused_kernel(x_ref, w1e_ref, w1o_ref, b1_ref, w2e_ref, w2o_ref, b2_ref,
                  wfc_ref, bfc_ref, wh_ref, bh_ref, out_ref):
    """Whole forward pass for one batch tile.

    x_ref   : (Bt, 200)     raw input, batch on sublanes, length on lanes
    w1e/w1o : (200, 1000)   BN-folded banded conv1 weights (even / odd positions)
    b1      : (1, 1000)     conv1+BN bias broadcast over length
    w2e/w2o : (1000, 1000)  BN-folded banded conv2 weights (even / odd positions)
    b2      : (1, 1000)
    wfc     : (1000, 600)   bfc: (1, 600)
    wh      : (600, 2)      systolic/diastolic heads fused     bh: (1, 2)
    out_ref : (Bt, 2)
    """
    f32 = jnp.float32
    x = x_ref[...]

    # conv1 + BN, even/odd positions, pool BEFORE tanh (max commutes with tanh)
    pre1e = jnp.dot(x, w1e_ref[...], preferred_element_type=f32)
    pre1o = jnp.dot(x, w1o_ref[...], preferred_element_type=f32)
    p1 = jnp.tanh(jnp.maximum(pre1e, pre1o) + b1_ref[...])          # (Bt, 1000)

    # conv2 + BN, even/odd positions, pool before tanh
    pre2e = jnp.dot(p1, w2e_ref[...], preferred_element_type=f32)
    pre2o = jnp.dot(p1, w2o_ref[...], preferred_element_type=f32)
    feat = jnp.tanh(jnp.maximum(pre2e, pre2o) + b2_ref[...])        # (Bt, 1000), flatten order

    # Linear(1000, 600) + tanh, then the two heads fused into one (600, 2) matmul
    hid = jnp.tanh(jnp.dot(feat, wfc_ref[...], preferred_element_type=f32) + bfc_ref[...])
    out_ref[...] = jnp.dot(hid, wh_ref[...], preferred_element_type=f32) + bh_ref[...]


def _banded_conv1(w1f, parity):
    """w1f: (10, 3) BN-folded conv1 weight. Returns (200, 1000), cols = co*100 + j,
    producing conv1 output at length position l = 2*j + parity ('same' zero padding)."""
    L, Lp = SEQ_LEN, SEQ_LEN // 2
    j = jnp.arange(Lp)
    k = jnp.arange(3)
    i_idx = 2 * j[:, None] + parity + k[None, :] - 1                     # (100, 3)
    valid = (i_idx >= 0) & (i_idx < L)
    onehot = ((jnp.arange(L)[:, None, None] == i_idx[None]) & valid[None]).astype(jnp.float32)
    wp = jnp.einsum("ijk,ck->icj", onehot, w1f, precision=HIGH)          # (200, 10, 100)
    return wp.reshape(L, 10 * Lp)


def _banded_conv2(w2f, parity):
    """w2f: (20, 10, 3) BN-folded conv2 weight. Returns (1000, 1000):
    rows = ci*100 + m, cols = c2*50 + j2, output position l = 2*j2 + parity."""
    Lin, Lout = SEQ_LEN // 2, SEQ_LEN // 4
    j = jnp.arange(Lout)
    k = jnp.arange(3)
    m_idx = 2 * j[:, None] + parity + k[None, :] - 1                     # (50, 3)
    valid = (m_idx >= 0) & (m_idx < Lin)
    onehot = ((jnp.arange(Lin)[:, None, None] == m_idx[None]) & valid[None]).astype(jnp.float32)
    wp = jnp.einsum("mjk,cik->imcj", onehot, w2f, precision=HIGH)        # (10, 100, 20, 50)
    return wp.reshape(10 * Lin, 20 * Lout)


def cnn_1d_mod_forward(x, params, batch_tile=BATCH_TILE):
    """x: (B, 1, 200) float32 (PyTorch NCL). Returns (systolic, diastolic), each (B, 1)."""
    f32 = jnp.float32
    B, cin, L = x.shape
    assert cin == 1 and L == SEQ_LEN
    L2, L4 = L // 2, L // 4

    def rup(a, m):
        return ((a + m - 1) // m) * m

    Bt = min(batch_tile, rup(B, 8))
    Bpad = rup(B, Bt)

    xp = x.astype(f32).reshape(B, L)
    if Bpad != B:
        xp = jnp.pad(xp, ((0, Bpad - B), (0, 0)))

    # ------- fold inference-mode BatchNorm into the conv weights / biases -------
    s1 = params["g1"] * jax.lax.rsqrt(params["rv1"] + EPS)               # (10,)
    w1f = (params["w1"][:, 0, :] * s1[:, None]).astype(f32)              # (10, 3)
    b1f = ((params["b1"] - params["rm1"]) * s1 + params["be1"]).astype(f32)
    s2 = params["g2"] * jax.lax.rsqrt(params["rv2"] + EPS)               # (20,)
    w2f = (params["w2"] * s2[:, None, None]).astype(f32)                 # (20, 10, 3)
    b2f = ((params["b2"] - params["rm2"]) * s2 + params["be2"]).astype(f32)

    # ------- banded (conv+pool) weight matrices, built once in the wrapper ------
    w1e = _banded_conv1(w1f, 0)
    w1o = _banded_conv1(w1f, 1)
    b1full = jnp.repeat(b1f, L2).reshape(1, 10 * L2)                     # (1, 1000)
    w2e = _banded_conv2(w2f, 0)
    w2o = _banded_conv2(w2f, 1)
    b2full = jnp.repeat(b2f, L4).reshape(1, 20 * L4)                     # (1, 1000)

    wfc = params["wfc"].T.astype(f32)                                    # (1000, 600)
    bfc = params["bfc"].reshape(1, 600).astype(f32)
    wh = jnp.concatenate([params["ws"].T, params["wd"].T], axis=1).astype(f32)  # (600, 2)
    bh = jnp.concatenate([params["bs"], params["bd"]]).reshape(1, 2).astype(f32)

    const2d = lambda i: (0, 0)
    n_steps = Bpad // Bt

    flops = 2 * Bpad * (L * 10 * L2 * 2 + (10 * L2) * (20 * L4) * 2 + 1000 * 600 + 600 * 2)
    transcendentals = Bpad * (10 * L2 + 20 * L4 + 600)
    bytes_accessed = 4 * (Bpad * L + Bpad * 2
                          + 2 * L * 10 * L2 + 10 * L2
                          + 2 * (10 * L2) * (20 * L4) + 20 * L4
                          + 1000 * 600 + 600 + 600 * 2 + 2)

    out = pl.pallas_call(
        _fused_kernel,
        out_shape=jax.ShapeDtypeStruct((Bpad, 2), f32),
        grid=(n_steps,),
        in_specs=[
            pl.BlockSpec((Bt, L), lambda i: (i, 0)),          # raw input, lane-dense
            pl.BlockSpec((L, 10 * L2), const2d),              # conv1 even
            pl.BlockSpec((L, 10 * L2), const2d),              # conv1 odd
            pl.BlockSpec((1, 10 * L2), const2d),
            pl.BlockSpec((10 * L2, 20 * L4), const2d),        # conv2 even
            pl.BlockSpec((10 * L2, 20 * L4), const2d),        # conv2 odd
            pl.BlockSpec((1, 20 * L4), const2d),
            pl.BlockSpec((10 * L2, 600), const2d),            # wfc
            pl.BlockSpec((1, 600), const2d),
            pl.BlockSpec((600, 2), const2d),                  # fused heads
            pl.BlockSpec((1, 2), const2d),
        ],
        out_specs=pl.BlockSpec((Bt, 2), lambda i: (i, 0)),
        compiler_params=pltpu.CompilerParams(
            dimension_semantics=("parallel",),
            vmem_limit_bytes=48 * 1024 * 1024,                # resident weights ~13 MB (x2 buf) + tiles
        ),
        cost_estimate=pl.CostEstimate(flops=flops,
                                      transcendentals=transcendentals,
                                      bytes_accessed=bytes_accessed),
    )(xp, w1e, w1o, b1full, w2e, w2o, b2full, wfc, bfc, wh, bh)

    return out[:B, 0:1], out[:B, 1:2]


def reference_forward(x, p):
    """Plain-JAX mirror of the PyTorch forward (eval-mode BN), for correctness checking."""
    def conv_same(h, w, b):
        out = jax.lax.conv_general_dilated(
            h, w, window_strides=(1,), padding="SAME",
            dimension_numbers=("NCH", "OIH", "NCH"))
        return out + b[None, :, None]

    def bn_inf(h, g, be, rm, rv):
        return (h - rm[None, :, None]) * (
            g[None, :, None] / jnp.sqrt(rv[None, :, None] + EPS)) + be[None, :, None]

    def pool(h):
        B, C, L = h.shape
        return jnp.max(h.reshape(B, C, L // 2, 2), axis=-1)

    h = pool(jnp.tanh(bn_inf(conv_same(x, p["w1"], p["b1"]),
                             p["g1"], p["be1"], p["rm1"], p["rv1"])))
    h = pool(jnp.tanh(bn_inf(conv_same(h, p["w2"], p["b2"]),
                             p["g2"], p["be2"], p["rm2"], p["rv2"])))
    feat = h.reshape(x.shape[0], -1)
    hid = jnp.tanh(feat @ p["wfc"].T + p["bfc"])
    return hid @ p["ws"].T + p["bs"], hid @ p["wd"].T + p["bd"]


if __name__ == "__main__":
    key = jax.random.PRNGKey(0)
    ks = jax.random.split(key, 20)
    f32 = jnp.float32
    params = {
        "w1": 0.2 * jax.random.normal(ks[0], (10, 1, 3), f32),
        "b1": 0.1 * jax.random.normal(ks[1], (10,), f32),
        "g1": 1.0 + 0.1 * jax.random.normal(ks[2], (10,), f32),
        "be1": 0.1 * jax.random.normal(ks[3], (10,), f32),
        "rm1": 0.1 * jax.random.normal(ks[4], (10,), f32),
        "rv1": 0.5 + jax.random.uniform(ks[5], (10,), f32),
        "w2": 0.2 * jax.random.normal(ks[6], (20, 10, 3), f32),
        "b2": 0.1 * jax.random.normal(ks[7], (20,), f32),
        "g2": 1.0 + 0.1 * jax.random.normal(ks[8], (20,), f32),
        "be2": 0.1 * jax.random.normal(ks[9], (20,), f32),
        "rm2": 0.1 * jax.random.normal(ks[10], (20,), f32),
        "rv2": 0.5 + jax.random.uniform(ks[11], (20,), f32),
        "wfc": 0.05 * jax.random.normal(ks[12], (600, 1000), f32),
        "bfc": 0.05 * jax.random.normal(ks[13], (600,), f32),
        "ws": 0.05 * jax.random.normal(ks[14], (1, 600), f32),
        "bs": 0.05 * jax.random.normal(ks[15], (1,), f32),
        "wd": 0.05 * jax.random.normal(ks[16], (1, 600), f32),
        "bd": 0.05 * jax.random.normal(ks[17], (1,), f32),
    }
    x = jax.random.normal(ks[18], (2, 1, SEQ_LEN), f32)

    sys_out, dia_out = cnn_1d_mod_forward(x, params)
    jax.block_until_ready((sys_out, dia_out))

    sys_ref, dia_ref = reference_forward(x, params)
    np.testing.assert_allclose(np.asarray(sys_out), np.asarray(sys_ref), atol=1e-4, rtol=1e-4)
    np.testing.assert_allclose(np.asarray(dia_out), np.asarray(dia_ref), atol=1e-4, rtol=1e-4)
    print("KERNEL_OK")
</pallas_src>

<mosaic_0001>
module attributes {stable_mosaic.version = 11 : i64} {
  func.func @_fused_kernel(%arg0: i32, %arg1: memref<8x200xf32, #tpu.memory_space<vmem>>, %arg2: memref<200x1000xf32, #tpu.memory_space<vmem>>, %arg3: memref<200x1000xf32, #tpu.memory_space<vmem>>, %arg4: memref<1x1000xf32, #tpu.memory_space<vmem>>, %arg5: memref<1000x1000xf32, #tpu.memory_space<vmem>>, %arg6: memref<1000x1000xf32, #tpu.memory_space<vmem>>, %arg7: memref<1x1000xf32, #tpu.memory_space<vmem>>, %arg8: memref<1000x600xf32, #tpu.memory_space<vmem>>, %arg9: memref<1x600xf32, #tpu.memory_space<vmem>>, %arg10: memref<600x2xf32, #tpu.memory_space<vmem>>, %arg11: memref<1x2xf32, #tpu.memory_space<vmem>>, %arg12: memref<8x2xf32, #tpu.memory_space<vmem>>) attributes {dimension_semantics = [#tpu.dimension_semantics<parallel>], iteration_bounds = array<i64: 1>, scalar_prefetch = 0 : i64, scratch_operands = 0 : i64, tpu.core_type = #tpu.core_type<tc>, window_params = [{transform_indices = @transform_0, window_bounds = array<i64: 8, 200>}, {pipeline_mode = #tpu.pipeline_mode<synchronous>, transform_indices = @transform_1, window_bounds = array<i64: 200, 1000>}, {pipeline_mode = #tpu.pipeline_mode<synchronous>, transform_indices = @transform_2, window_bounds = array<i64: 200, 1000>}, {pipeline_mode = #tpu.pipeline_mode<synchronous>, transform_indices = @transform_3, window_bounds = array<i64: 1, 1000>}, {pipeline_mode = #tpu.pipeline_mode<synchronous>, transform_indices = @transform_4, window_bounds = array<i64: 1000, 1000>}, {pipeline_mode = #tpu.pipeline_mode<synchronous>, transform_indices = @transform_5, window_bounds = array<i64: 1000, 1000>}, {pipeline_mode = #tpu.pipeline_mode<synchronous>, transform_indices = @transform_6, window_bounds = array<i64: 1, 1000>}, {pipeline_mode = #tpu.pipeline_mode<synchronous>, transform_indices = @transform_7, window_bounds = array<i64: 1000, 600>}, {pipeline_mode = #tpu.pipeline_mode<synchronous>, transform_indices = @transform_8, window_bounds = array<i64: 1, 600>}, {pipeline_mode = #tpu.pipeline_mode<synchronous>, transform_indices = @transform_9, window_bounds = array<i64: 600, 2>}, {pipeline_mode = #tpu.pipeline_mode<synchronous>, transform_indices = @transform_10, window_bounds = array<i64: 1, 2>}, {transform_indices = @transform_11, window_bounds = array<i64: 8, 2>}]} {
    %c0 = arith.constant 0 : index
    %c0_0 = arith.constant 0 : index
    %0 = vector.load %arg1[%c0, %c0_0] : memref<8x200xf32, #tpu.memory_space<vmem>>, vector<8x200xf32>
    %c0_1 = arith.constant 0 : index
    %c0_2 = arith.constant 0 : index
    %1 = vector.load %arg2[%c0_1, %c0_2] : memref<200x1000xf32, #tpu.memory_space<vmem>>, vector<200x1000xf32>
    %cst = arith.constant dense<0.000000e+00> : vector<8x1000xf32>
    %2 = tpu.matmul %0, %1, %cst {dimension_numbers = #tpu.dot_dimension_numbers<[1], [0], [0], [1], [0, 0, 1, 1], [], []>} : vector<8x200xf32>, vector<200x1000xf32>, vector<8x1000xf32> -> vector<8x1000xf32>
    %c0_3 = arith.constant 0 : index
    %c0_4 = arith.constant 0 : index
    %3 = vector.load %arg3[%c0_3, %c0_4] : memref<200x1000xf32, #tpu.memory_space<vmem>>, vector<200x1000xf32>
    %cst_5 = arith.constant dense<0.000000e+00> : vector<8x1000xf32>
    %4 = tpu.matmul %0, %3, %cst_5 {dimension_numbers = #tpu.dot_dimension_numbers<[1], [0], [0], [1], [0, 0, 1, 1], [], []>} : vector<8x200xf32>, vector<200x1000xf32>, vector<8x1000xf32> -> vector<8x1000xf32>
    %5 = arith.maximumf %2, %4 : vector<8x1000xf32>
    %c0_6 = arith.constant 0 : index
    %c0_7 = arith.constant 0 : index
    %6 = vector.load %arg4[%c0_6, %c0_7] : memref<1x1000xf32, #tpu.memory_space<vmem>>, vector<1x1000xf32>
    %7 = vector.broadcast %6 : vector<1x1000xf32> to vector<8x1000xf32>
    %8 = arith.addf %5, %7 : vector<8x1000xf32>
    %9 = math.tanh %8 : vector<8x1000xf32>
    %c0_8 = arith.constant 0 : index
    %c0_9 = arith.constant 0 : index
    %10 = vector.load %arg5[%c0_8, %c0_9] : memref<1000x1000xf32, #tpu.memory_space<vmem>>, vector<1000x1000xf32>
    %cst_10 = arith.constant dense<0.000000e+00> : vector<8x1000xf32>
    %11 = tpu.matmul %9, %10, %cst_10 {dimension_numbers = #tpu.dot_dimension_numbers<[1], [0], [0], [1], [0, 0, 1, 1], [], []>} : vector<8x1000xf32>, vector<1000x1000xf32>, vector<8x1000xf32> -> vector<8x1000xf32>
    %c0_11 = arith.constant 0 : index
    %c0_12 = arith.constant 0 : index
    %12 = vector.load %arg6[%c0_11, %c0_12] : memref<1000x1000xf32, #tpu.memory_space<vmem>>, vector<1000x1000xf32>
    %cst_13 = arith.constant dense<0.000000e+00> : vector<8x1000xf32>
    %13 = tpu.matmul %9, %12, %cst_13 {dimension_numbers = #tpu.dot_dimension_numbers<[1], [0], [0], [1], [0, 0, 1, 1], [], []>} : vector<8x1000xf32>, vector<1000x1000xf32>, vector<8x1000xf32> -> vector<8x1000xf32>
    %14 = arith.maximumf %11, %13 : vector<8x1000xf32>
    %c0_14 = arith.constant 0 : index
    %c0_15 = arith.constant 0 : index
    %15 = vector.load %arg7[%c0_14, %c0_15] : memref<1x1000xf32, #tpu.memory_space<vmem>>, vector<1x1000xf32>
    %16 = vector.broadcast %15 : vector<1x1000xf32> to vector<8x1000xf32>
    %17 = arith.addf %14, %16 : vector<8x1000xf32>
    %18 = math.tanh %17 : vector<8x1000xf32>
    %c0_16 = arith.constant 0 : index
    %c0_17 = arith.constant 0 : index
    %19 = vector.load %arg8[%c0_16, %c0_17] : memref<1000x600xf32, #tpu.memory_space<vmem>>, vector<1000x600xf32>
    %cst_18 = arith.constant dense<0.000000e+00> : vector<8x600xf32>
    %20 = tpu.matmul %18, %19, %cst_18 {dimension_numbers = #tpu.dot_dimension_numbers<[1], [0], [0], [1], [0, 0, 1, 1], [], []>} : vector<8x1000xf32>, vector<1000x600xf32>, vector<8x600xf32> -> vector<8x600xf32>
    %c0_19 = arith.constant 0 : index
    %c0_20 = arith.constant 0 : index
    %21 = vector.load %arg9[%c0_19, %c0_20] : memref<1x600xf32, #tpu.memory_space<vmem>>, vector<1x600xf32>
    %22 = vector.broadcast %21 : vector<1x600xf32> to vector<8x600xf32>
    %23 = arith.addf %20, %22 : vector<8x600xf32>
    %24 = math.tanh %23 : vector<8x600xf32>
    %c0_21 = arith.constant 0 : index
    %c0_22 = arith.constant 0 : index
    %25 = vector.load %arg10[%c0_21, %c0_22] : memref<600x2xf32, #tpu.memory_space<vmem>>, vector<600x2xf32>
    %cst_23 = arith.constant dense<0.000000e+00> : vector<8x2xf32>
    %26 = tpu.matmul %24, %25, %cst_23 {dimension_numbers = #tpu.dot_dimension_numbers<[1], [0], [0], [1], [0, 0, 1, 1], [], []>} : vector<8x600xf32>, vector<600x2xf32>, vector<8x2xf32> -> vector<8x2xf32>
    %c0_24 = arith.constant 0 : index
    %c0_25 = arith.constant 0 : index
    %27 = vector.load %arg11[%c0_24, %c0_25] : memref<1x2xf32, #tpu.memory_space<vmem>>, vector<1x2xf32>
    %28 = vector.broadcast %27 : vector<1x2xf32> to vector<8x2xf32>
    %29 = arith.addf %26, %28 : vector<8x2xf32>
    %c0_26 = arith.constant 0 : index
    %c0_27 = arith.constant 0 : index
    %30 = vector.load %arg12[%c0_26, %c0_27] : memref<8x2xf32, #tpu.memory_space<vmem>>, vector<8x2xf32>
    tpu.vector_store %arg12[%c0_26, %c0_27], %29 {strides = array<i32>} : memref<8x2xf32, #tpu.memory_space<vmem>>, vector<8x2xf32>,
    return
  }
  func.func @transform_0(%arg0: i32) -> (i32, i32) {
    %c0_i32 = arith.constant 0 : i32
    %c0_i32_0 = arith.constant 0 : i32
    return %arg0, %c0_i32 : i32, i32
  }
  func.func @transform_1(%arg0: i32) -> (i32, i32) {
    %c0_i32 = arith.constant 0 : i32
    %c0_i32_0 = arith.constant 0 : i32
    %c0_i32_1 = arith.constant 0 : i32
    return %c0_i32, %c0_i32_0 : i32, i32
  }
  func.func @transform_2(%arg0: i32) -> (i32, i32) {
    %c0_i32 = arith.constant 0 : i32
    %c0_i32_0 = arith.constant 0 : i32
    %c0_i32_1 = arith.constant 0 : i32
    return %c0_i32, %c0_i32_0 : i32, i32
  }
  func.func @transform_3(%arg0: i32) -> (i32, i32) {
    %c0_i32 = arith.constant 0 : i32
    %c0_i32_0 = arith.constant 0 : i32
    %c0_i32_1 = arith.constant 0 : i32
    return %c0_i32, %c0_i32_0 : i32, i32
  }
  func.func @transform_4(%arg0: i32) -> (i32, i32) {
    %c0_i32 = arith.constant 0 : i32
    %c0_i32_0 = arith.constant 0 : i32
    %c0_i32_1 = arith.constant 0 : i32
    return %c0_i32, %c0_i32_0 : i32, i32
  }
  func.func @transform_5(%arg0: i32) -> (i32, i32) {
    %c0_i32 = arith.constant 0 : i32
    %c0_i32_0 = arith.constant 0 : i32
    %c0_i32_1 = arith.constant 0 : i32
    return %c0_i32, %c0_i32_0 : i32, i32
  }
  func.func @transform_6(%arg0: i32) -> (i32, i32) {
    %c0_i32 = arith.constant 0 : i32
    %c0_i32_0 = arith.constant 0 : i32
    %c0_i32_1 = arith.constant 0 : i32
    return %c0_i32, %c0_i32_0 : i32, i32
  }
  func.func @transform_7(%arg0: i32) -> (i32, i32) {
    %c0_i32 = arith.constant 0 : i32
    %c0_i32_0 = arith.constant 0 : i32
    %c0_i32_1 = arith.constant 0 : i32
    return %c0_i32, %c0_i32_0 : i32, i32
  }
  func.func @transform_8(%arg0: i32) -> (i32, i32) {
    %c0_i32 = arith.constant 0 : i32
    %c0_i32_0 = arith.constant 0 : i32
    %c0_i32_1 = arith.constant 0 : i32
    return %c0_i32, %c0_i32_0 : i32, i32
  }
  func.func @transform_9(%arg0: i32) -> (i32, i32) {
    %c0_i32 = arith.constant 0 : i32
    %c0_i32_0 = arith.constant 0 : i32
    %c0_i32_1 = arith.constant 0 : i32
    return %c0_i32, %c0_i32_0 : i32, i32
  }
  func.func @transform_10(%arg0: i32) -> (i32, i32) {
    %c0_i32 = arith.constant 0 : i32
    %c0_i32_0 = arith.constant 0 : i32
    %c0_i32_1 = arith.constant 0 : i32
    return %c0_i32, %c0_i32_0 : i32, i32
  }
  func.func @transform_11(%arg0: i32) -> (i32, i32) {
    %c0_i32 = arith.constant 0 : i32
    %c0_i32_0 = arith.constant 0 : i32
    return %arg0, %c0_i32 : i32, i32
  }
}

</mosaic_0001>

<llo_original>
// kernel: tpu_custom_call.1
$region0: #{tpu_custom_call.1}
  #allocation0 [shape = 'u32[]', space=smem, size = 0x4, offset = 0x4, fixed_abs, tag = 'smem constant byte address 0x4 - core index']
  #allocation1 [shape = 'u32[144,128]{1,0:T(1,128)}', space=vmem, size = 0x12000, scoped, tag = 'internal scratch']
  %s0 = inlined_call_operand.vmem [shape: f32[8,200], index: 0, kind: input, shape index: {}]
  %s1 = inlined_call_operand.vmem [shape: f32[200,1000], index: 1, kind: input, shape index: {}]
  %s2 = inlined_call_operand.hbm [shape: f32[200,1000], index: 2, kind: input, shape index: {}]
  %s3 = inlined_call_operand.vmem [shape: f32[1,1000], index: 3, kind: input, shape index: {}]
  %s4 = inlined_call_operand.vmem [shape: f32[1000,1000], index: 4, kind: input, shape index: {}]
  %s5 = inlined_call_operand.hbm [shape: f32[1000,1000], index: 5, kind: input, shape index: {}]
  %s6 = inlined_call_operand.vmem [shape: f32[1,1000], index: 6, kind: input, shape index: {}]
  %s7 = inlined_call_operand.vmem [shape: f32[1000,600], index: 7, kind: input, shape index: {}]
  %s8 = inlined_call_operand.vmem [shape: f32[1,600], index: 8, kind: input, shape index: {}]
  %s9 = inlined_call_operand.vmem [shape: f32[600,2], index: 9, kind: input, shape index: {}]
  %s10 = inlined_call_operand.vmem [shape: f32[1,2], index: 10, kind: input, shape index: {}]
  %s11 = inlined_call_operand.vmem [shape: f32[8,2], index: 11, kind: output, shape index: {}]
  %s12 = sld [smem:[#allocation0]]
  $region62: #{tpu_custom_call.1} parent=0
    _
  %s14 = ssub.s32 1, %s12
  %s15 = scalar_select 0, %s14, %s12
  $region1: #{tpu_custom_call.1} parent=0
    #allocation2 [shape = 'u8[819200]{0}', space=vmem, size = 0xc8000, scoped, tag = 'input window, operand 2, single buffered']
    #allocation3 [shape = 's32[1]{0}', space=sflag, size = 0x4, scoped, tag = 'scoped memory for tpu_custom_call.1']
    #allocation4 [shape = 'u8[4096000]{0}', space=vmem, size = 0x3e8000, scoped, tag = 'input window, operand 5, single buffered']
    #allocation5 [shape = 's32[1]{0}', space=sflag, size = 0x4, scoped, tag = 'scoped memory for tpu_custom_call.1']
    %16 = vsyncpa [#allocation3], 0
    %17 = vsyncpa [#allocation5], 0
    // Predicated region
    $region2: #{tpu_custom_call.1} parent=1 // pred_check
      _
    $region3: #{tpu_custom_call.1} parent=1 // pred_check_branch
      %19 = sbr.rel (0) target = $region5
    $region4: #{tpu_custom_call.1} parent=1 // pred_region
      _
    $region5: #{tpu_custom_call.1} parent=1 // pred_fallthru
      _
    // Predicated region
    $region6: #{tpu_custom_call.1} parent=1 // pred_check
      _
    $region7: #{tpu_custom_call.1} parent=1 // pred_check_branch
      %21 = sbr.rel (0) target = $region9
    $region8: #{tpu_custom_call.1} parent=1 // pred_region
      _
    $region9: #{tpu_custom_call.1} parent=1 // pred_fallthru
      _
    // Predicated region
    $region10: #{tpu_custom_call.1} parent=1 // pred_check
      _
    $region11: #{tpu_custom_call.1} parent=1 // pred_check_branch
      %23 = sbr.rel (0) target = $region13
    $region12: #{tpu_custom_call.1} parent=1 // pred_region
      %s25 = ssub.s32 25600, 25600
      %26 = vsyncadd [#allocation3], %s25
      %s27 = sshll.u32 [#allocation2], 4
      %s28 = int_to_ptr.vmem [resolvable:$true] %s27
      %33 = dma.hbm_to_vmem [thread:$0]  %s2, 25600, %s28, [#allocation3], 1024, 1024, 64
    $region13: #{tpu_custom_call.1} parent=1 // pred_fallthru
      _
    // Predicated region
    $region14: #{tpu_custom_call.1} parent=1 // pred_check
      _
    $region15: #{tpu_custom_call.1} parent=1 // pred_check_branch
      %35 = sbr.rel (0) target = $region17
    $region16: #{tpu_custom_call.1} parent=1 // pred_region
      _
    $region17: #{tpu_custom_call.1} parent=1 // pred_fallthru
      _
    // Predicated region
    $region18: #{tpu_custom_call.1} parent=1 // pred_check
      _
    $region19: #{tpu_custom_call.1} parent=1 // pred_check_branch
      %37 = sbr.rel (0) target = $region21
    $region20: #{tpu_custom_call.1} parent=1 // pred_region
      _
    $region21: #{tpu_custom_call.1} parent=1 // pred_fallthru
      _
    // Predicated region
    $region22: #{tpu_custom_call.1} parent=1 // pred_check
      _
    $region23: #{tpu_custom_call.1} parent=1 // pred_check_branch
      %39 = sbr.rel (0) target = $region25
    $region24: #{tpu_custom_call.1} parent=1 // pred_region
      %s41 = ssub.s32 128000, 128000
      %42 = vsyncadd [#allocation5], %s41
      %s43 = sshll.u32 [#allocation4], 4
      %s44 = int_to_ptr.vmem [resolvable:$true] %s43
      %49 = dma.hbm_to_vmem [thread:$0]  %s5, 128000, %s44, [#allocation5], 1024, 1024, 64
    $region25: #{tpu_custom_call.1} parent=1 // pred_fallthru
      _
    // Predicated region
    $region26: #{tpu_custom_call.1} parent=1 // pred_check
      _
    $region27: #{tpu_custom_call.1} parent=1 // pred_check_branch
      %51 = sbr.rel (0) target = $region29
    $region28: #{tpu_custom_call.1} parent=1 // pred_region
      _
    $region29: #{tpu_custom_call.1} parent=1 // pred_fallthru
      _
    // Predicated region
    $region30: #{tpu_custom_call.1} parent=1 // pred_check
      _
    $region31: #{tpu_custom_call.1} parent=1 // pred_check_branch
      %53 = sbr.rel (0) target = $region33
    $region32: #{tpu_custom_call.1} parent=1 // pred_region
      _
    $region33: #{tpu_custom_call.1} parent=1 // pred_fallthru
      _
    // Predicated region
    $region34: #{tpu_custom_call.1} parent=1 // pred_check
      _
    $region35: #{tpu_custom_call.1} parent=1 // pred_check_branch
      %55 = sbr.rel (0) target = $region37
    $region36: #{tpu_custom_call.1} parent=1 // pred_region
      _
    $region37: #{tpu_custom_call.1} parent=1 // pred_fallthru
      _
    // Predicated region
    $region38: #{tpu_custom_call.1} parent=1 // pred_check
      _
    $region39: #{tpu_custom_call.1} parent=1 // pred_check_branch
      %57 = sbr.rel (0) target = $region41
    $region40: #{tpu_custom_call.1} parent=1 // pred_region
      _
    $region41: #{tpu_custom_call.1} parent=1 // pred_fallthru
      _
    // Predicated region
    $region42: #{tpu_custom_call.1} parent=1 // pred_check
      _
    $region43: #{tpu_custom_call.1} parent=1 // pred_check_branch
      %59 = sbr.rel (0) target = $region45
    $region44: #{tpu_custom_call.1} parent=1 // pred_region
      _
    $region45: #{tpu_custom_call.1} parent=1 // pred_fallthru
      _
    // Predicated region
    $region46: #{tpu_custom_call.1} parent=1 // pred_check
      _
    $region47: #{tpu_custom_call.1} parent=1 // pred_check_branch
      %61 = sbr.rel (0) target = $region49
    $region48: #{tpu_custom_call.1} parent=1 // pred_region
      %62 = dma.done [#allocation3], 25600
    $region49: #{tpu_custom_call.1} parent=1 // pred_fallthru
      _
    // Predicated region
    $region50: #{tpu_custom_call.1} parent=1 // pred_check
      _
    $region51: #{tpu_custom_call.1} parent=1 // pred_check_branch
      %64 = sbr.rel (0) target = $region53
    $region52: #{tpu_custom_call.1} parent=1 // pred_region
      %65 = dma.done [#allocation5], 128000
    $region53: #{tpu_custom_call.1} parent=1 // pred_fallthru
      _
    %v66 = vld [vmem:[%s0] sm:$0xff]
    %v67 = vld [vmem:[%s0 + $0x8] sm:$0xff]
    %v68 = vld [vmem:[%s1] sm:$0xff]
    %v69 = vld [vmem:[%s1 + $0x8] sm:$0xff]
    %v70 = vld [vmem:[%s1 + $0x10] sm:$0xff]
    %v71 = vld [vmem:[%s1 + $0x18] sm:$0xff]
    %v72 = vld [vmem:[%s1 + $0x20] sm:$0xff]
    %v73 = vld [vmem:[%s1 + $0x28] sm:$0xff]
    %v74 = vld [vmem:[%s1 + $0x30] sm:$0xff]
    %v75 = vld [vmem:[%s1 + $0x38] sm:$0xff]
    %v76 = vld [vmem:[%s1 + $0x40] sm:$0xff]
    %v77 = vld [vmem:[%s1 + $0x48] sm:$0xff]
    %v78 = vld [vmem:[%s1 + $0x50] sm:$0xff]
    %v79 = vld [vmem:[%s1 + $0x58] sm:$0xff]
    %v80 = vld [vmem:[%s1 + $0x60] sm:$0xff]
    %v81 = vld [vmem:[%s1 + $0x68] sm:$0xff]
    %v82 = vld [vmem:[%s1 + $0x70] sm:$0xff]
    %v83 = vld [vmem:[%s1 + $0x78] sm:$0xff]
    %v84 = vld [vmem:[%s1 + $0x80] sm:$0xff]
    %v85 = vld [vmem:[%s1 + $0x88] sm:$0xff]
    %v86 = vld [vmem:[%s1 + $0x90] sm:$0xff]
    %v87 = vld [vmem:[%s1 + $0x98] sm:$0xff]
    %v88 = vld [vmem:[%s1 + $0xa0] sm:$0xff]
    %v89 = vld [vmem:[%s1 + $0xa8] sm:$0xff]
    %v90 = vld [vmem:[%s1 + $0xb0] sm:$0xff]
    %v91 = vld [vmem:[%s1 + $0xb8] sm:$0xff]
    %v92 = vld [vmem:[%s1 + $0xc0] sm:$0xff]
    %v93 = vld [vmem:[%s1 + $0xc8] sm:$0xff]
    %v94 = vld [vmem:[%s1 + $0xd0] sm:$0xff]
    %v95 = vld [vmem:[%s1 + $0xd8] sm:$0xff]
    %v96 = vld [vmem:[%s1 + $0xe0] sm:$0xff]
    %v97 = vld [vmem:[%s1 + $0xe8] sm:$0xff]
    %v98 = vld [vmem:[%s1 + $0xf0] sm:$0xff]
    %v99 = vld [vmem:[%s1 + $0xf8] sm:$0xff]
    %v100 = vld [vmem:[%s1 + $0x100] sm:$0xff]
    %v101 = vld [vmem:[%s1 + $0x108] sm:$0xff]
    %v102 = vld [vmem:[%s1 + $0x110] sm:$0xff]
    %v103 = vld [vmem:[%s1 + $0x118] sm:$0xff]
    %v104 = vld [vmem:[%s1 + $0x120] sm:$0xff]
    %v105 = vld [vmem:[%s1 + $0x128] sm:$0xff]
    %v106 = vld [vmem:[%s1 + $0x130] sm:$0xff]
    %v107 = vld [vmem:[%s1 + $0x138] sm:$0xff]
    %v108 = vld [vmem:[%s1 + $0x140] sm:$0xff]
    %v109 = vld [vmem:[%s1 + $0x148] sm:$0xff]
    %v110 = vld [vmem:[%s1 + $0x150] sm:$0xff]
    %v111 = vld [vmem:[%s1 + $0x158] sm:$0xff]
    %v112 = vld [vmem:[%s1 + $0x160] sm:$0xff]
    %v113 = vld [vmem:[%s1 + $0x168] sm:$0xff]
    %v114 = vld [vmem:[%s1 + $0x170] sm:$0xff]
    %v115 = vld [vmem:[%s1 + $0x178] sm:$0xff]
    %v116 = vld [vmem:[%s1 + $0x180] sm:$0xff]
    %v117 = vld [vmem:[%s1 + $0x188] sm:$0xff]
    %v118 = vld [vmem:[%s1 + $0x190] sm:$0xff]
    %v119 = vld [vmem:[%s1 + $0x198] sm:$0xff]
    %v120 = vld [vmem:[%s1 + $0x1a0] sm:$0xff]
    %v121 = vld [vmem:[%s1 + $0x1a8] sm:$0xff]
    %v122 = vld [vmem:[%s1 + $0x1b0] sm:$0xff]
    %v123 = vld [vmem:[%s1 + $0x1b8] sm:$0xff]
    %v124 = vld [vmem:[%s1 + $0x1c0] sm:$0xff]
    %v125 = vld [vmem:[%s1 + $0x1c8] sm:$0xff]
    %v126 = vld [vmem:[%s1 + $0x1d0] sm:$0xff]
    %v127 = vld [vmem:[%s1 + $0x1d8] sm:$0xff]
    %v128 = vld [vmem:[%s1 + $0x1e0] sm:$0xff]
    %v129 = vld [vmem:[%s1 + $0x1e8] sm:$0xff]
    %v130 = vld [vmem:[%s1 + $0x1f0] sm:$0xff]
    %v131 = vld [vmem:[%s1 + $0x1f8] sm:$0xff]
    %v132 = vld [vmem:[%s1 + $0x200] sm:$0xff]
    %v133 = vld [vmem:[%s1 + $0x208] sm:$0xff]
    %v134 = vld [vmem:[%s1 + $0x210] sm:$0xff]
    %v135 = vld [vmem:[%s1 + $0x218] sm:$0xff]
    %v136 = vld [vmem:[%s1 + $0x220] sm:$0xff]
    %v137 = vld [vmem:[%s1 + $0x228] sm:$0xff]
    %v138 = vld [vmem:[%s1 + $0x230] sm:$0xff]
    %v139 = vld [vmem:[%s1 + $0x238] sm:$0xff]
    %v140 = vld [vmem:[%s1 + $0x240] sm:$0xff]
    %v141 = vld [vmem:[%s1 + $0x248] sm:$0xff]
    %v142 = vld [vmem:[%s1 + $0x250] sm:$0xff]
    %v143 = vld [vmem:[%s1 + $0x258] sm:$0xff]
    %v144 = vld [vmem:[%s1 + $0x260] sm:$0xff]
    %v145 = vld [vmem:[%s1 + $0x268] sm:$0xff]
    %v146 = vld [vmem:[%s1 + $0x270] sm:$0xff]
    %v147 = vld [vmem:[%s1 + $0x278] sm:$0xff]
    %v148 = vld [vmem:[%s1 + $0x280] sm:$0xff]
    %v149 = vld [vmem:[%s1 + $0x288] sm:$0xff]
    %v150 = vld [vmem:[%s1 + $0x290] sm:$0xff]
    %v151 = vld [vmem:[%s1 + $0x298] sm:$0xff]
    %v152 = vld [vmem:[%s1 + $0x2a0] sm:$0xff]
    %v153 = vld [vmem:[%s1 + $0x2a8] sm:$0xff]
    %v154 = vld [vmem:[%s1 + $0x2b0] sm:$0xff]
    %v155 = vld [vmem:[%s1 + $0x2b8] sm:$0xff]
    %v156 = vld [vmem:[%s1 + $0x2c0] sm:$0xff]
    %v157 = vld [vmem:[%s1 + $0x2c8] sm:$0xff]
    %v158 = vld [vmem:[%s1 + $0x2d0] sm:$0xff]
    %v159 = vld [vmem:[%s1 + $0x2d8] sm:$0xff]
    %v160 = vld [vmem:[%s1 + $0x2e0] sm:$0xff]
    %v161 = vld [vmem:[%s1 + $0x2e8] sm:$0xff]
    %v162 = vld [vmem:[%s1 + $0x2f0] sm:$0xff]
    %v163 = vld [vmem:[%s1 + $0x2f8] sm:$0xff]
    %v164 = vld [vmem:[%s1 + $0x300] sm:$0xff]
    %v165 = vld [vmem:[%s1 + $0x308] sm:$0xff]
    %v166 = vld [vmem:[%s1 + $0x310] sm:$0xff]
    %v167 = vld [vmem:[%s1 + $0x318] sm:$0xff]
    %v168 = vld [vmem:[%s1 + $0x320] sm:$0xff]
    %v169 = vld [vmem:[%s1 + $0x328] sm:$0xff]
    %v170 = vld [vmem:[%s1 + $0x330] sm:$0xff]
    %v171 = vld [vmem:[%s1 + $0x338] sm:$0xff]
    %v172 = vld [vmem:[%s1 + $0x340] sm:$0xff]
    %v173 = vld [vmem:[%s1 + $0x348] sm:$0xff]
    %v174 = vld [vmem:[%s1 + $0x350] sm:$0xff]
    %v175 = vld [vmem:[%s1 + $0x358] sm:$0xff]
    %v176 = vld [vmem:[%s1 + $0x360] sm:$0xff]
    %v177 = vld [vmem:[%s1 + $0x368] sm:$0xff]
    %v178 = vld [vmem:[%s1 + $0x370] sm:$0xff]
    %v179 = vld [vmem:[%s1 + $0x378] sm:$0xff]
    %v180 = vld [vmem:[%s1 + $0x380] sm:$0xff]
    %v181 = vld [vmem:[%s1 + $0x388] sm:$0xff]
    %v182 = vld [vmem:[%s1 + $0x390] sm:$0xff]
    %v183 = vld [vmem:[%s1 + $0x398] sm:$0xff]
    %v184 = vld [vmem:[%s1 + $0x3a0] sm:$0xff]
    %v185 = vld [vmem:[%s1 + $0x3a8] sm:$0xff]
    %v186 = vld [vmem:[%s1 + $0x3b0] sm:$0xff]
    %v187 = vld [vmem:[%s1 + $0x3b8] sm:$0xff]
    %v188 = vld [vmem:[%s1 + $0x3c0] sm:$0xff]
    %v189 = vld [vmem:[%s1 + $0x3c8] sm:$0xff]
    %v190 = vld [vmem:[%s1 + $0x3d0] sm:$0xff]
    %v191 = vld [vmem:[%s1 + $0x3d8] sm:$0xff]
    %v192 = vld [vmem:[%s1 + $0x3e0] sm:$0xff]
    %v193 = vld [vmem:[%s1 + $0x3e8] sm:$0xff]
    %v194 = vld [vmem:[%s1 + $0x3f0] sm:$0xff]
    %v195 = vld [vmem:[%s1 + $0x3f8] sm:$0xff]
    %v196 = vld [vmem:[%s1 + $0x400] sm:$0xff]
    %v197 = vld [vmem:[%s1 + $0x408] sm:$0xff]
    %v198 = vld [vmem:[%s1 + $0x410] sm:$0xff]
    %v199 = vld [vmem:[%s1 + $0x418] sm:$0xff]
    %v200 = vld [vmem:[%s1 + $0x420] sm:$0xff]
    %v201 = vld [vmem:[%s1 + $0x428] sm:$0xff]
    %v202 = vld [vmem:[%s1 + $0x430] sm:$0xff]
    %v203 = vld [vmem:[%s1 + $0x438] sm:$0xff]
    %v204 = vld [vmem:[%s1 + $0x440] sm:$0xff]
    %v205 = vld [vmem:[%s1 + $0x448] sm:$0xff]
    %v206 = vld [vmem:[%s1 + $0x450] sm:$0xff]
    %v207 = vld [vmem:[%s1 + $0x458] sm:$0xff]
    %v208 = vld [vmem:[%s1 + $0x460] sm:$0xff]
    %v209 = vld [vmem:[%s1 + $0x468] sm:$0xff]
    %v210 = vld [vmem:[%s1 + $0x470] sm:$0xff]
    %v211 = vld [vmem:[%s1 + $0x478] sm:$0xff]
    %v212 = vld [vmem:[%s1 + $0x480] sm:$0xff]
    %v213 = vld [vmem:[%s1 + $0x488] sm:$0xff]
    %v214 = vld [vmem:[%s1 + $0x490] sm:$0xff]
    %v215 = vld [vmem:[%s1 + $0x498] sm:$0xff]
    %v216 = vld [vmem:[%s1 + $0x4a0] sm:$0xff]
    %v217 = vld [vmem:[%s1 + $0x4a8] sm:$0xff]
    %v218 = vld [vmem:[%s1 + $0x4b0] sm:$0xff]
    %v219 = vld [vmem:[%s1 + $0x4b8] sm:$0xff]
    %v220 = vld [vmem:[%s1 + $0x4c0] sm:$0xff]
    %v221 = vld [vmem:[%s1 + $0x4c8] sm:$0xff]
    %v222 = vld [vmem:[%s1 + $0x4d0] sm:$0xff]
    %v223 = vld [vmem:[%s1 + $0x4d8] sm:$0xff]
    %v224 = vld [vmem:[%s1 + $0x4e0] sm:$0xff]
    %v225 = vld [vmem:[%s1 + $0x4e8] sm:$0xff]
    %v226 = vld [vmem:[%s1 + $0x4f0] sm:$0xff]
    %v227 = vld [vmem:[%s1 + $0x4f8] sm:$0xff]
    %v228 = vld [vmem:[%s1 + $0x500] sm:$0xff]
    %v229 = vld [vmem:[%s1 + $0x508] sm:$0xff]
    %v230 = vld [vmem:[%s1 + $0x510] sm:$0xff]
    %v231 = vld [vmem:[%s1 + $0x518] sm:$0xff]
    %v232 = vld [vmem:[%s1 + $0x520] sm:$0xff]
    %v233 = vld [vmem:[%s1 + $0x528] sm:$0xff]
    %v234 = vld [vmem:[%s1 + $0x530] sm:$0xff]
    %v235 = vld [vmem:[%s1 + $0x538] sm:$0xff]
    %v236 = vld [vmem:[%s1 + $0x540] sm:$0xff]
    %v237 = vld [vmem:[%s1 + $0x548] sm:$0xff]
    %v238 = vld [vmem:[%s1 + $0x550] sm:$0xff]
    %v239 = vld [vmem:[%s1 + $0x558] sm:$0xff]
    %v240 = vld [vmem:[%s1 + $0x560] sm:$0xff]
    %v241 = vld [vmem:[%s1 + $0x568] sm:$0xff]
    %v242 = vld [vmem:[%s1 + $0x570] sm:$0xff]
    %v243 = vld [vmem:[%s1 + $0x578] sm:$0xff]
    %v244 = vld [vmem:[%s1 + $0x580] sm:$0xff]
    %v245 = vld [vmem:[%s1 + $0x588] sm:$0xff]
    %v246 = vld [vmem:[%s1 + $0x590] sm:$0xff]
    %v247 = vld [vmem:[%s1 + $0x598] sm:$0xff]
    %v248 = vld [vmem:[%s1 + $0x5a0] sm:$0xff]
    %v249 = vld [vmem:[%s1 + $0x5a8] sm:$0xff]
    %v250 = vld [vmem:[%s1 + $0x5b0] sm:$0xff]
    %v251 = vld [vmem:[%s1 + $0x5b8] sm:$0xff]
    %v252 = vld [vmem:[%s1 + $0x5c0] sm:$0xff]
    %v253 = vld [vmem:[%s1 + $0x5c8] sm:$0xff]
    %v254 = vld [vmem:[%s1 + $0x5d0] sm:$0xff]
    %v255 = vld [vmem:[%s1 + $0x5d8] sm:$0xff]
    %v256 = vld [vmem:[%s1 + $0x5e0] sm:$0xff]
    %v257 = vld [vmem:[%s1 + $0x5e8] sm:$0xff]
    %v258 = vld [vmem:[%s1 + $0x5f0] sm:$0xff]
    %v259 = vld [vmem:[%s1 + $0x5f8] sm:$0xff]
    %v260 = vld [vmem:[%s1 + $0x600] sm:$0xff]
    %v261 = vld [vmem:[%s1 + $0x608] sm:$0xff]
    %v262 = vld [vmem:[%s1 + $0x610] sm:$0xff]
    %v263 = vld [vmem:[%s1 + $0x618] sm:$0xff]
    %v264 = vld [vmem:[%s1 + $0x620] sm:$0xff]
    %v265 = vld [vmem:[%s1 + $0x628] sm:$0xff]
    %v266 = vld [vmem:[%s1 + $0x630] sm:$0xff]
    %v267 = vld [vmem:[%s1 + $0x638] sm:$0xff]
    %vm268 = vcmask 588800
    %v270 = vsel %vm268, %v67, 0
    %272 = vmatprep.subr.mxu0 %v69
    %273 = vmatpush1.msra.mxu0 %v68
    %274 = vmatprep.subr.mxu0 %v77
    %275 = vmatpush1.msra.mxu0 %v76
    %276 = vmatprep.subr.mxu0 %v85
    %277 = vmatpush1.msra.mxu0 %v84
    %278 = vmatprep.subr.mxu0 %v93
    %279 = vmatpush1.msra.mxu0 %v92
    %280 = vmatprep.subr.mxu0 %v101
    %281 = vmatpush1.msra.mxu0 %v100
    %282 = vmatprep.subr.mxu0 %v109
    %283 = vmatpush1.msra.mxu0 %v108
    %284 = vmatprep.subr.mxu0 %v117
    %285 = vmatpush1.msra.mxu0 %v116
    %286 = vmatprep.subr.mxu0 %v125
    %287 = vmatpush1.msra.mxu0 %v124
    %288 = vmatprep.subr.mxu0 %v133
    %289 = vmatpush1.msra.mxu0 %v132
    %290 = vmatprep.subr.mxu0 %v141
    %291 = vmatpush1.msra.mxu0 %v140
    %292 = vmatprep.subr.mxu0 %v149
    %293 = vmatpush1.msra.mxu0 %v148
    %294 = vmatprep.subr.mxu0 %v157
    %295 = vmatpush1.msra.mxu0 %v156
    %296 = vmatprep.subr.mxu0 %v165
    %297 = vmatpush1.msra.mxu0 %v164
    %298 = vmatprep.subr.mxu0 %v173
    %299 = vmatpush1.msra.mxu0 %v172
    %300 = vmatprep.subr.mxu0 %v181
    %301 = vmatpush1.msra.mxu0 %v180
    %302 = vmatprep.subr.mxu0 %v189
    %303 = vmatpush1.msra.mxu0 %v188
    %304 = vmatprep.subr.mxu0 %v197
    %305 = vmatpush1.msra.mxu0 %v196
    %306 = vmatprep.subr.mxu0 %v205
    %307 = vmatpush1.msra.mxu0 %v204
    %308 = vmatprep.subr.mxu0 %v213
    %309 = vmatpush1.msra.mxu0 %v212
    %310 = vmatprep.subr.mxu0 %v221
    %311 = vmatpush1.msra.mxu0 %v220
    %312 = vmatprep.subr.mxu0 %v229
    %313 = vmatpush1.msra.mxu0 %v228
    %314 = vmatprep.subr.mxu0 %v237
    %315 = vmatpush1.msra.mxu0 %v236
    %316 = vmatprep.subr.mxu0 %v245
    %317 = vmatpush1.msra.mxu0 %v244
    %318 = vmatprep.subr.mxu0 %v253
    %319 = vmatpush1.msra.mxu0 %v252
    %320 = vmatprep.subr.mxu0 %v261
    %321 = vmatpush1.msra.mxu0 %v260
    %322 = vmatprep.subr.mxu0 0.0
    %323 = vmatpush1.msra.mxu0 0.0
    %324 = vmatprep.subr.mxu0 0.0
    %325 = vmatpush1.msra.mxu0 0.0
    %326 = vmatprep.subr.mxu0 0.0
    %327 = vmatpush1.msra.mxu0 0.0
    %328 = vmatprep.subr.mxu0 0.0
    %329 = vmatpush1.msra.mxu0 0.0
    %330 = vmatprep.subr.mxu0 0.0
    %331 = vmatpush1.msra.mxu0 0.0
    %332 = vmatprep.subr.mxu0 0.0
    %333 = vmatpush1.msra.mxu0 0.0
    %334 = vmatprep.subr.mxu0 0.0
    %335 = vmatpush1.msra.mxu0 0.0
    %336 = vmatprep.mubr.f32.mxu0 %v270
    %337 = vmatmul.mubr.f32.gmra.mrb[0].mxu0 %v66
    %v338 = vpop.f32.mrb[0].mxu0
    %v339 = vadd.f32 0.0, %v338
    %v340 = vpop.f32.mrb[0].mxu0
    %v341 = vadd.f32 0.0, %v340
    %342 = vdwg.mxu0
    %343 = vmatprep.subr.mxu0 %v71
    %344 = vmatpush1.msra.mxu0 %v70
    %345 = vmatprep.subr.mxu0 %v79
    %346 = vmatpush1.msra.mxu0 %v78
    %347 = vmatprep.subr.mxu0 %v87
    %348 = vmatpush1.msra.mxu0 %v86
    %349 = vmatprep.subr.mxu0 %v95
    %350 = vmatpush1.msra.mxu0 %v94
    %351 = vmatprep.subr.mxu0 %v103
    %352 = vmatpush1.msra.mxu0 %v102
    %353 = vmatprep.subr.mxu0 %v111
    %354 = vmatpush1.msra.mxu0 %v110
    %355 = vmatprep.subr.mxu0 %v119
    %356 = vmatpush1.msra.mxu0 %v118
    %357 = vmatprep.subr.mxu0 %v127
    %358 = vmatpush1.msra.mxu0 %v126
    %359 = vmatprep.subr.mxu0 %v135
    %360 = vmatpush1.msra.mxu0 %v134
    %361 = vmatprep.subr.mxu0 %v143
    %362 = vmatpush1.msra.mxu0 %v142
    %363 = vmatprep.subr.mxu0 %v151
    %364 = vmatpush1.msra.mxu0 %v150
    %365 = vmatprep.subr.mxu0 %v159
    %366 = vmatpush1.msra.mxu0 %v158
    %367 = vmatprep.subr.mxu0 %v167
    %368 = vmatpush1.msra.mxu0 %v166
    %369 = vmatprep.subr.mxu0 %v175
    %370 = vmatpush1.msra.mxu0 %v174
    %371 = vmatprep.subr.mxu0 %v183
    %372 = vmatpush1.msra.mxu0 %v182
    %373 = vmatprep.subr.mxu0 %v191
    %374 = vmatpush1.msra.mxu0 %v190
    %375 = vmatprep.subr.mxu0 %v199
    %376 = vmatpush1.msra.mxu0 %v198
    %377 = vmatprep.subr.mxu0 %v207
    %378 = vmatpush1.msra.mxu0 %v206
    %379 = vmatprep.subr.mxu0 %v215
    %380 = vmatpush1.msra.mxu0 %v214
    %381 = vmatprep.subr.mxu0 %v223
    %382 = vmatpush1.msra.mxu0 %v222
    %383 = vmatprep.subr.mxu0 %v231
    %384 = vmatpush1.msra.mxu0 %v230
    %385 = vmatprep.subr.mxu0 %v239
    %386 = vmatpush1.msra.mxu0 %v238
    %387 = vmatprep.subr.mxu0 %v247
    %388 = vmatpush1.msra.mxu0 %v246
    %389 = vmatprep.subr.mxu0 %v255
    %390 = vmatpush1.msra.mxu0 %v254
    %391 = vmatprep.subr.mxu0 %v263
    %392 = vmatpush1.msra.mxu0 %v262
    %393 = vmatprep.subr.mxu0 0.0
    %394 = vmatpush1.msra.mxu0 0.0
    %395 = vmatprep.subr.mxu0 0.0
    %396 = vmatpush1.msra.mxu0 0.0
    %397 = vmatprep.subr.mxu0 0.0
    %398 = vmatpush1.msra.mxu0 0.0
    %399 = vmatprep.subr.mxu0 0.0
    %400 = vmatpush1.msra.mxu0 0.0
    %401 = vmatprep.subr.mxu0 0.0
    %402 = vmatpush1.msra.mxu0 0.0
    %403 = vmatprep.subr.mxu0 0.0
    %404 = vmatpush1.msra.mxu0 0.0
    %405 = vmatprep.subr.mxu0 0.0
    %406 = vmatpush1.msra.mxu0 0.0
    %407 = vmatprep.mubr.f32.mxu0 %v270
    %408 = vmatmul.mubr.f32.gmra.mrb[0].mxu0 %v66
    %v409 = vpop.f32.mrb[0].mxu0
    %v410 = vadd.f32 0.0, %v409
    %v411 = vpop.f32.mrb[0].mxu0
    %v412 = vadd.f32 0.0, %v411
    %413 = vdwg.mxu0
    %414 = vmatprep.subr.mxu0 %v73
    %415 = vmatpush1.msra.mxu0 %v72
    %416 = vmatprep.subr.mxu0 %v81
    %417 = vmatpush1.msra.mxu0 %v80
    %418 = vmatprep.subr.mxu0 %v89
    %419 = vmatpush1.msra.mxu0 %v88
    %420 = vmatprep.subr.mxu0 %v97
    %421 = vmatpush1.msra.mxu0 %v96
    %422 = vmatprep.subr.mxu0 %v105
    %423 = vmatpush1.msra.mxu0 %v104
    %424 = vmatprep.subr.mxu0 %v113
    %425 = vmatpush1.msra.mxu0 %v112
    %426 = vmatprep.subr.mxu0 %v121
    %427 = vmatpush1.msra.mxu0 %v120
    %428 = vmatprep.subr.mxu0 %v129
    %429 = vmatpush1.msra.mxu0 %v128
    %430 = vmatprep.subr.mxu0 %v137
    %431 = vmatpush1.msra.mxu0 %v136
    %432 = vmatprep.subr.mxu0 %v145
    %433 = vmatpush1.msra.mxu0 %v144
    %434 = vmatprep.subr.mxu0 %v153
    %435 = vmatpush1.msra.mxu0 %v152
    %436 = vmatprep.subr.mxu0 %v161
    %437 = vmatpush1.msra.mxu0 %v160
    %438 = vmatprep.subr.mxu0 %v169
    %439 = vmatpush1.msra.mxu0 %v168
    %440 = vmatprep.subr.mxu0 %v177
    %441 = vmatpush1.msra.mxu0 %v176
    %442 = vmatprep.subr.mxu0 %v185
    %443 = vmatpush1.msra.mxu0 %v184
    %444 = vmatprep.subr.mxu0 %v193
    %445 = vmatpush1.msra.mxu0 %v192
    %446 = vmatprep.subr.mxu0 %v201
    %447 = vmatpush1.msra.mxu0 %v200
    %448 = vmatprep.subr.mxu0 %v209
    %449 = vmatpush1.msra.mxu0 %v208
    %450 = vmatprep.subr.mxu0 %v217
    %451 = vmatpush1.msra.mxu0 %v216
    %452 = vmatprep.subr.mxu0 %v225
    %453 = vmatpush1.msra.mxu0 %v224
    %454 = vmatprep.subr.mxu0 %v233
    %455 = vmatpush1.msra.mxu0 %v232
    %456 = vmatprep.subr.mxu0 %v241
    %457 = vmatpush1.msra.mxu0 %v240
    %458 = vmatprep.subr.mxu0 %v249
    %459 = vmatpush1.msra.mxu0 %v248
    %460 = vmatprep.subr.mxu0 %v257
    %461 = vmatpush1.msra.mxu0 %v256
    %462 = vmatprep.subr.mxu0 %v265
    %463 = vmatpush1.msra.mxu0 %v264
    %464 = vmatprep.subr.mxu0 0.0
    %465 = vmatpush1.msra.mxu0 0.0
    %466 = vmatprep.subr.mxu0 0.0
    %467 = vmatpush1.msra.mxu0 0.0
    %468 = vmatprep.subr.mxu0 0.0
    %469 = vmatpush1.msra.mxu0 0.0
    %470 = vmatprep.subr.mxu0 0.0
    %471 = vmatpush1.msra.mxu0 0.0
    %472 = vmatprep.subr.mxu0 0.0
    %473 = vmatpush1.msra.mxu0 0.0
    %474 = vmatprep.subr.mxu0 0.0
    %475 = vmatpush1.msra.mxu0 0.0
    %476 = vmatprep.subr.mxu0 0.0
    %477 = vmatpush1.msra.mxu0 0.0
    %478 = vmatprep.mubr.f32.mxu0 %v270
    %479 = vmatmul.mubr.f32.gmra.mrb[0].mxu0 %v66
    %v480 = vpop.f32.mrb[0].mxu0
    %v481 = vadd.f32 0.0, %v480
    %v482 = vpop.f32.mrb[0].mxu0
    %v483 = vadd.f32 0.0, %v482
    %484 = vdwg.mxu0
    %485 = vmatprep.subr.mxu0 %v75
    %486 = vmatpush1.msra.mxu0 %v74
    %487 = vmatprep.subr.mxu0 %v83
    %488 = vmatpush1.msra.mxu0 %v82
    %489 = vmatprep.subr.mxu0 %v91
    %490 = vmatpush1.msra.mxu0 %v90
    %491 = vmatprep.subr.mxu0 %v99
    %492 = vmatpush1.msra.mxu0 %v98
    %493 = vmatprep.subr.mxu0 %v107
    %494 = vmatpush1.msra.mxu0 %v106
    %495 = vmatprep.subr.mxu0 %v115
    %496 = vmatpush1.msra.mxu0 %v114
    %497 = vmatprep.subr.mxu0 %v123
    %498 = vmatpush1.msra.mxu0 %v122
    %499 = vmatprep.subr.mxu0 %v131
    %500 = vmatpush1.msra.mxu0 %v130
    %501 = vmatprep.subr.mxu0 %v139
    %502 = vmatpush1.msra.mxu0 %v138
    %503 = vmatprep.subr.mxu0 %v147
    %504 = vmatpush1.msra.mxu0 %v146
    %505 = vmatprep.subr.mxu0 %v155
    %506 = vmatpush1.msra.mxu0 %v154
    %507 = vmatprep.subr.mxu0 %v163
    %508 = vmatpush1.msra.mxu0 %v162
    %509 = vmatprep.subr.mxu0 %v171
    %510 = vmatpush1.msra.mxu0 %v170
    %511 = vmatprep.subr.mxu0 %v179
    %512 = vmatpush1.msra.mxu0 %v178
    %513 = vmatprep.subr.mxu0 %v187
    %514 = vmatpush1.msra.mxu0 %v186
    %515 = vmatprep.subr.mxu0 %v195
    %516 = vmatpush1.msra.mxu0 %v194
    %517 = vmatprep.subr.mxu0 %v203
    %518 = vmatpush1.msra.mxu0 %v202
    %519 = vmatprep.subr.mxu0 %v211
    %520 = vmatpush1.msra.mxu0 %v210
    %521 = vmatprep.subr.mxu0 %v219
    %522 = vmatpush1.msra.mxu0 %v218
    %523 = vmatprep.subr.mxu0 %v227
    %524 = vmatpush1.msra.mxu0 %v226
    %525 = vmatprep.subr.mxu0 %v235
    %526 = vmatpush1.msra.mxu0 %v234
    %527 = vmatprep.subr.mxu0 %v243
    %528 = vmatpush1.msra.mxu0 %v242
    %529 = vmatprep.subr.mxu0 %v251
    %530 = vmatpush1.msra.mxu0 %v250
    %531 = vmatprep.subr.mxu0 %v259
    %532 = vmatpush1.msra.mxu0 %v258
    %533 = vmatprep.subr.mxu0 %v267
    %534 = vmatpush1.msra.mxu0 %v266
    %535 = vmatprep.subr.mxu0 0.0
    %536 = vmatpush1.msra.mxu0 0.0
    %537 = vmatprep.subr.mxu0 0.0
    %538 = vmatpush1.msra.mxu0 0.0
    %539 = vmatprep.subr.mxu0 0.0
    %540 = vmatpush1.msra.mxu0 0.0
    %541 = vmatprep.subr.mxu0 0.0
    %542 = vmatpush1.msra.mxu0 0.0
    %543 = vmatprep.subr.mxu0 0.0
    %544 = vmatpush1.msra.mxu0 0.0
    %545 = vmatprep.subr.mxu0 0.0
    %546 = vmatpush1.msra.mxu0 0.0
    %547 = vmatprep.subr.mxu0 0.0
    %548 = vmatpush1.msra.mxu0 0.0
    %549 = vmatprep.mubr.f32.mxu0 %v270
    %550 = vmatmul.mubr.f32.gmra.mrb[0].mxu0 %v66
    %v551 = vpop.f32.mrb[0].mxu0
    %v552 = vadd.f32 0.0, %v551
    %v553 = vpop.f32.mrb[0].mxu0
    %v554 = vadd.f32 0.0, %v553
    %555 = vdwg.mxu0
    %v556 = vld [vmem:[#allocation2] sm:$0xff]
    %v557 = vld [vmem:[#allocation2 + $0x8] sm:$0xff]
    %v558 = vld [vmem:[#allocation2 + $0x10] sm:$0xff]
    %v559 = vld [vmem:[#allocation2 + $0x18] sm:$0xff]
    %v560 = vld [vmem:[#allocation2 + $0x20] sm:$0xff]
    %v561 = vld [vmem:[#allocation2 + $0x28] sm:$0xff]
    %v562 = vld [vmem:[#allocation2 + $0x30] sm:$0xff]
    %v563 = vld [vmem:[#allocation2 + $0x38] sm:$0xff]
    %v564 = vld [vmem:[#allocation2 + $0x40] sm:$0xff]
    %v565 = vld [vmem:[#allocation2 + $0x48] sm:$0xff]
    %v566 = vld [vmem:[#allocation2 + $0x50] sm:$0xff]
    %v567 = vld [vmem:[#allocation2 + $0x58] sm:$0xff]
    %v568 = vld [vmem:[#allocation2 + $0x60] sm:$0xff]
    %v569 = vld [vmem:[#allocation2 + $0x68] sm:$0xff]
    %v570 = vld [vmem:[#allocation2 + $0x70] sm:$0xff]
    %v571 = vld [vmem:[#allocation2 + $0x78] sm:$0xff]
    %v572 = vld [vmem:[#allocation2 + $0x80] sm:$0xff]
    %v573 = vld [vmem:[#allocation2 + $0x88] sm:$0xff]
    %v574 = vld [vmem:[#allocation2 + $0x90] sm:$0xff]
    %v575 = vld [vmem:[#allocation2 + $0x98] sm:$0xff]
    %v576 = vld [vmem:[#allocation2 + $0xa0] sm:$0xff]
    %v577 = vld [vmem:[#allocation2 + $0xa8] sm:$0xff]
    %v578 = vld [vmem:[#allocation2 + $0xb0] sm:$0xff]
    %v579 = vld [vmem:[#allocation2 + $0xb8] sm:$0xff]
    %v580 = vld [vmem:[#allocation2 + $0xc0] sm:$0xff]
    %v581 = vld [vmem:[#allocation2 + $0xc8] sm:$0xff]
    %v582 = vld [vmem:[#allocation2 + $0xd0] sm:$0xff]
    %v583 = vld [vmem:[#allocation2 + $0xd8] sm:$0xff]
    %v584 = vld [vmem:[#allocation2 + $0xe0] sm:$0xff]
    %v585 = vld [vmem:[#allocation2 + $0xe8] sm:$0xff]
    %v586 = vld [vmem:[#allocation2 + $0xf0] sm:$0xff]
    %v587 = vld [vmem:[#allocation2 + $0xf8] sm:$0xff]
    %v588 = vld [vmem:[#allocation2 + $0x100] sm:$0xff]
    %v589 = vld [vmem:[#allocation2 + $0x108] sm:$0xff]
    %v590 = vld [vmem:[#allocation2 + $0x110] sm:$0xff]
    %v591 = vld [vmem:[#allocation2 + $0x118] sm:$0xff]
    %v592 = vld [vmem:[#allocation2 + $0x120] sm:$0xff]
    %v593 = vld [vmem:[#allocation2 + $0x128] sm:$0xff]
    %v594 = vld [vmem:[#allocation2 + $0x130] sm:$0xff]
    %v595 = vld [vmem:[#allocation2 + $0x138] sm:$0xff]
    %v596 = vld [vmem:[#allocation2 + $0x140] sm:$0xff]
    %v597 = vld [vmem:[#allocation2 + $0x148] sm:$0xff]
    %v598 = vld [vmem:[#allocation2 + $0x150] sm:$0xff]
    %v599 = vld [vmem:[#allocation2 + $0x158] sm:$0xff]
    %v600 = vld [vmem:[#allocation2 + $0x160] sm:$0xff]
    %v601 = vld [vmem:[#allocation2 + $0x168] sm:$0xff]
    %v602 = vld [vmem:[#allocation2 + $0x170] sm:$0xff]
    %v603 = vld [vmem:[#allocation2 + $0x178] sm:$0xff]
    %v604 = vld [vmem:[#allocation2 + $0x180] sm:$0xff]
    %v605 = vld [vmem:[#allocation2 + $0x188] sm:$0xff]
    %v606 = vld [vmem:[#allocation2 + $0x190] sm:$0xff]
    %v607 = vld [vmem:[#allocation2 + $0x198] sm:$0xff]
    %v608 = vld [vmem:[#allocation2 + $0x1a0] sm:$0xff]
    %v609 = vld [vmem:[#allocation2 + $0x1a8] sm:$0xff]
    %v610 = vld [vmem:[#allocation2 + $0x1b0] sm:$0xff]
    %v611 = vld [vmem:[#allocation2 + $0x1b8] sm:$0xff]
    %v612 = vld [vmem:[#allocation2 + $0x1c0] sm:$0xff]
    %v613 = vld [vmem:[#allocation2 + $0x1c8] sm:$0xff]
    %v614 = vld [vmem:[#allocation2 + $0x1d0] sm:$0xff]
    %v615 = vld [vmem:[#allocation2 + $0x1d8] sm:$0xff]
    %v616 = vld [vmem:[#allocation2 + $0x1e0] sm:$0xff]
    %v617 = vld [vmem:[#allocation2 + $0x1e8] sm:$0xff]
    %v618 = vld [vmem:[#allocation2 + $0x1f0] sm:$0xff]
    %v619 = vld [vmem:[#allocation2 + $0x1f8] sm:$0xff]
    %v620 = vld [vmem:[#allocation2 + $0x200] sm:$0xff]
    %v621 = vld [vmem:[#allocation2 + $0x208] sm:$0xff]
    %v622 = vld [vmem:[#allocation2 + $0x210] sm:$0xff]
    %v623 = vld [vmem:[#allocation2 + $0x218] sm:$0xff]
    %v624 = vld [vmem:[#allocation2 + $0x220] sm:$0xff]
    %v625 = vld [vmem:[#allocation2 + $0x228] sm:$0xff]
    %v626 = vld [vmem:[#allocation2 + $0x230] sm:$0xff]
    %v627 = vld [vmem:[#allocation2 + $0x238] sm:$0xff]
    %v628 = vld [vmem:[#allocation2 + $0x240] sm:$0xff]
    %v629 = vld [vmem:[#allocation2 + $0x248] sm:$0xff]
    %v630 = vld [vmem:[#allocation2 + $0x250] sm:$0xff]
    %v631 = vld [vmem:[#allocation2 + $0x258] sm:$0xff]
    %v632 = vld [vmem:[#allocation2 + $0x260] sm:$0xff]
    %v633 = vld [vmem:[#allocation2 + $0x268] sm:$0xff]
    %v634 = vld [vmem:[#allocation2 + $0x270] sm:$0xff]
    %v635 = vld [vmem:[#allocation2 + $0x278] sm:$0xff]
    %v636 = vld [vmem:[#allocation2 + $0x280] sm:$0xff]
    %v637 = vld [vmem:[#allocation2 + $0x288] sm:$0xff]
    %v638 = vld [vmem:[#allocation2 + $0x290] sm:$0xff]
    %v639 = vld [vmem:[#allocation2 + $0x298] sm:$0xff]
    %v640 = vld [vmem:[#allocation2 + $0x2a0] sm:$0xff]
    %v641 = vld [vmem:[#allocation2 + $0x2a8] sm:$0xff]
    %v642 = vld [vmem:[#allocation2 + $0x2b0] sm:$0xff]
    %v643 = vld [vmem:[#allocation2 + $0x2b8] sm:$0xff]
    %v644 = vld [vmem:[#allocation2 + $0x2c0] sm:$0xff]
    %v645 = vld [vmem:[#allocation2 + $0x2c8] sm:$0xff]
    %v646 = vld [vmem:[#allocation2 + $0x2d0] sm:$0xff]
    %v647 = vld [vmem:[#allocation2 + $0x2d8] sm:$0xff]
    %v648 = vld [vmem:[#allocation2 + $0x2e0] sm:$0xff]
    %v649 = vld [vmem:[#allocation2 + $0x2e8] sm:$0xff]
    %v650 = vld [vmem:[#allocation2 + $0x2f0] sm:$0xff]
    %v651 = vld [vmem:[#allocation2 + $0x2f8] sm:$0xff]
    %v652 = vld [vmem:[#allocation2 + $0x300] sm:$0xff]
    %v653 = vld [vmem:[#allocation2 + $0x308] sm:$0xff]
    %v654 = vld [vmem:[#allocation2 + $0x310] sm:$0xff]
    %v655 = vld [vmem:[#allocation2 + $0x318] sm:$0xff]
    %v656 = vld [vmem:[#allocation2 + $0x320] sm:$0xff]
    %v657 = vld [vmem:[#allocation2 + $0x328] sm:$0xff]
    %v658 = vld [vmem:[#allocation2 + $0x330] sm:$0xff]
    %v659 = vld [vmem:[#allocation2 + $0x338] sm:$0xff]
    %v660 = vld [vmem:[#allocation2 + $0x340] sm:$0xff]
    %v661 = vld [vmem:[#allocation2 + $0x348] sm:$0xff]
    %v662 = vld [vmem:[#allocation2 + $0x350] sm:$0xff]
    %v663 = vld [vmem:[#allocation2 + $0x358] sm:$0xff]
    %v664 = vld [vmem:[#allocation2 + $0x360] sm:$0xff]
    %v665 = vld [vmem:[#allocation2 + $0x368] sm:$0xff]
    %v666 = vld [vmem:[#allocation2 + $0x370] sm:$0xff]
    %v667 = vld [vmem:[#allocation2 + $0x378] sm:$0xff]
    %v668 = vld [vmem:[#allocation2 + $0x380] sm:$0xff]
    %v669 = vld [vmem:[#allocation2 + $0x388] sm:$0xff]
    %v670 = vld [vmem:[#allocation2 + $0x390] sm:$0xff]
    %v671 = vld [vmem:[#allocation2 + $0x398] sm:$0xff]
    %v672 = vld [vmem:[#allocation2 + $0x3a0] sm:$0xff]
    %v673 = vld [vmem:[#allocation2 + $0x3a8] sm:$0xff]
    %v674 = vld [vmem:[#allocation2 + $0x3b0] sm:$0xff]
    %v675 = vld [vmem:[#allocation2 + $0x3b8] sm:$0xff]
    %v676 = vld [vmem:[#allocation2 + $0x3c0] sm:$0xff]
    %v677 = vld [vmem:[#allocation2 + $0x3c8] sm:$0xff]
    %v678 = vld [vmem:[#allocation2 + $0x3d0] sm:$0xff]
    %v679 = vld [vmem:[#allocation2 + $0x3d8] sm:$0xff]
    %v680 = vld [vmem:[#allocation2 + $0x3e0] sm:$0xff]
    %v681 = vld [vmem:[#allocation2 + $0x3e8] sm:$0xff]
    %v682 = vld [vmem:[#allocation2 + $0x3f0] sm:$0xff]
    %v683 = vld [vmem:[#allocation2 + $0x3f8] sm:$0xff]
    %v684 = vld [vmem:[#allocation2 + $0x400] sm:$0xff]
    %v685 = vld [vmem:[#allocation2 + $0x408] sm:$0xff]
    %v686 = vld [vmem:[#allocation2 + $0x410] sm:$0xff]
    %v687 = vld [vmem:[#allocation2 + $0x418] sm:$0xff]
    %v688 = vld [vmem:[#allocation2 + $0x420] sm:$0xff]
    %v689 = vld [vmem:[#allocation2 + $0x428] sm:$0xff]
    %v690 = vld [vmem:[#allocation2 + $0x430] sm:$0xff]
    %v691 = vld [vmem:[#allocation2 + $0x438] sm:$0xff]
    %v692 = vld [vmem:[#allocation2 + $0x440] sm:$0xff]
    %v693 = vld [vmem:[#allocation2 + $0x448] sm:$0xff]
    %v694 = vld [vmem:[#allocation2 + $0x450] sm:$0xff]
    %v695 = vld [vmem:[#allocation2 + $0x458] sm:$0xff]
    %v696 = vld [vmem:[#allocation2 + $0x460] sm:$0xff]
    %v697 = vld [vmem:[#allocation2 + $0x468] sm:$0xff]
    %v698 = vld [vmem:[#allocation2 + $0x470] sm:$0xff]
    %v699 = vld [vmem:[#allocation2 + $0x478] sm:$0xff]
    %v700 = vld [vmem:[#allocation2 + $0x480] sm:$0xff]
    %v701 = vld [vmem:[#allocation2 + $0x488] sm:$0xff]
    %v702 = vld [vmem:[#allocation2 + $0x490] sm:$0xff]
    %v703 = vld [vmem:[#allocation2 + $0x498] sm:$0xff]
    %v704 = vld [vmem:[#allocation2 + $0x4a0] sm:$0xff]
    %v705 = vld [vmem:[#allocation2 + $0x4a8] sm:$0xff]
    %v706 = vld [vmem:[#allocation2 + $0x4b0] sm:$0xff]
    %v707 = vld [vmem:[#allocation2 + $0x4b8] sm:$0xff]
    %v708 = vld [vmem:[#allocation2 + $0x4c0] sm:$0xff]
    %v709 = vld [vmem:[#allocation2 + $0x4c8] sm:$0xff]
    %v710 = vld [vmem:[#allocation2 + $0x4d0] sm:$0xff]
    %v711 = vld [vmem:[#allocation2 + $0x4d8] sm:$0xff]
    %v712 = vld [vmem:[#allocation2 + $0x4e0] sm:$0xff]
    %v713 = vld [vmem:[#allocation2 + $0x4e8] sm:$0xff]
    %v714 = vld [vmem:[#allocation2 + $0x4f0] sm:$0xff]
    %v715 = vld [vmem:[#allocation2 + $0x4f8] sm:$0xff]
    %v716 = vld [vmem:[#allocation2 + $0x500] sm:$0xff]
    %v717 = vld [vmem:[#allocation2 + $0x508] sm:$0xff]
    %v718 = vld [vmem:[#allocation2 + $0x510] sm:$0xff]
    %v719 = vld [vmem:[#allocation2 + $0x518] sm:$0xff]
    %v720 = vld [vmem:[#allocation2 + $0x520] sm:$0xff]
    %v721 = vld [vmem:[#allocation2 + $0x528] sm:$0xff]
    %v722 = vld [vmem:[#allocation2 + $0x530] sm:$0xff]
    %v723 = vld [vmem:[#allocation2 + $0x538] sm:$0xff]
    %v724 = vld [vmem:[#allocation2 + $0x540] sm:$0xff]
    %v725 = vld [vmem:[#allocation2 + $0x548] sm:$0xff]
    %v726 = vld [vmem:[#allocation2 + $0x550] sm:$0xff]
    %v727 = vld [vmem:[#allocation2 + $0x558] sm:$0xff]
    %v728 = vld [vmem:[#allocation2 + $0x560] sm:$0xff]
    %v729 = vld [vmem:[#allocation2 + $0x568] sm:$0xff]
    %v730 = vld [vmem:[#allocation2 + $0x570] sm:$0xff]
    %v731 = vld [vmem:[#allocation2 + $0x578] sm:$0xff]
    %v732 = vld [vmem:[#allocation2 + $0x580] sm:$0xff]
    %v733 = vld [vmem:[#allocation2 + $0x588] sm:$0xff]
    %v734 = vld [vmem:[#allocation2 + $0x590] sm:$0xff]
    %v735 = vld [vmem:[#allocation2 + $0x598] sm:$0xff]
    %v736 = vld [vmem:[#allocation2 + $0x5a0] sm:$0xff]
    %v737 = vld [vmem:[#allocation2 + $0x5a8] sm:$0xff]
    %v738 = vld [vmem:[#allocation2 + $0x5b0] sm:$0xff]
    %v739 = vld [vmem:[#allocation2 + $0x5b8] sm:$0xff]
    %v740 = vld [vmem:[#allocation2 + $0x5c0] sm:$0xff]
    %v741 = vld [vmem:[#allocation2 + $0x5c8] sm:$0xff]
    %v742 = vld [vmem:[#allocation2 + $0x5d0] sm:$0xff]
    %v743 = vld [vmem:[#allocation2 + $0x5d8] sm:$0xff]
    %v744 = vld [vmem:[#allocation2 + $0x5e0] sm:$0xff]
    %v745 = vld [vmem:[#allocation2 + $0x5e8] sm:$0xff]
    %v746 = vld [vmem:[#allocation2 + $0x5f0] sm:$0xff]
    %v747 = vld [vmem:[#allocation2 + $0x5f8] sm:$0xff]
    %v748 = vld [vmem:[#allocation2 + $0x600] sm:$0xff]
    %v749 = vld [vmem:[#allocation2 + $0x608] sm:$0xff]
    %v750 = vld [vmem:[#allocation2 + $0x610] sm:$0xff]
    %v751 = vld [vmem:[#allocation2 + $0x618] sm:$0xff]
    %v752 = vld [vmem:[#allocation2 + $0x620] sm:$0xff]
    %v753 = vld [vmem:[#allocation2 + $0x628] sm:$0xff]
    %v754 = vld [vmem:[#allocation2 + $0x630] sm:$0xff]
    %v755 = vld [vmem:[#allocation2 + $0x638] sm:$0xff]
    %756 = vmatprep.subr.mxu0 %v557
    %757 = vmatpush1.msra.mxu0 %v556
    %758 = vmatprep.subr.mxu0 %v565
    %759 = vmatpush1.msra.mxu0 %v564
    %760 = vmatprep.subr.mxu0 %v573
    %761 = vmatpush1.msra.mxu0 %v572
    %762 = vmatprep.subr.mxu0 %v581
    %763 = vmatpush1.msra.mxu0 %v580
    %764 = vmatprep.subr.mxu0 %v589
    %765 = vmatpush1.msra.mxu0 %v588
    %766 = vmatprep.subr.mxu0 %v597
    %767 = vmatpush1.msra.mxu0 %v596
    %768 = vmatprep.subr.mxu0 %v605
    %769 = vmatpush1.msra.mxu0 %v604
    %770 = vmatprep.subr.mxu0 %v613
    %771 = vmatpush1.msra.mxu0 %v612
    %772 = vmatprep.subr.mxu0 %v621
    %773 = vmatpush1.msra.mxu0 %v620
    %774 = vmatprep.subr.mxu0 %v629
    %775 = vmatpush1.msra.mxu0 %v628
    %776 = vmatprep.subr.mxu0 %v637
    %777 = vmatpush1.msra.mxu0 %v636
    %778 = vmatprep.subr.mxu0 %v645
    %779 = vmatpush1.msra.mxu0 %v644
    %780 = vmatprep.subr.mxu0 %v653
    %781 = vmatpush1.msra.mxu0 %v652
    %782 = vmatprep.subr.mxu0 %v661
    %783 = vmatpush1.msra.mxu0 %v660
    %784 = vmatprep.subr.mxu0 %v669
    %785 = vmatpush1.msra.mxu0 %v668
    %786 = vmatprep.subr.mxu0 %v677
    %787 = vmatpush1.msra.mxu0 %v676
    %788 = vmatprep.subr.mxu0 %v685
    %789 = vmatpush1.msra.mxu0 %v684
    %790 = vmatprep.subr.mxu0 %v693
    %791 = vmatpush1.msra.mxu0 %v692
    %792 = vmatprep.subr.mxu0 %v701
    %793 = vmatpush1.msra.mxu0 %v700
    %794 = vmatprep.subr.mxu0 %v709
    %795 = vmatpush1.msra.mxu0 %v708
    %796 = vmatprep.subr.mxu0 %v717
    %797 = vmatpush1.msra.mxu0 %v716
    %798 = vmatprep.subr.mxu0 %v725
    %799 = vmatpush1.msra.mxu0 %v724
    %800 = vmatprep.subr.mxu0 %v733
    %801 = vmatpush1.msra.mxu0 %v732
    %802 = vmatprep.subr.mxu0 %v741
    %803 = vmatpush1.msra.mxu0 %v740
    %804 = vmatprep.subr.mxu0 %v749
    %805 = vmatpush1.msra.mxu0 %v748
    %806 = vmatprep.subr.mxu0 0.0
    %807 = vmatpush1.msra.mxu0 0.0
    %808 = vmatprep.subr.mxu0 0.0
    %809 = vmatpush1.msra.mxu0 0.0
    %810 = vmatprep.subr.mxu0 0.0
    %811 = vmatpush1.msra.mxu0 0.0
    %812 = vmatprep.subr.mxu0 0.0
    %813 = vmatpush1.msra.mxu0 0.0
    %814 = vmatprep.subr.mxu0 0.0
    %815 = vmatpush1.msra.mxu0 0.0
    %816 = vmatprep.subr.mxu0 0.0
    %817 = vmatpush1.msra.mxu0 0.0
    %818 = vmatprep.subr.mxu0 0.0
    %819 = vmatpush1.msra.mxu0 0.0
    %820 = vmatprep.mubr.f32.mxu0 %v270
    %821 = vmatmul.mubr.f32.gmra.mrb[0].mxu0 %v66
    %v822 = vpop.f32.mrb[0].mxu0
    %v823 = vadd.f32 0.0, %v822
    %v824 = vpop.f32.mrb[0].mxu0
    %v825 = vadd.f32 0.0, %v824
    %826 = vdwg.mxu0
    %827 = vmatprep.subr.mxu0 %v559
    %828 = vmatpush1.msra.mxu0 %v558
    %829 = vmatprep.subr.mxu0 %v567
    %830 = vmatpush1.msra.mxu0 %v566
    %831 = vmatprep.subr.mxu0 %v575
    %832 = vmatpush1.msra.mxu0 %v574
    %833 = vmatprep.subr.mxu0 %v583
    %834 = vmatpush1.msra.mxu0 %v582
    %835 = vmatprep.subr.mxu0 %v591
    %836 = vmatpush1.msra.mxu0 %v590
    %837 = vmatprep.subr.mxu0 %v599
    %838 = vmatpush1.msra.mxu0 %v598
    %839 = vmatprep.subr.mxu0 %v607
    %840 = vmatpush1.msra.mxu0 %v606
    %841 = vmatprep.subr.mxu0 %v615
    %842 = vmatpush1.msra.mxu0 %v614
    %843 = vmatprep.subr.mxu0 %v623
    %844 = vmatpush1.msra.mxu0 %v622
    %845 = vmatprep.subr.mxu0 %v631
    %846 = vmatpush1.msra.mxu0 %v630
    %847 = vmatprep.subr.mxu0 %v639
    %848 = vmatpush1.msra.mxu0 %v638
    %849 = vmatprep.subr.mxu0 %v647
    %850 = vmatpush1.msra.mxu0 %v646
    %851 = vmatprep.subr.mxu0 %v655
    %852 = vmatpush1.msra.mxu0 %v654
    %853 = vmatprep.subr.mxu0 %v663
    %854 = vmatpush1.msra.mxu0 %v662
    %855 = vmatprep.subr.mxu0 %v671
    %856 = vmatpush1.msra.mxu0 %v670
    %857 = vmatprep.subr.mxu0 %v679
    %858 = vmatpush1.msra.mxu0 %v678
    %859 = vmatprep.subr.mxu0 %v687
    %860 = vmatpush1.msra.mxu0 %v686
    %861 = vmatprep.subr.mxu0 %v695
    %862 = vmatpush1.msra.mxu0 %v694
    %863 = vmatprep.subr.mxu0 %v703
    %864 = vmatpush1.msra.mxu0 %v702
    %865 = vmatprep.subr.mxu0 %v711
    %866 = vmatpush1.msra.mxu0 %v710
    %867 = vmatprep.subr.mxu0 %v719
    %868 = vmatpush1.msra.mxu0 %v718
    %869 = vmatprep.subr.mxu0 %v727
    %870 = vmatpush1.msra.mxu0 %v726
    %871 = vmatprep.subr.mxu0 %v735
    %872 = vmatpush1.msra.mxu0 %v734
    %873 = vmatprep.subr.mxu0 %v743
    %874 = vmatpush1.msra.mxu0 %v742
    %875 = vmatprep.subr.mxu0 %v751
    %876 = vmatpush1.msra.mxu0 %v750
    %877 = vmatprep.subr.mxu0 0.0
    %878 = vmatpush1.msra.mxu0 0.0
    %879 = vmatprep.subr.mxu0 0.0
    %880 = vmatpush1.msra.mxu0 0.0
    %881 = vmatprep.subr.mxu0 0.0
    %882 = vmatpush1.msra.mxu0 0.0
    %883 = vmatprep.subr.mxu0 0.0
    %884 = vmatpush1.msra.mxu0 0.0
    %885 = vmatprep.subr.mxu0 0.0
    %886 = vmatpush1.msra.mxu0 0.0
    %887 = vmatprep.subr.mxu0 0.0
    %888 = vmatpush1.msra.mxu0 0.0
    %889 = vmatprep.subr.mxu0 0.0
    %890 = vmatpush1.msra.mxu0 0.0
    %891 = vmatprep.mubr.f32.mxu0 %v270
    %892 = vmatmul.mubr.f32.gmra.mrb[0].mxu0 %v66
    %v893 = vpop.f32.mrb[0].mxu0
    %v894 = vadd.f32 0.0, %v893
    %v895 = vpop.f32.mrb[0].mxu0
    %v896 = vadd.f32 0.0, %v895
    %897 = vdwg.mxu0
    %898 = vmatprep.subr.mxu0 %v561
    %899 = vmatpush1.msra.mxu0 %v560
    %900 = vmatprep.subr.mxu0 %v569
    %901 = vmatpush1.msra.mxu0 %v568
    %902 = vmatprep.subr.mxu0 %v577
    %903 = vmatpush1.msra.mxu0 %v576
    %904 = vmatprep.subr.mxu0 %v585
    %905 = vmatpush1.msra.mxu0 %v584
    %906 = vmatprep.subr.mxu0 %v593
    %907 = vmatpush1.msra.mxu0 %v592
    %908 = vmatprep.subr.mxu0 %v601
    %909 = vmatpush1.msra.mxu0 %v600
    %910 = vmatprep.subr.mxu0 %v609
    %911 = vmatpush1.msra.mxu0 %v608
    %912 = vmatprep.subr.mxu0 %v617
    %913 = vmatpush1.msra.mxu0 %v616
    %914 = vmatprep.subr.mxu0 %v625
    %915 = vmatpush1.msra.mxu0 %v624
    %916 = vmatprep.subr.mxu0 %v633
    %917 = vmatpush1.msra.mxu0 %v632
    %918 = vmatprep.subr.mxu0 %v641
    %919 = vmatpush1.msra.mxu0 %v640
    %920 = vmatprep.subr.mxu0 %v649
    %921 = vmatpush1.msra.mxu0 %v648
    %922 = vmatprep.subr.mxu0 %v657
    %923 = vmatpush1.msra.mxu0 %v656
    %924 = vmatprep.subr.mxu0 %v665
    %925 = vmatpush1.msra.mxu0 %v664
    %926 = vmatprep.subr.mxu0 %v673
    %927 = vmatpush1.msra.mxu0 %v672
    %928 = vmatprep.subr.mxu0 %v681
    %929 = vmatpush1.msra.mxu0 %v680
    %930 = vmatprep.subr.mxu0 %v689
    %931 = vmatpush1.msra.mxu0 %v688
    %932 = vmatprep.subr.mxu0 %v697
    %933 = vmatpush1.msra.mxu0 %v696
    %934 = vmatprep.subr.mxu0 %v705
    %935 = vmatpush1.msra.mxu0 %v704
    %936 = vmatprep.subr.mxu0 %v713
    %937 = vmatpush1.msra.mxu0 %v712
    %938 = vmatprep.subr.mxu0 %v721
    %939 = vmatpush1.msra.mxu0 %v720
    %940 = vmatprep.subr.mxu0 %v729
    %941 = vmatpush1.msra.mxu0 %v728
    %942 = vmatprep.subr.mxu0 %v737
    %943 = vmatpush1.msra.mxu0 %v736
    %944 = vmatprep.subr.mxu0 %v745
    %945 = vmatpush1.msra.mxu0 %v744
    %946 = vmatprep.subr.mxu0 %v753
    %947 = vmatpush1.msra.mxu0 %v752
    %948 = vmatprep.subr.mxu0 0.0
    %949 = vmatpush1.msra.mxu0 0.0
    %950 = vmatprep.subr.mxu0 0.0
    %951 = vmatpush1.msra.mxu0 0.0
    %952 = vmatprep.subr.mxu0 0.0
    %953 = vmatpush1.msra.mxu0 0.0
    %954 = vmatprep.subr.mxu0 0.0
    %955 = vmatpush1.msra.mxu0 0.0
    %956 = vmatprep.subr.mxu0 0.0
    %957 = vmatpush1.msra.mxu0 0.0
    %958 = vmatprep.subr.mxu0 0.0
    %959 = vmatpush1.msra.mxu0 0.0
    %960 = vmatprep.subr.mxu0 0.0
    %961 = vmatpush1.msra.mxu0 0.0
    %962 = vmatprep.mubr.f32.mxu0 %v270
    %963 = vmatmul.mubr.f32.gmra.mrb[0].mxu0 %v66
    %v964 = vpop.f32.mrb[0].mxu0
    %v965 = vadd.f32 0.0, %v964
    %v966 = vpop.f32.mrb[0].mxu0
    %v967 = vadd.f32 0.0, %v966
    %968 = vdwg.mxu0
    %969 = vmatprep.subr.mxu0 %v563
    %970 = vmatpush1.msra.mxu0 %v562
    %971 = vmatprep.subr.mxu0 %v571
    %972 = vmatpush1.msra.mxu0 %v570
    %973 = vmatprep.subr.mxu0 %v579
    %974 = vmatpush1.msra.mxu0 %v578
    %975 = vmatprep.subr.mxu0 %v587
    %976 = vmatpush1.msra.mxu0 %v586
    %977 = vmatprep.subr.mxu0 %v595
    %978 = vmatpush1.msra.mxu0 %v594
    %979 = vmatprep.subr.mxu0 %v603
    %980 = vmatpush1.msra.mxu0 %v602
    %981 = vmatprep.subr.mxu0 %v611
    %982 = vmatpush1.msra.mxu0 %v610
    %983 = vmatprep.subr.mxu0 %v619
    %984 = vmatpush1.msra.mxu0 %v618
    %985 = vmatprep.subr.mxu0 %v627
    %986 = vmatpush1.msra.mxu0 %v626
    %987 = vmatprep.subr.mxu0 %v635
    %988 = vmatpush1.msra.mxu0 %v634
    %989 = vmatprep.subr.mxu0 %v643
    %990 = vmatpush1.msra.mxu0 %v642
    %991 = vmatprep.subr.mxu0 %v651
    %992 = vmatpush1.msra.mxu0 %v650
    %993 = vmatprep.subr.mxu0 %v659
    %994 = vmatpush1.msra.mxu0 %v658
    %995 = vmatprep.subr.mxu0 %v667
    %996 = vmatpush1.msra.mxu0 %v666
    %997 = vmatprep.subr.mxu0 %v675
    %998 = vmatpush1.msra.mxu0 %v674
    %999 = vmatprep.subr.mxu0 %v683
    %1000 = vmatpush1.msra.mxu0 %v682
    %1001 = vmatprep.subr.mxu0 %v691
    %1002 = vmatpush1.msra.mxu0 %v690
    %1003 = vmatprep.subr.mxu0 %v699
    %1004 = vmatpush1.msra.mxu0 %v698
    %1005 = vmatprep.subr.mxu0 %v707
    %1006 = vmatpush1.msra.mxu0 %v706
    %1007 = vmatprep.subr.mxu0 %v715
    %1008 = vmatpush1.msra.mxu0 %v714
    %1009 = vmatprep.subr.mxu0 %v723
    %1010 = vmatpush1.msra.mxu0 %v722
    %1011 = vmatprep.subr.mxu0 %v731
    %1012 = vmatpush1.msra.mxu0 %v730
    %1013 = vmatprep.subr.mxu0 %v739
    %1014 = vmatpush1.msra.mxu0 %v738
    %1015 = vmatprep.subr.mxu0 %v747
    %1016 = vmatpush1.msra.mxu0 %v746
    %1017 = vmatprep.subr.mxu0 %v755
    %1018 = vmatpush1.msra.mxu0 %v754
    %1019 = vmatprep.subr.mxu0 0.0
    %1020 = vmatpush1.msra.mxu0 0.0
    %1021 = vmatprep.subr.mxu0 0.0
    %1022 = vmatpush1.msra.mxu0 0.0
    %1023 = vmatprep.subr.mxu0 0.0
    %1024 = vmatpush1.msra.mxu0 0.0
    %1025 = vmatprep.subr.mxu0 0.0
    %1026 = vmatpush1.msra.mxu0 0.0
    %1027 = vmatprep.subr.mxu0 0.0
    %1028 = vmatpush1.msra.mxu0 0.0
    %1029 = vmatprep.subr.mxu0 0.0
    %1030 = vmatpush1.msra.mxu0 0.0
    %1031 = vmatprep.subr.mxu0 0.0
    %1032 = vmatpush1.msra.mxu0 0.0
    %1033 = vmatprep.mubr.f32.mxu0 %v270
    %1034 = vmatmul.mubr.f32.gmra.mrb[0].mxu0 %v66
    %v1035 = vpop.f32.mrb[0].mxu0
    %v1036 = vadd.f32 0.0, %v1035
    %v1037 = vpop.f32.mrb[0].mxu0
    %v1038 = vadd.f32 0.0, %v1037
    %1039 = vdwg.mxu0
    %v1040 = vmax.f32 %v339, %v823
    %v1041 = vmax.f32 %v341, %v825
    %v1042 = vmax.f32 %v410, %v894
    %v1043 = vmax.f32 %v412, %v896
    %v1044 = vmax.f32 %v481, %v965
    %v1045 = vmax.f32 %v483, %v967
    %v1046 = vmax.f32 %v552, %v1036
    %v1047 = vmax.f32 %v554, %v1038
    %v1048 = vld [vmem:[%s3] sm:$0xff]
    %v1050 = vlaneseq
    %v1051 = vshrl.u32 %v1050, 7
    %v1052 = vsub.s32 0, %v1051
    %v1053 = vrot.slane %v1048, %v1052
    %v1054 = vlaneseq
    %v1055 = vshrl.u32 %v1054, 7
    %v1056 = vsub.s32 1, %v1055
    %v1057 = vrot.slane %v1048, %v1056
    %v1058 = vlaneseq
    %v1059 = vshrl.u32 %v1058, 7
    %v1060 = vsub.s32 2, %v1059
    %v1061 = vrot.slane %v1048, %v1060
    %v1062 = vlaneseq
    %v1063 = vshrl.u32 %v1062, 7
    %v1064 = vsub.s32 3, %v1063
    %v1065 = vrot.slane %v1048, %v1064
    %v1066 = vlaneseq
    %v1067 = vshrl.u32 %v1066, 7
    %v1068 = vsub.s32 4, %v1067
    %v1069 = vrot.slane %v1048, %v1068
    %v1070 = vlaneseq
    %v1071 = vshrl.u32 %v1070, 7
    %v1072 = vsub.s32 5, %v1071
    %v1073 = vrot.slane %v1048, %v1072
    %v1074 = vlaneseq
    %v1075 = vshrl.u32 %v1074, 7
    %v1076 = vsub.s32 6, %v1075
    %v1077 = vrot.slane %v1048, %v1076
    %v1078 = vlaneseq
    %v1079 = vshrl.u32 %v1078, 7
    %v1080 = vsub.s32 7, %v1079
    %v1081 = vrot.slane %v1048, %v1080
    %v1090 = vadd.f32 %v1040, %v1053
    %v1091 = vadd.f32 %v1041, %v1057
    %v1092 = vadd.f32 %v1042, %v1061
    %v1093 = vadd.f32 %v1043, %v1065
    %v1094 = vadd.f32 %v1044, %v1069
    %v1095 = vadd.f32 %v1045, %v1073
    %v1096 = vadd.f32 %v1046, %v1077
    %v1097 = vadd.f32 %v1047, %v1081
    %v1098 = vtanh.pop %v1090
    %v1099 = vtanh.pop %v1091
    %v1100 = vtanh.pop %v1092
    %v1101 = vtanh.pop %v1093
    %v1102 = vtanh.pop %v1094
    %v1103 = vtanh.pop %v1095
    %v1104 = vtanh.pop %v1096
    %v1105 = vtanh.pop %v1097
    %v1106 = vld [vmem:[%s4] sm:$0xff]
    %v1107 = vld [vmem:[%s4 + $0x8] sm:$0xff]
    %v1108 = vld [vmem:[%s4 + $0x10] sm:$0xff]
    %v1109 = vld [vmem:[%s4 + $0x18] sm:$0xff]
    %v1110 = vld [vmem:[%s4 + $0x20] sm:$0xff]
    %v1111 = vld [vmem:[%s4 + $0x28] sm:$0xff]
    %v1112 = vld [vmem:[%s4 + $0x30] sm:$0xff]
    %v1113 = vld [vmem:[%s4 + $0x38] sm:$0xff]
    %v1114 = vld [vmem:[%s4 + $0x40] sm:$0xff]
    %v1115 = vld [vmem:[%s4 + $0x48] sm:$0xff]
    %v1116 = vld [vmem:[%s4 + $0x50] sm:$0xff]
    %v1117 = vld [vmem:[%s4 + $0x58] sm:$0xff]
    %v1118 = vld [vmem:[%s4 + $0x60] sm:$0xff]
    %v1119 = vld [vmem:[%s4 + $0x68] sm:$0xff]
    %v1120 = vld [vmem:[%s4 + $0x70] sm:$0xff]
    %v1121 = vld [vmem:[%s4 + $0x78] sm:$0xff]
    %v1122 = vld [vmem:[%s4 + $0x80] sm:$0xff]
    %v1123 = vld [vmem:[%s4 + $0x88] sm:$0xff]
    %v1124 = vld [vmem:[%s4 + $0x90] sm:$0xff]
    %v1125 = vld [vmem:[%s4 + $0x98] sm:$0xff]
    %v1126 = vld [vmem:[%s4 + $0xa0] sm:$0xff]
    %v1127 = vld [vmem:[%s4 + $0xa8] sm:$0xff]
    %v1128 = vld [vmem:[%s4 + $0xb0] sm:$0xff]
    %v1129 = vld [vmem:[%s4 + $0xb8] sm:$0xff]
    %v1130 = vld [vmem:[%s4 + $0xc0] sm:$0xff]
    %v1131 = vld [vmem:[%s4 + $0xc8] sm:$0xff]
    %v1132 = vld [vmem:[%s4 + $0xd0] sm:$0xff]
    %v1133 = vld [vmem:[%s4 + $0xd8] sm:$0xff]
    %v1134 = vld [vmem:[%s4 + $0xe0] sm:$0xff]
    %v1135 = vld [vmem:[%s4 + $0xe8] sm:$0xff]
    %v1136 = vld [vmem:[%s4 + $0xf0] sm:$0xff]
    %v1137 = vld [vmem:[%s4 + $0xf8] sm:$0xff]
    %v1138 = vld [vmem:[%s4 + $0x100] sm:$0xff]
    %v1139 = vld [vmem:[%s4 + $0x108] sm:$0xff]
    %v1140 = vld [vmem:[%s4 + $0x110] sm:$0xff]
    %v1141 = vld [vmem:[%s4 + $0x118] sm:$0xff]
    %v1142 = vld [vmem:[%s4 + $0x120] sm:$0xff]
    %v1143 = vld [vmem:[%s4 + $0x128] sm:$0xff]
    %v1144 = vld [vmem:[%s4 + $0x130] sm:$0xff]
    %v1145 = vld [vmem:[%s4 + $0x138] sm:$0xff]
    %v1146 = vld [vmem:[%s4 + $0x140] sm:$0xff]
    %v1147 = vld [vmem:[%s4 + $0x148] sm:$0xff]
    %v1148 = vld [vmem:[%s4 + $0x150] sm:$0xff]
    %v1149 = vld [vmem:[%s4 + $0x158] sm:$0xff]
    %v1150 = vld [vmem:[%s4 + $0x160] sm:$0xff]
    %v1151 = vld [vmem:[%s4 + $0x168] sm:$0xff]
    %v1152 = vld [vmem:[%s4 + $0x170] sm:$0xff]
    %v1153 = vld [vmem:[%s4 + $0x178] sm:$0xff]
    %v1154 = vld [vmem:[%s4 + $0x180] sm:$0xff]
    %v1155 = vld [vmem:[%s4 + $0x188] sm:$0xff]
    %v1156 = vld [vmem:[%s4 + $0x190] sm:$0xff]
    %v1157 = vld [vmem:[%s4 + $0x198] sm:$0xff]
    %v1158 = vld [vmem:[%s4 + $0x1a0] sm:$0xff]
    %v1159 = vld [vmem:[%s4 + $0x1a8] sm:$0xff]
    %v1160 = vld [vmem:[%s4 + $0x1b0] sm:$0xff]
    %v1161 = vld [vmem:[%s4 + $0x1b8] sm:$0xff]
    %v1162 = vld [vmem:[%s4 + $0x1c0] sm:$0xff]
    %v1163 = vld [vmem:[%s4 + $0x1c8] sm:$0xff]
    %v1164 = vld [vmem:[%s4 + $0x1d0] sm:$0xff]
    %v1165 = vld [vmem:[%s4 + $0x1d8] sm:$0xff]
    %v1166 = vld [vmem:[%s4 + $0x1e0] sm:$0xff]
    %v1167 = vld [vmem:[%s4 + $0x1e8] sm:$0xff]
    %v1168 = vld [vmem:[%s4 + $0x1f0] sm:$0xff]
    %v1169 = vld [vmem:[%s4 + $0x1f8] sm:$0xff]
    %v1170 = vld [vmem:[%s4 + $0x200] sm:$0xff]
    %v1171 = vld [vmem:[%s4 + $0x208] sm:$0xff]
    %v1172 = vld [vmem:[%s4 + $0x210] sm:$0xff]
    %v1173 = vld [vmem:[%s4 + $0x218] sm:$0xff]
    %v1174 = vld [vmem:[%s4 + $0x220] sm:$0xff]
    %v1175 = vld [vmem:[%s4 + $0x228] sm:$0xff]
    %v1176 = vld [vmem:[%s4 + $0x230] sm:$0xff]
    %v1177 = vld [vmem:[%s4 + $0x238] sm:$0xff]
    %v1178 = vld [vmem:[%s4 + $0x240] sm:$0xff]
    %v1179 = vld [vmem:[%s4 + $0x248] sm:$0xff]
    %v1180 = vld [vmem:[%s4 + $0x250] sm:$0xff]
    %v1181 = vld [vmem:[%s4 + $0x258] sm:$0xff]
    %v1182 = vld [vmem:[%s4 + $0x260] sm:$0xff]
    %v1183 = vld [vmem:[%s4 + $0x268] sm:$0xff]
    %v1184 = vld [vmem:[%s4 + $0x270] sm:$0xff]
    %v1185 = vld [vmem:[%s4 + $0x278] sm:$0xff]
    %v1186 = vld [vmem:[%s4 + $0x280] sm:$0xff]
    %v1187 = vld [vmem:[%s4 + $0x288] sm:$0xff]
    %v1188 = vld [vmem:[%s4 + $0x290] sm:$0xff]
    %v1189 = vld [vmem:[%s4 + $0x298] sm:$0xff]
    %v1190 = vld [vmem:[%s4 + $0x2a0] sm:$0xff]
    %v1191 = vld [vmem:[%s4 + $0x2a8] sm:$0xff]
    %v1192 = vld [vmem:[%s4 + $0x2b0] sm:$0xff]
    %v1193 = vld [vmem:[%s4 + $0x2b8] sm:$0xff]
    %v1194 = vld [vmem:[%s4 + $0x2c0] sm:$0xff]
    %v1195 = vld [vmem:[%s4 + $0x2c8] sm:$0xff]
    %v1196 = vld [vmem:[%s4 + $0x2d0] sm:$0xff]
    %v1197 = vld [vmem:[%s4 + $0x2d8] sm:$0xff]
    %v1198 = vld [vmem:[%s4 + $0x2e0] sm:$0xff]
    %v1199 = vld [vmem:[%s4 + $0x2e8] sm:$0xff]
    %v1200 = vld [vmem:[%s4 + $0x2f0] sm:$0xff]
    %v1201 = vld [vmem:[%s4 + $0x2f8] sm:$0xff]
    %v1202 = vld [vmem:[%s4 + $0x300] sm:$0xff]
    %v1203 = vld [vmem:[%s4 + $0x308] sm:$0xff]
    %v1204 = vld [vmem:[%s4 + $0x310] sm:$0xff]
    %v1205 = vld [vmem:[%s4 + $0x318] sm:$0xff]
    %v1206 = vld [vmem:[%s4 + $0x320] sm:$0xff]
    %v1207 = vld [vmem:[%s4 + $0x328] sm:$0xff]
    %v1208 = vld [vmem:[%s4 + $0x330] sm:$0xff]
    %v1209 = vld [vmem:[%s4 + $0x338] sm:$0xff]
    %v1210 = vld [vmem:[%s4 + $0x340] sm:$0xff]
    %v1211 = vld [vmem:[%s4 + $0x348] sm:$0xff]
    %v1212 = vld [vmem:[%s4 + $0x350] sm:$0xff]
    %v1213 = vld [vmem:[%s4 + $0x358] sm:$0xff]
    %v1214 = vld [vmem:[%s4 + $0x360] sm:$0xff]
    %v1215 = vld [vmem:[%s4 + $0x368] sm:$0xff]
    %v1216 = vld [vmem:[%s4 + $0x370] sm:$0xff]
    %v1217 = vld [vmem:[%s4 + $0x378] sm:$0xff]
    %v1218 = vld [vmem:[%s4 + $0x380] sm:$0xff]
    %v1219 = vld [vmem:[%s4 + $0x388] sm:$0xff]
    %v1220 = vld [vmem:[%s4 + $0x390] sm:$0xff]
    %v1221 = vld [vmem:[%s4 + $0x398] sm:$0xff]
    %v1222 = vld [vmem:[%s4 + $0x3a0] sm:$0xff]
    %v1223 = vld [vmem:[%s4 + $0x3a8] sm:$0xff]
    %v1224 = vld [vmem:[%s4 + $0x3b0] sm:$0xff]
    %v1225 = vld [vmem:[%s4 + $0x3b8] sm:$0xff]
    %v1226 = vld [vmem:[%s4 + $0x3c0] sm:$0xff]
    %v1227 = vld [vmem:[%s4 + $0x3c8] sm:$0xff]
    %v1228 = vld [vmem:[%s4 + $0x3d0] sm:$0xff]
    %v1229 = vld [vmem:[%s4 + $0x3d8] sm:$0xff]
    %v1230 = vld [vmem:[%s4 + $0x3e0] sm:$0xff]
    %v1231 = vld [vmem:[%s4 + $0x3e8] sm:$0xff]
    %v1232 = vld [vmem:[%s4 + $0x3f0] sm:$0xff]
    %v1233 = vld [vmem:[%s4 + $0x3f8] sm:$0xff]
    %v1234 = vld [vmem:[%s4 + $0x400] sm:$0xff]
    %v1235 = vld [vmem:[%s4 + $0x408] sm:$0xff]
    %v1236 = vld [vmem:[%s4 + $0x410] sm:$0xff]
    %v1237 = vld [vmem:[%s4 + $0x418] sm:$0xff]
    %v1238 = vld [vmem:[%s4 + $0x420] sm:$0xff]
    %v1239 = vld [vmem:[%s4 + $0x428] sm:$0xff]
    %v1240 = vld [vmem:[%s4 + $0x430] sm:$0xff]
    %v1241 = vld [vmem:[%s4 + $0x438] sm:$0xff]
    %v1242 = vld [vmem:[%s4 + $0x440] sm:$0xff]
    %v1243 = vld [vmem:[%s4 + $0x448] sm:$0xff]
    %v1244 = vld [vmem:[%s4 + $0x450] sm:$0xff]
    %v1245 = vld [vmem:[%s4 + $0x458] sm:$0xff]
    %v1246 = vld [vmem:[%s4 + $0x460] sm:$0xff]
    %v1247 = vld [vmem:[%s4 + $0x468] sm:$0xff]
    %v1248 = vld [vmem:[%s4 + $0x470] sm:$0xff]
    %v1249 = vld [vmem:[%s4 + $0x478] sm:$0xff]
    %v1250 = vld [vmem:[%s4 + $0x480] sm:$0xff]
    %v1251 = vld [vmem:[%s4 + $0x488] sm:$0xff]
    %v1252 = vld [vmem:[%s4 + $0x490] sm:$0xff]
    %v1253 = vld [vmem:[%s4 + $0x498] sm:$0xff]
    %v1254 = vld [vmem:[%s4 + $0x4a0] sm:$0xff]
    %v1255 = vld [vmem:[%s4 + $0x4a8] sm:$0xff]
    %v1256 = vld [vmem:[%s4 + $0x4b0] sm:$0xff]
    %v1257 = vld [vmem:[%s4 + $0x4b8] sm:$0xff]
    %v1258 = vld [vmem:[%s4 + $0x4c0] sm:$0xff]
    %v1259 = vld [vmem:[%s4 + $0x4c8] sm:$0xff]
    %v1260 = vld [vmem:[%s4 + $0x4d0] sm:$0xff]
    %v1261 = vld [vmem:[%s4 + $0x4d8] sm:$0xff]
    %v1262 = vld [vmem:[%s4 + $0x4e0] sm:$0xff]
    %v1263 = vld [vmem:[%s4 + $0x4e8] sm:$0xff]
    %v1264 = vld [vmem:[%s4 + $0x4f0] sm:$0xff]
    %v1265 = vld [vmem:[%s4 + $0x4f8] sm:$0xff]
    %v1266 = vld [vmem:[%s4 + $0x500] sm:$0xff]
    %v1267 = vld [vmem:[%s4 + $0x508] sm:$0xff]
    %v1268 = vld [vmem:[%s4 + $0x510] sm:$0xff]
    %v1269 = vld [vmem:[%s4 + $0x518] sm:$0xff]
    %v1270 = vld [vmem:[%s4 + $0x520] sm:$0xff]
    %v1271 = vld [vmem:[%s4 + $0x528] sm:$0xff]
    %v1272 = vld [vmem:[%s4 + $0x530] sm:$0xff]
    %v1273 = vld [vmem:[%s4 + $0x538] sm:$0xff]
    %v1274 = vld [vmem:[%s4 + $0x540] sm:$0xff]
    %v1275 = vld [vmem:[%s4 + $0x548] sm:$0xff]
    %v1276 = vld [vmem:[%s4 + $0x550] sm:$0xff]
    %v1277 = vld [vmem:[%s4 + $0x558] sm:$0xff]
    %v1278 = vld [vmem:[%s4 + $0x560] sm:$0xff]
    %v1279 = vld [vmem:[%s4 + $0x568] sm:$0xff]
    %v1280 = vld [vmem:[%s4 + $0x570] sm:$0xff]
    %v1281 = vld [vmem:[%s4 + $0x578] sm:$0xff]
    %v1282 = vld [vmem:[%s4 + $0x580] sm:$0xff]
    %v1283 = vld [vmem:[%s4 + $0x588] sm:$0xff]
    %v1284 = vld [vmem:[%s4 + $0x590] sm:$0xff]
    %v1285 = vld [vmem:[%s4 + $0x598] sm:$0xff]
    %v1286 = vld [vmem:[%s4 + $0x5a0] sm:$0xff]
    %v1287 = vld [vmem:[%s4 + $0x5a8] sm:$0xff]
    %v1288 = vld [vmem:[%s4 + $0x5b0] sm:$0xff]
    %v1289 = vld [vmem:[%s4 + $0x5b8] sm:$0xff]
    %v1290 = vld [vmem:[%s4 + $0x5c0] sm:$0xff]
    %v1291 = vld [vmem:[%s4 + $0x5c8] sm:$0xff]
    %v1292 = vld [vmem:[%s4 + $0x5d0] sm:$0xff]
    %v1293 = vld [vmem:[%s4 + $0x5d8] sm:$0xff]
    %v1294 = vld [vmem:[%s4 + $0x5e0] sm:$0xff]
    %v1295 = vld [vmem:[%s4 + $0x5e8] sm:$0xff]
    %v1296 = vld [vmem:[%s4 + $0x5f0] sm:$0xff]
    %v1297 = vld [vmem:[%s4 + $0x5f8] sm:$0xff]
    %v1298 = vld [vmem:[%s4 + $0x600] sm:$0xff]
    %v1299 = vld [vmem:[%s4 + $0x608] sm:$0xff]
    %v1300 = vld [vmem:[%s4 + $0x610] sm:$0xff]
    %v1301 = vld [vmem:[%s4 + $0x618] sm:$0xff]
    %v1302 = vld [vmem:[%s4 + $0x620] sm:$0xff]
    %v1303 = vld [vmem:[%s4 + $0x628] sm:$0xff]
    %v1304 = vld [vmem:[%s4 + $0x630] sm:$0xff]
    %v1305 = vld [vmem:[%s4 + $0x638] sm:$0xff]
    %v1306 = vld [vmem:[%s4 + $0x640] sm:$0xff]
    %v1307 = vld [vmem:[%s4 + $0x648] sm:$0xff]
    %v1308 = vld [vmem:[%s4 + $0x650] sm:$0xff]
    %v1309 = vld [vmem:[%s4 + $0x658] sm:$0xff]
    %v1310 = vld [vmem:[%s4 + $0x660] sm:$0xff]
    %v1311 = vld [vmem:[%s4 + $0x668] sm:$0xff]
    %v1312 = vld [vmem:[%s4 + $0x670] sm:$0xff]
    %v1313 = vld [vmem:[%s4 + $0x678] sm:$0xff]
    %v1314 = vld [vmem:[%s4 + $0x680] sm:$0xff]
    %v1315 = vld [vmem:[%s4 + $0x688] sm:$0xff]
    %v1316 = vld [vmem:[%s4 + $0x690] sm:$0xff]
    %v1317 = vld [vmem:[%s4 + $0x698] sm:$0xff]
    %v1318 = vld [vmem:[%s4 + $0x6a0] sm:$0xff]
    %v1319 = vld [vmem:[%s4 + $0x6a8] sm:$0xff]
    %v1320 = vld [vmem:[%s4 + $0x6b0] sm:$0xff]
    %v1321 = vld [vmem:[%s4 + $0x6b8] sm:$0xff]
    %v1322 = vld [vmem:[%s4 + $0x6c0] sm:$0xff]
    %v1323 = vld [vmem:[%s4 + $0x6c8] sm:$0xff]
    %v1324 = vld [vmem:[%s4 + $0x6d0] sm:$0xff]
    %v1325 = vld [vmem:[%s4 + $0x6d8] sm:$0xff]
    %v1326 = vld [vmem:[%s4 + $0x6e0] sm:$0xff]
    %v1327 = vld [vmem:[%s4 + $0x6e8] sm:$0xff]
    %v1328 = vld [vmem:[%s4 + $0x6f0] sm:$0xff]
    %v1329 = vld [vmem:[%s4 + $0x6f8] sm:$0xff]
    %v1330 = vld [vmem:[%s4 + $0x700] sm:$0xff]
    %v1331 = vld [vmem:[%s4 + $0x708] sm:$0xff]
    %v1332 = vld [vmem:[%s4 + $0x710] sm:$0xff]
    %v1333 = vld [vmem:[%s4 + $0x718] sm:$0xff]
    %v1334 = vld [vmem:[%s4 + $0x720] sm:$0xff]
    %v1335 = vld [vmem:[%s4 + $0x728] sm:$0xff]
    %v1336 = vld [vmem:[%s4 + $0x730] sm:$0xff]
    %v1337 = vld [vmem:[%s4 + $0x738] sm:$0xff]
    %v1338 = vld [vmem:[%s4 + $0x740] sm:$0xff]
    %v1339 = vld [vmem:[%s4 + $0x748] sm:$0xff]
    %v1340 = vld [vmem:[%s4 + $0x750] sm:$0xff]
    %v1341 = vld [vmem:[%s4 + $0x758] sm:$0xff]
    %v1342 = vld [vmem:[%s4 + $0x760] sm:$0xff]
    %v1343 = vld [vmem:[%s4 + $0x768] sm:$0xff]
    %v1344 = vld [vmem:[%s4 + $0x770] sm:$0xff]
    %v1345 = vld [vmem:[%s4 + $0x778] sm:$0xff]
    %v1346 = vld [vmem:[%s4 + $0x780] sm:$0xff]
    %v1347 = vld [vmem:[%s4 + $0x788] sm:$0xff]
    %v1348 = vld [vmem:[%s4 + $0x790] sm:$0xff]
    %v1349 = vld [vmem:[%s4 + $0x798] sm:$0xff]
    %v1350 = vld [vmem:[%s4 + $0x7a0] sm:$0xff]
    %v1351 = vld [vmem:[%s4 + $0x7a8] sm:$0xff]
    %v1352 = vld [vmem:[%s4 + $0x7b0] sm:$0xff]
    %v1353 = vld [vmem:[%s4 + $0x7b8] sm:$0xff]
    %v1354 = vld [vmem:[%s4 + $0x7c0] sm:$0xff]
    %v1355 = vld [vmem:[%s4 + $0x7c8] sm:$0xff]
    %v1356 = vld [vmem:[%s4 + $0x7d0] sm:$0xff]
    %v1357 = vld [vmem:[%s4 + $0x7d8] sm:$0xff]
    %v1358 = vld [vmem:[%s4 + $0x7e0] sm:$0xff]
    %v1359 = vld [vmem:[%s4 + $0x7e8] sm:$0xff]
    %v1360 = vld [vmem:[%s4 + $0x7f0] sm:$0xff]
    %v1361 = vld [vmem:[%s4 + $0x7f8] sm:$0xff]
    %v1362 = vld [vmem:[%s4 + $0x800] sm:$0xff]
    %v1363 = vld [vmem:[%s4 + $0x808] sm:$0xff]
    %v1364 = vld [vmem:[%s4 + $0x810] sm:$0xff]
    %v1365 = vld [vmem:[%s4 + $0x818] sm:$0xff]
    %v1366 = vld [vmem:[%s4 + $0x820] sm:$0xff]
    %v1367 = vld [vmem:[%s4 + $0x828] sm:$0xff]
    %v1368 = vld [vmem:[%s4 + $0x830] sm:$0xff]
    %v1369 = vld [vmem:[%s4 + $0x838] sm:$0xff]
    %v1370 = vld [vmem:[%s4 + $0x840] sm:$0xff]
    %v1371 = vld [vmem:[%s4 + $0x848] sm:$0xff]
    %v1372 = vld [vmem:[%s4 + $0x850] sm:$0xff]
    %v1373 = vld [vmem:[%s4 + $0x858] sm:$0xff]
    %v1374 = vld [vmem:[%s4 + $0x860] sm:$0xff]
    %v1375 = vld [vmem:[%s4 + $0x868] sm:$0xff]
    %v1376 = vld [vmem:[%s4 + $0x870] sm:$0xff]
    %v1377 = vld [vmem:[%s4 + $0x878] sm:$0xff]
    %v1378 = vld [vmem:[%s4 + $0x880] sm:$0xff]
    %v1379 = vld [vmem:[%s4 + $0x888] sm:$0xff]
    %v1380 = vld [vmem:[%s4 + $0x890] sm:$0xff]
    %v1381 = vld [vmem:[%s4 + $0x898] sm:$0xff]
    %v1382 = vld [vmem:[%s4 + $0x8a0] sm:$0xff]
    %v1383 = vld [vmem:[%s4 + $0x8a8] sm:$0xff]
    %v1384 = vld [vmem:[%s4 + $0x8b0] sm:$0xff]
    %v1385 = vld [vmem:[%s4 + $0x8b8] sm:$0xff]
    %v1386 = vld [vmem:[%s4 + $0x8c0] sm:$0xff]
    %v1387 = vld [vmem:[%s4 + $0x8c8] sm:$0xff]
    %v1388 = vld [vmem:[%s4 + $0x8d0] sm:$0xff]
    %v1389 = vld [vmem:[%s4 + $0x8d8] sm:$0xff]
    %v1390 = vld [vmem:[%s4 + $0x8e0] sm:$0xff]
    %v1391 = vld [vmem:[%s4 + $0x8e8] sm:$0xff]
    %v1392 = vld [vmem:[%s4 + $0x8f0] sm:$0xff]
    %v1393 = vld [vmem:[%s4 + $0x8f8] sm:$0xff]
    %v1394 = vld [vmem:[%s4 + $0x900] sm:$0xff]
    %v1395 = vld [vmem:[%s4 + $0x908] sm:$0xff]
    %v1396 = vld [vmem:[%s4 + $0x910] sm:$0xff]
    %v1397 = vld [vmem:[%s4 + $0x918] sm:$0xff]
    %v1398 = vld [vmem:[%s4 + $0x920] sm:$0xff]
    %v1399 = vld [vmem:[%s4 + $0x928] sm:$0xff]
    %v1400 = vld [vmem:[%s4 + $0x930] sm:$0xff]
    %v1401 = vld [vmem:[%s4 + $0x938] sm:$0xff]
    %v1402 = vld [vmem:[%s4 + $0x940] sm:$0xff]
    %v1403 = vld [vmem:[%s4 + $0x948] sm:$0xff]
    %v1404 = vld [vmem:[%s4 + $0x950] sm:$0xff]
    %v1405 = vld [vmem:[%s4 + $0x958] sm:$0xff]
    %v1406 = vld [vmem:[%s4 + $0x960] sm:$0xff]
    %v1407 = vld [vmem:[%s4 + $0x968] sm:$0xff]
    %v1408 = vld [vmem:[%s4 + $0x970] sm:$0xff]
    %v1409 = vld [vmem:[%s4 + $0x978] sm:$0xff]
    %v1410 = vld [vmem:[%s4 + $0x980] sm:$0xff]
    %v1411 = vld [vmem:[%s4 + $0x988] sm:$0xff]
    %v1412 = vld [vmem:[%s4 + $0x990] sm:$0xff]
    %v1413 = vld [vmem:[%s4 + $0x998] sm:$0xff]
    %v1414 = vld [vmem:[%s4 + $0x9a0] sm:$0xff]
    %v1415 = vld [vmem:[%s4 + $0x9a8] sm:$0xff]
    %v1416 = vld [vmem:[%s4 + $0x9b0] sm:$0xff]
    %v1417 = vld [vmem:[%s4 + $0x9b8] sm:$0xff]
    %v1418 = vld [vmem:[%s4 + $0x9c0] sm:$0xff]
    %v1419 = vld [vmem:[%s4 + $0x9c8] sm:$0xff]
    %v1420 = vld [vmem:[%s4 + $0x9d0] sm:$0xff]
    %v1421 = vld [vmem:[%s4 + $0x9d8] sm:$0xff]
    %v1422 = vld [vmem:[%s4 + $0x9e0] sm:$0xff]
    %v1423 = vld [vmem:[%s4 + $0x9e8] sm:$0xff]
    %v1424 = vld [vmem:[%s4 + $0x9f0] sm:$0xff]
    %v1425 = vld [vmem:[%s4 + $0x9f8] sm:$0xff]
    %v1426 = vld [vmem:[%s4 + $0xa00] sm:$0xff]
    %v1427 = vld [vmem:[%s4 + $0xa08] sm:$0xff]
    %v1428 = vld [vmem:[%s4 + $0xa10] sm:$0xff]
    %v1429 = vld [vmem:[%s4 + $0xa18] sm:$0xff]
    %v1430 = vld [vmem:[%s4 + $0xa20] sm:$0xff]
    %v1431 = vld [vmem:[%s4 + $0xa28] sm:$0xff]
    %v1432 = vld [vmem:[%s4 + $0xa30] sm:$0xff]
    %v1433 = vld [vmem:[%s4 + $0xa38] sm:$0xff]
    %v1434 = vld [vmem:[%s4 + $0xa40] sm:$0xff]
    %v1435 = vld [vmem:[%s4 + $0xa48] sm:$0xff]
    %v1436 = vld [vmem:[%s4 + $0xa50] sm:$0xff]
    %v1437 = vld [vmem:[%s4 + $0xa58] sm:$0xff]
    %v1438 = vld [vmem:[%s4 + $0xa60] sm:$0xff]
    %v1439 = vld [vmem:[%s4 + $0xa68] sm:$0xff]
    %v1440 = vld [vmem:[%s4 + $0xa70] sm:$0xff]
    %v1441 = vld [vmem:[%s4 + $0xa78] sm:$0xff]
    %v1442 = vld [vmem:[%s4 + $0xa80] sm:$0xff]
    %v1443 = vld [vmem:[%s4 + $0xa88] sm:$0xff]
    %v1444 = vld [vmem:[%s4 + $0xa90] sm:$0xff]
    %v1445 = vld [vmem:[%s4 + $0xa98] sm:$0xff]
    %v1446 = vld [vmem:[%s4 + $0xaa0] sm:$0xff]
    %v1447 = vld [vmem:[%s4 + $0xaa8] sm:$0xff]
    %v1448 = vld [vmem:[%s4 + $0xab0] sm:$0xff]
    %v1449 = vld [vmem:[%s4 + $0xab8] sm:$0xff]
    %v1450 = vld [vmem:[%s4 + $0xac0] sm:$0xff]
    %v1451 = vld [vmem:[%s4 + $0xac8] sm:$0xff]
    %v1452 = vld [vmem:[%s4 + $0xad0] sm:$0xff]
    %v1453 = vld [vmem:[%s4 + $0xad8] sm:$0xff]
    %v1454 = vld [vmem:[%s4 + $0xae0] sm:$0xff]
    %v1455 = vld [vmem:[%s4 + $0xae8] sm:$0xff]
    %v1456 = vld [vmem:[%s4 + $0xaf0] sm:$0xff]
    %v1457 = vld [vmem:[%s4 + $0xaf8] sm:$0xff]
    %v1458 = vld [vmem:[%s4 + $0xb00] sm:$0xff]
    %v1459 = vld [vmem:[%s4 + $0xb08] sm:$0xff]
    %v1460 = vld [vmem:[%s4 + $0xb10] sm:$0xff]
    %v1461 = vld [vmem:[%s4 + $0xb18] sm:$0xff]
    %v1462 = vld [vmem:[%s4 + $0xb20] sm:$0xff]
    %v1463 = vld [vmem:[%s4 + $0xb28] sm:$0xff]
    %v1464 = vld [vmem:[%s4 + $0xb30] sm:$0xff]
    %v1465 = vld [vmem:[%s4 + $0xb38] sm:$0xff]
    %v1466 = vld [vmem:[%s4 + $0xb40] sm:$0xff]
    %v1467 = vld [vmem:[%s4 + $0xb48] sm:$0xff]
    %v1468 = vld [vmem:[%s4 + $0xb50] sm:$0xff]
    %v1469 = vld [vmem:[%s4 + $0xb58] sm:$0xff]
    %v1470 = vld [vmem:[%s4 + $0xb60] sm:$0xff]
    %v1471 = vld [vmem:[%s4 + $0xb68] sm:$0xff]
    %v1472 = vld [vmem:[%s4 + $0xb70] sm:$0xff]
    %v1473 = vld [vmem:[%s4 + $0xb78] sm:$0xff]
    %v1474 = vld [vmem:[%s4 + $0xb80] sm:$0xff]
    %v1475 = vld [vmem:[%s4 + $0xb88] sm:$0xff]
    %v1476 = vld [vmem:[%s4 + $0xb90] sm:$0xff]
    %v1477 = vld [vmem:[%s4 + $0xb98] sm:$0xff]
    %v1478 = vld [vmem:[%s4 + $0xba0] sm:$0xff]
    %v1479 = vld [vmem:[%s4 + $0xba8] sm:$0xff]
    %v1480 = vld [vmem:[%s4 + $0xbb0] sm:$0xff]
    %v1481 = vld [vmem:[%s4 + $0xbb8] sm:$0xff]
    %v1482 = vld [vmem:[%s4 + $0xbc0] sm:$0xff]
    %v1483 = vld [vmem:[%s4 + $0xbc8] sm:$0xff]
    %v1484 = vld [vmem:[%s4 + $0xbd0] sm:$0xff]
    %v1485 = vld [vmem:[%s4 + $0xbd8] sm:$0xff]
    %v1486 = vld [vmem:[%s4 + $0xbe0] sm:$0xff]
    %v1487 = vld [vmem:[%s4 + $0xbe8] sm:$0xff]
    %v1488 = vld [vmem:[%s4 + $0xbf0] sm:$0xff]
    %v1489 = vld [vmem:[%s4 + $0xbf8] sm:$0xff]
    %v1490 = vld [vmem:[%s4 + $0xc00] sm:$0xff]
    %v1491 = vld [vmem:[%s4 + $0xc08] sm:$0xff]
    %v1492 = vld [vmem:[%s4 + $0xc10] sm:$0xff]
    %v1493 = vld [vmem:[%s4 + $0xc18] sm:$0xff]
    %v1494 = vld [vmem:[%s4 + $0xc20] sm:$0xff]
    %v1495 = vld [vmem:[%s4 + $0xc28] sm:$0xff]
    %v1496 = vld [vmem:[%s4 + $0xc30] sm:$0xff]
    %v1497 = vld [vmem:[%s4 + $0xc38] sm:$0xff]
    %v1498 = vld [vmem:[%s4 + $0xc40] sm:$0xff]
    %v1499 = vld [vmem:[%s4 + $0xc48] sm:$0xff]
    %v1500 = vld [vmem:[%s4 + $0xc50] sm:$0xff]
    %v1501 = vld [vmem:[%s4 + $0xc58] sm:$0xff]
    %v1502 = vld [vmem:[%s4 + $0xc60] sm:$0xff]
    %v1503 = vld [vmem:[%s4 + $0xc68] sm:$0xff]
    %v1504 = vld [vmem:[%s4 + $0xc70] sm:$0xff]
    %v1505 = vld [vmem:[%s4 + $0xc78] sm:$0xff]
    %v1506 = vld [vmem:[%s4 + $0xc80] sm:$0xff]
    %v1507 = vld [vmem:[%s4 + $0xc88] sm:$0xff]
    %v1508 = vld [vmem:[%s4 + $0xc90] sm:$0xff]
    %v1509 = vld [vmem:[%s4 + $0xc98] sm:$0xff]
    %v1510 = vld [vmem:[%s4 + $0xca0] sm:$0xff]
    %v1511 = vld [vmem:[%s4 + $0xca8] sm:$0xff]
    %v1512 = vld [vmem:[%s4 + $0xcb0] sm:$0xff]
    %v1513 = vld [vmem:[%s4 + $0xcb8] sm:$0xff]
    %v1514 = vld [vmem:[%s4 + $0xcc0] sm:$0xff]
    %v1515 = vld [vmem:[%s4 + $0xcc8] sm:$0xff]
    %v1516 = vld [vmem:[%s4 + $0xcd0] sm:$0xff]
    %v1517 = vld [vmem:[%s4 + $0xcd8] sm:$0xff]
    %v1518 = vld [vmem:[%s4 + $0xce0] sm:$0xff]
    %v1519 = vld [vmem:[%s4 + $0xce8] sm:$0xff]
    %v1520 = vld [vmem:[%s4 + $0xcf0] sm:$0xff]
    %v1521 = vld [vmem:[%s4 + $0xcf8] sm:$0xff]
    %v1522 = vld [vmem:[%s4 + $0xd00] sm:$0xff]
    %v1523 = vld [vmem:[%s4 + $0xd08] sm:$0xff]
    %v1524 = vld [vmem:[%s4 + $0xd10] sm:$0xff]
    %v1525 = vld [vmem:[%s4 + $0xd18] sm:$0xff]
    %v1526 = vld [vmem:[%s4 + $0xd20] sm:$0xff]
    %v1527 = vld [vmem:[%s4 + $0xd28] sm:$0xff]
    %v1528 = vld [vmem:[%s4 + $0xd30] sm:$0xff]
    %v1529 = vld [vmem:[%s4 + $0xd38] sm:$0xff]
    %v1530 = vld [vmem:[%s4 + $0xd40] sm:$0xff]
    %v1531 = vld [vmem:[%s4 + $0xd48] sm:$0xff]
    %v1532 = vld [vmem:[%s4 + $0xd50] sm:$0xff]
    %v1533 = vld [vmem:[%s4 + $0xd58] sm:$0xff]
    %v1534 = vld [vmem:[%s4 + $0xd60] sm:$0xff]
    %v1535 = vld [vmem:[%s4 + $0xd68] sm:$0xff]
    %v1536 = vld [vmem:[%s4 + $0xd70] sm:$0xff]
    %v1537 = vld [vmem:[%s4 + $0xd78] sm:$0xff]
    %v1538 = vld [vmem:[%s4 + $0xd80] sm:$0xff]
    %v1539 = vld [vmem:[%s4 + $0xd88] sm:$0xff]
    %v1540 = vld [vmem:[%s4 + $0xd90] sm:$0xff]
    %v1541 = vld [vmem:[%s4 + $0xd98] sm:$0xff]
    %v1542 = vld [vmem:[%s4 + $0xda0] sm:$0xff]
    %v1543 = vld [vmem:[%s4 + $0xda8] sm:$0xff]
    %v1544 = vld [vmem:[%s4 + $0xdb0] sm:$0xff]
    %v1545 = vld [vmem:[%s4 + $0xdb8] sm:$0xff]
    %v1546 = vld [vmem:[%s4 + $0xdc0] sm:$0xff]
    %v1547 = vld [vmem:[%s4 + $0xdc8] sm:$0xff]
    %v1548 = vld [vmem:[%s4 + $0xdd0] sm:$0xff]
    %v1549 = vld [vmem:[%s4 + $0xdd8] sm:$0xff]
    %v1550 = vld [vmem:[%s4 + $0xde0] sm:$0xff]
    %v1551 = vld [vmem:[%s4 + $0xde8] sm:$0xff]
    %v1552 = vld [vmem:[%s4 + $0xdf0] sm:$0xff]
    %v1553 = vld [vmem:[%s4 + $0xdf8] sm:$0xff]
    %v1554 = vld [vmem:[%s4 + $0xe00] sm:$0xff]
    %v1555 = vld [vmem:[%s4 + $0xe08] sm:$0xff]
    %v1556 = vld [vmem:[%s4 + $0xe10] sm:$0xff]
    %v1557 = vld [vmem:[%s4 + $0xe18] sm:$0xff]
    %v1558 = vld [vmem:[%s4 + $0xe20] sm:$0xff]
    %v1559 = vld [vmem:[%s4 + $0xe28] sm:$0xff]
    %v1560 = vld [vmem:[%s4 + $0xe30] sm:$0xff]
    %v1561 = vld [vmem:[%s4 + $0xe38] sm:$0xff]
    %v1562 = vld [vmem:[%s4 + $0xe40] sm:$0xff]
    %v1563 = vld [vmem:[%s4 + $0xe48] sm:$0xff]
    %v1564 = vld [vmem:[%s4 + $0xe50] sm:$0xff]
    %v1565 = vld [vmem:[%s4 + $0xe58] sm:$0xff]
    %v1566 = vld [vmem:[%s4 + $0xe60] sm:$0xff]
    %v1567 = vld [vmem:[%s4 + $0xe68] sm:$0xff]
    %v1568 = vld [vmem:[%s4 + $0xe70] sm:$0xff]
    %v1569 = vld [vmem:[%s4 + $0xe78] sm:$0xff]
    %v1570 = vld [vmem:[%s4 + $0xe80] sm:$0xff]
    %v1571 = vld [vmem:[%s4 + $0xe88] sm:$0xff]
    %v1572 = vld [vmem:[%s4 + $0xe90] sm:$0xff]
    %v1573 = vld [vmem:[%s4 + $0xe98] sm:$0xff]
    %v1574 = vld [vmem:[%s4 + $0xea0] sm:$0xff]
    %v1575 = vld [vmem:[%s4 + $0xea8] sm:$0xff]
    %v1576 = vld [vmem:[%s4 + $0xeb0] sm:$0xff]
    %v1577 = vld [vmem:[%s4 + $0xeb8] sm:$0xff]
    %v1578 = vld [vmem:[%s4 + $0xec0] sm:$0xff]
    %v1579 = vld [vmem:[%s4 + $0xec8] sm:$0xff]
    %v1580 = vld [vmem:[%s4 + $0xed0] sm:$0xff]
    %v1581 = vld [vmem:[%s4 + $0xed8] sm:$0xff]
    %v1582 = vld [vmem:[%s4 + $0xee0] sm:$0xff]
    %v1583 = vld [vmem:[%s4 + $0xee8] sm:$0xff]
    %v1584 = vld [vmem:[%s4 + $0xef0] sm:$0xff]
    %v1585 = vld [vmem:[%s4 + $0xef8] sm:$0xff]
    %v1586 = vld [vmem:[%s4 + $0xf00] sm:$0xff]
    %v1587 = vld [vmem:[%s4 + $0xf08] sm:$0xff]
    %v1588 = vld [vmem:[%s4 + $0xf10] sm:$0xff]
    %v1589 = vld [vmem:[%s4 + $0xf18] sm:$0xff]
    %v1590 = vld [vmem:[%s4 + $0xf20] sm:$0xff]
    %v1591 = vld [vmem:[%s4 + $0xf28] sm:$0xff]
    %v1592 = vld [vmem:[%s4 + $0xf30] sm:$0xff]
    %v1593 = vld [vmem:[%s4 + $0xf38] sm:$0xff]
    %v1594 = vld [vmem:[%s4 + $0xf40] sm:$0xff]
    %v1595 = vld [vmem:[%s4 + $0xf48] sm:$0xff]
    %v1596 = vld [vmem:[%s4 + $0xf50] sm:$0xff]
    %v1597 = vld [vmem:[%s4 + $0xf58] sm:$0xff]
    %v1598 = vld [vmem:[%s4 + $0xf60] sm:$0xff]
    %v1599 = vld [vmem:[%s4 + $0xf68] sm:$0xff]
    %v1600 = vld [vmem:[%s4 + $0xf70] sm:$0xff]
    %v1601 = vld [vmem:[%s4 + $0xf78] sm:$0xff]
    %v1602 = vld [vmem:[%s4 + $0xf80] sm:$0xff]
    %v1603 = vld [vmem:[%s4 + $0xf88] sm:$0xff]
    %v1604 = vld [vmem:[%s4 + $0xf90] sm:$0xff]
    %v1605 = vld [vmem:[%s4 + $0xf98] sm:$0xff]
    %v1606 = vld [vmem:[%s4 + $0xfa0] sm:$0xff]
    %v1607 = vld [vmem:[%s4 + $0xfa8] sm:$0xff]
    %v1608 = vld [vmem:[%s4 + $0xfb0] sm:$0xff]
    %v1609 = vld [vmem:[%s4 + $0xfb8] sm:$0xff]
    %v1610 = vld [vmem:[%s4 + $0xfc0] sm:$0xff]
    %v1611 = vld [vmem:[%s4 + $0xfc8] sm:$0xff]
    %v1612 = vld [vmem:[%s4 + $0xfd0] sm:$0xff]
    %v1613 = vld [vmem:[%s4 + $0xfd8] sm:$0xff]
    %v1614 = vld [vmem:[%s4 + $0xfe0] sm:$0xff]
    %v1615 = vld [vmem:[%s4 + $0xfe8] sm:$0xff]
    %v1616 = vld [vmem:[%s4 + $0xff0] sm:$0xff]
    %v1617 = vld [vmem:[%s4 + $0xff8] sm:$0xff]
    %v1618 = vld [vmem:[%s4 + $0x1000] sm:$0xff]
    %v1619 = vld [vmem:[%s4 + $0x1008] sm:$0xff]
    %v1620 = vld [vmem:[%s4 + $0x1010] sm:$0xff]
    %v1621 = vld [vmem:[%s4 + $0x1018] sm:$0xff]
    %v1622 = vld [vmem:[%s4 + $0x1020] sm:$0xff]
    %v1623 = vld [vmem:[%s4 + $0x1028] sm:$0xff]
    %v1624 = vld [vmem:[%s4 + $0x1030] sm:$0xff]
    %v1625 = vld [vmem:[%s4 + $0x1038] sm:$0xff]
    %v1626 = vld [vmem:[%s4 + $0x1040] sm:$0xff]
    %v1627 = vld [vmem:[%s4 + $0x1048] sm:$0xff]
    %v1628 = vld [vmem:[%s4 + $0x1050] sm:$0xff]
    %v1629 = vld [vmem:[%s4 + $0x1058] sm:$0xff]
    %v1630 = vld [vmem:[%s4 + $0x1060] sm:$0xff]
    %v1631 = vld [vmem:[%s4 + $0x1068] sm:$0xff]
    %v1632 = vld [vmem:[%s4 + $0x1070] sm:$0xff]
    %v1633 = vld [vmem:[%s4 + $0x1078] sm:$0xff]
    %v1634 = vld [vmem:[%s4 + $0x1080] sm:$0xff]
    %v1635 = vld [vmem:[%s4 + $0x1088] sm:$0xff]
    %v1636 = vld [vmem:[%s4 + $0x1090] sm:$0xff]
    %v1637 = vld [vmem:[%s4 + $0x1098] sm:$0xff]
    %v1638 = vld [vmem:[%s4 + $0x10a0] sm:$0xff]
    %v1639 = vld [vmem:[%s4 + $0x10a8] sm:$0xff]
    %v1640 = vld [vmem:[%s4 + $0x10b0] sm:$0xff]
    %v1641 = vld [vmem:[%s4 + $0x10b8] sm:$0xff]
    %v1642 = vld [vmem:[%s4 + $0x10c0] sm:$0xff]
    %v1643 = vld [vmem:[%s4 + $0x10c8] sm:$0xff]
    %v1644 = vld [vmem:[%s4 + $0x10d0] sm:$0xff]
    %v1645 = vld [vmem:[%s4 + $0x10d8] sm:$0xff]
    %v1646 = vld [vmem:[%s4 + $0x10e0] sm:$0xff]
    %v1647 = vld [vmem:[%s4 + $0x10e8] sm:$0xff]
    %v1648 = vld [vmem:[%s4 + $0x10f0] sm:$0xff]
    %v1649 = vld [vmem:[%s4 + $0x10f8] sm:$0xff]
    %v1650 = vld [vmem:[%s4 + $0x1100] sm:$0xff]
    %v1651 = vld [vmem:[%s4 + $0x1108] sm:$0xff]
    %v1652 = vld [vmem:[%s4 + $0x1110] sm:$0xff]
    %v1653 = vld [vmem:[%s4 + $0x1118] sm:$0xff]
    %v1654 = vld [vmem:[%s4 + $0x1120] sm:$0xff]
    %v1655 = vld [vmem:[%s4 + $0x1128] sm:$0xff]
    %v1656 = vld [vmem:[%s4 + $0x1130] sm:$0xff]
    %v1657 = vld [vmem:[%s4 + $0x1138] sm:$0xff]
    %v1658 = vld [vmem:[%s4 + $0x1140] sm:$0xff]
    %v1659 = vld [vmem:[%s4 + $0x1148] sm:$0xff]
    %v1660 = vld [vmem:[%s4 + $0x1150] sm:$0xff]
    %v1661 = vld [vmem:[%s4 + $0x1158] sm:$0xff]
    %v1662 = vld [vmem:[%s4 + $0x1160] sm:$0xff]
    %v1663 = vld [vmem:[%s4 + $0x1168] sm:$0xff]
    %v1664 = vld [vmem:[%s4 + $0x1170] sm:$0xff]
    %v1665 = vld [vmem:[%s4 + $0x1178] sm:$0xff]
    %v1666 = vld [vmem:[%s4 + $0x1180] sm:$0xff]
    %v1667 = vld [vmem:[%s4 + $0x1188] sm:$0xff]
    %v1668 = vld [vmem:[%s4 + $0x1190] sm:$0xff]
    %v1669 = vld [vmem:[%s4 + $0x1198] sm:$0xff]
    %v1670 = vld [vmem:[%s4 + $0x11a0] sm:$0xff]
    %v1671 = vld [vmem:[%s4 + $0x11a8] sm:$0xff]
    %v1672 = vld [vmem:[%s4 + $0x11b0] sm:$0xff]
    %v1673 = vld [vmem:[%s4 + $0x11b8] sm:$0xff]
    %v1674 = vld [vmem:[%s4 + $0x11c0] sm:$0xff]
    %v1675 = vld [vmem:[%s4 + $0x11c8] sm:$0xff]
    %v1676 = vld [vmem:[%s4 + $0x11d0] sm:$0xff]
    %v1677 = vld [vmem:[%s4 + $0x11d8] sm:$0xff]
    %v1678 = vld [vmem:[%s4 + $0x11e0] sm:$0xff]
    %v1679 = vld [vmem:[%s4 + $0x11e8] sm:$0xff]
    %v1680 = vld [vmem:[%s4 + $0x11f0] sm:$0xff]
    %v1681 = vld [vmem:[%s4 + $0x11f8] sm:$0xff]
    %v1682 = vld [vmem:[%s4 + $0x1200] sm:$0xff]
    %v1683 = vld [vmem:[%s4 + $0x1208] sm:$0xff]
    %v1684 = vld [vmem:[%s4 + $0x1210] sm:$0xff]
    %v1685 = vld [vmem:[%s4 + $0x1218] sm:$0xff]
    %v1686 = vld [vmem:[%s4 + $0x1220] sm:$0xff]
    %v1687 = vld [vmem:[%s4 + $0x1228] sm:$0xff]
    %v1688 = vld [vmem:[%s4 + $0x1230] sm:$0xff]
    %v1689 = vld [vmem:[%s4 + $0x1238] sm:$0xff]
    %v1690 = vld [vmem:[%s4 + $0x1240] sm:$0xff]
    %v1691 = vld [vmem:[%s4 + $0x1248] sm:$0xff]
    %v1692 = vld [vmem:[%s4 + $0x1250] sm:$0xff]
    %v1693 = vld [vmem:[%s4 + $0x1258] sm:$0xff]
    %v1694 = vld [vmem:[%s4 + $0x1260] sm:$0xff]
    %v1695 = vld [vmem:[%s4 + $0x1268] sm:$0xff]
    %v1696 = vld [vmem:[%s4 + $0x1270] sm:$0xff]
    %v1697 = vld [vmem:[%s4 + $0x1278] sm:$0xff]
    %v1698 = vld [vmem:[%s4 + $0x1280] sm:$0xff]
    %v1699 = vld [vmem:[%s4 + $0x1288] sm:$0xff]
    %v1700 = vld [vmem:[%s4 + $0x1290] sm:$0xff]
    %v1701 = vld [vmem:[%s4 + $0x1298] sm:$0xff]
    %v1702 = vld [vmem:[%s4 + $0x12a0] sm:$0xff]
    %v1703 = vld [vmem:[%s4 + $0x12a8] sm:$0xff]
    %v1704 = vld [vmem:[%s4 + $0x12b0] sm:$0xff]
    %v1705 = vld [vmem:[%s4 + $0x12b8] sm:$0xff]
    %v1706 = vld [vmem:[%s4 + $0x12c0] sm:$0xff]
    %v1707 = vld [vmem:[%s4 + $0x12c8] sm:$0xff]
    %v1708 = vld [vmem:[%s4 + $0x12d0] sm:$0xff]
    %v1709 = vld [vmem:[%s4 + $0x12d8] sm:$0xff]
    %v1710 = vld [vmem:[%s4 + $0x12e0] sm:$0xff]
    %v1711 = vld [vmem:[%s4 + $0x12e8] sm:$0xff]
    %v1712 = vld [vmem:[%s4 + $0x12f0] sm:$0xff]
    %v1713 = vld [vmem:[%s4 + $0x12f8] sm:$0xff]
    %v1714 = vld [vmem:[%s4 + $0x1300] sm:$0xff]
    %v1715 = vld [vmem:[%s4 + $0x1308] sm:$0xff]
    %v1716 = vld [vmem:[%s4 + $0x1310] sm:$0xff]
    %v1717 = vld [vmem:[%s4 + $0x1318] sm:$0xff]
    %v1718 = vld [vmem:[%s4 + $0x1320] sm:$0xff]
    %v1719 = vld [vmem:[%s4 + $0x1328] sm:$0xff]
    %v1720 = vld [vmem:[%s4 + $0x1330] sm:$0xff]
    %v1721 = vld [vmem:[%s4 + $0x1338] sm:$0xff]
    %v1722 = vld [vmem:[%s4 + $0x1340] sm:$0xff]
    %v1723 = vld [vmem:[%s4 + $0x1348] sm:$0xff]
    %v1724 = vld [vmem:[%s4 + $0x1350] sm:$0xff]
    %v1725 = vld [vmem:[%s4 + $0x1358] sm:$0xff]
    %v1726 = vld [vmem:[%s4 + $0x1360] sm:$0xff]
    %v1727 = vld [vmem:[%s4 + $0x1368] sm:$0xff]
    %v1728 = vld [vmem:[%s4 + $0x1370] sm:$0xff]
    %v1729 = vld [vmem:[%s4 + $0x1378] sm:$0xff]
    %v1730 = vld [vmem:[%s4 + $0x1380] sm:$0xff]
    %v1731 = vld [vmem:[%s4 + $0x1388] sm:$0xff]
    %v1732 = vld [vmem:[%s4 + $0x1390] sm:$0xff]
    %v1733 = vld [vmem:[%s4 + $0x1398] sm:$0xff]
    %v1734 = vld [vmem:[%s4 + $0x13a0] sm:$0xff]
    %v1735 = vld [vmem:[%s4 + $0x13a8] sm:$0xff]
    %v1736 = vld [vmem:[%s4 + $0x13b0] sm:$0xff]
    %v1737 = vld [vmem:[%s4 + $0x13b8] sm:$0xff]
    %v1738 = vld [vmem:[%s4 + $0x13c0] sm:$0xff]
    %v1739 = vld [vmem:[%s4 + $0x13c8] sm:$0xff]
    %v1740 = vld [vmem:[%s4 + $0x13d0] sm:$0xff]
    %v1741 = vld [vmem:[%s4 + $0x13d8] sm:$0xff]
    %v1742 = vld [vmem:[%s4 + $0x13e0] sm:$0xff]
    %v1743 = vld [vmem:[%s4 + $0x13e8] sm:$0xff]
    %v1744 = vld [vmem:[%s4 + $0x13f0] sm:$0xff]
    %v1745 = vld [vmem:[%s4 + $0x13f8] sm:$0xff]
    %v1746 = vld [vmem:[%s4 + $0x1400] sm:$0xff]
    %v1747 = vld [vmem:[%s4 + $0x1408] sm:$0xff]
    %v1748 = vld [vmem:[%s4 + $0x1410] sm:$0xff]
    %v1749 = vld [vmem:[%s4 + $0x1418] sm:$0xff]
    %v1750 = vld [vmem:[%s4 + $0x1420] sm:$0xff]
    %v1751 = vld [vmem:[%s4 + $0x1428] sm:$0xff]
    %v1752 = vld [vmem:[%s4 + $0x1430] sm:$0xff]
    %v1753 = vld [vmem:[%s4 + $0x1438] sm:$0xff]
    %v1754 = vld [vmem:[%s4 + $0x1440] sm:$0xff]
    %v1755 = vld [vmem:[%s4 + $0x1448] sm:$0xff]
    %v1756 = vld [vmem:[%s4 + $0x1450] sm:$0xff]
    %v1757 = vld [vmem:[%s4 + $0x1458] sm:$0xff]
    %v1758 = vld [vmem:[%s4 + $0x1460] sm:$0xff]
    %v1759 = vld [vmem:[%s4 + $0x1468] sm:$0xff]
    %v1760 = vld [vmem:[%s4 + $0x1470] sm:$0xff]
    %v1761 = vld [vmem:[%s4 + $0x1478] sm:$0xff]
    %v1762 = vld [vmem:[%s4 + $0x1480] sm:$0xff]
    %v1763 = vld [vmem:[%s4 + $0x1488] sm:$0xff]
    %v1764 = vld [vmem:[%s4 + $0x1490] sm:$0xff]
    %v1765 = vld [vmem:[%s4 + $0x1498] sm:$0xff]
    %v1766 = vld [vmem:[%s4 + $0x14a0] sm:$0xff]
    %v1767 = vld [vmem:[%s4 + $0x14a8] sm:$0xff]
    %v1768 = vld [vmem:[%s4 + $0x14b0] sm:$0xff]
    %v1769 = vld [vmem:[%s4 + $0x14b8] sm:$0xff]
    %v1770 = vld [vmem:[%s4 + $0x14c0] sm:$0xff]
    %v1771 = vld [vmem:[%s4 + $0x14c8] sm:$0xff]
    %v1772 = vld [vmem:[%s4 + $0x14d0] sm:$0xff]
    %v1773 = vld [vmem:[%s4 + $0x14d8] sm:$0xff]
    %v1774 = vld [vmem:[%s4 + $0x14e0] sm:$0xff]
    %v1775 = vld [vmem:[%s4 + $0x14e8] sm:$0xff]
    %v1776 = vld [vmem:[%s4 + $0x14f0] sm:$0xff]
    %v1777 = vld [vmem:[%s4 + $0x14f8] sm:$0xff]
    %v1778 = vld [vmem:[%s4 + $0x1500] sm:$0xff]
    %v1779 = vld [vmem:[%s4 + $0x1508] sm:$0xff]
    %v1780 = vld [vmem:[%s4 + $0x1510] sm:$0xff]
    %v1781 = vld [vmem:[%s4 + $0x1518] sm:$0xff]
    %v1782 = vld [vmem:[%s4 + $0x1520] sm:$0xff]
    %v1783 = vld [vmem:[%s4 + $0x1528] sm:$0xff]
    %v1784 = vld [vmem:[%s4 + $0x1530] sm:$0xff]
    %v1785 = vld [vmem:[%s4 + $0x1538] sm:$0xff]
    %v1786 = vld [vmem:[%s4 + $0x1540] sm:$0xff]
    %v1787 = vld [vmem:[%s4 + $0x1548] sm:$0xff]
    %v1788 = vld [vmem:[%s4 + $0x1550] sm:$0xff]
    %v1789 = vld [vmem:[%s4 + $0x1558] sm:$0xff]
    %v1790 = vld [vmem:[%s4 + $0x1560] sm:$0xff]
    %v1791 = vld [vmem:[%s4 + $0x1568] sm:$0xff]
    %v1792 = vld [vmem:[%s4 + $0x1570] sm:$0xff]
    %v1793 = vld [vmem:[%s4 + $0x1578] sm:$0xff]
    %v1794 = vld [vmem:[%s4 + $0x1580] sm:$0xff]
    %v1795 = vld [vmem:[%s4 + $0x1588] sm:$0xff]
    %v1796 = vld [vmem:[%s4 + $0x1590] sm:$0xff]
    %v1797 = vld [vmem:[%s4 + $0x1598] sm:$0xff]
    %v1798 = vld [vmem:[%s4 + $0x15a0] sm:$0xff]
    %v1799 = vld [vmem:[%s4 + $0x15a8] sm:$0xff]
    %v1800 = vld [vmem:[%s4 + $0x15b0] sm:$0xff]
    %v1801 = vld [vmem:[%s4 + $0x15b8] sm:$0xff]
    %v1802 = vld [vmem:[%s4 + $0x15c0] sm:$0xff]
    %v1803 = vld [vmem:[%s4 + $0x15c8] sm:$0xff]
    %v1804 = vld [vmem:[%s4 + $0x15d0] sm:$0xff]
    %v1805 = vld [vmem:[%s4 + $0x15d8] sm:$0xff]
    %v1806 = vld [vmem:[%s4 + $0x15e0] sm:$0xff]
    %v1807 = vld [vmem:[%s4 + $0x15e8] sm:$0xff]
    %v1808 = vld [vmem:[%s4 + $0x15f0] sm:$0xff]
    %v1809 = vld [vmem:[%s4 + $0x15f8] sm:$0xff]
    %v1810 = vld [vmem:[%s4 + $0x1600] sm:$0xff]
    %v1811 = vld [vmem:[%s4 + $0x1608] sm:$0xff]
    %v1812 = vld [vmem:[%s4 + $0x1610] sm:$0xff]
    %v1813 = vld [vmem:[%s4 + $0x1618] sm:$0xff]
    %v1814 = vld [vmem:[%s4 + $0x1620] sm:$0xff]
    %v1815 = vld [vmem:[%s4 + $0x1628] sm:$0xff]
    %v1816 = vld [vmem:[%s4 + $0x1630] sm:$0xff]
    %v1817 = vld [vmem:[%s4 + $0x1638] sm:$0xff]
    %v1818 = vld [vmem:[%s4 + $0x1640] sm:$0xff]
    %v1819 = vld [vmem:[%s4 + $0x1648] sm:$0xff]
    %v1820 = vld [vmem:[%s4 + $0x1650] sm:$0xff]
    %v1821 = vld [vmem:[%s4 + $0x1658] sm:$0xff]
    %v1822 = vld [vmem:[%s4 + $0x1660] sm:$0xff]
    %v1823 = vld [vmem:[%s4 + $0x1668] sm:$0xff]
    %v1824 = vld [vmem:[%s4 + $0x1670] sm:$0xff]
    %v1825 = vld [vmem:[%s4 + $0x1678] sm:$0xff]
    %v1826 = vld [vmem:[%s4 + $0x1680] sm:$0xff]
    %v1827 = vld [vmem:[%s4 + $0x1688] sm:$0xff]
    %v1828 = vld [vmem:[%s4 + $0x1690] sm:$0xff]
    %v1829 = vld [vmem:[%s4 + $0x1698] sm:$0xff]
    %v1830 = vld [vmem:[%s4 + $0x16a0] sm:$0xff]
    %v1831 = vld [vmem:[%s4 + $0x16a8] sm:$0xff]
    %v1832 = vld [vmem:[%s4 + $0x16b0] sm:$0xff]
    %v1833 = vld [vmem:[%s4 + $0x16b8] sm:$0xff]
    %v1834 = vld [vmem:[%s4 + $0x16c0] sm:$0xff]
    %v1835 = vld [vmem:[%s4 + $0x16c8] sm:$0xff]
    %v1836 = vld [vmem:[%s4 + $0x16d0] sm:$0xff]
    %v1837 = vld [vmem:[%s4 + $0x16d8] sm:$0xff]
    %v1838 = vld [vmem:[%s4 + $0x16e0] sm:$0xff]
    %v1839 = vld [vmem:[%s4 + $0x16e8] sm:$0xff]
    %v1840 = vld [vmem:[%s4 + $0x16f0] sm:$0xff]
    %v1841 = vld [vmem:[%s4 + $0x16f8] sm:$0xff]
    %v1842 = vld [vmem:[%s4 + $0x1700] sm:$0xff]
    %v1843 = vld [vmem:[%s4 + $0x1708] sm:$0xff]
    %v1844 = vld [vmem:[%s4 + $0x1710] sm:$0xff]
    %v1845 = vld [vmem:[%s4 + $0x1718] sm:$0xff]
    %v1846 = vld [vmem:[%s4 + $0x1720] sm:$0xff]
    %v1847 = vld [vmem:[%s4 + $0x1728] sm:$0xff]
    %v1848 = vld [vmem:[%s4 + $0x1730] sm:$0xff]
    %v1849 = vld [vmem:[%s4 + $0x1738] sm:$0xff]
    %v1850 = vld [vmem:[%s4 + $0x1740] sm:$0xff]
    %v1851 = vld [vmem:[%s4 + $0x1748] sm:$0xff]
    %v1852 = vld [vmem:[%s4 + $0x1750] sm:$0xff]
    %v1853 = vld [vmem:[%s4 + $0x1758] sm:$0xff]
    %v1854 = vld [vmem:[%s4 + $0x1760] sm:$0xff]
    %v1855 = vld [vmem:[%s4 + $0x1768] sm:$0xff]
    %v1856 = vld [vmem:[%s4 + $0x1770] sm:$0xff]
    %v1857 = vld [vmem:[%s4 + $0x1778] sm:$0xff]
    %v1858 = vld [vmem:[%s4 + $0x1780] sm:$0xff]
    %v1859 = vld [vmem:[%s4 + $0x1788] sm:$0xff]
    %v1860 = vld [vmem:[%s4 + $0x1790] sm:$0xff]
    %v1861 = vld [vmem:[%s4 + $0x1798] sm:$0xff]
    %v1862 = vld [vmem:[%s4 + $0x17a0] sm:$0xff]
    %v1863 = vld [vmem:[%s4 + $0x17a8] sm:$0xff]
    %v1864 = vld [vmem:[%s4 + $0x17b0] sm:$0xff]
    %v1865 = vld [vmem:[%s4 + $0x17b8] sm:$0xff]
    %v1866 = vld [vmem:[%s4 + $0x17c0] sm:$0xff]
    %v1867 = vld [vmem:[%s4 + $0x17c8] sm:$0xff]
    %v1868 = vld [vmem:[%s4 + $0x17d0] sm:$0xff]
    %v1869 = vld [vmem:[%s4 + $0x17d8] sm:$0xff]
    %v1870 = vld [vmem:[%s4 + $0x17e0] sm:$0xff]
    %v1871 = vld [vmem:[%s4 + $0x17e8] sm:$0xff]
    %v1872 = vld [vmem:[%s4 + $0x17f0] sm:$0xff]
    %v1873 = vld [vmem:[%s4 + $0x17f8] sm:$0xff]
    %v1874 = vld [vmem:[%s4 + $0x1800] sm:$0xff]
    %v1875 = vld [vmem:[%s4 + $0x1808] sm:$0xff]
    %v1876 = vld [vmem:[%s4 + $0x1810] sm:$0xff]
    %v1877 = vld [vmem:[%s4 + $0x1818] sm:$0xff]
    %v1878 = vld [vmem:[%s4 + $0x1820] sm:$0xff]
    %v1879 = vld [vmem:[%s4 + $0x1828] sm:$0xff]
    %v1880 = vld [vmem:[%s4 + $0x1830] sm:$0xff]
    %v1881 = vld [vmem:[%s4 + $0x1838] sm:$0xff]
    %v1882 = vld [vmem:[%s4 + $0x1840] sm:$0xff]
    %v1883 = vld [vmem:[%s4 + $0x1848] sm:$0xff]
    %v1884 = vld [vmem:[%s4 + $0x1850] sm:$0xff]
    %v1885 = vld [vmem:[%s4 + $0x1858] sm:$0xff]
    %v1886 = vld [vmem:[%s4 + $0x1860] sm:$0xff]
    %v1887 = vld [vmem:[%s4 + $0x1868] sm:$0xff]
    %v1888 = vld [vmem:[%s4 + $0x1870] sm:$0xff]
    %v1889 = vld [vmem:[%s4 + $0x1878] sm:$0xff]
    %v1890 = vld [vmem:[%s4 + $0x1880] sm:$0xff]
    %v1891 = vld [vmem:[%s4 + $0x1888] sm:$0xff]
    %v1892 = vld [vmem:[%s4 + $0x1890] sm:$0xff]
    %v1893 = vld [vmem:[%s4 + $0x1898] sm:$0xff]
    %v1894 = vld [vmem:[%s4 + $0x18a0] sm:$0xff]
    %v1895 = vld [vmem:[%s4 + $0x18a8] sm:$0xff]
    %v1896 = vld [vmem:[%s4 + $0x18b0] sm:$0xff]
    %v1897 = vld [vmem:[%s4 + $0x18b8] sm:$0xff]
    %v1898 = vld [vmem:[%s4 + $0x18c0] sm:$0xff]
    %v1899 = vld [vmem:[%s4 + $0x18c8] sm:$0xff]
    %v1900 = vld [vmem:[%s4 + $0x18d0] sm:$0xff]
    %v1901 = vld [vmem:[%s4 + $0x18d8] sm:$0xff]
    %v1902 = vld [vmem:[%s4 + $0x18e0] sm:$0xff]
    %v1903 = vld [vmem:[%s4 + $0x18e8] sm:$0xff]
    %v1904 = vld [vmem:[%s4 + $0x18f0] sm:$0xff]
    %v1905 = vld [vmem:[%s4 + $0x18f8] sm:$0xff]
    %v1906 = vld [vmem:[%s4 + $0x1900] sm:$0xff]
    %v1907 = vld [vmem:[%s4 + $0x1908] sm:$0xff]
    %v1908 = vld [vmem:[%s4 + $0x1910] sm:$0xff]
    %v1909 = vld [vmem:[%s4 + $0x1918] sm:$0xff]
    %v1910 = vld [vmem:[%s4 + $0x1920] sm:$0xff]
    %v1911 = vld [vmem:[%s4 + $0x1928] sm:$0xff]
    %v1912 = vld [vmem:[%s4 + $0x1930] sm:$0xff]
    %v1913 = vld [vmem:[%s4 + $0x1938] sm:$0xff]
    %v1914 = vld [vmem:[%s4 + $0x1940] sm:$0xff]
    %v1915 = vld [vmem:[%s4 + $0x1948] sm:$0xff]
    %v1916 = vld [vmem:[%s4 + $0x1950] sm:$0xff]
    %v1917 = vld [vmem:[%s4 + $0x1958] sm:$0xff]
    %v1918 = vld [vmem:[%s4 + $0x1960] sm:$0xff]
    %v1919 = vld [vmem:[%s4 + $0x1968] sm:$0xff]
    %v1920 = vld [vmem:[%s4 + $0x1970] sm:$0xff]
    %v1921 = vld [vmem:[%s4 + $0x1978] sm:$0xff]
    %v1922 = vld [vmem:[%s4 + $0x1980] sm:$0xff]
    %v1923 = vld [vmem:[%s4 + $0x1988] sm:$0xff]
    %v1924 = vld [vmem:[%s4 + $0x1990] sm:$0xff]
    %v1925 = vld [vmem:[%s4 + $0x1998] sm:$0xff]
    %v1926 = vld [vmem:[%s4 + $0x19a0] sm:$0xff]
    %v1927 = vld [vmem:[%s4 + $0x19a8] sm:$0xff]
    %v1928 = vld [vmem:[%s4 + $0x19b0] sm:$0xff]
    %v1929 = vld [vmem:[%s4 + $0x19b8] sm:$0xff]
    %v1930 = vld [vmem:[%s4 + $0x19c0] sm:$0xff]
    %v1931 = vld [vmem:[%s4 + $0x19c8] sm:$0xff]
    %v1932 = vld [vmem:[%s4 + $0x19d0] sm:$0xff]
    %v1933 = vld [vmem:[%s4 + $0x19d8] sm:$0xff]
    %v1934 = vld [vmem:[%s4 + $0x19e0] sm:$0xff]
    %v1935 = vld [vmem:[%s4 + $0x19e8] sm:$0xff]
    %v1936 = vld [vmem:[%s4 + $0x19f0] sm:$0xff]
    %v1937 = vld [vmem:[%s4 + $0x19f8] sm:$0xff]
    %v1938 = vld [vmem:[%s4 + $0x1a00] sm:$0xff]
    %v1939 = vld [vmem:[%s4 + $0x1a08] sm:$0xff]
    %v1940 = vld [vmem:[%s4 + $0x1a10] sm:$0xff]
    %v1941 = vld [vmem:[%s4 + $0x1a18] sm:$0xff]
    %v1942 = vld [vmem:[%s4 + $0x1a20] sm:$0xff]
    %v1943 = vld [vmem:[%s4 + $0x1a28] sm:$0xff]
    %v1944 = vld [vmem:[%s4 + $0x1a30] sm:$0xff]
    %v1945 = vld [vmem:[%s4 + $0x1a38] sm:$0xff]
    %v1946 = vld [vmem:[%s4 + $0x1a40] sm:$0xff]
    %v1947 = vld [vmem:[%s4 + $0x1a48] sm:$0xff]
    %v1948 = vld [vmem:[%s4 + $0x1a50] sm:$0xff]
    %v1949 = vld [vmem:[%s4 + $0x1a58] sm:$0xff]
    %v1950 = vld [vmem:[%s4 + $0x1a60] sm:$0xff]
    %v1951 = vld [vmem:[%s4 + $0x1a68] sm:$0xff]
    %v1952 = vld [vmem:[%s4 + $0x1a70] sm:$0xff]
    %v1953 = vld [vmem:[%s4 + $0x1a78] sm:$0xff]
    %v1954 = vld [vmem:[%s4 + $0x1a80] sm:$0xff]
    %v1955 = vld [vmem:[%s4 + $0x1a88] sm:$0xff]
    %v1956 = vld [vmem:[%s4 + $0x1a90] sm:$0xff]
    %v1957 = vld [vmem:[%s4 + $0x1a98] sm:$0xff]
    %v1958 = vld [vmem:[%s4 + $0x1aa0] sm:$0xff]
    %v1959 = vld [vmem:[%s4 + $0x1aa8] sm:$0xff]
    %v1960 = vld [vmem:[%s4 + $0x1ab0] sm:$0xff]
    %v1961 = vld [vmem:[%s4 + $0x1ab8] sm:$0xff]
    %v1962 = vld [vmem:[%s4 + $0x1ac0] sm:$0xff]
    %v1963 = vld [vmem:[%s4 + $0x1ac8] sm:$0xff]
    %v1964 = vld [vmem:[%s4 + $0x1ad0] sm:$0xff]
    %v1965 = vld [vmem:[%s4 + $0x1ad8] sm:$0xff]
    %v1966 = vld [vmem:[%s4 + $0x1ae0] sm:$0xff]
    %v1967 = vld [vmem:[%s4 + $0x1ae8] sm:$0xff]
    %v1968 = vld [vmem:[%s4 + $0x1af0] sm:$0xff]
    %v1969 = vld [vmem:[%s4 + $0x1af8] sm:$0xff]
    %v1970 = vld [vmem:[%s4 + $0x1b00] sm:$0xff]
    %v1971 = vld [vmem:[%s4 + $0x1b08] sm:$0xff]
    %v1972 = vld [vmem:[%s4 + $0x1b10] sm:$0xff]
    %v1973 = vld [vmem:[%s4 + $0x1b18] sm:$0xff]
    %v1974 = vld [vmem:[%s4 + $0x1b20] sm:$0xff]
    %v1975 = vld [vmem:[%s4 + $0x1b28] sm:$0xff]
    %v1976 = vld [vmem:[%s4 + $0x1b30] sm:$0xff]
    %v1977 = vld [vmem:[%s4 + $0x1b38] sm:$0xff]
    %v1978 = vld [vmem:[%s4 + $0x1b40] sm:$0xff]
    %v1979 = vld [vmem:[%s4 + $0x1b48] sm:$0xff]
    %v1980 = vld [vmem:[%s4 + $0x1b50] sm:$0xff]
    %v1981 = vld [vmem:[%s4 + $0x1b58] sm:$0xff]
    %v1982 = vld [vmem:[%s4 + $0x1b60] sm:$0xff]
    %v1983 = vld [vmem:[%s4 + $0x1b68] sm:$0xff]
    %v1984 = vld [vmem:[%s4 + $0x1b70] sm:$0xff]
    %v1985 = vld [vmem:[%s4 + $0x1b78] sm:$0xff]
    %v1986 = vld [vmem:[%s4 + $0x1b80] sm:$0xff]
    %v1987 = vld [vmem:[%s4 + $0x1b88] sm:$0xff]
    %v1988 = vld [vmem:[%s4 + $0x1b90] sm:$0xff]
    %v1989 = vld [vmem:[%s4 + $0x1b98] sm:$0xff]
    %v1990 = vld [vmem:[%s4 + $0x1ba0] sm:$0xff]
    %v1991 = vld [vmem:[%s4 + $0x1ba8] sm:$0xff]
    %v1992 = vld [vmem:[%s4 + $0x1bb0] sm:$0xff]
    %v1993 = vld [vmem:[%s4 + $0x1bb8] sm:$0xff]
    %v1994 = vld [vmem:[%s4 + $0x1bc0] sm:$0xff]
    %v1995 = vld [vmem:[%s4 + $0x1bc8] sm:$0xff]
    %v1996 = vld [vmem:[%s4 + $0x1bd0] sm:$0xff]
    %v1997 = vld [vmem:[%s4 + $0x1bd8] sm:$0xff]
    %v1998 = vld [vmem:[%s4 + $0x1be0] sm:$0xff]
    %v1999 = vld [vmem:[%s4 + $0x1be8] sm:$0xff]
    %v2000 = vld [vmem:[%s4 + $0x1bf0] sm:$0xff]
    %v2001 = vld [vmem:[%s4 + $0x1bf8] sm:$0xff]
    %v2002 = vld [vmem:[%s4 + $0x1c00] sm:$0xff]
    %v2003 = vld [vmem:[%s4 + $0x1c08] sm:$0xff]
    %v2004 = vld [vmem:[%s4 + $0x1c10] sm:$0xff]
    %v2005 = vld [vmem:[%s4 + $0x1c18] sm:$0xff]
    %v2006 = vld [vmem:[%s4 + $0x1c20] sm:$0xff]
    %v2007 = vld [vmem:[%s4 + $0x1c28] sm:$0xff]
    %v2008 = vld [vmem:[%s4 + $0x1c30] sm:$0xff]
    %v2009 = vld [vmem:[%s4 + $0x1c38] sm:$0xff]
    %v2010 = vld [vmem:[%s4 + $0x1c40] sm:$0xff]
    %v2011 = vld [vmem:[%s4 + $0x1c48] sm:$0xff]
    %v2012 = vld [vmem:[%s4 + $0x1c50] sm:$0xff]
    %v2013 = vld [vmem:[%s4 + $0x1c58] sm:$0xff]
    %v2014 = vld [vmem:[%s4 + $0x1c60] sm:$0xff]
    %v2015 = vld [vmem:[%s4 + $0x1c68] sm:$0xff]
    %v2016 = vld [vmem:[%s4 + $0x1c70] sm:$0xff]
    %v2017 = vld [vmem:[%s4 + $0x1c78] sm:$0xff]
    %v2018 = vld [vmem:[%s4 + $0x1c80] sm:$0xff]
    %v2019 = vld [vmem:[%s4 + $0x1c88] sm:$0xff]
    %v2020 = vld [vmem:[%s4 + $0x1c90] sm:$0xff]
    %v2021 = vld [vmem:[%s4 + $0x1c98] sm:$0xff]
    %v2022 = vld [vmem:[%s4 + $0x1ca0] sm:$0xff]
    %v2023 = vld [vmem:[%s4 + $0x1ca8] sm:$0xff]
    %v2024 = vld [vmem:[%s4 + $0x1cb0] sm:$0xff]
    %v2025 = vld [vmem:[%s4 + $0x1cb8] sm:$0xff]
    %v2026 = vld [vmem:[%s4 + $0x1cc0] sm:$0xff]
    %v2027 = vld [vmem:[%s4 + $0x1cc8] sm:$0xff]
    %v2028 = vld [vmem:[%s4 + $0x1cd0] sm:$0xff]
    %v2029 = vld [vmem:[%s4 + $0x1cd8] sm:$0xff]
    %v2030 = vld [vmem:[%s4 + $0x1ce0] sm:$0xff]
    %v2031 = vld [vmem:[%s4 + $0x1ce8] sm:$0xff]
    %v2032 = vld [vmem:[%s4 + $0x1cf0] sm:$0xff]
    %v2033 = vld [vmem:[%s4 + $0x1cf8] sm:$0xff]
    %v2034 = vld [vmem:[%s4 + $0x1d00] sm:$0xff]
    %v2035 = vld [vmem:[%s4 + $0x1d08] sm:$0xff]
    %v2036 = vld [vmem:[%s4 + $0x1d10] sm:$0xff]
    %v2037 = vld [vmem:[%s4 + $0x1d18] sm:$0xff]
    %v2038 = vld [vmem:[%s4 + $0x1d20] sm:$0xff]
    %v2039 = vld [vmem:[%s4 + $0x1d28] sm:$0xff]
    %v2040 = vld [vmem:[%s4 + $0x1d30] sm:$0xff]
    %v2041 = vld [vmem:[%s4 + $0x1d38] sm:$0xff]
    %v2042 = vld [vmem:[%s4 + $0x1d40] sm:$0xff]
    %v2043 = vld [vmem:[%s4 + $0x1d48] sm:$0xff]
    %v2044 = vld [vmem:[%s4 + $0x1d50] sm:$0xff]
    %v2045 = vld [vmem:[%s4 + $0x1d58] sm:$0xff]
    %v2046 = vld [vmem:[%s4 + $0x1d60] sm:$0xff]
    %v2047 = vld [vmem:[%s4 + $0x1d68] sm:$0xff]
    %v2048 = vld [vmem:[%s4 + $0x1d70] sm:$0xff]
    %v2049 = vld [vmem:[%s4 + $0x1d78] sm:$0xff]
    %v2050 = vld [vmem:[%s4 + $0x1d80] sm:$0xff]
    %v2051 = vld [vmem:[%s4 + $0x1d88] sm:$0xff]
    %v2052 = vld [vmem:[%s4 + $0x1d90] sm:$0xff]
    %v2053 = vld [vmem:[%s4 + $0x1d98] sm:$0xff]
    %v2054 = vld [vmem:[%s4 + $0x1da0] sm:$0xff]
    %v2055 = vld [vmem:[%s4 + $0x1da8] sm:$0xff]
    %v2056 = vld [vmem:[%s4 + $0x1db0] sm:$0xff]
    %v2057 = vld [vmem:[%s4 + $0x1db8] sm:$0xff]
    %v2058 = vld [vmem:[%s4 + $0x1dc0] sm:$0xff]
    %v2059 = vld [vmem:[%s4 + $0x1dc8] sm:$0xff]
    %v2060 = vld [vmem:[%s4 + $0x1dd0] sm:$0xff]
    %v2061 = vld [vmem:[%s4 + $0x1dd8] sm:$0xff]
    %v2062 = vld [vmem:[%s4 + $0x1de0] sm:$0xff]
    %v2063 = vld [vmem:[%s4 + $0x1de8] sm:$0xff]
    %v2064 = vld [vmem:[%s4 + $0x1df0] sm:$0xff]
    %v2065 = vld [vmem:[%s4 + $0x1df8] sm:$0xff]
    %v2066 = vld [vmem:[%s4 + $0x1e00] sm:$0xff]
    %v2067 = vld [vmem:[%s4 + $0x1e08] sm:$0xff]
    %v2068 = vld [vmem:[%s4 + $0x1e10] sm:$0xff]
    %v2069 = vld [vmem:[%s4 + $0x1e18] sm:$0xff]
    %v2070 = vld [vmem:[%s4 + $0x1e20] sm:$0xff]
    %v2071 = vld [vmem:[%s4 + $0x1e28] sm:$0xff]
    %v2072 = vld [vmem:[%s4 + $0x1e30] sm:$0xff]
    %v2073 = vld [vmem:[%s4 + $0x1e38] sm:$0xff]
    %v2074 = vld [vmem:[%s4 + $0x1e40] sm:$0xff]
    %v2075 = vld [vmem:[%s4 + $0x1e48] sm:$0xff]
    %v2076 = vld [vmem:[%s4 + $0x1e50] sm:$0xff]
    %v2077 = vld [vmem:[%s4 + $0x1e58] sm:$0xff]
    %v2078 = vld [vmem:[%s4 + $0x1e60] sm:$0xff]
    %v2079 = vld [vmem:[%s4 + $0x1e68] sm:$0xff]
    %v2080 = vld [vmem:[%s4 + $0x1e70] sm:$0xff]
    %v2081 = vld [vmem:[%s4 + $0x1e78] sm:$0xff]
    %v2082 = vld [vmem:[%s4 + $0x1e80] sm:$0xff]
    %v2083 = vld [vmem:[%s4 + $0x1e88] sm:$0xff]
    %v2084 = vld [vmem:[%s4 + $0x1e90] sm:$0xff]
    %v2085 = vld [vmem:[%s4 + $0x1e98] sm:$0xff]
    %v2086 = vld [vmem:[%s4 + $0x1ea0] sm:$0xff]
    %v2087 = vld [vmem:[%s4 + $0x1ea8] sm:$0xff]
    %v2088 = vld [vmem:[%s4 + $0x1eb0] sm:$0xff]
    %v2089 = vld [vmem:[%s4 + $0x1eb8] sm:$0xff]
    %v2090 = vld [vmem:[%s4 + $0x1ec0] sm:$0xff]
    %v2091 = vld [vmem:[%s4 + $0x1ec8] sm:$0xff]
    %v2092 = vld [vmem:[%s4 + $0x1ed0] sm:$0xff]
    %v2093 = vld [vmem:[%s4 + $0x1ed8] sm:$0xff]
    %v2094 = vld [vmem:[%s4 + $0x1ee0] sm:$0xff]
    %v2095 = vld [vmem:[%s4 + $0x1ee8] sm:$0xff]
    %v2096 = vld [vmem:[%s4 + $0x1ef0] sm:$0xff]
    %v2097 = vld [vmem:[%s4 + $0x1ef8] sm:$0xff]
    %v2098 = vld [vmem:[%s4 + $0x1f00] sm:$0xff]
    %v2099 = vld [vmem:[%s4 + $0x1f08] sm:$0xff]
    %v2100 = vld [vmem:[%s4 + $0x1f10] sm:$0xff]
    %v2101 = vld [vmem:[%s4 + $0x1f18] sm:$0xff]
    %v2102 = vld [vmem:[%s4 + $0x1f20] sm:$0xff]
    %v2103 = vld [vmem:[%s4 + $0x1f28] sm:$0xff]
    %v2104 = vld [vmem:[%s4 + $0x1f30] sm:$0xff]
    %v2105 = vld [vmem:[%s4 + $0x1f38] sm:$0xff]
    %vm2106 = vcmask 850944
    %v2108 = vsel %vm2106, %v1105, 0
    %2110 = vmatprep.subr.mxu0 %v1107
    %2111 = vmatpush1.msra.mxu0 %v1106
    %2112 = vmatprep.subr.mxu0 %v1115
    %2113 = vmatpush1.msra.mxu0 %v1114
    %2114 = vmatprep.subr.mxu0 %v1123
    %2115 = vmatpush1.msra.mxu0 %v1122
    %2116 = vmatprep.subr.mxu0 %v1131
    %2117 = vmatpush1.msra.mxu0 %v1130
    %2118 = vmatprep.subr.mxu0 %v1139
    %2119 = vmatpush1.msra.mxu0 %v1138
    %2120 = vmatprep.subr.mxu0 %v1147
    %2121 = vmatpush1.msra.mxu0 %v1146
    %2122 = vmatprep.subr.mxu0 %v1155
    %2123 = vmatpush1.msra.mxu0 %v1154
    %2124 = vmatprep.subr.mxu0 %v1163
    %2125 = vmatpush1.msra.mxu0 %v1162
    %2126 = vmatprep.subr.mxu0 %v1171
    %2127 = vmatpush1.msra.mxu0 %v1170
    %2128 = vmatprep.subr.mxu0 %v1179
    %2129 = vmatpush1.msra.mxu0 %v1178
    %2130 = vmatprep.subr.mxu0 %v1187
    %2131 = vmatpush1.msra.mxu0 %v1186
    %2132 = vmatprep.subr.mxu0 %v1195
    %2133 = vmatpush1.msra.mxu0 %v1194
    %2134 = vmatprep.subr.mxu0 %v1203
    %2135 = vmatpush1.msra.mxu0 %v1202
    %2136 = vmatprep.subr.mxu0 %v1211
    %2137 = vmatpush1.msra.mxu0 %v1210
    %2138 = vmatprep.subr.mxu0 %v1219
    %2139 = vmatpush1.msra.mxu0 %v1218
    %2140 = vmatprep.subr.mxu0 %v1227
    %2141 = vmatpush1.msra.mxu0 %v1226
    %2142 = vmatprep.subr.mxu0 %v1235
    %2143 = vmatpush1.msra.mxu0 %v1234
    %2144 = vmatprep.subr.mxu0 %v1243
    %2145 = vmatpush1.msra.mxu0 %v1242
    %2146 = vmatprep.subr.mxu0 %v1251
    %2147 = vmatpush1.msra.mxu0 %v1250
    %2148 = vmatprep.subr.mxu0 %v1259
    %2149 = vmatpush1.msra.mxu0 %v1258
    %2150 = vmatprep.subr.mxu0 %v1267
    %2151 = vmatpush1.msra.mxu0 %v1266
    %2152 = vmatprep.subr.mxu0 %v1275
    %2153 = vmatpush1.msra.mxu0 %v1274
    %2154 = vmatprep.subr.mxu0 %v1283
    %2155 = vmatpush1.msra.mxu0 %v1282
    %2156 = vmatprep.subr.mxu0 %v1291
    %2157 = vmatpush1.msra.mxu0 %v1290
    %2158 = vmatprep.subr.mxu0 %v1299
    %2159 = vmatpush1.msra.mxu0 %v1298
    %2160 = vmatprep.subr.mxu0 %v1307
    %2161 = vmatpush1.msra.mxu0 %v1306
    %2162 = vmatprep.subr.mxu0 %v1315
    %2163 = vmatpush1.msra.mxu0 %v1314
    %2164 = vmatprep.subr.mxu0 %v1323
    %2165 = vmatpush1.msra.mxu0 %v1322
    %2166 = vmatprep.subr.mxu0 %v1331
    %2167 = vmatpush1.msra.mxu0 %v1330
    %2168 = vmatprep.subr.mxu0 %v1339
    %2169 = vmatpush1.msra.mxu0 %v1338
    %2170 = vmatprep.subr.mxu0 %v1347
    %2171 = vmatpush1.msra.mxu0 %v1346
    %2172 = vmatprep.subr.mxu0 %v1355
    %2173 = vmatpush1.msra.mxu0 %v1354
    %2174 = vmatprep.mubr.f32.mxu0 %v1099
    %2175 = vmatmul.mubr.f32.gmra.mrb[0].mxu0 %v1098
    %v2176 = vpop.f32.mrb[0].mxu0
    %v2177 = vadd.f32 0.0, %v2176
    %v2178 = vpop.f32.mrb[0].mxu0
    %v2179 = vadd.f32 0.0, %v2178
    %2180 = vdwg.mxu0
    %2181 = vmatprep.subr.mxu0 %v1363
    %2182 = vmatpush1.msra.mxu0 %v1362
    %2183 = vmatprep.subr.mxu0 %v1371
    %2184 = vmatpush1.msra.mxu0 %v1370
    %2185 = vmatprep.subr.mxu0 %v1379
    %2186 = vmatpush1.msra.mxu0 %v1378
    %2187 = vmatprep.subr.mxu0 %v1387
    %2188 = vmatpush1.msra.mxu0 %v1386
    %2189 = vmatprep.subr.mxu0 %v1395
    %2190 = vmatpush1.msra.mxu0 %v1394
    %2191 = vmatprep.subr.mxu0 %v1403
    %2192 = vmatpush1.msra.mxu0 %v1402
    %2193 = vmatprep.subr.mxu0 %v1411
    %2194 = vmatpush1.msra.mxu0 %v1410
    %2195 = vmatprep.subr.mxu0 %v1419
    %2196 = vmatpush1.msra.mxu0 %v1418
    %2197 = vmatprep.subr.mxu0 %v1427
    %2198 = vmatpush1.msra.mxu0 %v1426
    %2199 = vmatprep.subr.mxu0 %v1435
    %2200 = vmatpush1.msra.mxu0 %v1434
    %2201 = vmatprep.subr.mxu0 %v1443
    %2202 = vmatpush1.msra.mxu0 %v1442
    %2203 = vmatprep.subr.mxu0 %v1451
    %2204 = vmatpush1.msra.mxu0 %v1450
    %2205 = vmatprep.subr.mxu0 %v1459
    %2206 = vmatpush1.msra.mxu0 %v1458
    %2207 = vmatprep.subr.mxu0 %v1467
    %2208 = vmatpush1.msra.mxu0 %v1466
    %2209 = vmatprep.subr.mxu0 %v1475
    %2210 = vmatpush1.msra.mxu0 %v1474
    %2211 = vmatprep.subr.mxu0 %v1483
    %2212 = vmatpush1.msra.mxu0 %v1482
    %2213 = vmatprep.subr.mxu0 %v1491
    %2214 = vmatpush1.msra.mxu0 %v1490
    %2215 = vmatprep.subr.mxu0 %v1499
    %2216 = vmatpush1.msra.mxu0 %v1498
    %2217 = vmatprep.subr.mxu0 %v1507
    %2218 = vmatpush1.msra.mxu0 %v1506
    %2219 = vmatprep.subr.mxu0 %v1515
    %2220 = vmatpush1.msra.mxu0 %v1514
    %2221 = vmatprep.subr.mxu0 %v1523
    %2222 = vmatpush1.msra.mxu0 %v1522
    %2223 = vmatprep.subr.mxu0 %v1531
    %2224 = vmatpush1.msra.mxu0 %v1530
    %2225 = vmatprep.subr.mxu0 %v1539
    %2226 = vmatpush1.msra.mxu0 %v1538
    %2227 = vmatprep.subr.mxu0 %v1547
    %2228 = vmatpush1.msra.mxu0 %v1546
    %2229 = vmatprep.subr.mxu0 %v1555
    %2230 = vmatpush1.msra.mxu0 %v1554
    %2231 = vmatprep.subr.mxu0 %v1563
    %2232 = vmatpush1.msra.mxu0 %v1562
    %2233 = vmatprep.subr.mxu0 %v1571
    %2234 = vmatpush1.msra.mxu0 %v1570
    %2235 = vmatprep.subr.mxu0 %v1579
    %2236 = vmatpush1.msra.mxu0 %v1578
    %2237 = vmatprep.subr.mxu0 %v1587
    %2238 = vmatpush1.msra.mxu0 %v1586
    %2239 = vmatprep.subr.mxu0 %v1595
    %2240 = vmatpush1.msra.mxu0 %v1594
    %2241 = vmatprep.subr.mxu0 %v1603
    %2242 = vmatpush1.msra.mxu0 %v1602
    %2243 = vmatprep.subr.mxu0 %v1611
    %2244 = vmatpush1.msra.mxu0 %v1610
    %2245 = vmatprep.mubr.f32.mxu0 %v1101
    %2246 = vmatmul.mubr.f32.gmra.mrb[0].mxu0 %v1100
    %v2247 = vpop.f32.mrb[0].mxu0
    %v2248 = vadd.f32 %v2177, %v2247
    %v2249 = vpop.f32.mrb[0].mxu0
    %v2250 = vadd.f32 %v2179, %v2249
    %2251 = vdwg.mxu0
    %2252 = vmatprep.subr.mxu0 %v1619
    %2253 = vmatpush1.msra.mxu0 %v1618
    %2254 = vmatprep.subr.mxu0 %v1627
    %2255 = vmatpush1.msra.mxu0 %v1626
    %2256 = vmatprep.subr.mxu0 %v1635
    %2257 = vmatpush1.msra.mxu0 %v1634
    %2258 = vmatprep.subr.mxu0 %v1643
    %2259 = vmatpush1.msra.mxu0 %v1642
    %2260 = vmatprep.subr.mxu0 %v1651
    %2261 = vmatpush1.msra.mxu0 %v1650
    %2262 = vmatprep.subr.mxu0 %v1659
    %2263 = vmatpush1.msra.mxu0 %v1658
    %2264 = vmatprep.subr.mxu0 %v1667
    %2265 = vmatpush1.msra.mxu0 %v1666
    %2266 = vmatprep.subr.mxu0 %v1675
    %2267 = vmatpush1.msra.mxu0 %v1674
    %2268 = vmatprep.subr.mxu0 %v1683
    %2269 = vmatpush1.msra.mxu0 %v1682
    %2270 = vmatprep.subr.mxu0 %v1691
    %2271 = vmatpush1.msra.mxu0 %v1690
    %2272 = vmatprep.subr.mxu0 %v1699
    %2273 = vmatpush1.msra.mxu0 %v1698
    %2274 = vmatprep.subr.mxu0 %v1707
    %2275 = vmatpush1.msra.mxu0 %v1706
    %2276 = vmatprep.subr.mxu0 %v1715
    %2277 = vmatpush1.msra.mxu0 %v1714
    %2278 = vmatprep.subr.mxu0 %v1723
    %2279 = vmatpush1.msra.mxu0 %v1722
    %2280 = vmatprep.subr.mxu0 %v1731
    %2281 = vmatpush1.msra.mxu0 %v1730
    %2282 = vmatprep.subr.mxu0 %v1739
    %2283 = vmatpush1.msra.mxu0 %v1738
    %2284 = vmatprep.subr.mxu0 %v1747
    %2285 = vmatpush1.msra.mxu0 %v1746
    %2286 = vmatprep.subr.mxu0 %v1755
    %2287 = vmatpush1.msra.mxu0 %v1754
    %2288 = vmatprep.subr.mxu0 %v1763
    %2289 = vmatpush1.msra.mxu0 %v1762
    %2290 = vmatprep.subr.mxu0 %v1771
    %2291 = vmatpush1.msra.mxu0 %v1770
    %2292 = vmatprep.subr.mxu0 %v1779
    %2293 = vmatpush1.msra.mxu0 %v1778
    %2294 = vmatprep.subr.mxu0 %v1787
    %2295 = vmatpush1.msra.mxu0 %v1786
    %2296 = vmatprep.subr.mxu0 %v1795
    %2297 = vmatpush1.msra.mxu0 %v1794
    %2298 = vmatprep.subr.mxu0 %v1803
    %2299 = vmatpush1.msra.mxu0 %v1802
    %2300 = vmatprep.subr.mxu0 %v1811
    %2301 = vmatpush1.msra.mxu0 %v1810
    %2302 = vmatprep.subr.mxu0 %v1819
    %2303 = vmatpush1.msra.mxu0 %v1818
    %2304 = vmatprep.subr.mxu0 %v1827
    %2305 = vmatpush1.msra.mxu0 %v1826
    %2306 = vmatprep.subr.mxu0 %v1835
    %2307 = vmatpush1.msra.mxu0 %v1834
    %2308 = vmatprep.subr.mxu0 %v1843
    %2309 = vmatpush1.msra.mxu0 %v1842
    %2310 = vmatprep.subr.mxu0 %v1851
    %2311 = vmatpush1.msra.mxu0 %v1850
    %2312 = vmatprep.subr.mxu0 %v1859
    %2313 = vmatpush1.msra.mxu0 %v1858
    %2314 = vmatprep.subr.mxu0 %v1867
    %2315 = vmatpush1.msra.mxu0 %v1866
    %2316 = vmatprep.mubr.f32.mxu0 %v1103
    %2317 = vmatmul.mubr.f32.gmra.mrb[0].mxu0 %v1102
    %v2318 = vpop.f32.mrb[0].mxu0
    %v2319 = vadd.f32 %v2248, %v2318
    %v2320 = vpop.f32.mrb[0].mxu0
    %v2321 = vadd.f32 %v2250, %v2320
    %2322 = vdwg.mxu0
    %2323 = vmatprep.subr.mxu0 %v1875
    %2324 = vmatpush1.msra.mxu0 %v1874
    %2325 = vmatprep.subr.mxu0 %v1883
    %2326 = vmatpush1.msra.mxu0 %v1882
    %2327 = vmatprep.subr.mxu0 %v1891
    %2328 = vmatpush1.msra.mxu0 %v1890
    %2329 = vmatprep.subr.mxu0 %v1899
    %2330 = vmatpush1.msra.mxu0 %v1898
    %2331 = vmatprep.subr.mxu0 %v1907
    %2332 = vmatpush1.msra.mxu0 %v1906
    %2333 = vmatprep.subr.mxu0 %v1915
    %2334 = vmatpush1.msra.mxu0 %v1914
    %2335 = vmatprep.subr.mxu0 %v1923
    %2336 = vmatpush1.msra.mxu0 %v1922
    %2337 = vmatprep.subr.mxu0 %v1931
    %2338 = vmatpush1.msra.mxu0 %v1930
    %2339 = vmatprep.subr.mxu0 %v1939
    %2340 = vmatpush1.msra.mxu0 %v1938
    %2341 = vmatprep.subr.mxu0 %v1947
    %2342 = vmatpush1.msra.mxu0 %v1946
    %2343 = vmatprep.subr.mxu0 %v1955
    %2344 = vmatpush1.msra.mxu0 %v1954
    %2345 = vmatprep.subr.mxu0 %v1963
    %2346 = vmatpush1.msra.mxu0 %v1962
    %2347 = vmatprep.subr.mxu0 %v1971
    %2348 = vmatpush1.msra.mxu0 %v1970
    %2349 = vmatprep.subr.mxu0 %v1979
    %2350 = vmatpush1.msra.mxu0 %v1978
    %2351 = vmatprep.subr.mxu0 %v1987
    %2352 = vmatpush1.msra.mxu0 %v1986
    %2353 = vmatprep.subr.mxu0 %v1995
    %2354 = vmatpush1.msra.mxu0 %v1994
    %2355 = vmatprep.subr.mxu0 %v2003
    %2356 = vmatpush1.msra.mxu0 %v2002
    %2357 = vmatprep.subr.mxu0 %v2011
    %2358 = vmatpush1.msra.mxu0 %v2010
    %2359 = vmatprep.subr.mxu0 %v2019
    %2360 = vmatpush1.msra.mxu0 %v2018
    %2361 = vmatprep.subr.mxu0 %v2027
    %2362 = vmatpush1.msra.mxu0 %v2026
    %2363 = vmatprep.subr.mxu0 %v2035
    %2364 = vmatpush1.msra.mxu0 %v2034
    %2365 = vmatprep.subr.mxu0 %v2043
    %2366 = vmatpush1.msra.mxu0 %v2042
    %2367 = vmatprep.subr.mxu0 %v2051
    %2368 = vmatpush1.msra.mxu0 %v2050
    %2369 = vmatprep.subr.mxu0 %v2059
    %2370 = vmatpush1.msra.mxu0 %v2058
    %2371 = vmatprep.subr.mxu0 %v2067
    %2372 = vmatpush1.msra.mxu0 %v2066
    %2373 = vmatprep.subr.mxu0 %v2075
    %2374 = vmatpush1.msra.mxu0 %v2074
    %2375 = vmatprep.subr.mxu0 %v2083
    %2376 = vmatpush1.msra.mxu0 %v2082
    %2377 = vmatprep.subr.mxu0 %v2091
    %2378 = vmatpush1.msra.mxu0 %v2090
    %2379 = vmatprep.subr.mxu0 %v2099
    %2380 = vmatpush1.msra.mxu0 %v2098
    %2381 = vmatprep.subr.mxu0 0.0
    %2382 = vmatpush1.msra.mxu0 0.0
    %2383 = vmatprep.subr.mxu0 0.0
    %2384 = vmatpush1.msra.mxu0 0.0
    %2385 = vmatprep.subr.mxu0 0.0
    %2386 = vmatpush1.msra.mxu0 0.0
    %2387 = vmatprep.mubr.f32.mxu0 %v2108
    %2388 = vmatmul.mubr.f32.gmra.mrb[0].mxu0 %v1104
    %v2389 = vpop.f32.mrb[0].mxu0
    %v2390 = vadd.f32 %v2319, %v2389
    %v2391 = vpop.f32.mrb[0].mxu0
    %v2392 = vadd.f32 %v2321, %v2391
    %2393 = vdwg.mxu0
    %2394 = vmatprep.subr.mxu0 %v1109
    %2395 = vmatpush1.msra.mxu0 %v1108
    %2396 = vmatprep.subr.mxu0 %v1117
    %2397 = vmatpush1.msra.mxu0 %v1116
    %2398 = vmatprep.subr.mxu0 %v1125
    %2399 = vmatpush1.msra.mxu0 %v1124
    %2400 = vmatprep.subr.mxu0 %v1133
    %2401 = vmatpush1.msra.mxu0 %v1132
    %2402 = vmatprep.subr.mxu0 %v1141
    %2403 = vmatpush1.msra.mxu0 %v1140
    %2404 = vmatprep.subr.mxu0 %v1149
    %2405 = vmatpush1.msra.mxu0 %v1148
    %2406 = vmatprep.subr.mxu0 %v1157
    %2407 = vmatpush1.msra.mxu0 %v1156
    %2408 = vmatprep.subr.mxu0 %v1165
    %2409 = vmatpush1.msra.mxu0 %v1164
    %2410 = vmatprep.subr.mxu0 %v1173
    %2411 = vmatpush1.msra.mxu0 %v1172
    %2412 = vmatprep.subr.mxu0 %v1181
    %2413 = vmatpush1.msra.mxu0 %v1180
    %2414 = vmatprep.subr.mxu0 %v1189
    %2415 = vmatpush1.msra.mxu0 %v1188
    %2416 = vmatprep.subr.mxu0 %v1197
    %2417 = vmatpush1.msra.mxu0 %v1196
    %2418 = vmatprep.subr.mxu0 %v1205
    %2419 = vmatpush1.msra.mxu0 %v1204
    %2420 = vmatprep.subr.mxu0 %v1213
    %2421 = vmatpush1.msra.mxu0 %v1212
    %2422 = vmatprep.subr.mxu0 %v1221
    %2423 = vmatpush1.msra.mxu0 %v1220
    %2424 = vmatprep.subr.mxu0 %v1229
    %2425 = vmatpush1.msra.mxu0 %v1228
    %2426 = vmatprep.subr.mxu0 %v1237
    %2427 = vmatpush1.msra.mxu0 %v1236
    %2428 = vmatprep.subr.mxu0 %v1245
    %2429 = vmatpush1.msra.mxu0 %v1244
    %2430 = vmatprep.subr.mxu0 %v1253
    %2431 = vmatpush1.msra.mxu0 %v1252
    %2432 = vmatprep.subr.mxu0 %v1261
    %2433 = vmatpush1.msra.mxu0 %v1260
    %2434 = vmatprep.subr.mxu0 %v1269
    %2435 = vmatpush1.msra.mxu0 %v1268
    %2436 = vmatprep.subr.mxu0 %v1277
    %2437 = vmatpush1.msra.mxu0 %v1276
    %2438 = vmatprep.subr.mxu0 %v1285
    %2439 = vmatpush1.msra.mxu0 %v1284
    %2440 = vmatprep.subr.mxu0 %v1293
    %2441 = vmatpush1.msra.mxu0 %v1292
    %2442 = vmatprep.subr.mxu0 %v1301
    %2443 = vmatpush1.msra.mxu0 %v1300
    %2444 = vmatprep.subr.mxu0 %v1309
    %2445 = vmatpush1.msra.mxu0 %v1308
    %2446 = vmatprep.subr.mxu0 %v1317
    %2447 = vmatpush1.msra.mxu0 %v1316
    %2448 = vmatprep.subr.mxu0 %v1325
    %2449 = vmatpush1.msra.mxu0 %v1324
    %2450 = vmatprep.subr.mxu0 %v1333
    %2451 = vmatpush1.msra.mxu0 %v1332
    %2452 = vmatprep.subr.mxu0 %v1341
    %2453 = vmatpush1.msra.mxu0 %v1340
    %2454 = vmatprep.subr.mxu0 %v1349
    %2455 = vmatpush1.msra.mxu0 %v1348
    %2456 = vmatprep.subr.mxu0 %v1357
    %2457 = vmatpush1.msra.mxu0 %v1356
    %2458 = vmatprep.mubr.f32.mxu0 %v1099
    %2459 = vmatmul.mubr.f32.gmra.mrb[0].mxu0 %v1098
    %v2460 = vpop.f32.mrb[0].mxu0
    %v2461 = vadd.f32 0.0, %v2460
    %v2462 = vpop.f32.mrb[0].mxu0
    %v2463 = vadd.f32 0.0, %v2462
    %2464 = vdwg.mxu0
    %2465 = vmatprep.subr.mxu0 %v1365
    %2466 = vmatpush1.msra.mxu0 %v1364
    %2467 = vmatprep.subr.mxu0 %v1373
    %2468 = vmatpush1.msra.mxu0 %v1372
    %2469 = vmatprep.subr.mxu0 %v1381
    %2470 = vmatpush1.msra.mxu0 %v1380
    %2471 = vmatprep.subr.mxu0 %v1389
    %2472 = vmatpush1.msra.mxu0 %v1388
    %2473 = vmatprep.subr.mxu0 %v1397
    %2474 = vmatpush1.msra.mxu0 %v1396
    %2475 = vmatprep.subr.mxu0 %v1405
    %2476 = vmatpush1.msra.mxu0 %v1404
    %2477 = vmatprep.subr.mxu0 %v1413
    %2478 = vmatpush1.msra.mxu0 %v1412
    %2479 = vmatprep.subr.mxu0 %v1421
    %2480 = vmatpush1.msra.mxu0 %v1420
    %2481 = vmatprep.subr.mxu0 %v1429
    %2482 = vmatpush1.msra.mxu0 %v1428
    %2483 = vmatprep.subr.mxu0 %v1437
    %2484 = vmatpush1.msra.mxu0 %v1436
    %2485 = vmatprep.subr.mxu0 %v1445
    %2486 = vmatpush1.msra.mxu0 %v1444
    %2487 = vmatprep.subr.mxu0 %v1453
    %2488 = vmatpush1.msra.mxu0 %v1452
    %2489 = vmatprep.subr.mxu0 %v1461
    %2490 = vmatpush1.msra.mxu0 %v1460
    %2491 = vmatprep.subr.mxu0 %v1469
    %2492 = vmatpush1.msra.mxu0 %v1468
    %2493 = vmatprep.subr.mxu0 %v1477
    %2494 = vmatpush1.msra.mxu0 %v1476
    %2495 = vmatprep.subr.mxu0 %v1485
    %2496 = vmatpush1.msra.mxu0 %v1484
    %2497 = vmatprep.subr.mxu0 %v1493
    %2498 = vmatpush1.msra.mxu0 %v1492
    %2499 = vmatprep.subr.mxu0 %v1501
    %2500 = vmatpush1.msra.mxu0 %v1500
    %2501 = vmatprep.subr.mxu0 %v1509
    %2502 = vmatpush1.msra.mxu0 %v1508
    %2503 = vmatprep.subr.mxu0 %v1517
    %2504 = vmatpush1.msra.mxu0 %v1516
    %2505 = vmatprep.subr.mxu0 %v1525
    %2506 = vmatpush1.msra.mxu0 %v1524
    %2507 = vmatprep.subr.mxu0 %v1533
    %2508 = vmatpush1.msra.mxu0 %v1532
    %2509 = vmatprep.subr.mxu0 %v1541
    %2510 = vmatpush1.msra.mxu0 %v1540
    %2511 = vmatprep.subr.mxu0 %v1549
    %2512 = vmatpush1.msra.mxu0 %v1548
    %2513 = vmatprep.subr.mxu0 %v1557
    %2514 = vmatpush1.msra.mxu0 %v1556
    %2515 = vmatprep.subr.mxu0 %v1565
    %2516 = vmatpush1.msra.mxu0 %v1564
    %2517 = vmatprep.subr.mxu0 %v1573
    %2518 = vmatpush1.msra.mxu0 %v1572
    %2519 = vmatprep.subr.mxu0 %v1581
    %2520 = vmatpush1.msra.mxu0 %v1580
    %2521 = vmatprep.subr.mxu0 %v1589
    %2522 = vmatpush1.msra.mxu0 %v1588
    %2523 = vmatprep.subr.mxu0 %v1597
    %2524 = vmatpush1.msra.mxu0 %v1596
    %2525 = vmatprep.subr.mxu0 %v1605
    %2526 = vmatpush1.msra.mxu0 %v1604
    %2527 = vmatprep.subr.mxu0 %v1613
    %2528 = vmatpush1.msra.mxu0 %v1612
    %2529 = vmatprep.mubr.f32.mxu0 %v1101
    %2530 = vmatmul.mubr.f32.gmra.mrb[0].mxu0 %v1100
    %v2531 = vpop.f32.mrb[0].mxu0
    %v2532 = vadd.f32 %v2461, %v2531
    %v2533 = vpop.f32.mrb[0].mxu0
    %v2534 = vadd.f32 %v2463, %v2533
    %2535 = vdwg.mxu0
    %2536 = vmatprep.subr.mxu0 %v1621
    %2537 = vmatpush1.msra.mxu0 %v1620
    %2538 = vmatprep.subr.mxu0 %v1629
    %2539 = vmatpush1.msra.mxu0 %v1628
    %2540 = vmatprep.subr.mxu0 %v1637
    %2541 = vmatpush1.msra.mxu0 %v1636
    %2542 = vmatprep.subr.mxu0 %v1645
    %2543 = vmatpush1.msra.mxu0 %v1644
    %2544 = vmatprep.subr.mxu0 %v1653
    %2545 = vmatpush1.msra.mxu0 %v1652
    %2546 = vmatprep.subr.mxu0 %v1661
    %2547 = vmatpush1.msra.mxu0 %v1660
    %2548 = vmatprep.subr.mxu0 %v1669
    %2549 = vmatpush1.msra.mxu0 %v1668
    %2550 = vmatprep.subr.mxu0 %v1677
    %2551 = vmatpush1.msra.mxu0 %v1676
    %2552 = vmatprep.subr.mxu0 %v1685
    %2553 = vmatpush1.msra.mxu0 %v1684
    %2554 = vmatprep.subr.mxu0 %v1693
    %2555 = vmatpush1.msra.mxu0 %v1692
    %2556 = vmatprep.subr.mxu0 %v1701
    %2557 = vmatpush1.msra.mxu0 %v1700
    %2558 = vmatprep.subr.mxu0 %v1709
    %2559 = vmatpush1.msra.mxu0 %v1708
    %2560 = vmatprep.subr.mxu0 %v1717
    %2561 = vmatpush1.msra.mxu0 %v1716
    %2562 = vmatprep.subr.mxu0 %v1725
    %2563 = vmatpush1.msra.mxu0 %v1724
    %2564 = vmatprep.subr.mxu0 %v1733
    %2565 = vmatpush1.msra.mxu0 %v1732
    %2566 = vmatprep.subr.mxu0 %v1741
    %2567 = vmatpush1.msra.mxu0 %v1740
    %2568 = vmatprep.subr.mxu0 %v1749
    %2569 = vmatpush1.msra.mxu0 %v1748
    %2570 = vmatprep.subr.mxu0 %v1757
    %2571 = vmatpush1.msra.mxu0 %v1756
    %2572 = vmatprep.subr.mxu0 %v1765
    %2573 = vmatpush1.msra.mxu0 %v1764
    %2574 = vmatprep.subr.mxu0 %v1773
    %2575 = vmatpush1.msra.mxu0 %v1772
    %2576 = vmatprep.subr.mxu0 %v1781
    %2577 = vmatpush1.msra.mxu0 %v1780
    %2578 = vmatprep.subr.mxu0 %v1789
    %2579 = vmatpush1.msra.mxu0 %v1788
    %2580 = vmatprep.subr.mxu0 %v1797
    %2581 = vmatpush1.msra.mxu0 %v1796
    %2582 = vmatprep.subr.mxu0 %v1805
    %2583 = vmatpush1.msra.mxu0 %v1804
    %2584 = vmatprep.subr.mxu0 %v1813
    %2585 = vmatpush1.msra.mxu0 %v1812
    %2586 = vmatprep.subr.mxu0 %v1821
    %2587 = vmatpush1.msra.mxu0 %v1820
    %2588 = vmatprep.subr.mxu0 %v1829
    %2589 = vmatpush1.msra.mxu0 %v1828
    %2590 = vmatprep.subr.mxu0 %v1837
    %2591 = vmatpush1.msra.mxu0 %v1836
    %2592 = vmatprep.subr.mxu0 %v1845
    %2593 = vmatpush1.msra.mxu0 %v1844
    %2594 = vmatprep.subr.mxu0 %v1853
    %2595 = vmatpush1.msra.mxu0 %v1852
    %2596 = vmatprep.subr.mxu0 %v1861
    %2597 = vmatpush1.msra.mxu0 %v1860
    %2598 = vmatprep.subr.mxu0 %v1869
    %2599 = vmatpush1.msra.mxu0 %v1868
    %2600 = vmatprep.mubr.f32.mxu0 %v1103
    %2601 = vmatmul.mubr.f32.gmra.mrb[0].mxu0 %v1102
    %v2602 = vpop.f32.mrb[0].mxu0
    %v2603 = vadd.f32 %v2532, %v2602
    %v2604 = vpop.f32.mrb[0].mxu0
    %v2605 = vadd.f32 %v2534, %v2604
    %2606 = vdwg.mxu0
    %2607 = vmatprep.subr.mxu0 %v1877
    %2608 = vmatpush1.msra.mxu0 %v1876
    %2609 = vmatprep.subr.mxu0 %v1885
    %2610 = vmatpush1.msra.mxu0 %v1884
    %2611 = vmatprep.subr.mxu0 %v1893
    %2612 = vmatpush1.msra.mxu0 %v1892
    %2613 = vmatprep.subr.mxu0 %v1901
    %2614 = vmatpush1.msra.mxu0 %v1900
    %2615 = vmatprep.subr.mxu0 %v1909
    %2616 = vmatpush1.msra.mxu0 %v1908
    %2617 = vmatprep.subr.mxu0 %v1917
    %2618 = vmatpush1.msra.mxu0 %v1916
    %2619 = vmatprep.subr.mxu0 %v1925
    %2620 = vmatpush1.msra.mxu0 %v1924
    %2621 = vmatprep.subr.mxu0 %v1933
    %2622 = vmatpush1.msra.mxu0 %v1932
    %2623 = vmatprep.subr.mxu0 %v1941
    %2624 = vmatpush1.msra.mxu0 %v1940
    %2625 = vmatprep.subr.mxu0 %v1949
    %2626 = vmatpush1.msra.mxu0 %v1948
    %2627 = vmatprep.subr.mxu0 %v1957
    %2628 = vmatpush1.msra.mxu0 %v1956
    %2629 = vmatprep.subr.mxu0 %v1965
    %2630 = vmatpush1.msra.mxu0 %v1964
    %2631 = vmatprep.subr.mxu0 %v1973
    %2632 = vmatpush1.msra.mxu0 %v1972
    %2633 = vmatprep.subr.mxu0 %v1981
    %2634 = vmatpush1.msra.mxu0 %v1980
    %2635 = vmatprep.subr.mxu0 %v1989
    %2636 = vmatpush1.msra.mxu0 %v1988
    %2637 = vmatprep.subr.mxu0 %v1997
    %2638 = vmatpush1.msra.mxu0 %v1996
    %2639 = vmatprep.subr.mxu0 %v2005
    %2640 = vmatpush1.msra.mxu0 %v2004
    %2641 = vmatprep.subr.mxu0 %v2013
    %2642 = vmatpush1.msra.mxu0 %v2012
    %2643 = vmatprep.subr.mxu0 %v2021
    %2644 = vmatpush1.msra.mxu0 %v2020
    %2645 = vmatprep.subr.mxu0 %v2029
    %2646 = vmatpush1.msra.mxu0 %v2028
    %2647 = vmatprep.subr.mxu0 %v2037
    %2648 = vmatpush1.msra.mxu0 %v2036
    %2649 = vmatprep.subr.mxu0 %v2045
    %2650 = vmatpush1.msra.mxu0 %v2044
    %2651 = vmatprep.subr.mxu0 %v2053
    %2652 = vmatpush1.msra.mxu0 %v2052
    %2653 = vmatprep.subr.mxu0 %v2061
    %2654 = vmatpush1.msra.mxu0 %v2060
    %2655 = vmatprep.subr.mxu0 %v2069
    %2656 = vmatpush1.msra.mxu0 %v2068
    %2657 = vmatprep.subr.mxu0 %v2077
    %2658 = vmatpush1.msra.mxu0 %v2076
    %2659 = vmatprep.subr.mxu0 %v2085
    %2660 = vmatpush1.msra.mxu0 %v2084
    %2661 = vmatprep.subr.mxu0 %v2093
    %2662 = vmatpush1.msra.mxu0 %v2092
    %2663 = vmatprep.subr.mxu0 %v2101
    %2664 = vmatpush1.msra.mxu0 %v2100
    %2665 = vmatprep.subr.mxu0 0.0
    %2666 = vmatpush1.msra.mxu0 0.0
    %2667 = vmatprep.subr.mxu0 0.0
    %2668 = vmatpush1.msra.mxu0 0.0
    %2669 = vmatprep.subr.mxu0 0.0
    %2670 = vmatpush1.msra.mxu0 0.0
    %2671 = vmatprep.mubr.f32.mxu0 %v2108
    %2672 = vmatmul.mubr.f32.gmra.mrb[0].mxu0 %v1104
    %v2673 = vpop.f32.mrb[0].mxu0
    %v2674 = vadd.f32 %v2603, %v2673
    %v2675 = vpop.f32.mrb[0].mxu0
    %v2676 = vadd.f32 %v2605, %v2675
    %2677 = vdwg.mxu0
    %2678 = vmatprep.subr.mxu0 %v1111
    %2679 = vmatpush1.msra.mxu0 %v1110
    %2680 = vmatprep.subr.mxu0 %v1119
    %2681 = vmatpush1.msra.mxu0 %v1118
    %2682 = vmatprep.subr.mxu0 %v1127
    %2683 = vmatpush1.msra.mxu0 %v1126
    %2684 = vmatprep.subr.mxu0 %v1135
    %2685 = vmatpush1.msra.mxu0 %v1134
    %2686 = vmatprep.subr.mxu0 %v1143
    %2687 = vmatpush1.msra.mxu0 %v1142
    %2688 = vmatprep.subr.mxu0 %v1151
    %2689 = vmatpush1.msra.mxu0 %v1150
    %2690 = vmatprep.subr.mxu0 %v1159
    %2691 = vmatpush1.msra.mxu0 %v1158
    %2692 = vmatprep.subr.mxu0 %v1167
    %2693 = vmatpush1.msra.mxu0 %v1166
    %2694 = vmatprep.subr.mxu0 %v1175
    %2695 = vmatpush1.msra.mxu0 %v1174
    %2696 = vmatprep.subr.mxu0 %v1183
    %2697 = vmatpush1.msra.mxu0 %v1182
    %2698 = vmatprep.subr.mxu0 %v1191
    %2699 = vmatpush1.msra.mxu0 %v1190
    %2700 = vmatprep.subr.mxu0 %v1199
    %2701 = vmatpush1.msra.mxu0 %v1198
    %2702 = vmatprep.subr.mxu0 %v1207
    %2703 = vmatpush1.msra.mxu0 %v1206
    %2704 = vmatprep.subr.mxu0 %v1215
    %2705 = vmatpush1.msra.mxu0 %v1214
    %2706 = vmatprep.subr.mxu0 %v1223
    %2707 = vmatpush1.msra.mxu0 %v1222
    %2708 = vmatprep.subr.mxu0 %v1231
    %2709 = vmatpush1.msra.mxu0 %v1230
    %2710 = vmatprep.subr.mxu0 %v1239
    %2711 = vmatpush1.msra.mxu0 %v1238
    %2712 = vmatprep.subr.mxu0 %v1247
    %2713 = vmatpush1.msra.mxu0 %v1246
    %2714 = vmatprep.subr.mxu0 %v1255
    %2715 = vmatpush1.msra.mxu0 %v1254
    %2716 = vmatprep.subr.mxu0 %v1263
    %2717 = vmatpush1.msra.mxu0 %v1262
    %2718 = vmatprep.subr.mxu0 %v1271
    %2719 = vmatpush1.msra.mxu0 %v1270
    %2720 = vmatprep.subr.mxu0 %v1279
    %2721 = vmatpush1.msra.mxu0 %v1278
    %2722 = vmatprep.subr.mxu0 %v1287
    %2723 = vmatpush1.msra.mxu0 %v1286
    %2724 = vmatprep.subr.mxu0 %v1295
    %2725 = vmatpush1.msra.mxu0 %v1294
    %2726 = vmatprep.subr.mxu0 %v1303
    %2727 = vmatpush1.msra.mxu0 %v1302
    %2728 = vmatprep.subr.mxu0 %v1311
    %2729 = vmatpush1.msra.mxu0 %v1310
    %2730 = vmatprep.subr.mxu0 %v1319
    %2731 = vmatpush1.msra.mxu0 %v1318
    %2732 = vmatprep.subr.mxu0 %v1327
    %2733 = vmatpush1.msra.mxu0 %v1326
    %2734 = vmatprep.subr.mxu0 %v1335
    %2735 = vmatpush1.msra.mxu0 %v1334
    %2736 = vmatprep.subr.mxu0 %v1343
    %2737 = vmatpush1.msra.mxu0 %v1342
    %2738 = vmatprep.subr.mxu0 %v1351
    %2739 = vmatpush1.msra.mxu0 %v1350
    %2740 = vmatprep.subr.mxu0 %v1359
    %2741 = vmatpush1.msra.mxu0 %v1358
    %2742 = vmatprep.mubr.f32.mxu0 %v1099
    %2743 = vmatmul.mubr.f32.gmra.mrb[0].mxu0 %v1098
    %v2744 = vpop.f32.mrb[0].mxu0
    %v2745 = vadd.f32 0.0, %v2744
    %v2746 = vpop.f32.mrb[0].mxu0
    %v2747 = vadd.f32 0.0, %v2746
    %2748 = vdwg.mxu0
    %2749 = vmatprep.subr.mxu0 %v1367
    %2750 = vmatpush1.msra.mxu0 %v1366
    %2751 = vmatprep.subr.mxu0 %v1375
    %2752 = vmatpush1.msra.mxu0 %v1374
    %2753 = vmatprep.subr.mxu0 %v1383
    %2754 = vmatpush1.msra.mxu0 %v1382
    %2755 = vmatprep.subr.mxu0 %v1391
    %2756 = vmatpush1.msra.mxu0 %v1390
    %2757 = vmatprep.subr.mxu0 %v1399
    %2758 = vmatpush1.msra.mxu0 %v1398
    %2759 = vmatprep.subr.mxu0 %v1407
    %2760 = vmatpush1.msra.mxu0 %v1406
    %2761 = vmatprep.subr.mxu0 %v1415
    %2762 = vmatpush1.msra.mxu0 %v1414
    %2763 = vmatprep.subr.mxu0 %v1423
    %2764 = vmatpush1.msra.mxu0 %v1422
    %2765 = vmatprep.subr.mxu0 %v1431
    %2766 = vmatpush1.msra.mxu0 %v1430
    %2767 = vmatprep.subr.mxu0 %v1439
    %2768 = vmatpush1.msra.mxu0 %v1438
    %2769 = vmatprep.subr.mxu0 %v1447
    %2770 = vmatpush1.msra.mxu0 %v1446
    %2771 = vmatprep.subr.mxu0 %v1455
    %2772 = vmatpush1.msra.mxu0 %v1454
    %2773 = vmatprep.subr.mxu0 %v1463
    %2774 = vmatpush1.msra.mxu0 %v1462
    %2775 = vmatprep.subr.mxu0 %v1471
    %2776 = vmatpush1.msra.mxu0 %v1470
    %2777 = vmatprep.subr.mxu0 %v1479
    %2778 = vmatpush1.msra.mxu0 %v1478
    %2779 = vmatprep.subr.mxu0 %v1487
    %2780 = vmatpush1.msra.mxu0 %v1486
    %2781 = vmatprep.subr.mxu0 %v1495
    %2782 = vmatpush1.msra.mxu0 %v1494
    %2783 = vmatprep.subr.mxu0 %v1503
    %2784 = vmatpush1.msra.mxu0 %v1502
    %2785 = vmatprep.subr.mxu0 %v1511
    %2786 = vmatpush1.msra.mxu0 %v1510
    %2787 = vmatprep.subr.mxu0 %v1519
    %2788 = vmatpush1.msra.mxu0 %v1518
    %2789 = vmatprep.subr.mxu0 %v1527
    %2790 = vmatpush1.msra.mxu0 %v1526
    %2791 = vmatprep.subr.mxu0 %v1535
    %2792 = vmatpush1.msra.mxu0 %v1534
    %2793 = vmatprep.subr.mxu0 %v1543
    %2794 = vmatpush1.msra.mxu0 %v1542
    %2795 = vmatprep.subr.mxu0 %v1551
    %2796 = vmatpush1.msra.mxu0 %v1550
    %2797 = vmatprep.subr.mxu0 %v1559
    %2798 = vmatpush1.msra.mxu0 %v1558
    %2799 = vmatprep.subr.mxu0 %v1567
    %2800 = vmatpush1.msra.mxu0 %v1566
    %2801 = vmatprep.subr.mxu0 %v1575
    %2802 = vmatpush1.msra.mxu0 %v1574
    %2803 = vmatprep.subr.mxu0 %v1583
    %2804 = vmatpush1.msra.mxu0 %v1582
    %2805 = vmatprep.subr.mxu0 %v1591
    %2806 = vmatpush1.msra.mxu0 %v1590
    %2807 = vmatprep.subr.mxu0 %v1599
    %2808 = vmatpush1.msra.mxu0 %v1598
    %2809 = vmatprep.subr.mxu0 %v1607
    %2810 = vmatpush1.msra.mxu0 %v1606
    %2811 = vmatprep.subr.mxu0 %v1615
    %2812 = vmatpush1.msra.mxu0 %v1614
    %2813 = vmatprep.mubr.f32.mxu0 %v1101
    %2814 = vmatmul.mubr.f32.gmra.mrb[0].mxu0 %v1100
    %v2815 = vpop.f32.mrb[0].mxu0
    %v2816 = vadd.f32 %v2745, %v2815
    %v2817 = vpop.f32.mrb[0].mxu0
    %v2818 = vadd.f32 %v2747, %v2817
    %2819 = vdwg.mxu0
    %2820 = vmatprep.subr.mxu0 %v1623
    %2821 = vmatpush1.msra.mxu0 %v1622
    %2822 = vmatprep.subr.mxu0 %v1631
    %2823 = vmatpush1.msra.mxu0 %v1630
    %2824 = vmatprep.subr.mxu0 %v1639
    %2825 = vmatpush1.msra.mxu0 %v1638
    %2826 = vmatprep.subr.mxu0 %v1647
    %2827 = vmatpush1.msra.mxu0 %v1646
    %2828 = vmatprep.subr.mxu0 %v1655
    %2829 = vmatpush1.msra.mxu0 %v1654
    %2830 = vmatprep.subr.mxu0 %v1663
    %2831 = vmatpush1.msra.mxu0 %v1662
    %2832 = vmatprep.subr.mxu0 %v1671
    %2833 = vmatpush1.msra.mxu0 %v1670
    %2834 = vmatprep.subr.mxu0 %v1679
    %2835 = vmatpush1.msra.mxu0 %v1678
    %2836 = vmatprep.subr.mxu0 %v1687
    %2837 = vmatpush1.msra.mxu0 %v1686
    %2838 = vmatprep.subr.mxu0 %v1695
    %2839 = vmatpush1.msra.mxu0 %v1694
    %2840 = vmatprep.subr.mxu0 %v1703
    %2841 = vmatpush1.msra.mxu0 %v1702
    %2842 = vmatprep.subr.mxu0 %v1711
    %2843 = vmatpush1.msra.mxu0 %v1710
    %2844 = vmatprep.subr.mxu0 %v1719
    %2845 = vmatpush1.msra.mxu0 %v1718
    %2846 = vmatprep.subr.mxu0 %v1727
    %2847 = vmatpush1.msra.mxu0 %v1726
    %2848 = vmatprep.subr.mxu0 %v1735
    %2849 = vmatpush1.msra.mxu0 %v1734
    %2850 = vmatprep.subr.mxu0 %v1743
    %2851 = vmatpush1.msra.mxu0 %v1742
    %2852 = vmatprep.subr.mxu0 %v1751
    %2853 = vmatpush1.msra.mxu0 %v1750
    %2854 = vmatprep.subr.mxu0 %v1759
    %2855 = vmatpush1.msra.mxu0 %v1758
    %2856 = vmatprep.subr.mxu0 %v1767
    %2857 = vmatpush1.msra.mxu0 %v1766
    %2858 = vmatprep.subr.mxu0 %v1775
    %2859 = vmatpush1.msra.mxu0 %v1774
    %2860 = vmatprep.subr.mxu0 %v1783
    %2861 = vmatpush1.msra.mxu0 %v1782
    %2862 = vmatprep.subr.mxu0 %v1791
    %2863 = vmatpush1.msra.mxu0 %v1790
    %2864 = vmatprep.subr.mxu0 %v1799
    %2865 = vmatpush1.msra.mxu0 %v1798
    %2866 = vmatprep.subr.mxu0 %v1807
    %2867 = vmatpush1.msra.mxu0 %v1806
    %2868 = vmatprep.subr.mxu0 %v1815
    %2869 = vmatpush1.msra.mxu0 %v1814
    %2870 = vmatprep.subr.mxu0 %v1823
    %2871 = vmatpush1.msra.mxu0 %v1822
    %2872 = vmatprep.subr.mxu0 %v1831
    %2873 = vmatpush1.msra.mxu0 %v1830
    %2874 = vmatprep.subr.mxu0 %v1839
    %2875 = vmatpush1.msra.mxu0 %v1838
    %2876 = vmatprep.subr.mxu0 %v1847
    %2877 = vmatpush1.msra.mxu0 %v1846
    %2878 = vmatprep.subr.mxu0 %v1855
    %2879 = vmatpush1.msra.mxu0 %v1854
    %2880 = vmatprep.subr.mxu0 %v1863
    %2881 = vmatpush1.msra.mxu0 %v1862
    %2882 = vmatprep.subr.mxu0 %v1871
    %2883 = vmatpush1.msra.mxu0 %v1870
    %2884 = vmatprep.mubr.f32.mxu0 %v1103
    %2885 = vmatmul.mubr.f32.gmra.mrb[0].mxu0 %v1102
    %v2886 = vpop.f32.mrb[0].mxu0
    %v2887 = vadd.f32 %v2816, %v2886
    %v2888 = vpop.f32.mrb[0].mxu0
    %v2889 = vadd.f32 %v2818, %v2888
    %2890 = vdwg.mxu0
    %2891 = vmatprep.subr.mxu0 %v1879
    %2892 = vmatpush1.msra.mxu0 %v1878
    %2893 = vmatprep.subr.mxu0 %v1887
    %2894 = vmatpush1.msra.mxu0 %v1886
    %2895 = vmatprep.subr.mxu0 %v1895
    %2896 = vmatpush1.msra.mxu0 %v1894
    %2897 = vmatprep.subr.mxu0 %v1903
    %2898 = vmatpush1.msra.mxu0 %v1902
    %2899 = vmatprep.subr.mxu0 %v1911
    %2900 = vmatpush1.msra.mxu0 %v1910
    %2901 = vmatprep.subr.mxu0 %v1919
    %2902 = vmatpush1.msra.mxu0 %v1918
    %2903 = vmatprep.subr.mxu0 %v1927
    %2904 = vmatpush1.msra.mxu0 %v1926
    %2905 = vmatprep.subr.mxu0 %v1935
    %2906 = vmatpush1.msra.mxu0 %v1934
    %2907 = vmatprep.subr.mxu0 %v1943
    %2908 = vmatpush1.msra.mxu0 %v1942
    %2909 = vmatprep.subr.mxu0 %v1951
    %2910 = vmatpush1.msra.mxu0 %v1950
    %2911 = vmatprep.subr.mxu0 %v1959
    %2912 = vmatpush1.msra.mxu0 %v1958
    %2913 = vmatprep.subr.mxu0 %v1967
    %2914 = vmatpush1.msra.mxu0 %v1966
    %2915 = vmatprep.subr.mxu0 %v1975
    %2916 = vmatpush1.msra.mxu0 %v1974
    %2917 = vmatprep.subr.mxu0 %v1983
    %2918 = vmatpush1.msra.mxu0 %v1982
    %2919 = vmatprep.subr.mxu0 %v1991
    %2920 = vmatpush1.msra.mxu0 %v1990
    %2921 = vmatprep.subr.mxu0 %v1999
    %2922 = vmatpush1.msra.mxu0 %v1998
    %2923 = vmatprep.subr.mxu0 %v2007
    %2924 = vmatpush1.msra.mxu0 %v2006
    %2925 = vmatprep.subr.mxu0 %v2015
    %2926 = vmatpush1.msra.mxu0 %v2014
    %2927 = vmatprep.subr.mxu0 %v2023
    %2928 = vmatpush1.msra.mxu0 %v2022
    %2929 = vmatprep.subr.mxu0 %v2031
    %2930 = vmatpush1.msra.mxu0 %v2030
    %2931 = vmatprep.subr.mxu0 %v2039
    %2932 = vmatpush1.msra.mxu0 %v2038
    %2933 = vmatprep.subr.mxu0 %v2047
    %2934 = vmatpush1.msra.mxu0 %v2046
    %2935 = vmatprep.subr.mxu0 %v2055
    %2936 = vmatpush1.msra.mxu0 %v2054
    %2937 = vmatprep.subr.mxu0 %v2063
    %2938 = vmatpush1.msra.mxu0 %v2062
    %2939 = vmatprep.subr.mxu0 %v2071
    %2940 = vmatpush1.msra.mxu0 %v2070
    %2941 = vmatprep.subr.mxu0 %v2079
    %2942 = vmatpush1.msra.mxu0 %v2078
    %2943 = vmatprep.subr.mxu0 %v2087
    %2944 = vmatpush1.msra.mxu0 %v2086
    %2945 = vmatprep.subr.mxu0 %v2095
    %2946 = vmatpush1.msra.mxu0 %v2094
    %2947 = vmatprep.subr.mxu0 %v2103
    %2948 = vmatpush1.msra.mxu0 %v2102
    %2949 = vmatprep.subr.mxu0 0.0
    %2950 = vmatpush1.msra.mxu0 0.0
    %2951 = vmatprep.subr.mxu0 0.0
    %2952 = vmatpush1.msra.mxu0 0.0
    %2953 = vmatprep.subr.mxu0 0.0
    %2954 = vmatpush1.msra.mxu0 0.0
    %2955 = vmatprep.mubr.f32.mxu0 %v2108
    %2956 = vmatmul.mubr.f32.gmra.mrb[0].mxu0 %v1104
    %v2957 = vpop.f32.mrb[0].mxu0
    %v2958 = vadd.f32 %v2887, %v2957
    %v2959 = vpop.f32.mrb[0].mxu0
    %v2960 = vadd.f32 %v2889, %v2959
    %2961 = vdwg.mxu0
    %2962 = vmatprep.subr.mxu0 %v1113
    %2963 = vmatpush1.msra.mxu0 %v1112
    %2964 = vmatprep.subr.mxu0 %v1121
    %2965 = vmatpush1.msra.mxu0 %v1120
    %2966 = vmatprep.subr.mxu0 %v1129
    %2967 = vmatpush1.msra.mxu0 %v1128
    %2968 = vmatprep.subr.mxu0 %v1137
    %2969 = vmatpush1.msra.mxu0 %v1136
    %2970 = vmatprep.subr.mxu0 %v1145
    %2971 = vmatpush1.msra.mxu0 %v1144
    %2972 = vmatprep.subr.mxu0 %v1153
    %2973 = vmatpush1.msra.mxu0 %v1152
    %2974 = vmatprep.subr.mxu0 %v1161
    %2975 = vmatpush1.msra.mxu0 %v1160
    %2976 = vmatprep.subr.mxu0 %v1169
    %2977 = vmatpush1.msra.mxu0 %v1168
    %2978 = vmatprep.subr.mxu0 %v1177
    %2979 = vmatpush1.msra.mxu0 %v1176
    %2980 = vmatprep.subr.mxu0 %v1185
    %2981 = vmatpush1.msra.mxu0 %v1184
    %2982 = vmatprep.subr.mxu0 %v1193
    %2983 = vmatpush1.msra.mxu0 %v1192
    %2984 = vmatprep.subr.mxu0 %v1201
    %2985 = vmatpush1.msra.mxu0 %v1200
    %2986 = vmatprep.subr.mxu0 %v1209
    %2987 = vmatpush1.msra.mxu0 %v1208
    %2988 = vmatprep.subr.mxu0 %v1217
    %2989 = vmatpush1.msra.mxu0 %v1216
    %2990 = vmatprep.subr.mxu0 %v1225
    %2991 = vmatpush1.msra.mxu0 %v1224
    %2992 = vmatprep.subr.mxu0 %v1233
    %2993 = vmatpush1.msra.mxu0 %v1232
    %2994 = vmatprep.subr.mxu0 %v1241
    %2995 = vmatpush1.msra.mxu0 %v1240
    %2996 = vmatprep.subr.mxu0 %v1249
    %2997 = vmatpush1.msra.mxu0 %v1248
    %2998 = vmatprep.subr.mxu0 %v1257
    %2999 = vmatpush1.msra.mxu0 %v1256
    %3000 = vmatprep.subr.mxu0 %v1265
    %3001 = vmatpush1.msra.mxu0 %v1264
    %3002 = vmatprep.subr.mxu0 %v1273
    %3003 = vmatpush1.msra.mxu0 %v1272
    %3004 = vmatprep.subr.mxu0 %v1281
    %3005 = vmatpush1.msra.mxu0 %v1280
    %3006 = vmatprep.subr.mxu0 %v1289
    %3007 = vmatpush1.msra.mxu0 %v1288
    %3008 = vmatprep.subr.mxu0 %v1297
    %3009 = vmatpush1.msra.mxu0 %v1296
    %3010 = vmatprep.subr.mxu0 %v1305
    %3011 = vmatpush1.msra.mxu0 %v1304
    %3012 = vmatprep.subr.mxu0 %v1313
    %3013 = vmatpush1.msra.mxu0 %v1312
    %3014 = vmatprep.subr.mxu0 %v1321
    %3015 = vmatpush1.msra.mxu0 %v1320
    %3016 = vmatprep.subr.mxu0 %v1329
    %3017 = vmatpush1.msra.mxu0 %v1328
    %3018 = vmatprep.subr.mxu0 %v1337
    %3019 = vmatpush1.msra.mxu0 %v1336
    %3020 = vmatprep.subr.mxu0 %v1345
    %3021 = vmatpush1.msra.mxu0 %v1344
    %3022 = vmatprep.subr.mxu0 %v1353
    %3023 = vmatpush1.msra.mxu0 %v1352
    %3024 = vmatprep.subr.mxu0 %v1361
    %3025 = vmatpush1.msra.mxu0 %v1360
    %3026 = vmatprep.mubr.f32.mxu0 %v1099
    %3027 = vmatmul.mubr.f32.gmra.mrb[0].mxu0 %v1098
    %v3028 = vpop.f32.mrb[0].mxu0
    %v3029 = vadd.f32 0.0, %v3028
    %v3030 = vpop.f32.mrb[0].mxu0
    %v3031 = vadd.f32 0.0, %v3030
    %3032 = vdwg.mxu0
    %3033 = vmatprep.subr.mxu0 %v1369
    %3034 = vmatpush1.msra.mxu0 %v1368
    %3035 = vmatprep.subr.mxu0 %v1377
    %3036 = vmatpush1.msra.mxu0 %v1376
    %3037 = vmatprep.subr.mxu0 %v1385
    %3038 = vmatpush1.msra.mxu0 %v1384
    %3039 = vmatprep.subr.mxu0 %v1393
    %3040 = vmatpush1.msra.mxu0 %v1392
    %3041 = vmatprep.subr.mxu0 %v1401
    %3042 = vmatpush1.msra.mxu0 %v1400
    %3043 = vmatprep.subr.mxu0 %v1409
    %3044 = vmatpush1.msra.mxu0 %v1408
    %3045 = vmatprep.subr.mxu0 %v1417
    %3046 = vmatpush1.msra.mxu0 %v1416
    %3047 = vmatprep.subr.mxu0 %v1425
    %3048 = vmatpush1.msra.mxu0 %v1424
    %3049 = vmatprep.subr.mxu0 %v1433
    %3050 = vmatpush1.msra.mxu0 %v1432
    %3051 = vmatprep.subr.mxu0 %v1441
    %3052 = vmatpush1.msra.mxu0 %v1440
    %3053 = vmatprep.subr.mxu0 %v1449
    %3054 = vmatpush1.msra.mxu0 %v1448
    %3055 = vmatprep.subr.mxu0 %v1457
    %3056 = vmatpush1.msra.mxu0 %v1456
    %3057 = vmatprep.subr.mxu0 %v1465
    %3058 = vmatpush1.msra.mxu0 %v1464
    %3059 = vmatprep.subr.mxu0 %v1473
    %3060 = vmatpush1.msra.mxu0 %v1472
    %3061 = vmatprep.subr.mxu0 %v1481
    %3062 = vmatpush1.msra.mxu0 %v1480
    %3063 = vmatprep.subr.mxu0 %v1489
    %3064 = vmatpush1.msra.mxu0 %v1488
    %3065 = vmatprep.subr.mxu0 %v1497
    %3066 = vmatpush1.msra.mxu0 %v1496
    %3067 = vmatprep.subr.mxu0 %v1505
    %3068 = vmatpush1.msra.mxu0 %v1504
    %3069 = vmatprep.subr.mxu0 %v1513
    %3070 = vmatpush1.msra.mxu0 %v1512
    %3071 = vmatprep.subr.mxu0 %v1521
    %3072 = vmatpush1.msra.mxu0 %v1520
    %3073 = vmatprep.subr.mxu0 %v1529
    %3074 = vmatpush1.msra.mxu0 %v1528
    %3075 = vmatprep.subr.mxu0 %v1537
    %3076 = vmatpush1.msra.mxu0 %v1536
    %3077 = vmatprep.subr.mxu0 %v1545
    %3078 = vmatpush1.msra.mxu0 %v1544
    %3079 = vmatprep.subr.mxu0 %v1553
    %3080 = vmatpush1.msra.mxu0 %v1552
    %3081 = vmatprep.subr.mxu0 %v1561
    %3082 = vmatpush1.msra.mxu0 %v1560
    %3083 = vmatprep.subr.mxu0 %v1569
    %3084 = vmatpush1.msra.mxu0 %v1568
    %3085 = vmatprep.subr.mxu0 %v1577
    %3086 = vmatpush1.msra.mxu0 %v1576
    %3087 = vmatprep.subr.mxu0 %v1585
    %3088 = vmatpush1.msra.mxu0 %v1584
    %3089 = vmatprep.subr.mxu0 %v1593
    %3090 = vmatpush1.msra.mxu0 %v1592
    %3091 = vmatprep.subr.mxu0 %v1601
    %3092 = vmatpush1.msra.mxu0 %v1600
    %3093 = vmatprep.subr.mxu0 %v1609
    %3094 = vmatpush1.msra.mxu0 %v1608
    %3095 = vmatprep.subr.mxu0 %v1617
    %3096 = vmatpush1.msra.mxu0 %v1616
    %3097 = vmatprep.mubr.f32.mxu0 %v1101
    %3098 = vmatmul.mubr.f32.gmra.mrb[0].mxu0 %v1100
    %v3099 = vpop.f32.mrb[0].mxu0
    %v3100 = vadd.f32 %v3029, %v3099
    %v3101 = vpop.f32.mrb[0].mxu0
    %v3102 = vadd.f32 %v3031, %v3101
    %3103 = vdwg.mxu0
    %3104 = vmatprep.subr.mxu0 %v1625
    %3105 = vmatpush1.msra.mxu0 %v1624
    %3106 = vmatprep.subr.mxu0 %v1633
    %3107 = vmatpush1.msra.mxu0 %v1632
    %3108 = vmatprep.subr.mxu0 %v1641
    %3109 = vmatpush1.msra.mxu0 %v1640
    %3110 = vmatprep.subr.mxu0 %v1649
    %3111 = vmatpush1.msra.mxu0 %v1648
    %3112 = vmatprep.subr.mxu0 %v1657
    %3113 = vmatpush1.msra.mxu0 %v1656
    %3114 = vmatprep.subr.mxu0 %v1665
    %3115 = vmatpush1.msra.mxu0 %v1664
    %3116 = vmatprep.subr.mxu0 %v1673
    %3117 = vmatpush1.msra.mxu0 %v1672
    %3118 = vmatprep.subr.mxu0 %v1681
    %3119 = vmatpush1.msra.mxu0 %v1680
    %3120 = vmatprep.subr.mxu0 %v1689
    %3121 = vmatpush1.msra.mxu0 %v1688
    %3122 = vmatprep.subr.mxu0 %v1697
    %3123 = vmatpush1.msra.mxu0 %v1696
    %3124 = vmatprep.subr.mxu0 %v1705
    %3125 = vmatpush1.msra.mxu0 %v1704
    %3126 = vmatprep.subr.mxu0 %v1713
    %3127 = vmatpush1.msra.mxu0 %v1712
    %3128 = vmatprep.subr.mxu0 %v1721
    %3129 = vmatpush1.msra.mxu0 %v1720
    %3130 = vmatprep.subr.mxu0 %v1729
    %3131 = vmatpush1.msra.mxu0 %v1728
    %3132 = vmatprep.subr.mxu0 %v1737
    %3133 = vmatpush1.msra.mxu0 %v1736
    %3134 = vmatprep.subr.mxu0 %v1745
    %3135 = vmatpush1.msra.mxu0 %v1744
    %3136 = vmatprep.subr.mxu0 %v1753
    %3137 = vmatpush1.msra.mxu0 %v1752
    %3138 = vmatprep.subr.mxu0 %v1761
    %3139 = vmatpush1.msra.mxu0 %v1760
    %3140 = vmatprep.subr.mxu0 %v1769
    %3141 = vmatpush1.msra.mxu0 %v1768
    %3142 = vmatprep.subr.mxu0 %v1777
    %3143 = vmatpush1.msra.mxu0 %v1776
    %3144 = vmatprep.subr.mxu0 %v1785
    %3145 = vmatpush1.msra.mxu0 %v1784
    %3146 = vmatprep.subr.mxu0 %v1793
    %3147 = vmatpush1.msra.mxu0 %v1792
    %3148 = vmatprep.subr.mxu0 %v1801
    %3149 = vmatpush1.msra.mxu0 %v1800
    %3150 = vmatprep.subr.mxu0 %v1809
    %3151 = vmatpush1.msra.mxu0 %v1808
    %3152 = vmatprep.subr.mxu0 %v1817
    %3153 = vmatpush1.msra.mxu0 %v1816
    %3154 = vmatprep.subr.mxu0 %v1825
    %3155 = vmatpush1.msra.mxu0 %v1824
    %3156 = vmatprep.subr.mxu0 %v1833
    %3157 = vmatpush1.msra.mxu0 %v1832
    %3158 = vmatprep.subr.mxu0 %v1841
    %3159 = vmatpush1.msra.mxu0 %v1840
    %3160 = vmatprep.subr.mxu0 %v1849
    %3161 = vmatpush1.msra.mxu0 %v1848
    %3162 = vmatprep.subr.mxu0 %v1857
    %3163 = vmatpush1.msra.mxu0 %v1856
    %3164 = vmatprep.subr.mxu0 %v1865
    %3165 = vmatpush1.msra.mxu0 %v1864
    %3166 = vmatprep.subr.mxu0 %v1873
    %3167 = vmatpush1.msra.mxu0 %v1872
    %3168 = vmatprep.mubr.f32.mxu0 %v1103
    %3169 = vmatmul.mubr.f32.gmra.mrb[0].mxu0 %v1102
    %v3170 = vpop.f32.mrb[0].mxu0
    %v3171 = vadd.f32 %v3100, %v3170
    %v3172 = vpop.f32.mrb[0].mxu0
    %v3173 = vadd.f32 %v3102, %v3172
    %3174 = vdwg.mxu0
    %3175 = vmatprep.subr.mxu0 %v1881
    %3176 = vmatpush1.msra.mxu0 %v1880
    %3177 = vmatprep.subr.mxu0 %v1889
    %3178 = vmatpush1.msra.mxu0 %v1888
    %3179 = vmatprep.subr.mxu0 %v1897
    %3180 = vmatpush1.msra.mxu0 %v1896
    %3181 = vmatprep.subr.mxu0 %v1905
    %3182 = vmatpush1.msra.mxu0 %v1904
    %3183 = vmatprep.subr.mxu0 %v1913
    %3184 = vmatpush1.msra.mxu0 %v1912
    %3185 = vmatprep.subr.mxu0 %v1921
    %3186 = vmatpush1.msra.mxu0 %v1920
    %3187 = vmatprep.subr.mxu0 %v1929
    %3188 = vmatpush1.msra.mxu0 %v1928
    %3189 = vmatprep.subr.mxu0 %v1937
    %3190 = vmatpush1.msra.mxu0 %v1936
    %3191 = vmatprep.subr.mxu0 %v1945
    %3192 = vmatpush1.msra.mxu0 %v1944
    %3193 = vmatprep.subr.mxu0 %v1953
    %3194 = vmatpush1.msra.mxu0 %v1952
    %3195 = vmatprep.subr.mxu0 %v1961
    %3196 = vmatpush1.msra.mxu0 %v1960
    %3197 = vmatprep.subr.mxu0 %v1969
    %3198 = vmatpush1.msra.mxu0 %v1968
    %3199 = vmatprep.subr.mxu0 %v1977
    %3200 = vmatpush1.msra.mxu0 %v1976
    %3201 = vmatprep.subr.mxu0 %v1985
    %3202 = vmatpush1.msra.mxu0 %v1984
    %3203 = vmatprep.subr.mxu0 %v1993
    %3204 = vmatpush1.msra.mxu0 %v1992
    %3205 = vmatprep.subr.mxu0 %v2001
    %3206 = vmatpush1.msra.mxu0 %v2000
    %3207 = vmatprep.subr.mxu0 %v2009
    %3208 = vmatpush1.msra.mxu0 %v2008
    %3209 = vmatprep.subr.mxu0 %v2017
    %3210 = vmatpush1.msra.mxu0 %v2016
    %3211 = vmatprep.subr.mxu0 %v2025
    %3212 = vmatpush1.msra.mxu0 %v2024
    %3213 = vmatprep.subr.mxu0 %v2033
    %3214 = vmatpush1.msra.mxu0 %v2032
    %3215 = vmatprep.subr.mxu0 %v2041
    %3216 = vmatpush1.msra.mxu0 %v2040
    %3217 = vmatprep.subr.mxu0 %v2049
    %3218 = vmatpush1.msra.mxu0 %v2048
    %3219 = vmatprep.subr.mxu0 %v2057
    %3220 = vmatpush1.msra.mxu0 %v2056
    %3221 = vmatprep.subr.mxu0 %v2065
    %3222 = vmatpush1.msra.mxu0 %v2064
    %3223 = vmatprep.subr.mxu0 %v2073
    %3224 = vmatpush1.msra.mxu0 %v2072
    %3225 = vmatprep.subr.mxu0 %v2081
    %3226 = vmatpush1.msra.mxu0 %v2080
    %3227 = vmatprep.subr.mxu0 %v2089
    %3228 = vmatpush1.msra.mxu0 %v2088
    %3229 = vmatprep.subr.mxu0 %v2097
    %3230 = vmatpush1.msra.mxu0 %v2096
    %3231 = vmatprep.subr.mxu0 %v2105
    %3232 = vmatpush1.msra.mxu0 %v2104
    %3233 = vmatprep.subr.mxu0 0.0
    %3234 = vmatpush1.msra.mxu0 0.0
    %3235 = vmatprep.subr.mxu0 0.0
    %3236 = vmatpush1.msra.mxu0 0.0
    %3237 = vmatprep.subr.mxu0 0.0
    %3238 = vmatpush1.msra.mxu0 0.0
    %3239 = vmatprep.mubr.f32.mxu0 %v2108
    %3240 = vmatmul.mubr.f32.gmra.mrb[0].mxu0 %v1104
    %v3241 = vpop.f32.mrb[0].mxu0
    %v3242 = vadd.f32 %v3171, %v3241
    %v3243 = vpop.f32.mrb[0].mxu0
    %v3244 = vadd.f32 %v3173, %v3243
    %3245 = vdwg.mxu0
    %v3246 = vld [vmem:[#allocation4] sm:$0xff]
    %v3247 = vld [vmem:[#allocation4 + $0x8] sm:$0xff]
    %v3248 = vld [vmem:[#allocation4 + $0x10] sm:$0xff]
    %v3249 = vld [vmem:[#allocation4 + $0x18] sm:$0xff]
    %v3250 = vld [vmem:[#allocation4 + $0x20] sm:$0xff]
    %v3251 = vld [vmem:[#allocation4 + $0x28] sm:$0xff]
    %v3252 = vld [vmem:[#allocation4 + $0x30] sm:$0xff]
    %v3253 = vld [vmem:[#allocation4 + $0x38] sm:$0xff]
    %v3254 = vld [vmem:[#allocation4 + $0x40] sm:$0xff]
    %v3255 = vld [vmem:[#allocation4 + $0x48] sm:$0xff]
    %v3256 = vld [vmem:[#allocation4 + $0x50] sm:$0xff]
    %v3257 = vld [vmem:[#allocation4 + $0x58] sm:$0xff]
    %v3258 = vld [vmem:[#allocation4 + $0x60] sm:$0xff]
    %v3259 = vld [vmem:[#allocation4 + $0x68] sm:$0xff]
    %v3260 = vld [vmem:[#allocation4 + $0x70] sm:$0xff]
    %v3261 = vld [vmem:[#allocation4 + $0x78] sm:$0xff]
    %v3262 = vld [vmem:[#allocation4 + $0x80] sm:$0xff]
    %v3263 = vld [vmem:[#allocation4 + $0x88] sm:$0xff]
    %v3264 = vld [vmem:[#allocation4 + $0x90] sm:$0xff]
    %v3265 = vld [vmem:[#allocation4 + $0x98] sm:$0xff]
    %v3266 = vld [vmem:[#allocation4 + $0xa0] sm:$0xff]
    %v3267 = vld [vmem:[#allocation4 + $0xa8] sm:$0xff]
    %v3268 = vld [vmem:[#allocation4 + $0xb0] sm:$0xff]
    %v3269 = vld [vmem:[#allocation4 + $0xb8] sm:$0xff]
    %v3270 = vld [vmem:[#allocation4 + $0xc0] sm:$0xff]
    %v3271 = vld [vmem:[#allocation4 + $0xc8] sm:$0xff]
    %v3272 = vld [vmem:[#allocation4 + $0xd0] sm:$0xff]
    %v3273 = vld [vmem:[#allocation4 + $0xd8] sm:$0xff]
    %v3274 = vld [vmem:[#allocation4 + $0xe0] sm:$0xff]
    %v3275 = vld [vmem:[#allocation4 + $0xe8] sm:$0xff]
    %v3276 = vld [vmem:[#allocation4 + $0xf0] sm:$0xff]
    %v3277 = vld [vmem:[#allocation4 + $0xf8] sm:$0xff]
    %v3278 = vld [vmem:[#allocation4 + $0x100] sm:$0xff]
    %v3279 = vld [vmem:[#allocation4 + $0x108] sm:$0xff]
    %v3280 = vld [vmem:[#allocation4 + $0x110] sm:$0xff]
    %v3281 = vld [vmem:[#allocation4 + $0x118] sm:$0xff]
    %v3282 = vld [vmem:[#allocation4 + $0x120] sm:$0xff]
    %v3283 = vld [vmem:[#allocation4 + $0x128] sm:$0xff]
    %v3284 = vld [vmem:[#allocation4 + $0x130] sm:$0xff]
    %v3285 = vld [vmem:[#allocation4 + $0x138] sm:$0xff]
    %v3286 = vld [vmem:[#allocation4 + $0x140] sm:$0xff]
    %v3287 = vld [vmem:[#allocation4 + $0x148] sm:$0xff]
    %v3288 = vld [vmem:[#allocation4 + $0x150] sm:$0xff]
    %v3289 = vld [vmem:[#allocation4 + $0x158] sm:$0xff]
    %v3290 = vld [vmem:[#allocation4 + $0x160] sm:$0xff]
    %v3291 = vld [vmem:[#allocation4 + $0x168] sm:$0xff]
    %v3292 = vld [vmem:[#allocation4 + $0x170] sm:$0xff]
    %v3293 = vld [vmem:[#allocation4 + $0x178] sm:$0xff]
    %v3294 = vld [vmem:[#allocation4 + $0x180] sm:$0xff]
    %v3295 = vld [vmem:[#allocation4 + $0x188] sm:$0xff]
    %v3296 = vld [vmem:[#allocation4 + $0x190] sm:$0xff]
    %v3297 = vld [vmem:[#allocation4 + $0x198] sm:$0xff]
    %v3298 = vld [vmem:[#allocation4 + $0x1a0] sm:$0xff]
    %v3299 = vld [vmem:[#allocation4 + $0x1a8] sm:$0xff]
    %v3300 = vld [vmem:[#allocation4 + $0x1b0] sm:$0xff]
    %v3301 = vld [vmem:[#allocation4 + $0x1b8] sm:$0xff]
    %v3302 = vld [vmem:[#allocation4 + $0x1c0] sm:$0xff]
    %v3303 = vld [vmem:[#allocation4 + $0x1c8] sm:$0xff]
    %v3304 = vld [vmem:[#allocation4 + $0x1d0] sm:$0xff]
    %v3305 = vld [vmem:[#allocation4 + $0x1d8] sm:$0xff]
    %v3306 = vld [vmem:[#allocation4 + $0x1e0] sm:$0xff]
    %v3307 = vld [vmem:[#allocation4 + $0x1e8] sm:$0xff]
    %v3308 = vld [vmem:[#allocation4 + $0x1f0] sm:$0xff]
    %v3309 = vld [vmem:[#allocation4 + $0x1f8] sm:$0xff]
    %v3310 = vld [vmem:[#allocation4 + $0x200] sm:$0xff]
    %v3311 = vld [vmem:[#allocation4 + $0x208] sm:$0xff]
    %v3312 = vld [vmem:[#allocation4 + $0x210] sm:$0xff]
    %v3313 = vld [vmem:[#allocation4 + $0x218] sm:$0xff]
    %v3314 = vld [vmem:[#allocation4 + $0x220] sm:$0xff]
    %v3315 = vld [vmem:[#allocation4 + $0x228] sm:$0xff]
    %v3316 = vld [vmem:[#allocation4 + $0x230] sm:$0xff]
    %v3317 = vld [vmem:[#allocation4 + $0x238] sm:$0xff]
    %v3318 = vld [vmem:[#allocation4 + $0x240] sm:$0xff]
    %v3319 = vld [vmem:[#allocation4 + $0x248] sm:$0xff]
    %v3320 = vld [vmem:[#allocation4 + $0x250] sm:$0xff]
    %v3321 = vld [vmem:[#allocation4 + $0x258] sm:$0xff]
    %v3322 = vld [vmem:[#allocation4 + $0x260] sm:$0xff]
    %v3323 = vld [vmem:[#allocation4 + $0x268] sm:$0xff]
    %v3324 = vld [vmem:[#allocation4 + $0x270] sm:$0xff]
    %v3325 = vld [vmem:[#allocation4 + $0x278] sm:$0xff]
    %v3326 = vld [vmem:[#allocation4 + $0x280] sm:$0xff]
    %v3327 = vld [vmem:[#allocation4 + $0x288] sm:$0xff]
    %v3328 = vld [vmem:[#allocation4 + $0x290] sm:$0xff]
    %v3329 = vld [vmem:[#allocation4 + $0x298] sm:$0xff]
    %v3330 = vld [vmem:[#allocation4 + $0x2a0] sm:$0xff]
    %v3331 = vld [vmem:[#allocation4 + $0x2a8] sm:$0xff]
    %v3332 = vld [vmem:[#allocation4 + $0x2b0] sm:$0xff]
    %v3333 = vld [vmem:[#allocation4 + $0x2b8] sm:$0xff]
    %v3334 = vld [vmem:[#allocation4 + $0x2c0] sm:$0xff]
    %v3335 = vld [vmem:[#allocation4 + $0x2c8] sm:$0xff]
    %v3336 = vld [vmem:[#allocation4 + $0x2d0] sm:$0xff]
    %v3337 = vld [vmem:[#allocation4 + $0x2d8] sm:$0xff]
    %v3338 = vld [vmem:[#allocation4 + $0x2e0] sm:$0xff]
    %v3339 = vld [vmem:[#allocation4 + $0x2e8] sm:$0xff]
    %v3340 = vld [vmem:[#allocation4 + $0x2f0] sm:$0xff]
    %v3341 = vld [vmem:[#allocation4 + $0x2f8] sm:$0xff]
    %v3342 = vld [vmem:[#allocation4 + $0x300] sm:$0xff]
    %v3343 = vld [vmem:[#allocation4 + $0x308] sm:$0xff]
    %v3344 = vld [vmem:[#allocation4 + $0x310] sm:$0xff]
    %v3345 = vld [vmem:[#allocation4 + $0x318] sm:$0xff]
    %v3346 = vld [vmem:[#allocation4 + $0x320] sm:$0xff]
    %v3347 = vld [vmem:[#allocation4 + $0x328] sm:$0xff]
    %v3348 = vld [vmem:[#allocation4 + $0x330] sm:$0xff]
    %v3349 = vld [vmem:[#allocation4 + $0x338] sm:$0xff]
    %v3350 = vld [vmem:[#allocation4 + $0x340] sm:$0xff]
    %v3351 = vld [vmem:[#allocation4 + $0x348] sm:$0xff]
    %v3352 = vld [vmem:[#allocation4 + $0x350] sm:$0xff]
    %v3353 = vld [vmem:[#allocation4 + $0x358] sm:$0xff]
    %v3354 = vld [vmem:[#allocation4 + $0x360] sm:$0xff]
    %v3355 = vld [vmem:[#allocation4 + $0x368] sm:$0xff]
    %v3356 = vld [vmem:[#allocation4 + $0x370] sm:$0xff]
    %v3357 = vld [vmem:[#allocation4 + $0x378] sm:$0xff]
    %v3358 = vld [vmem:[#allocation4 + $0x380] sm:$0xff]
    %v3359 = vld [vmem:[#allocation4 + $0x388] sm:$0xff]
    %v3360 = vld [vmem:[#allocation4 + $0x390] sm:$0xff]
    %v3361 = vld [vmem:[#allocation4 + $0x398] sm:$0xff]
    %v3362 = vld [vmem:[#allocation4 + $0x3a0] sm:$0xff]
    %v3363 = vld [vmem:[#allocation4 + $0x3a8] sm:$0xff]
    %v3364 = vld [vmem:[#allocation4 + $0x3b0] sm:$0xff]
    %v3365 = vld [vmem:[#allocation4 + $0x3b8] sm:$0xff]
    %v3366 = vld [vmem:[#allocation4 + $0x3c0] sm:$0xff]
    %v3367 = vld [vmem:[#allocation4 + $0x3c8] sm:$0xff]
    %v3368 = vld [vmem:[#allocation4 + $0x3d0] sm:$0xff]
    %v3369 = vld [vmem:[#allocation4 + $0x3d8] sm:$0xff]
    %v3370 = vld [vmem:[#allocation4 + $0x3e0] sm:$0xff]
    %v3371 = vld [vmem:[#allocation4 + $0x3e8] sm:$0xff]
    %v3372 = vld [vmem:[#allocation4 + $0x3f0] sm:$0xff]
    %v3373 = vld [vmem:[#allocation4 + $0x3f8] sm:$0xff]
    %v3374 = vld [vmem:[#allocation4 + $0x400] sm:$0xff]
    %v3375 = vld [vmem:[#allocation4 + $0x408] sm:$0xff]
    %v3376 = vld [vmem:[#allocation4 + $0x410] sm:$0xff]
    %v3377 = vld [vmem:[#allocation4 + $0x418] sm:$0xff]
    %v3378 = vld [vmem:[#allocation4 + $0x420] sm:$0xff]
    %v3379 = vld [vmem:[#allocation4 + $0x428] sm:$0xff]
    %v3380 = vld [vmem:[#allocation4 + $0x430] sm:$0xff]
    %v3381 = vld [vmem:[#allocation4 + $0x438] sm:$0xff]
    %v3382 = vld [vmem:[#allocation4 + $0x440] sm:$0xff]
    %v3383 = vld [vmem:[#allocation4 + $0x448] sm:$0xff]
    %v3384 = vld [vmem:[#allocation4 + $0x450] sm:$0xff]
    %v3385 = vld [vmem:[#allocation4 + $0x458] sm:$0xff]
    %v3386 = vld [vmem:[#allocation4 + $0x460] sm:$0xff]
    %v3387 = vld [vmem:[#allocation4 + $0x468] sm:$0xff]
    %v3388 = vld [vmem:[#allocation4 + $0x470] sm:$0xff]
    %v3389 = vld [vmem:[#allocation4 + $0x478] sm:$0xff]
    %v3390 = vld [vmem:[#allocation4 + $0x480] sm:$0xff]
    %v3391 = vld [vmem:[#allocation4 + $0x488] sm:$0xff]
    %v3392 = vld [vmem:[#allocation4 + $0x490] sm:$0xff]
    %v3393 = vld [vmem:[#allocation4 + $0x498] sm:$0xff]
    %v3394 = vld [vmem:[#allocation4 + $0x4a0] sm:$0xff]
    %v3395 = vld [vmem:[#allocation4 + $0x4a8] sm:$0xff]
    %v3396 = vld [vmem:[#allocation4 + $0x4b0] sm:$0xff]
    %v3397 = vld [vmem:[#allocation4 + $0x4b8] sm:$0xff]
    %v3398 = vld [vmem:[#allocation4 + $0x4c0] sm:$0xff]
    %v3399 = vld [vmem:[#allocation4 + $0x4c8] sm:$0xff]
    %v3400 = vld [vmem:[#allocation4 + $0x4d0] sm:$0xff]
    %v3401 = vld [vmem:[#allocation4 + $0x4d8] sm:$0xff]
    %v3402 = vld [vmem:[#allocation4 + $0x4e0] sm:$0xff]
    %v3403 = vld [vmem:[#allocation4 + $0x4e8] sm:$0xff]
    %v3404 = vld [vmem:[#allocation4 + $0x4f0] sm:$0xff]
    %v3405 = vld [vmem:[#allocation4 + $0x4f8] sm:$0xff]
    %v3406 = vld [vmem:[#allocation4 + $0x500] sm:$0xff]
    %v3407 = vld [vmem:[#allocation4 + $0x508] sm:$0xff]
    %v3408 = vld [vmem:[#allocation4 + $0x510] sm:$0xff]
    %v3409 = vld [vmem:[#allocation4 + $0x518] sm:$0xff]
    %v3410 = vld [vmem:[#allocation4 + $0x520] sm:$0xff]
    %v3411 = vld [vmem:[#allocation4 + $0x528] sm:$0xff]
    %v3412 = vld [vmem:[#allocation4 + $0x530] sm:$0xff]
    %v3413 = vld [vmem:[#allocation4 + $0x538] sm:$0xff]
    %v3414 = vld [vmem:[#allocation4 + $0x540] sm:$0xff]
    %v3415 = vld [vmem:[#allocation4 + $0x548] sm:$0xff]
    %v3416 = vld [vmem:[#allocation4 + $0x550] sm:$0xff]
    %v3417 = vld [vmem:[#allocation4 + $0x558] sm:$0xff]
    %v3418 = vld [vmem:[#allocation4 + $0x560] sm:$0xff]
    %v3419 = vld [vmem:[#allocation4 + $0x568] sm:$0xff]
    %v3420 = vld [vmem:[#allocation4 + $0x570] sm:$0xff]
    %v3421 = vld [vmem:[#allocation4 + $0x578] sm:$0xff]
    %v3422 = vld [vmem:[#allocation4 + $0x580] sm:$0xff]
    %v3423 = vld [vmem:[#allocation4 + $0x588] sm:$0xff]
    %v3424 = vld [vmem:[#allocation4 + $0x590] sm:$0xff]
    %v3425 = vld [vmem:[#allocation4 + $0x598] sm:$0xff]
    %v3426 = vld [vmem:[#allocation4 + $0x5a0] sm:$0xff]
    %v3427 = vld [vmem:[#allocation4 + $0x5a8] sm:$0xff]
    %v3428 = vld [vmem:[#allocation4 + $0x5b0] sm:$0xff]
    %v3429 = vld [vmem:[#allocation4 + $0x5b8] sm:$0xff]
    %v3430 = vld [vmem:[#allocation4 + $0x5c0] sm:$0xff]
    %v3431 = vld [vmem:[#allocation4 + $0x5c8] sm:$0xff]
    %v3432 = vld [vmem:[#allocation4 + $0x5d0] sm:$0xff]
    %v3433 = vld [vmem:[#allocation4 + $0x5d8] sm:$0xff]
    %v3434 = vld [vmem:[#allocation4 + $0x5e0] sm:$0xff]
    %v3435 = vld [vmem:[#allocation4 + $0x5e8] sm:$0xff]
    %v3436 = vld [vmem:[#allocation4 + $0x5f0] sm:$0xff]
    %v3437 = vld [vmem:[#allocation4 + $0x5f8] sm:$0xff]
    %v3438 = vld [vmem:[#allocation4 + $0x600] sm:$0xff]
    %v3439 = vld [vmem:[#allocation4 + $0x608] sm:$0xff]
    %v3440 = vld [vmem:[#allocation4 + $0x610] sm:$0xff]
    %v3441 = vld [vmem:[#allocation4 + $0x618] sm:$0xff]
    %v3442 = vld [vmem:[#allocation4 + $0x620] sm:$0xff]
    %v3443 = vld [vmem:[#allocation4 + $0x628] sm:$0xff]
    %v3444 = vld [vmem:[#allocation4 + $0x630] sm:$0xff]
    %v3445 = vld [vmem:[#allocation4 + $0x638] sm:$0xff]
    %v3446 = vld [vmem:[#allocation4 + $0x640] sm:$0xff]
    %v3447 = vld [vmem:[#allocation4 + $0x648] sm:$0xff]
    %v3448 = vld [vmem:[#allocation4 + $0x650] sm:$0xff]
    %v3449 = vld [vmem:[#allocation4 + $0x658] sm:$0xff]
    %v3450 = vld [vmem:[#allocation4 + $0x660] sm:$0xff]
    %v3451 = vld [vmem:[#allocation4 + $0x668] sm:$0xff]
    %v3452 = vld [vmem:[#allocation4 + $0x670] sm:$0xff]
    %v3453 = vld [vmem:[#allocation4 + $0x678] sm:$0xff]
    %v3454 = vld [vmem:[#allocation4 + $0x680] sm:$0xff]
    %v3455 = vld [vmem:[#allocation4 + $0x688] sm:$0xff]
    %v3456 = vld [vmem:[#allocation4 + $0x690] sm:$0xff]
    %v3457 = vld [vmem:[#allocation4 + $0x698] sm:$0xff]
    %v3458 = vld [vmem:[#allocation4 + $0x6a0] sm:$0xff]
    %v3459 = vld [vmem:[#allocation4 + $0x6a8] sm:$0xff]
    %v3460 = vld [vmem:[#allocation4 + $0x6b0] sm:$0xff]
    %v3461 = vld [vmem:[#allocation4 + $0x6b8] sm:$0xff]
    %v3462 = vld [vmem:[#allocation4 + $0x6c0] sm:$0xff]
    %v3463 = vld [vmem:[#allocation4 + $0x6c8] sm:$0xff]
    %v3464 = vld [vmem:[#allocation4 + $0x6d0] sm:$0xff]
    %v3465 = vld [vmem:[#allocation4 + $0x6d8] sm:$0xff]
    %v3466 = vld [vmem:[#allocation4 + $0x6e0] sm:$0xff]
    %v3467 = vld [vmem:[#allocation4 + $0x6e8] sm:$0xff]
    %v3468 = vld [vmem:[#allocation4 + $0x6f0] sm:$0xff]
    %v3469 = vld [vmem:[#allocation4 + $0x6f8] sm:$0xff]
    %v3470 = vld [vmem:[#allocation4 + $0x700] sm:$0xff]
    %v3471 = vld [vmem:[#allocation4 + $0x708] sm:$0xff]
    %v3472 = vld [vmem:[#allocation4 + $0x710] sm:$0xff]
    %v3473 = vld [vmem:[#allocation4 + $0x718] sm:$0xff]
    %v3474 = vld [vmem:[#allocation4 + $0x720] sm:$0xff]
    %v3475 = vld [vmem:[#allocation4 + $0x728] sm:$0xff]
    %v3476 = vld [vmem:[#allocation4 + $0x730] sm:$0xff]
    %v3477 = vld [vmem:[#allocation4 + $0x738] sm:$0xff]
    %v3478 = vld [vmem:[#allocation4 + $0x740] sm:$0xff]
    %v3479 = vld [vmem:[#allocation4 + $0x748] sm:$0xff]
    %v3480 = vld [vmem:[#allocation4 + $0x750] sm:$0xff]
    %v3481 = vld [vmem:[#allocation4 + $0x758] sm:$0xff]
    %v3482 = vld [vmem:[#allocation4 + $0x760] sm:$0xff]
    %v3483 = vld [vmem:[#allocation4 + $0x768] sm:$0xff]
    %v3484 = vld [vmem:[#allocation4 + $0x770] sm:$0xff]
    %v3485 = vld [vmem:[#allocation4 + $0x778] sm:$0xff]
    %v3486 = vld [vmem:[#allocation4 + $0x780] sm:$0xff]
    %v3487 = vld [vmem:[#allocation4 + $0x788] sm:$0xff]
    %v3488 = vld [vmem:[#allocation4 + $0x790] sm:$0xff]
    %v3489 = vld [vmem:[#allocation4 + $0x798] sm:$0xff]
    %v3490 = vld [vmem:[#allocation4 + $0x7a0] sm:$0xff]
    %v3491 = vld [vmem:[#allocation4 + $0x7a8] sm:$0xff]
    %v3492 = vld [vmem:[#allocation4 + $0x7b0] sm:$0xff]
    %v3493 = vld [vmem:[#allocation4 + $0x7b8] sm:$0xff]
    %v3494 = vld [vmem:[#allocation4 + $0x7c0] sm:$0xff]
    %v3495 = vld [vmem:[#allocation4 + $0x7c8] sm:$0xff]
    %v3496 = vld [vmem:[#allocation4 + $0x7d0] sm:$0xff]
    %v3497 = vld [vmem:[#allocation4 + $0x7d8] sm:$0xff]
    %v3498 = vld [vmem:[#allocation4 + $0x7e0] sm:$0xff]
    %v3499 = vld [vmem:[#allocation4 + $0x7e8] sm:$0xff]
    %v3500 = vld [vmem:[#allocation4 + $0x7f0] sm:$0xff]
    %v3501 = vld [vmem:[#allocation4 + $0x7f8] sm:$0xff]
    %v3502 = vld [vmem:[#allocation4 + $0x800] sm:$0xff]
    %v3503 = vld [vmem:[#allocation4 + $0x808] sm:$0xff]
    %v3504 = vld [vmem:[#allocation4 + $0x810] sm:$0xff]
    %v3505 = vld [vmem:[#allocation4 + $0x818] sm:$0xff]
    %v3506 = vld [vmem:[#allocation4 + $0x820] sm:$0xff]
    %v3507 = vld [vmem:[#allocation4 + $0x828] sm:$0xff]
    %v3508 = vld [vmem:[#allocation4 + $0x830] sm:$0xff]
    %v3509 = vld [vmem:[#allocation4 + $0x838] sm:$0xff]
    %v3510 = vld [vmem:[#allocation4 + $0x840] sm:$0xff]
    %v3511 = vld [vmem:[#allocation4 + $0x848] sm:$0xff]
    %v3512 = vld [vmem:[#allocation4 + $0x850] sm:$0xff]
    %v3513 = vld [vmem:[#allocation4 + $0x858] sm:$0xff]
    %v3514 = vld [vmem:[#allocation4 + $0x860] sm:$0xff]
    %v3515 = vld [vmem:[#allocation4 + $0x868] sm:$0xff]
    %v3516 = vld [vmem:[#allocation4 + $0x870] sm:$0xff]
    %v3517 = vld [vmem:[#allocation4 + $0x878] sm:$0xff]
    %v3518 = vld [vmem:[#allocation4 + $0x880] sm:$0xff]
    %v3519 = vld [vmem:[#allocation4 + $0x888] sm:$0xff]
    %v3520 = vld [vmem:[#allocation4 + $0x890] sm:$0xff]
    %v3521 = vld [vmem:[#allocation4 + $0x898] sm:$0xff]
    %v3522 = vld [vmem:[#allocation4 + $0x8a0] sm:$0xff]
    %v3523 = vld [vmem:[#allocation4 + $0x8a8] sm:$0xff]
    %v3524 = vld [vmem:[#allocation4 + $0x8b0] sm:$0xff]
    %v3525 = vld [vmem:[#allocation4 + $0x8b8] sm:$0xff]
    %v3526 = vld [vmem:[#allocation4 + $0x8c0] sm:$0xff]
    %v3527 = vld [vmem:[#allocation4 + $0x8c8] sm:$0xff]
    %v3528 = vld [vmem:[#allocation4 + $0x8d0] sm:$0xff]
    %v3529 = vld [vmem:[#allocation4 + $0x8d8] sm:$0xff]
    %v3530 = vld [vmem:[#allocation4 + $0x8e0] sm:$0xff]
    %v3531 = vld [vmem:[#allocation4 + $0x8e8] sm:$0xff]
    %v3532 = vld [vmem:[#allocation4 + $0x8f0] sm:$0xff]
    %v3533 = vld [vmem:[#allocation4 + $0x8f8] sm:$0xff]
    %v3534 = vld [vmem:[#allocation4 + $0x900] sm:$0xff]
    %v3535 = vld [vmem:[#allocation4 + $0x908] sm:$0xff]
    %v3536 = vld [vmem:[#allocation4 + $0x910] sm:$0xff]
    %v3537 = vld [vmem:[#allocation4 + $0x918] sm:$0xff]
    %v3538 = vld [vmem:[#allocation4 + $0x920] sm:$0xff]
    %v3539 = vld [vmem:[#allocation4 + $0x928] sm:$0xff]
    %v3540 = vld [vmem:[#allocation4 + $0x930] sm:$0xff]
    %v3541 = vld [vmem:[#allocation4 + $0x938] sm:$0xff]
    %v3542 = vld [vmem:[#allocation4 + $0x940] sm:$0xff]
    %v3543 = vld [vmem:[#allocation4 + $0x948] sm:$0xff]
    %v3544 = vld [vmem:[#allocation4 + $0x950] sm:$0xff]
    %v3545 = vld [vmem:[#allocation4 + $0x958] sm:$0xff]
    %v3546 = vld [vmem:[#allocation4 + $0x960] sm:$0xff]
    %v3547 = vld [vmem:[#allocation4 + $0x968] sm:$0xff]
    %v3548 = vld [vmem:[#allocation4 + $0x970] sm:$0xff]
    %v3549 = vld [vmem:[#allocation4 + $0x978] sm:$0xff]
    %v3550 = vld [vmem:[#allocation4 + $0x980] sm:$0xff]
    %v3551 = vld [vmem:[#allocation4 + $0x988] sm:$0xff]
    %v3552 = vld [vmem:[#allocation4 + $0x990] sm:$0xff]
    %v3553 = vld [vmem:[#allocation4 + $0x998] sm:$0xff]
    %v3554 = vld [vmem:[#allocation4 + $0x9a0] sm:$0xff]
    %v3555 = vld [vmem:[#allocation4 + $0x9a8] sm:$0xff]
    %v3556 = vld [vmem:[#allocation4 + $0x9b0] sm:$0xff]
    %v3557 = vld [vmem:[#allocation4 + $0x9b8] sm:$0xff]
    %v3558 = vld [vmem:[#allocation4 + $0x9c0] sm:$0xff]
    %v3559 = vld [vmem:[#allocation4 + $0x9c8] sm:$0xff]
    %v3560 = vld [vmem:[#allocation4 + $0x9d0] sm:$0xff]
    %v3561 = vld [vmem:[#allocation4 + $0x9d8] sm:$0xff]
    %v3562 = vld [vmem:[#allocation4 + $0x9e0] sm:$0xff]
    %v3563 = vld [vmem:[#allocation4 + $0x9e8] sm:$0xff]
    %v3564 = vld [vmem:[#allocation4 + $0x9f0] sm:$0xff]
    %v3565 = vld [vmem:[#allocation4 + $0x9f8] sm:$0xff]
    %v3566 = vld [vmem:[#allocation4 + $0xa00] sm:$0xff]
    %v3567 = vld [vmem:[#allocation4 + $0xa08] sm:$0xff]
    %v3568 = vld [vmem:[#allocation4 + $0xa10] sm:$0xff]
    %v3569 = vld [vmem:[#allocation4 + $0xa18] sm:$0xff]
    %v3570 = vld [vmem:[#allocation4 + $0xa20] sm:$0xff]
    %v3571 = vld [vmem:[#allocation4 + $0xa28] sm:$0xff]
    %v3572 = vld [vmem:[#allocation4 + $0xa30] sm:$0xff]
    %v3573 = vld [vmem:[#allocation4 + $0xa38] sm:$0xff]
    %v3574 = vld [vmem:[#allocation4 + $0xa40] sm:$0xff]
    %v3575 = vld [vmem:[#allocation4 + $0xa48] sm:$0xff]
    %v3576 = vld [vmem:[#allocation4 + $0xa50] sm:$0xff]
    %v3577 = vld [vmem:[#allocation4 + $0xa58] sm:$0xff]
    %v3578 = vld [vmem:[#allocation4 + $0xa60] sm:$0xff]
    %v3579 = vld [vmem:[#allocation4 + $0xa68] sm:$0xff]
    %v3580 = vld [vmem:[#allocation4 + $0xa70] sm:$0xff]
    %v3581 = vld [vmem:[#allocation4 + $0xa78] sm:$0xff]
    %v3582 = vld [vmem:[#allocation4 + $0xa80] sm:$0xff]
    %v3583 = vld [vmem:[#allocation4 + $0xa88] sm:$0xff]
    %v3584 = vld [vmem:[#allocation4 + $0xa90] sm:$0xff]
    %v3585 = vld [vmem:[#allocation4 + $0xa98] sm:$0xff]
    %v3586 = vld [vmem:[#allocation4 + $0xaa0] sm:$0xff]
    %v3587 = vld [vmem:[#allocation4 + $0xaa8] sm:$0xff]
    %v3588 = vld [vmem:[#allocation4 + $0xab0] sm:$0xff]
    %v3589 = vld [vmem:[#allocation4 + $0xab8] sm:$0xff]
    %v3590 = vld [vmem:[#allocation4 + $0xac0] sm:$0xff]
    %v3591 = vld [vmem:[#allocation4 + $0xac8] sm:$0xff]
    %v3592 = vld [vmem:[#allocation4 + $0xad0] sm:$0xff]
    %v3593 = vld [vmem:[#allocation4 + $0xad8] sm:$0xff]
    %v3594 = vld [vmem:[#allocation4 + $0xae0] sm:$0xff]
    %v3595 = vld [vmem:[#allocation4 + $0xae8] sm:$0xff]
    %v3596 = vld [vmem:[#allocation4 + $0xaf0] sm:$0xff]
    %v3597 = vld [vmem:[#allocation4 + $0xaf8] sm:$0xff]
    %v3598 = vld [vmem:[#allocation4 + $0xb00] sm:$0xff]
    %v3599 = vld [vmem:[#allocation4 + $0xb08] sm:$0xff]
    %v3600 = vld [vmem:[#allocation4 + $0xb10] sm:$0xff]
    %v3601 = vld [vmem:[#allocation4 + $0xb18] sm:$0xff]
    %v3602 = vld [vmem:[#allocation4 + $0xb20] sm:$0xff]
    %v3603 = vld [vmem:[#allocation4 + $0xb28] sm:$0xff]
    %v3604 = vld [vmem:[#allocation4 + $0xb30] sm:$0xff]
    %v3605 = vld [vmem:[#allocation4 + $0xb38] sm:$0xff]
    %v3606 = vld [vmem:[#allocation4 + $0xb40] sm:$0xff]
    %v3607 = vld [vmem:[#allocation4 + $0xb48] sm:$0xff]
    %v3608 = vld [vmem:[#allocation4 + $0xb50] sm:$0xff]
    %v3609 = vld [vmem:[#allocation4 + $0xb58] sm:$0xff]
    %v3610 = vld [vmem:[#allocation4 + $0xb60] sm:$0xff]
    %v3611 = vld [vmem:[#allocation4 + $0xb68] sm:$0xff]
    %v3612 = vld [vmem:[#allocation4 + $0xb70] sm:$0xff]
    %v3613 = vld [vmem:[#allocation4 + $0xb78] sm:$0xff]
    %v3614 = vld [vmem:[#allocation4 + $0xb80] sm:$0xff]
    %v3615 = vld [vmem:[#allocation4 + $0xb88] sm:$0xff]
    %v3616 = vld [vmem:[#allocation4 + $0xb90] sm:$0xff]
    %v3617 = vld [vmem:[#allocation4 + $0xb98] sm:$0xff]
    %v3618 = vld [vmem:[#allocation4 + $0xba0] sm:$0xff]
    %v3619 = vld [vmem:[#allocation4 + $0xba8] sm:$0xff]
    %v3620 = vld [vmem:[#allocation4 + $0xbb0] sm:$0xff]
    %v3621 = vld [vmem:[#allocation4 + $0xbb8] sm:$0xff]
    %v3622 = vld [vmem:[#allocation4 + $0xbc0] sm:$0xff]
    %v3623 = vld [vmem:[#allocation4 + $0xbc8] sm:$0xff]
    %v3624 = vld [vmem:[#allocation4 + $0xbd0] sm:$0xff]
    %v3625 = vld [vmem:[#allocation4 + $0xbd8] sm:$0xff]
    %v3626 = vld [vmem:[#allocation4 + $0xbe0] sm:$0xff]
    %v3627 = vld [vmem:[#allocation4 + $0xbe8] sm:$0xff]
    %v3628 = vld [vmem:[#allocation4 + $0xbf0] sm:$0xff]
    %v3629 = vld [vmem:[#allocation4 + $0xbf8] sm:$0xff]
    %v3630 = vld [vmem:[#allocation4 + $0xc00] sm:$0xff]
    %v3631 = vld [vmem:[#allocation4 + $0xc08] sm:$0xff]
    %v3632 = vld [vmem:[#allocation4 + $0xc10] sm:$0xff]
    %v3633 = vld [vmem:[#allocation4 + $0xc18] sm:$0xff]
    %v3634 = vld [vmem:[#allocation4 + $0xc20] sm:$0xff]
    %v3635 = vld [vmem:[#allocation4 + $0xc28] sm:$0xff]
    %v3636 = vld [vmem:[#allocation4 + $0xc30] sm:$0xff]
    %v3637 = vld [vmem:[#allocation4 + $0xc38] sm:$0xff]
    %v3638 = vld [vmem:[#allocation4 + $0xc40] sm:$0xff]
    %v3639 = vld [vmem:[#allocation4 + $0xc48] sm:$0xff]
    %v3640 = vld [vmem:[#allocation4 + $0xc50] sm:$0xff]
    %v3641 = vld [vmem:[#allocation4 + $0xc58] sm:$0xff]
    %v3642 = vld [vmem:[#allocation4 + $0xc60] sm:$0xff]
    %v3643 = vld [vmem:[#allocation4 + $0xc68] sm:$0xff]
    %v3644 = vld [vmem:[#allocation4 + $0xc70] sm:$0xff]
    %v3645 = vld [vmem:[#allocation4 + $0xc78] sm:$0xff]
    %v3646 = vld [vmem:[#allocation4 + $0xc80] sm:$0xff]
    %v3647 = vld [vmem:[#allocation4 + $0xc88] sm:$0xff]
    %v3648 = vld [vmem:[#allocation4 + $0xc90] sm:$0xff]
    %v3649 = vld [vmem:[#allocation4 + $0xc98] sm:$0xff]
    %v3650 = vld [vmem:[#allocation4 + $0xca0] sm:$0xff]
    %v3651 = vld [vmem:[#allocation4 + $0xca8] sm:$0xff]
    %v3652 = vld [vmem:[#allocation4 + $0xcb0] sm:$0xff]
    %v3653 = vld [vmem:[#allocation4 + $0xcb8] sm:$0xff]
    %v3654 = vld [vmem:[#allocation4 + $0xcc0] sm:$0xff]
    %v3655 = vld [vmem:[#allocation4 + $0xcc8] sm:$0xff]
    %v3656 = vld [vmem:[#allocation4 + $0xcd0] sm:$0xff]
    %v3657 = vld [vmem:[#allocation4 + $0xcd8] sm:$0xff]
    %v3658 = vld [vmem:[#allocation4 + $0xce0] sm:$0xff]
    %v3659 = vld [vmem:[#allocation4 + $0xce8] sm:$0xff]
    %v3660 = vld [vmem:[#allocation4 + $0xcf0] sm:$0xff]
    %v3661 = vld [vmem:[#allocation4 + $0xcf8] sm:$0xff]
    %v3662 = vld [vmem:[#allocation4 + $0xd00] sm:$0xff]
    %v3663 = vld [vmem:[#allocation4 + $0xd08] sm:$0xff]
    %v3664 = vld [vmem:[#allocation4 + $0xd10] sm:$0xff]
    %v3665 = vld [vmem:[#allocation4 + $0xd18] sm:$0xff]
    %v3666 = vld [vmem:[#allocation4 + $0xd20] sm:$0xff]
    %v3667 = vld [vmem:[#allocation4 + $0xd28] sm:$0xff]
    %v3668 = vld [vmem:[#allocation4 + $0xd30] sm:$0xff]
    %v3669 = vld [vmem:[#allocation4 + $0xd38] sm:$0xff]
    %v3670 = vld [vmem:[#allocation4 + $0xd40] sm:$0xff]
    %v3671 = vld [vmem:[#allocation4 + $0xd48] sm:$0xff]
    %v3672 = vld [vmem:[#allocation4 + $0xd50] sm:$0xff]
    %v3673 = vld [vmem:[#allocation4 + $0xd58] sm:$0xff]
    %v3674 = vld [vmem:[#allocation4 + $0xd60] sm:$0xff]
    %v3675 = vld [vmem:[#allocation4 + $0xd68] sm:$0xff]
    %v3676 = vld [vmem:[#allocation4 + $0xd70] sm:$0xff]
    %v3677 = vld [vmem:[#allocation4 + $0xd78] sm:$0xff]
    %v3678 = vld [vmem:[#allocation4 + $0xd80] sm:$0xff]
    %v3679 = vld [vmem:[#allocation4 + $0xd88] sm:$0xff]
    %v3680 = vld [vmem:[#allocation4 + $0xd90] sm:$0xff]
    %v3681 = vld [vmem:[#allocation4 + $0xd98] sm:$0xff]
    %v3682 = vld [vmem:[#allocation4 + $0xda0] sm:$0xff]
    %v3683 = vld [vmem:[#allocation4 + $0xda8] sm:$0xff]
    %v3684 = vld [vmem:[#allocation4 + $0xdb0] sm:$0xff]
    %v3685 = vld [vmem:[#allocation4 + $0xdb8] sm:$0xff]
    %v3686 = vld [vmem:[#allocation4 + $0xdc0] sm:$0xff]
    %v3687 = vld [vmem:[#allocation4 + $0xdc8] sm:$0xff]
    %v3688 = vld [vmem:[#allocation4 + $0xdd0] sm:$0xff]
    %v3689 = vld [vmem:[#allocation4 + $0xdd8] sm:$0xff]
    %v3690 = vld [vmem:[#allocation4 + $0xde0] sm:$0xff]
    %v3691 = vld [vmem:[#allocation4 + $0xde8] sm:$0xff]
    %v3692 = vld [vmem:[#allocation4 + $0xdf0] sm:$0xff]
    %v3693 = vld [vmem:[#allocation4 + $0xdf8] sm:$0xff]
    %v3694 = vld [vmem:[#allocation4 + $0xe00] sm:$0xff]
    %v3695 = vld [vmem:[#allocation4 + $0xe08] sm:$0xff]
    %v3696 = vld [vmem:[#allocation4 + $0xe10] sm:$0xff]
    %v3697 = vld [vmem:[#allocation4 + $0xe18] sm:$0xff]
    %v3698 = vld [vmem:[#allocation4 + $0xe20] sm:$0xff]
    %v3699 = vld [vmem:[#allocation4 + $0xe28] sm:$0xff]
    %v3700 = vld [vmem:[#allocation4 + $0xe30] sm:$0xff]
    %v3701 = vld [vmem:[#allocation4 + $0xe38] sm:$0xff]
    %v3702 = vld [vmem:[#allocation4 + $0xe40] sm:$0xff]
    %v3703 = vld [vmem:[#allocation4 + $0xe48] sm:$0xff]
    %v3704 = vld [vmem:[#allocation4 + $0xe50] sm:$0xff]
    %v3705 = vld [vmem:[#allocation4 + $0xe58] sm:$0xff]
    %v3706 = vld [vmem:[#allocation4 + $0xe60] sm:$0xff]
    %v3707 = vld [vmem:[#allocation4 + $0xe68] sm:$0xff]
    %v3708 = vld [vmem:[#allocation4 + $0xe70] sm:$0xff]
    %v3709 = vld [vmem:[#allocation4 + $0xe78] sm:$0xff]
    %v3710 = vld [vmem:[#allocation4 + $0xe80] sm:$0xff]
    %v3711 = vld [vmem:[#allocation4 + $0xe88] sm:$0xff]
    %v3712 = vld [vmem:[#allocation4 + $0xe90] sm:$0xff]
    %v3713 = vld [vmem:[#allocation4 + $0xe98] sm:$0xff]
    %v3714 = vld [vmem:[#allocation4 + $0xea0] sm:$0xff]
    %v3715 = vld [vmem:[#allocation4 + $0xea8] sm:$0xff]
    %v3716 = vld [vmem:[#allocation4 + $0xeb0] sm:$0xff]
    %v3717 = vld [vmem:[#allocation4 + $0xeb8] sm:$0xff]
    %v3718 = vld [vmem:[#allocation4 + $0xec0] sm:$0xff]
    %v3719 = vld [vmem:[#allocation4 + $0xec8] sm:$0xff]
    %v3720 = vld [vmem:[#allocation4 + $0xed0] sm:$0xff]
    %v3721 = vld [vmem:[#allocation4 + $0xed8] sm:$0xff]
    %v3722 = vld [vmem:[#allocation4 + $0xee0] sm:$0xff]
    %v3723 = vld [vmem:[#allocation4 + $0xee8] sm:$0xff]
    %v3724 = vld [vmem:[#allocation4 + $0xef0] sm:$0xff]
    %v3725 = vld [vmem:[#allocation4 + $0xef8] sm:$0xff]
    %v3726 = vld [vmem:[#allocation4 + $0xf00] sm:$0xff]
    %v3727 = vld [vmem:[#allocation4 + $0xf08] sm:$0xff]
    %v3728 = vld [vmem:[#allocation4 + $0xf10] sm:$0xff]
    %v3729 = vld [vmem:[#allocation4 + $0xf18] sm:$0xff]
    %v3730 = vld [vmem:[#allocation4 + $0xf20] sm:$0xff]
    %v3731 = vld [vmem:[#allocation4 + $0xf28] sm:$0xff]
    %v3732 = vld [vmem:[#allocation4 + $0xf30] sm:$0xff]
    %v3733 = vld [vmem:[#allocation4 + $0xf38] sm:$0xff]
    %v3734 = vld [vmem:[#allocation4 + $0xf40] sm:$0xff]
    %v3735 = vld [vmem:[#allocation4 + $0xf48] sm:$0xff]
    %v3736 = vld [vmem:[#allocation4 + $0xf50] sm:$0xff]
    %v3737 = vld [vmem:[#allocation4 + $0xf58] sm:$0xff]
    %v3738 = vld [vmem:[#allocation4 + $0xf60] sm:$0xff]
    %v3739 = vld [vmem:[#allocation4 + $0xf68] sm:$0xff]
    %v3740 = vld [vmem:[#allocation4 + $0xf70] sm:$0xff]
    %v3741 = vld [vmem:[#allocation4 + $0xf78] sm:$0xff]
    %v3742 = vld [vmem:[#allocation4 + $0xf80] sm:$0xff]
    %v3743 = vld [vmem:[#allocation4 + $0xf88] sm:$0xff]
    %v3744 = vld [vmem:[#allocation4 + $0xf90] sm:$0xff]
    %v3745 = vld [vmem:[#allocation4 + $0xf98] sm:$0xff]
    %v3746 = vld [vmem:[#allocation4 + $0xfa0] sm:$0xff]
    %v3747 = vld [vmem:[#allocation4 + $0xfa8] sm:$0xff]
    %v3748 = vld [vmem:[#allocation4 + $0xfb0] sm:$0xff]
    %v3749 = vld [vmem:[#allocation4 + $0xfb8] sm:$0xff]
    %v3750 = vld [vmem:[#allocation4 + $0xfc0] sm:$0xff]
    %v3751 = vld [vmem:[#allocation4 + $0xfc8] sm:$0xff]
    %v3752 = vld [vmem:[#allocation4 + $0xfd0] sm:$0xff]
    %v3753 = vld [vmem:[#allocation4 + $0xfd8] sm:$0xff]
    %v3754 = vld [vmem:[#allocation4 + $0xfe0] sm:$0xff]
    %v3755 = vld [vmem:[#allocation4 + $0xfe8] sm:$0xff]
    %v3756 = vld [vmem:[#allocation4 + $0xff0] sm:$0xff]
    %v3757 = vld [vmem:[#allocation4 + $0xff8] sm:$0xff]
    %v3758 = vld [vmem:[#allocation4 + $0x1000] sm:$0xff]
    %v3759 = vld [vmem:[#allocation4 + $0x1008] sm:$0xff]
    %v3760 = vld [vmem:[#allocation4 + $0x1010] sm:$0xff]
    %v3761 = vld [vmem:[#allocation4 + $0x1018] sm:$0xff]
    %v3762 = vld [vmem:[#allocation4 + $0x1020] sm:$0xff]
    %v3763 = vld [vmem:[#allocation4 + $0x1028] sm:$0xff]
    %v3764 = vld [vmem:[#allocation4 + $0x1030] sm:$0xff]
    %v3765 = vld [vmem:[#allocation4 + $0x1038] sm:$0xff]
    %v3766 = vld [vmem:[#allocation4 + $0x1040] sm:$0xff]
    %v3767 = vld [vmem:[#allocation4 + $0x1048] sm:$0xff]
    %v3768 = vld [vmem:[#allocation4 + $0x1050] sm:$0xff]
    %v3769 = vld [vmem:[#allocation4 + $0x1058] sm:$0xff]
    %v3770 = vld [vmem:[#allocation4 + $0x1060] sm:$0xff]
    %v3771 = vld [vmem:[#allocation4 + $0x1068] sm:$0xff]
    %v3772 = vld [vmem:[#allocation4 + $0x1070] sm:$0xff]
    %v3773 = vld [vmem:[#allocation4 + $0x1078] sm:$0xff]
    %v3774 = vld [vmem:[#allocation4 + $0x1080] sm:$0xff]
    %v3775 = vld [vmem:[#allocation4 + $0x1088] sm:$0xff]
    %v3776 = vld [vmem:[#allocation4 + $0x1090] sm:$0xff]
    %v3777 = vld [vmem:[#allocation4 + $0x1098] sm:$0xff]
    %v3778 = vld [vmem:[#allocation4 + $0x10a0] sm:$0xff]
    %v3779 = vld [vmem:[#allocation4 + $0x10a8] sm:$0xff]
    %v3780 = vld [vmem:[#allocation4 + $0x10b0] sm:$0xff]
    %v3781 = vld [vmem:[#allocation4 + $0x10b8] sm:$0xff]
    %v3782 = vld [vmem:[#allocation4 + $0x10c0] sm:$0xff]
    %v3783 = vld [vmem:[#allocation4 + $0x10c8] sm:$0xff]
    %v3784 = vld [vmem:[#allocation4 + $0x10d0] sm:$0xff]
    %v3785 = vld [vmem:[#allocation4 + $0x10d8] sm:$0xff]
    %v3786 = vld [vmem:[#allocation4 + $0x10e0] sm:$0xff]
    %v3787 = vld [vmem:[#allocation4 + $0x10e8] sm:$0xff]
    %v3788 = vld [vmem:[#allocation4 + $0x10f0] sm:$0xff]
    %v3789 = vld [vmem:[#allocation4 + $0x10f8] sm:$0xff]
    %v3790 = vld [vmem:[#allocation4 + $0x1100] sm:$0xff]
    %v3791 = vld [vmem:[#allocation4 + $0x1108] sm:$0xff]
    %v3792 = vld [vmem:[#allocation4 + $0x1110] sm:$0xff]
    %v3793 = vld [vmem:[#allocation4 + $0x1118] sm:$0xff]
    %v3794 = vld [vmem:[#allocation4 + $0x1120] sm:$0xff]
    %v3795 = vld [vmem:[#allocation4 + $0x1128] sm:$0xff]
    %v3796 = vld [vmem:[#allocation4 + $0x1130] sm:$0xff]
    %v3797 = vld [vmem:[#allocation4 + $0x1138] sm:$0xff]
    %v3798 = vld [vmem:[#allocation4 + $0x1140] sm:$0xff]
    %v3799 = vld [vmem:[#allocation4 + $0x1148] sm:$0xff]
    %v3800 = vld [vmem:[#allocation4 + $0x1150] sm:$0xff]
    %v3801 = vld [vmem:[#allocation4 + $0x1158] sm:$0xff]
    %v3802 = vld [vmem:[#allocation4 + $0x1160] sm:$0xff]
    %v3803 = vld [vmem:[#allocation4 + $0x1168] sm:$0xff]
    %v3804 = vld [vmem:[#allocation4 + $0x1170] sm:$0xff]
    %v3805 = vld [vmem:[#allocation4 + $0x1178] sm:$0xff]
    %v3806 = vld [vmem:[#allocation4 + $0x1180] sm:$0xff]
    %v3807 = vld [vmem:[#allocation4 + $0x1188] sm:$0xff]
    %v3808 = vld [vmem:[#allocation4 + $0x1190] sm:$0xff]
    %v3809 = vld [vmem:[#allocation4 + $0x1198] sm:$0xff]
    %v3810 = vld [vmem:[#allocation4 + $0x11a0] sm:$0xff]
    %v3811 = vld [vmem:[#allocation4 + $0x11a8] sm:$0xff]
    %v3812 = vld [vmem:[#allocation4 + $0x11b0] sm:$0xff]
    %v3813 = vld [vmem:[#allocation4 + $0x11b8] sm:$0xff]
    %v3814 = vld [vmem:[#allocation4 + $0x11c0] sm:$0xff]
    %v3815 = vld [vmem:[#allocation4 + $0x11c8] sm:$0xff]
    %v3816 = vld [vmem:[#allocation4 + $0x11d0] sm:$0xff]
    %v3817 = vld [vmem:[#allocation4 + $0x11d8] sm:$0xff]
    %v3818 = vld [vmem:[#allocation4 + $0x11e0] sm:$0xff]
    %v3819 = vld [vmem:[#allocation4 + $0x11e8] sm:$0xff]
    %v3820 = vld [vmem:[#allocation4 + $0x11f0] sm:$0xff]
    %v3821 = vld [vmem:[#allocation4 + $0x11f8] sm:$0xff]
    %v3822 = vld [vmem:[#allocation4 + $0x1200] sm:$0xff]
    %v3823 = vld [vmem:[#allocation4 + $0x1208] sm:$0xff]
    %v3824 = vld [vmem:[#allocation4 + $0x1210] sm:$0xff]
    %v3825 = vld [vmem:[#allocation4 + $0x1218] sm:$0xff]
    %v3826 = vld [vmem:[#allocation4 + $0x1220] sm:$0xff]
    %v3827 = vld [vmem:[#allocation4 + $0x1228] sm:$0xff]
    %v3828 = vld [vmem:[#allocation4 + $0x1230] sm:$0xff]
    %v3829 = vld [vmem:[#allocation4 + $0x1238] sm:$0xff]
    %v3830 = vld [vmem:[#allocation4 + $0x1240] sm:$0xff]
    %v3831 = vld [vmem:[#allocation4 + $0x1248] sm:$0xff]
    %v3832 = vld [vmem:[#allocation4 + $0x1250] sm:$0xff]
    %v3833 = vld [vmem:[#allocation4 + $0x1258] sm:$0xff]
    %v3834 = vld [vmem:[#allocation4 + $0x1260] sm:$0xff]
    %v3835 = vld [vmem:[#allocation4 + $0x1268] sm:$0xff]
    %v3836 = vld [vmem:[#allocation4 + $0x1270] sm:$0xff]
    %v3837 = vld [vmem:[#allocation4 + $0x1278] sm:$0xff]
    %v3838 = vld [vmem:[#allocation4 + $0x1280] sm:$0xff]
    %v3839 = vld [vmem:[#allocation4 + $0x1288] sm:$0xff]
    %v3840 = vld [vmem:[#allocation4 + $0x1290] sm:$0xff]
    %v3841 = vld [vmem:[#allocation4 + $0x1298] sm:$0xff]
    %v3842 = vld [vmem:[#allocation4 + $0x12a0] sm:$0xff]
    %v3843 = vld [vmem:[#allocation4 + $0x12a8] sm:$0xff]
    %v3844 = vld [vmem:[#allocation4 + $0x12b0] sm:$0xff]
    %v3845 = vld [vmem:[#allocation4 + $0x12b8] sm:$0xff]
    %v3846 = vld [vmem:[#allocation4 + $0x12c0] sm:$0xff]
    %v3847 = vld [vmem:[#allocation4 + $0x12c8] sm:$0xff]
    %v3848 = vld [vmem:[#allocation4 + $0x12d0] sm:$0xff]
    %v3849 = vld [vmem:[#allocation4 + $0x12d8] sm:$0xff]
    %v3850 = vld [vmem:[#allocation4 + $0x12e0] sm:$0xff]
    %v3851 = vld [vmem:[#allocation4 + $0x12e8] sm:$0xff]
    %v3852 = vld [vmem:[#allocation4 + $0x12f0] sm:$0xff]
    %v3853 = vld [vmem:[#allocation4 + $0x12f8] sm:$0xff]
    %v3854 = vld [vmem:[#allocation4 + $0x1300] sm:$0xff]
    %v3855 = vld [vmem:[#allocation4 + $0x1308] sm:$0xff]
    %v3856 = vld [vmem:[#allocation4 + $0x1310] sm:$0xff]
    %v3857 = vld [vmem:[#allocation4 + $0x1318] sm:$0xff]
    %v3858 = vld [vmem:[#allocation4 + $0x1320] sm:$0xff]
    %v3859 = vld [vmem:[#allocation4 + $0x1328] sm:$0xff]
    %v3860 = vld [vmem:[#allocation4 + $0x1330] sm:$0xff]
    %v3861 = vld [vmem:[#allocation4 + $0x1338] sm:$0xff]
    %v3862 = vld [vmem:[#allocation4 + $0x1340] sm:$0xff]
    %v3863 = vld [vmem:[#allocation4 + $0x1348] sm:$0xff]
    %v3864 = vld [vmem:[#allocation4 + $0x1350] sm:$0xff]
    %v3865 = vld [vmem:[#allocation4 + $0x1358] sm:$0xff]
    %v3866 = vld [vmem:[#allocation4 + $0x1360] sm:$0xff]
    %v3867 = vld [vmem:[#allocation4 + $0x1368] sm:$0xff]
    %v3868 = vld [vmem:[#allocation4 + $0x1370] sm:$0xff]
    %v3869 = vld [vmem:[#allocation4 + $0x1378] sm:$0xff]
    %v3870 = vld [vmem:[#allocation4 + $0x1380] sm:$0xff]
    %v3871 = vld [vmem:[#allocation4 + $0x1388] sm:$0xff]
    %v3872 = vld [vmem:[#allocation4 + $0x1390] sm:$0xff]
    %v3873 = vld [vmem:[#allocation4 + $0x1398] sm:$0xff]
    %v3874 = vld [vmem:[#allocation4 + $0x13a0] sm:$0xff]
    %v3875 = vld [vmem:[#allocation4 + $0x13a8] sm:$0xff]
    %v3876 = vld [vmem:[#allocation4 + $0x13b0] sm:$0xff]
    %v3877 = vld [vmem:[#allocation4 + $0x13b8] sm:$0xff]
    %v3878 = vld [vmem:[#allocation4 + $0x13c0] sm:$0xff]
    %v3879 = vld [vmem:[#allocation4 + $0x13c8] sm:$0xff]
    %v3880 = vld [vmem:[#allocation4 + $0x13d0] sm:$0xff]
    %v3881 = vld [vmem:[#allocation4 + $0x13d8] sm:$0xff]
    %v3882 = vld [vmem:[#allocation4 + $0x13e0] sm:$0xff]
    %v3883 = vld [vmem:[#allocation4 + $0x13e8] sm:$0xff]
    %v3884 = vld [vmem:[#allocation4 + $0x13f0] sm:$0xff]
    %v3885 = vld [vmem:[#allocation4 + $0x13f8] sm:$0xff]
    %v3886 = vld [vmem:[#allocation4 + $0x1400] sm:$0xff]
    %v3887 = vld [vmem:[#allocation4 + $0x1408] sm:$0xff]
    %v3888 = vld [vmem:[#allocation4 + $0x1410] sm:$0xff]
    %v3889 = vld [vmem:[#allocation4 + $0x1418] sm:$0xff]
    %v3890 = vld [vmem:[#allocation4 + $0x1420] sm:$0xff]
    %v3891 = vld [vmem:[#allocation4 + $0x1428] sm:$0xff]
    %v3892 = vld [vmem:[#allocation4 + $0x1430] sm:$0xff]
    %v3893 = vld [vmem:[#allocation4 + $0x1438] sm:$0xff]
    %v3894 = vld [vmem:[#allocation4 + $0x1440] sm:$0xff]
    %v3895 = vld [vmem:[#allocation4 + $0x1448] sm:$0xff]
    %v3896 = vld [vmem:[#allocation4 + $0x1450] sm:$0xff]
    %v3897 = vld [vmem:[#allocation4 + $0x1458] sm:$0xff]
    %v3898 = vld [vmem:[#allocation4 + $0x1460] sm:$0xff]
    %v3899 = vld [vmem:[#allocation4 + $0x1468] sm:$0xff]
    %v3900 = vld [vmem:[#allocation4 + $0x1470] sm:$0xff]
    %v3901 = vld [vmem:[#allocation4 + $0x1478] sm:$0xff]
    %v3902 = vld [vmem:[#allocation4 + $0x1480] sm:$0xff]
    %v3903 = vld [vmem:[#allocation4 + $0x1488] sm:$0xff]
    %v3904 = vld [vmem:[#allocation4 + $0x1490] sm:$0xff]
    %v3905 = vld [vmem:[#allocation4 + $0x1498] sm:$0xff]
    %v3906 = vld [vmem:[#allocation4 + $0x14a0] sm:$0xff]
    %v3907 = vld [vmem:[#allocation4 + $0x14a8] sm:$0xff]
    %v3908 = vld [vmem:[#allocation4 + $0x14b0] sm:$0xff]
    %v3909 = vld [vmem:[#allocation4 + $0x14b8] sm:$0xff]
    %v3910 = vld [vmem:[#allocation4 + $0x14c0] sm:$0xff]
    %v3911 = vld [vmem:[#allocation4 + $0x14c8] sm:$0xff]
    %v3912 = vld [vmem:[#allocation4 + $0x14d0] sm:$0xff]
    %v3913 = vld [vmem:[#allocation4 + $0x14d8] sm:$0xff]
    %v3914 = vld [vmem:[#allocation4 + $0x14e0] sm:$0xff]
    %v3915 = vld [vmem:[#allocation4 + $0x14e8] sm:$0xff]
    %v3916 = vld [vmem:[#allocation4 + $0x14f0] sm:$0xff]
    %v3917 = vld [vmem:[#allocation4 + $0x14f8] sm:$0xff]
    %v3918 = vld [vmem:[#allocation4 + $0x1500] sm:$0xff]
    %v3919 = vld [vmem:[#allocation4 + $0x1508] sm:$0xff]
    %v3920 = vld [vmem:[#allocation4 + $0x1510] sm:$0xff]
    %v3921 = vld [vmem:[#allocation4 + $0x1518] sm:$0xff]
    %v3922 = vld [vmem:[#allocation4 + $0x1520] sm:$0xff]
    %v3923 = vld [vmem:[#allocation4 + $0x1528] sm:$0xff]
    %v3924 = vld [vmem:[#allocation4 + $0x1530] sm:$0xff]
    %v3925 = vld [vmem:[#allocation4 + $0x1538] sm:$0xff]
    %v3926 = vld [vmem:[#allocation4 + $0x1540] sm:$0xff]
    %v3927 = vld [vmem:[#allocation4 + $0x1548] sm:$0xff]
    %v3928 = vld [vmem:[#allocation4 + $0x1550] sm:$0xff]
    %v3929 = vld [vmem:[#allocation4 + $0x1558] sm:$0xff]
    %v3930 = vld [vmem:[#allocation4 + $0x1560] sm:$0xff]
    %v3931 = vld [vmem:[#allocation4 + $0x1568] sm:$0xff]
    %v3932 = vld [vmem:[#allocation4 + $0x1570] sm:$0xff]
    %v3933 = vld [vmem:[#allocation4 + $0x1578] sm:$0xff]
    %v3934 = vld [vmem:[#allocation4 + $0x1580] sm:$0xff]
    %v3935 = vld [vmem:[#allocation4 + $0x1588] sm:$0xff]
    %v3936 = vld [vmem:[#allocation4 + $0x1590] sm:$0xff]
    %v3937 = vld [vmem:[#allocation4 + $0x1598] sm:$0xff]
    %v3938 = vld [vmem:[#allocation4 + $0x15a0] sm:$0xff]
    %v3939 = vld [vmem:[#allocation4 + $0x15a8] sm:$0xff]
    %v3940 = vld [vmem:[#allocation4 + $0x15b0] sm:$0xff]
    %v3941 = vld [vmem:[#allocation4 + $0x15b8] sm:$0xff]
    %v3942 = vld [vmem:[#allocation4 + $0x15c0] sm:$0xff]
    %v3943 = vld [vmem:[#allocation4 + $0x15c8] sm:$0xff]
    %v3944 = vld [vmem:[#allocation4 + $0x15d0] sm:$0xff]
    %v3945 = vld [vmem:[#allocation4 + $0x15d8] sm:$0xff]
    %v3946 = vld [vmem:[#allocation4 + $0x15e0] sm:$0xff]
    %v3947 = vld [vmem:[#allocation4 + $0x15e8] sm:$0xff]
    %v3948 = vld [vmem:[#allocation4 + $0x15f0] sm:$0xff]
    %v3949 = vld [vmem:[#allocation4 + $0x15f8] sm:$0xff]
    %v3950 = vld [vmem:[#allocation4 + $0x1600] sm:$0xff]
    %v3951 = vld [vmem:[#allocation4 + $0x1608] sm:$0xff]
    %v3952 = vld [vmem:[#allocation4 + $0x1610] sm:$0xff]
    %v3953 = vld [vmem:[#allocation4 + $0x1618] sm:$0xff]
    %v3954 = vld [vmem:[#allocation4 + $0x1620] sm:$0xff]
    %v3955 = vld [vmem:[#allocation4 + $0x1628] sm:$0xff]
    %v3956 = vld [vmem:[#allocation4 + $0x1630] sm:$0xff]
    %v3957 = vld [vmem:[#allocation4 + $0x1638] sm:$0xff]
    %v3958 = vld [vmem:[#allocation4 + $0x1640] sm:$0xff]
    %v3959 = vld [vmem:[#allocation4 + $0x1648] sm:$0xff]
    %v3960 = vld [vmem:[#allocation4 + $0x1650] sm:$0xff]
    %v3961 = vld [vmem:[#allocation4 + $0x1658] sm:$0xff]
    %v3962 = vld [vmem:[#allocation4 + $0x1660] sm:$0xff]
    %v3963 = vld [vmem:[#allocation4 + $0x1668] sm:$0xff]
    %v3964 = vld [vmem:[#allocation4 + $0x1670] sm:$0xff]
    %v3965 = vld [vmem:[#allocation4 + $0x1678] sm:$0xff]
    %v3966 = vld [vmem:[#allocation4 + $0x1680] sm:$0xff]
    %v3967 = vld [vmem:[#allocation4 + $0x1688] sm:$0xff]
    %v3968 = vld [vmem:[#allocation4 + $0x1690] sm:$0xff]
    %v3969 = vld [vmem:[#allocation4 + $0x1698] sm:$0xff]
    %v3970 = vld [vmem:[#allocation4 + $0x16a0] sm:$0xff]
    %v3971 = vld [vmem:[#allocation4 + $0x16a8] sm:$0xff]
    %v3972 = vld [vmem:[#allocation4 + $0x16b0] sm:$0xff]
    %v3973 = vld [vmem:[#allocation4 + $0x16b8] sm:$0xff]
    %v3974 = vld [vmem:[#allocation4 + $0x16c0] sm:$0xff]
    %v3975 = vld [vmem:[#allocation4 + $0x16c8] sm:$0xff]
    %v3976 = vld [vmem:[#allocation4 + $0x16d0] sm:$0xff]
    %v3977 = vld [vmem:[#allocation4 + $0x16d8] sm:$0xff]
    %v3978 = vld [vmem:[#allocation4 + $0x16e0] sm:$0xff]
    %v3979 = vld [vmem:[#allocation4 + $0x16e8] sm:$0xff]
    %v3980 = vld [vmem:[#allocation4 + $0x16f0] sm:$0xff]
    %v3981 = vld [vmem:[#allocation4 + $0x16f8] sm:$0xff]
    %v3982 = vld [vmem:[#allocation4 + $0x1700] sm:$0xff]
    %v3983 = vld [vmem:[#allocation4 + $0x1708] sm:$0xff]
    %v3984 = vld [vmem:[#allocation4 + $0x1710] sm:$0xff]
    %v3985 = vld [vmem:[#allocation4 + $0x1718] sm:$0xff]
    %v3986 = vld [vmem:[#allocation4 + $0x1720] sm:$0xff]
    %v3987 = vld [vmem:[#allocation4 + $0x1728] sm:$0xff]
    %v3988 = vld [vmem:[#allocation4 + $0x1730] sm:$0xff]
    %v3989 = vld [vmem:[#allocation4 + $0x1738] sm:$0xff]
    %v3990 = vld [vmem:[#allocation4 + $0x1740] sm:$0xff]
    %v3991 = vld [vmem:[#allocation4 + $0x1748] sm:$0xff]
    %v3992 = vld [vmem:[#allocation4 + $0x1750] sm:$0xff]
    %v3993 = vld [vmem:[#allocation4 + $0x1758] sm:$0xff]
    %v3994 = vld [vmem:[#allocation4 + $0x1760] sm:$0xff]
    %v3995 = vld [vmem:[#allocation4 + $0x1768] sm:$0xff]
    %v3996 = vld [vmem:[#allocation4 + $0x1770] sm:$0xff]
    %v3997 = vld [vmem:[#allocation4 + $0x1778] sm:$0xff]
    %v3998 = vld [vmem:[#allocation4 + $0x1780] sm:$0xff]
    %v3999 = vld [vmem:[#allocation4 + $0x1788] sm:$0xff]
    %v4000 = vld [vmem:[#allocation4 + $0x1790] sm:$0xff]
    %v4001 = vld [vmem:[#allocation4 + $0x1798] sm:$0xff]
    %v4002 = vld [vmem:[#allocation4 + $0x17a0] sm:$0xff]
    %v4003 = vld [vmem:[#allocation4 + $0x17a8] sm:$0xff]
    %v4004 = vld [vmem:[#allocation4 + $0x17b0] sm:$0xff]
    %v4005 = vld [vmem:[#allocation4 + $0x17b8] sm:$0xff]
    %v4006 = vld [vmem:[#allocation4 + $0x17c0] sm:$0xff]
    %v4007 = vld [vmem:[#allocation4 + $0x17c8] sm:$0xff]
    %v4008 = vld [vmem:[#allocation4 + $0x17d0] sm:$0xff]
    %v4009 = vld [vmem:[#allocation4 + $0x17d8] sm:$0xff]
    %v4010 = vld [vmem:[#allocation4 + $0x17e0] sm:$0xff]
    %v4011 = vld [vmem:[#allocation4 + $0x17e8] sm:$0xff]
    %v4012 = vld [vmem:[#allocation4 + $0x17f0] sm:$0xff]
    %v4013 = vld [vmem:[#allocation4 + $0x17f8] sm:$0xff]
    %v4014 = vld [vmem:[#allocation4 + $0x1800] sm:$0xff]
    %v4015 = vld [vmem:[#allocation4 + $0x1808] sm:$0xff]
    %v4016 = vld [vmem:[#allocation4 + $0x1810] sm:$0xff]
    %v4017 = vld [vmem:[#allocation4 + $0x1818] sm:$0xff]
    %v4018 = vld [vmem:[#allocation4 + $0x1820] sm:$0xff]
    %v4019 = vld [vmem:[#allocation4 + $0x1828] sm:$0xff]
    %v4020 = vld [vmem:[#allocation4 + $0x1830] sm:$0xff]
    %v4021 = vld [vmem:[#allocation4 + $0x1838] sm:$0xff]
    %v4022 = vld [vmem:[#allocation4 + $0x1840] sm:$0xff]
    %v4023 = vld [vmem:[#allocation4 + $0x1848] sm:$0xff]
    %v4024 = vld [vmem:[#allocation4 + $0x1850] sm:$0xff]
    %v4025 = vld [vmem:[#allocation4 + $0x1858] sm:$0xff]
    %v4026 = vld [vmem:[#allocation4 + $0x1860] sm:$0xff]
    %v4027 = vld [vmem:[#allocation4 + $0x1868] sm:$0xff]
    %v4028 = vld [vmem:[#allocation4 + $0x1870] sm:$0xff]
    %v4029 = vld [vmem:[#allocation4 + $0x1878] sm:$0xff]
    %v4030 = vld [vmem:[#allocation4 + $0x1880] sm:$0xff]
    %v4031 = vld [vmem:[#allocation4 + $0x1888] sm:$0xff]
    %v4032 = vld [vmem:[#allocation4 + $0x1890] sm:$0xff]
    %v4033 = vld [vmem:[#allocation4 + $0x1898] sm:$0xff]
    %v4034 = vld [vmem:[#allocation4 + $0x18a0] sm:$0xff]
    %v4035 = vld [vmem:[#allocation4 + $0x18a8] sm:$0xff]
    %v4036 = vld [vmem:[#allocation4 + $0x18b0] sm:$0xff]
    %v4037 = vld [vmem:[#allocation4 + $0x18b8] sm:$0xff]
    %v4038 = vld [vmem:[#allocation4 + $0x18c0] sm:$0xff]
    %v4039 = vld [vmem:[#allocation4 + $0x18c8] sm:$0xff]
    %v4040 = vld [vmem:[#allocation4 + $0x18d0] sm:$0xff]
    %v4041 = vld [vmem:[#allocation4 + $0x18d8] sm:$0xff]
    %v4042 = vld [vmem:[#allocation4 + $0x18e0] sm:$0xff]
    %v4043 = vld [vmem:[#allocation4 + $0x18e8] sm:$0xff]
    %v4044 = vld [vmem:[#allocation4 + $0x18f0] sm:$0xff]
    %v4045 = vld [vmem:[#allocation4 + $0x18f8] sm:$0xff]
    %v4046 = vld [vmem:[#allocation4 + $0x1900] sm:$0xff]
    %v4047 = vld [vmem:[#allocation4 + $0x1908] sm:$0xff]
    %v4048 = vld [vmem:[#allocation4 + $0x1910] sm:$0xff]
    %v4049 = vld [vmem:[#allocation4 + $0x1918] sm:$0xff]
    %v4050 = vld [vmem:[#allocation4 + $0x1920] sm:$0xff]
    %v4051 = vld [vmem:[#allocation4 + $0x1928] sm:$0xff]
    %v4052 = vld [vmem:[#allocation4 + $0x1930] sm:$0xff]
    %v4053 = vld [vmem:[#allocation4 + $0x1938] sm:$0xff]
    %v4054 = vld [vmem:[#allocation4 + $0x1940] sm:$0xff]
    %v4055 = vld [vmem:[#allocation4 + $0x1948] sm:$0xff]
    %v4056 = vld [vmem:[#allocation4 + $0x1950] sm:$0xff]
    %v4057 = vld [vmem:[#allocation4 + $0x1958] sm:$0xff]
    %v4058 = vld [vmem:[#allocation4 + $0x1960] sm:$0xff]
    %v4059 = vld [vmem:[#allocation4 + $0x1968] sm:$0xff]
    %v4060 = vld [vmem:[#allocation4 + $0x1970] sm:$0xff]
    %v4061 = vld [vmem:[#allocation4 + $0x1978] sm:$0xff]
    %v4062 = vld [vmem:[#allocation4 + $0x1980] sm:$0xff]
    %v4063 = vld [vmem:[#allocation4 + $0x1988] sm:$0xff]
    %v4064 = vld [vmem:[#allocation4 + $0x1990] sm:$0xff]
    %v4065 = vld [vmem:[#allocation4 + $0x1998] sm:$0xff]
    %v4066 = vld [vmem:[#allocation4 + $0x19a0] sm:$0xff]
    %v4067 = vld [vmem:[#allocation4 + $0x19a8] sm:$0xff]
    %v4068 = vld [vmem:[#allocation4 + $0x19b0] sm:$0xff]
    %v4069 = vld [vmem:[#allocation4 + $0x19b8] sm:$0xff]
    %v4070 = vld [vmem:[#allocation4 + $0x19c0] sm:$0xff]
    %v4071 = vld [vmem:[#allocation4 + $0x19c8] sm:$0xff]
    %v4072 = vld [vmem:[#allocation4 + $0x19d0] sm:$0xff]
    %v4073 = vld [vmem:[#allocation4 + $0x19d8] sm:$0xff]
    %v4074 = vld [vmem:[#allocation4 + $0x19e0] sm:$0xff]
    %v4075 = vld [vmem:[#allocation4 + $0x19e8] sm:$0xff]
    %v4076 = vld [vmem:[#allocation4 + $0x19f0] sm:$0xff]
    %v4077 = vld [vmem:[#allocation4 + $0x19f8] sm:$0xff]
    %v4078 = vld [vmem:[#allocation4 + $0x1a00] sm:$0xff]
    %v4079 = vld [vmem:[#allocation4 + $0x1a08] sm:$0xff]
    %v4080 = vld [vmem:[#allocation4 + $0x1a10] sm:$0xff]
    %v4081 = vld [vmem:[#allocation4 + $0x1a18] sm:$0xff]
    %v4082 = vld [vmem:[#allocation4 + $0x1a20] sm:$0xff]
    %v4083 = vld [vmem:[#allocation4 + $0x1a28] sm:$0xff]
    %v4084 = vld [vmem:[#allocation4 + $0x1a30] sm:$0xff]
    %v4085 = vld [vmem:[#allocation4 + $0x1a38] sm:$0xff]
    %v4086 = vld [vmem:[#allocation4 + $0x1a40] sm:$0xff]
    %v4087 = vld [vmem:[#allocation4 + $0x1a48] sm:$0xff]
    %v4088 = vld [vmem:[#allocation4 + $0x1a50] sm:$0xff]
    %v4089 = vld [vmem:[#allocation4 + $0x1a58] sm:$0xff]
    %v4090 = vld [vmem:[#allocation4 + $0x1a60] sm:$0xff]
    %v4091 = vld [vmem:[#allocation4 + $0x1a68] sm:$0xff]
    %v4092 = vld [vmem:[#allocation4 + $0x1a70] sm:$0xff]
    %v4093 = vld [vmem:[#allocation4 + $0x1a78] sm:$0xff]
    %v4094 = vld [vmem:[#allocation4 + $0x1a80] sm:$0xff]
    %v4095 = vld [vmem:[#allocation4 + $0x1a88] sm:$0xff]
    %v4096 = vld [vmem:[#allocation4 + $0x1a90] sm:$0xff]
    %v4097 = vld [vmem:[#allocation4 + $0x1a98] sm:$0xff]
    %v4098 = vld [vmem:[#allocation4 + $0x1aa0] sm:$0xff]
    %v4099 = vld [vmem:[#allocation4 + $0x1aa8] sm:$0xff]
    %v4100 = vld [vmem:[#allocation4 + $0x1ab0] sm:$0xff]
    %v4101 = vld [vmem:[#allocation4 + $0x1ab8] sm:$0xff]
    %v4102 = vld [vmem:[#allocation4 + $0x1ac0] sm:$0xff]
    %v4103 = vld [vmem:[#allocation4 + $0x1ac8] sm:$0xff]
    %v4104 = vld [vmem:[#allocation4 + $0x1ad0] sm:$0xff]
    %v4105 = vld [vmem:[#allocation4 + $0x1ad8] sm:$0xff]
    %v4106 = vld [vmem:[#allocation4 + $0x1ae0] sm:$0xff]
    %v4107 = vld [vmem:[#allocation4 + $0x1ae8] sm:$0xff]
    %v4108 = vld [vmem:[#allocation4 + $0x1af0] sm:$0xff]
    %v4109 = vld [vmem:[#allocation4 + $0x1af8] sm:$0xff]
    %v4110 = vld [vmem:[#allocation4 + $0x1b00] sm:$0xff]
    %v4111 = vld [vmem:[#allocation4 + $0x1b08] sm:$0xff]
    %v4112 = vld [vmem:[#allocation4 + $0x1b10] sm:$0xff]
    %v4113 = vld [vmem:[#allocation4 + $0x1b18] sm:$0xff]
    %v4114 = vld [vmem:[#allocation4 + $0x1b20] sm:$0xff]
    %v4115 = vld [vmem:[#allocation4 + $0x1b28] sm:$0xff]
    %v4116 = vld [vmem:[#allocation4 + $0x1b30] sm:$0xff]
    %v4117 = vld [vmem:[#allocation4 + $0x1b38] sm:$0xff]
    %v4118 = vld [vmem:[#allocation4 + $0x1b40] sm:$0xff]
    %v4119 = vld [vmem:[#allocation4 + $0x1b48] sm:$0xff]
    %v4120 = vld [vmem:[#allocation4 + $0x1b50] sm:$0xff]
    %v4121 = vld [vmem:[#allocation4 + $0x1b58] sm:$0xff]
    %v4122 = vld [vmem:[#allocation4 + $0x1b60] sm:$0xff]
    %v4123 = vld [vmem:[#allocation4 + $0x1b68] sm:$0xff]
    %v4124 = vld [vmem:[#allocation4 + $0x1b70] sm:$0xff]
    %v4125 = vld [vmem:[#allocation4 + $0x1b78] sm:$0xff]
    %v4126 = vld [vmem:[#allocation4 + $0x1b80] sm:$0xff]
    %v4127 = vld [vmem:[#allocation4 + $0x1b88] sm:$0xff]
    %v4128 = vld [vmem:[#allocation4 + $0x1b90] sm:$0xff]
    %v4129 = vld [vmem:[#allocation4 + $0x1b98] sm:$0xff]
    %v4130 = vld [vmem:[#allocation4 + $0x1ba0] sm:$0xff]
    %v4131 = vld [vmem:[#allocation4 + $0x1ba8] sm:$0xff]
    %v4132 = vld [vmem:[#allocation4 + $0x1bb0] sm:$0xff]
    %v4133 = vld [vmem:[#allocation4 + $0x1bb8] sm:$0xff]
    %v4134 = vld [vmem:[#allocation4 + $0x1bc0] sm:$0xff]
    %v4135 = vld [vmem:[#allocation4 + $0x1bc8] sm:$0xff]
    %v4136 = vld [vmem:[#allocation4 + $0x1bd0] sm:$0xff]
    %v4137 = vld [vmem:[#allocation4 + $0x1bd8] sm:$0xff]
    %v4138 = vld [vmem:[#allocation4 + $0x1be0] sm:$0xff]
    %v4139 = vld [vmem:[#allocation4 + $0x1be8] sm:$0xff]
    %v4140 = vld [vmem:[#allocation4 + $0x1bf0] sm:$0xff]
    %v4141 = vld [vmem:[#allocation4 + $0x1bf8] sm:$0xff]
    %v4142 = vld [vmem:[#allocation4 + $0x1c00] sm:$0xff]
    %v4143 = vld [vmem:[#allocation4 + $0x1c08] sm:$0xff]
    %v4144 = vld [vmem:[#allocation4 + $0x1c10] sm:$0xff]
    %v4145 = vld [vmem:[#allocation4 + $0x1c18] sm:$0xff]
    %v4146 = vld [vmem:[#allocation4 + $0x1c20] sm:$0xff]
    %v4147 = vld [vmem:[#allocation4 + $0x1c28] sm:$0xff]
    %v4148 = vld [vmem:[#allocation4 + $0x1c30] sm:$0xff]
    %v4149 = vld [vmem:[#allocation4 + $0x1c38] sm:$0xff]
    %v4150 = vld [vmem:[#allocation4 + $0x1c40] sm:$0xff]
    %v4151 = vld [vmem:[#allocation4 + $0x1c48] sm:$0xff]
    %v4152 = vld [vmem:[#allocation4 + $0x1c50] sm:$0xff]
    %v4153 = vld [vmem:[#allocation4 + $0x1c58] sm:$0xff]
    %v4154 = vld [vmem:[#allocation4 + $0x1c60] sm:$0xff]
    %v4155 = vld [vmem:[#allocation4 + $0x1c68] sm:$0xff]
    %v4156 = vld [vmem:[#allocation4 + $0x1c70] sm:$0xff]
    %v4157 = vld [vmem:[#allocation4 + $0x1c78] sm:$0xff]
    %v4158 = vld [vmem:[#allocation4 + $0x1c80] sm:$0xff]
    %v4159 = vld [vmem:[#allocation4 + $0x1c88] sm:$0xff]
    %v4160 = vld [vmem:[#allocation4 + $0x1c90] sm:$0xff]
    %v4161 = vld [vmem:[#allocation4 + $0x1c98] sm:$0xff]
    %v4162 = vld [vmem:[#allocation4 + $0x1ca0] sm:$0xff]
    %v4163 = vld [vmem:[#allocation4 + $0x1ca8] sm:$0xff]
    %v4164 = vld [vmem:[#allocation4 + $0x1cb0] sm:$0xff]
    %v4165 = vld [vmem:[#allocation4 + $0x1cb8] sm:$0xff]
    %v4166 = vld [vmem:[#allocation4 + $0x1cc0] sm:$0xff]
    %v4167 = vld [vmem:[#allocation4 + $0x1cc8] sm:$0xff]
    %v4168 = vld [vmem:[#allocation4 + $0x1cd0] sm:$0xff]
    %v4169 = vld [vmem:[#allocation4 + $0x1cd8] sm:$0xff]
    %v4170 = vld [vmem:[#allocation4 + $0x1ce0] sm:$0xff]
    %v4171 = vld [vmem:[#allocation4 + $0x1ce8] sm:$0xff]
    %v4172 = vld [vmem:[#allocation4 + $0x1cf0] sm:$0xff]
    %v4173 = vld [vmem:[#allocation4 + $0x1cf8] sm:$0xff]
    %v4174 = vld [vmem:[#allocation4 + $0x1d00] sm:$0xff]
    %v4175 = vld [vmem:[#allocation4 + $0x1d08] sm:$0xff]
    %v4176 = vld [vmem:[#allocation4 + $0x1d10] sm:$0xff]
    %v4177 = vld [vmem:[#allocation4 + $0x1d18] sm:$0xff]
    %v4178 = vld [vmem:[#allocation4 + $0x1d20] sm:$0xff]
    %v4179 = vld [vmem:[#allocation4 + $0x1d28] sm:$0xff]
    %v4180 = vld [vmem:[#allocation4 + $0x1d30] sm:$0xff]
    %v4181 = vld [vmem:[#allocation4 + $0x1d38] sm:$0xff]
    %v4182 = vld [vmem:[#allocation4 + $0x1d40] sm:$0xff]
    %v4183 = vld [vmem:[#allocation4 + $0x1d48] sm:$0xff]
    %v4184 = vld [vmem:[#allocation4 + $0x1d50] sm:$0xff]
    %v4185 = vld [vmem:[#allocation4 + $0x1d58] sm:$0xff]
    %v4186 = vld [vmem:[#allocation4 + $0x1d60] sm:$0xff]
    %v4187 = vld [vmem:[#allocation4 + $0x1d68] sm:$0xff]
    %v4188 = vld [vmem:[#allocation4 + $0x1d70] sm:$0xff]
    %v4189 = vld [vmem:[#allocation4 + $0x1d78] sm:$0xff]
    %v4190 = vld [vmem:[#allocation4 + $0x1d80] sm:$0xff]
    %v4191 = vld [vmem:[#allocation4 + $0x1d88] sm:$0xff]
    %v4192 = vld [vmem:[#allocation4 + $0x1d90] sm:$0xff]
    %v4193 = vld [vmem:[#allocation4 + $0x1d98] sm:$0xff]
    %v4194 = vld [vmem:[#allocation4 + $0x1da0] sm:$0xff]
    %v4195 = vld [vmem:[#allocation4 + $0x1da8] sm:$0xff]
    %v4196 = vld [vmem:[#allocation4 + $0x1db0] sm:$0xff]
    %v4197 = vld [vmem:[#allocation4 + $0x1db8] sm:$0xff]
    %v4198 = vld [vmem:[#allocation4 + $0x1dc0] sm:$0xff]
    %v4199 = vld [vmem:[#allocation4 + $0x1dc8] sm:$0xff]
    %v4200 = vld [vmem:[#allocation4 + $0x1dd0] sm:$0xff]
    %v4201 = vld [vmem:[#allocation4 + $0x1dd8] sm:$0xff]
    %v4202 = vld [vmem:[#allocation4 + $0x1de0] sm:$0xff]
    %v4203 = vld [vmem:[#allocation4 + $0x1de8] sm:$0xff]
    %v4204 = vld [vmem:[#allocation4 + $0x1df0] sm:$0xff]
    %v4205 = vld [vmem:[#allocation4 + $0x1df8] sm:$0xff]
    %v4206 = vld [vmem:[#allocation4 + $0x1e00] sm:$0xff]
    %v4207 = vld [vmem:[#allocation4 + $0x1e08] sm:$0xff]
    %v4208 = vld [vmem:[#allocation4 + $0x1e10] sm:$0xff]
    %v4209 = vld [vmem:[#allocation4 + $0x1e18] sm:$0xff]
    %v4210 = vld [vmem:[#allocation4 + $0x1e20] sm:$0xff]
    %v4211 = vld [vmem:[#allocation4 + $0x1e28] sm:$0xff]
    %v4212 = vld [vmem:[#allocation4 + $0x1e30] sm:$0xff]
    %v4213 = vld [vmem:[#allocation4 + $0x1e38] sm:$0xff]
    %v4214 = vld [vmem:[#allocation4 + $0x1e40] sm:$0xff]
    %v4215 = vld [vmem:[#allocation4 + $0x1e48] sm:$0xff]
    %v4216 = vld [vmem:[#allocation4 + $0x1e50] sm:$0xff]
    %v4217 = vld [vmem:[#allocation4 + $0x1e58] sm:$0xff]
    %v4218 = vld [vmem:[#allocation4 + $0x1e60] sm:$0xff]
    %v4219 = vld [vmem:[#allocation4 + $0x1e68] sm:$0xff]
    %v4220 = vld [vmem:[#allocation4 + $0x1e70] sm:$0xff]
    %v4221 = vld [vmem:[#allocation4 + $0x1e78] sm:$0xff]
    %v4222 = vld [vmem:[#allocation4 + $0x1e80] sm:$0xff]
    %v4223 = vld [vmem:[#allocation4 + $0x1e88] sm:$0xff]
    %v4224 = vld [vmem:[#allocation4 + $0x1e90] sm:$0xff]
    %v4225 = vld [vmem:[#allocation4 + $0x1e98] sm:$0xff]
    %v4226 = vld [vmem:[#allocation4 + $0x1ea0] sm:$0xff]
    %v4227 = vld [vmem:[#allocation4 + $0x1ea8] sm:$0xff]
    %v4228 = vld [vmem:[#allocation4 + $0x1eb0] sm:$0xff]
    %v4229 = vld [vmem:[#allocation4 + $0x1eb8] sm:$0xff]
    %v4230 = vld [vmem:[#allocation4 + $0x1ec0] sm:$0xff]
    %v4231 = vld [vmem:[#allocation4 + $0x1ec8] sm:$0xff]
    %v4232 = vld [vmem:[#allocation4 + $0x1ed0] sm:$0xff]
    %v4233 = vld [vmem:[#allocation4 + $0x1ed8] sm:$0xff]
    %v4234 = vld [vmem:[#allocation4 + $0x1ee0] sm:$0xff]
    %v4235 = vld [vmem:[#allocation4 + $0x1ee8] sm:$0xff]
    %v4236 = vld [vmem:[#allocation4 + $0x1ef0] sm:$0xff]
    %v4237 = vld [vmem:[#allocation4 + $0x1ef8] sm:$0xff]
    %v4238 = vld [vmem:[#allocation4 + $0x1f00] sm:$0xff]
    %v4239 = vld [vmem:[#allocation4 + $0x1f08] sm:$0xff]
    %v4240 = vld [vmem:[#allocation4 + $0x1f10] sm:$0xff]
    %v4241 = vld [vmem:[#allocation4 + $0x1f18] sm:$0xff]
    %v4242 = vld [vmem:[#allocation4 + $0x1f20] sm:$0xff]
    %v4243 = vld [vmem:[#allocation4 + $0x1f28] sm:$0xff]
    %v4244 = vld [vmem:[#allocation4 + $0x1f30] sm:$0xff]
    %v4245 = vld [vmem:[#allocation4 + $0x1f38] sm:$0xff]
    %4246 = vmatprep.subr.mxu0 %v3247
    %4247 = vmatpush1.msra.mxu0 %v3246
    %4248 = vmatprep.subr.mxu0 %v3255
    %4249 = vmatpush1.msra.mxu0 %v3254
    %4250 = vmatprep.subr.mxu0 %v3263
    %4251 = vmatpush1.msra.mxu0 %v3262
    %4252 = vmatprep.subr.mxu0 %v3271
    %4253 = vmatpush1.msra.mxu0 %v3270
    %4254 = vmatprep.subr.mxu0 %v3279
    %4255 = vmatpush1.msra.mxu0 %v3278
    %4256 = vmatprep.subr.mxu0 %v3287
    %4257 = vmatpush1.msra.mxu0 %v3286
    %4258 = vmatprep.subr.mxu0 %v3295
    %4259 = vmatpush1.msra.mxu0 %v3294
    %4260 = vmatprep.subr.mxu0 %v3303
    %4261 = vmatpush1.msra.mxu0 %v3302
    %4262 = vmatprep.subr.mxu0 %v3311
    %4263 = vmatpush1.msra.mxu0 %v3310
    %4264 = vmatprep.subr.mxu0 %v3319
    %4265 = vmatpush1.msra.mxu0 %v3318
    %4266 = vmatprep.subr.mxu0 %v3327
    %4267 = vmatpush1.msra.mxu0 %v3326
    %4268 = vmatprep.subr.mxu0 %v3335
    %4269 = vmatpush1.msra.mxu0 %v3334
    %4270 = vmatprep.subr.mxu0 %v3343
    %4271 = vmatpush1.msra.mxu0 %v3342
    %4272 = vmatprep.subr.mxu0 %v3351
    %4273 = vmatpush1.msra.mxu0 %v3350
    %4274 = vmatprep.subr.mxu0 %v3359
    %4275 = vmatpush1.msra.mxu0 %v3358
    %4276 = vmatprep.subr.mxu0 %v3367
    %4277 = vmatpush1.msra.mxu0 %v3366
    %4278 = vmatprep.subr.mxu0 %v3375
    %4279 = vmatpush1.msra.mxu0 %v3374
    %4280 = vmatprep.subr.mxu0 %v3383
    %4281 = vmatpush1.msra.mxu0 %v3382
    %4282 = vmatprep.subr.mxu0 %v3391
    %4283 = vmatpush1.msra.mxu0 %v3390
    %4284 = vmatprep.subr.mxu0 %v3399
    %4285 = vmatpush1.msra.mxu0 %v3398
    %4286 = vmatprep.subr.mxu0 %v3407
    %4287 = vmatpush1.msra.mxu0 %v3406
    %4288 = vmatprep.subr.mxu0 %v3415
    %4289 = vmatpush1.msra.mxu0 %v3414
    %4290 = vmatprep.subr.mxu0 %v3423
    %4291 = vmatpush1.msra.mxu0 %v3422
    %4292 = vmatprep.subr.mxu0 %v3431
    %4293 = vmatpush1.msra.mxu0 %v3430
    %4294 = vmatprep.subr.mxu0 %v3439
    %4295 = vmatpush1.msra.mxu0 %v3438
    %4296 = vmatprep.subr.mxu0 %v3447
    %4297 = vmatpush1.msra.mxu0 %v3446
    %4298 = vmatprep.subr.mxu0 %v3455
    %4299 = vmatpush1.msra.mxu0 %v3454
    %4300 = vmatprep.subr.mxu0 %v3463
    %4301 = vmatpush1.msra.mxu0 %v3462
    %4302 = vmatprep.subr.mxu0 %v3471
    %4303 = vmatpush1.msra.mxu0 %v3470
    %4304 = vmatprep.subr.mxu0 %v3479
    %4305 = vmatpush1.msra.mxu0 %v3478
    %4306 = vmatprep.subr.mxu0 %v3487
    %4307 = vmatpush1.msra.mxu0 %v3486
    %4308 = vmatprep.subr.mxu0 %v3495
    %4309 = vmatpush1.msra.mxu0 %v3494
    %4310 = vmatprep.mubr.f32.mxu0 %v1099
    %4311 = vmatmul.mubr.f32.gmra.mrb[0].mxu0 %v1098
    %v4312 = vpop.f32.mrb[0].mxu0
    %v4313 = vadd.f32 0.0, %v4312
    %v4314 = vpop.f32.mrb[0].mxu0
    %v4315 = vadd.f32 0.0, %v4314
    %4316 = vdwg.mxu0
    %4317 = vmatprep.subr.mxu0 %v3503
    %4318 = vmatpush1.msra.mxu0 %v3502
    %4319 = vmatprep.subr.mxu0 %v3511
    %4320 = vmatpush1.msra.mxu0 %v3510
    %4321 = vmatprep.subr.mxu0 %v3519
    %4322 = vmatpush1.msra.mxu0 %v3518
    %4323 = vmatprep.subr.mxu0 %v3527
    %4324 = vmatpush1.msra.mxu0 %v3526
    %4325 = vmatprep.subr.mxu0 %v3535
    %4326 = vmatpush1.msra.mxu0 %v3534
    %4327 = vmatprep.subr.mxu0 %v3543
    %4328 = vmatpush1.msra.mxu0 %v3542
    %4329 = vmatprep.subr.mxu0 %v3551
    %4330 = vmatpush1.msra.mxu0 %v3550
    %4331 = vmatprep.subr.mxu0 %v3559
    %4332 = vmatpush1.msra.mxu0 %v3558
    %4333 = vmatprep.subr.mxu0 %v3567
    %4334 = vmatpush1.msra.mxu0 %v3566
    %4335 = vmatprep.subr.mxu0 %v3575
    %4336 = vmatpush1.msra.mxu0 %v3574
    %4337 = vmatprep.subr.mxu0 %v3583
    %4338 = vmatpush1.msra.mxu0 %v3582
    %4339 = vmatprep.subr.mxu0 %v3591
    %4340 = vmatpush1.msra.mxu0 %v3590
    %4341 = vmatprep.subr.mxu0 %v3599
    %4342 = vmatpush1.msra.mxu0 %v3598
    %4343 = vmatprep.subr.mxu0 %v3607
    %4344 = vmatpush1.msra.mxu0 %v3606
    %4345 = vmatprep.subr.mxu0 %v3615
    %4346 = vmatpush1.msra.mxu0 %v3614
    %4347 = vmatprep.subr.mxu0 %v3623
    %4348 = vmatpush1.msra.mxu0 %v3622
    %4349 = vmatprep.subr.mxu0 %v3631
    %4350 = vmatpush1.msra.mxu0 %v3630
    %4351 = vmatprep.subr.mxu0 %v3639
    %4352 = vmatpush1.msra.mxu0 %v3638
    %4353 = vmatprep.subr.mxu0 %v3647
    %4354 = vmatpush1.msra.mxu0 %v3646
    %4355 = vmatprep.subr.mxu0 %v3655
    %4356 = vmatpush1.msra.mxu0 %v3654
    %4357 = vmatprep.subr.mxu0 %v3663
    %4358 = vmatpush1.msra.mxu0 %v3662
    %4359 = vmatprep.subr.mxu0 %v3671
    %4360 = vmatpush1.msra.mxu0 %v3670
    %4361 = vmatprep.subr.mxu0 %v3679
    %4362 = vmatpush1.msra.mxu0 %v3678
    %4363 = vmatprep.subr.mxu0 %v3687
    %4364 = vmatpush1.msra.mxu0 %v3686
    %4365 = vmatprep.subr.mxu0 %v3695
    %4366 = vmatpush1.msra.mxu0 %v3694
    %4367 = vmatprep.subr.mxu0 %v3703
    %4368 = vmatpush1.msra.mxu0 %v3702
    %4369 = vmatprep.subr.mxu0 %v3711
    %4370 = vmatpush1.msra.mxu0 %v3710
    %4371 = vmatprep.subr.mxu0 %v3719
    %4372 = vmatpush1.msra.mxu0 %v3718
    %4373 = vmatprep.subr.mxu0 %v3727
    %4374 = vmatpush1.msra.mxu0 %v3726
    %4375 = vmatprep.subr.mxu0 %v3735
    %4376 = vmatpush1.msra.mxu0 %v3734
    %4377 = vmatprep.subr.mxu0 %v3743
    %4378 = vmatpush1.msra.mxu0 %v3742
    %4379 = vmatprep.subr.mxu0 %v3751
    %4380 = vmatpush1.msra.mxu0 %v3750
    %4381 = vmatprep.mubr.f32.mxu0 %v1101
    %4382 = vmatmul.mubr.f32.gmra.mrb[0].mxu0 %v1100
    %v4383 = vpop.f32.mrb[0].mxu0
    %v4384 = vadd.f32 %v4313, %v4383
    %v4385 = vpop.f32.mrb[0].mxu0
    %v4386 = vadd.f32 %v4315, %v4385
    %4387 = vdwg.mxu0
    %4388 = vmatprep.subr.mxu0 %v3759
    %4389 = vmatpush1.msra.mxu0 %v3758
    %4390 = vmatprep.subr.mxu0 %v3767
    %4391 = vmatpush1.msra.mxu0 %v3766
    %4392 = vmatprep.subr.mxu0 %v3775
    %4393 = vmatpush1.msra.mxu0 %v3774
    %4394 = vmatprep.subr.mxu0 %v3783
    %4395 = vmatpush1.msra.mxu0 %v3782
    %4396 = vmatprep.subr.mxu0 %v3791
    %4397 = vmatpush1.msra.mxu0 %v3790
    %4398 = vmatprep.subr.mxu0 %v3799
    %4399 = vmatpush1.msra.mxu0 %v3798
    %4400 = vmatprep.subr.mxu0 %v3807
    %4401 = vmatpush1.msra.mxu0 %v3806
    %4402 = vmatprep.subr.mxu0 %v3815
    %4403 = vmatpush1.msra.mxu0 %v3814
    %4404 = vmatprep.subr.mxu0 %v3823
    %4405 = vmatpush1.msra.mxu0 %v3822
    %4406 = vmatprep.subr.mxu0 %v3831
    %4407 = vmatpush1.msra.mxu0 %v3830
    %4408 = vmatprep.subr.mxu0 %v3839
    %4409 = vmatpush1.msra.mxu0 %v3838
    %4410 = vmatprep.subr.mxu0 %v3847
    %4411 = vmatpush1.msra.mxu0 %v3846
    %4412 = vmatprep.subr.mxu0 %v3855
    %4413 = vmatpush1.msra.mxu0 %v3854
    %4414 = vmatprep.subr.mxu0 %v3863
    %4415 = vmatpush1.msra.mxu0 %v3862
    %4416 = vmatprep.subr.mxu0 %v3871
    %4417 = vmatpush1.msra.mxu0 %v3870
    %4418 = vmatprep.subr.mxu0 %v3879
    %4419 = vmatpush1.msra.mxu0 %v3878
    %4420 = vmatprep.subr.mxu0 %v3887
    %4421 = vmatpush1.msra.mxu0 %v3886
    %4422 = vmatprep.subr.mxu0 %v3895
    %4423 = vmatpush1.msra.mxu0 %v3894
    %4424 = vmatprep.subr.mxu0 %v3903
    %4425 = vmatpush1.msra.mxu0 %v3902
    %4426 = vmatprep.subr.mxu0 %v3911
    %4427 = vmatpush1.msra.mxu0 %v3910
    %4428 = vmatprep.subr.mxu0 %v3919
    %4429 = vmatpush1.msra.mxu0 %v3918
    %4430 = vmatprep.subr.mxu0 %v3927
    %4431 = vmatpush1.msra.mxu0 %v3926
    %4432 = vmatprep.subr.mxu0 %v3935
    %4433 = vmatpush1.msra.mxu0 %v3934
    %4434 = vmatprep.subr.mxu0 %v3943
    %4435 = vmatpush1.msra.mxu0 %v3942
    %4436 = vmatprep.subr.mxu0 %v3951
    %4437 = vmatpush1.msra.mxu0 %v3950
    %4438 = vmatprep.subr.mxu0 %v3959
    %4439 = vmatpush1.msra.mxu0 %v3958
    %4440 = vmatprep.subr.mxu0 %v3967
    %4441 = vmatpush1.msra.mxu0 %v3966
    %4442 = vmatprep.subr.mxu0 %v3975
    %4443 = vmatpush1.msra.mxu0 %v3974
    %4444 = vmatprep.subr.mxu0 %v3983
    %4445 = vmatpush1.msra.mxu0 %v3982
    %4446 = vmatprep.subr.mxu0 %v3991
    %4447 = vmatpush1.msra.mxu0 %v3990
    %4448 = vmatprep.subr.mxu0 %v3999
    %4449 = vmatpush1.msra.mxu0 %v3998
    %4450 = vmatprep.subr.mxu0 %v4007
    %4451 = vmatpush1.msra.mxu0 %v4006
    %4452 = vmatprep.mubr.f32.mxu0 %v1103
    %4453 = vmatmul.mubr.f32.gmra.mrb[0].mxu0 %v1102
    %v4454 = vpop.f32.mrb[0].mxu0
    %v4455 = vadd.f32 %v4384, %v4454
    %v4456 = vpop.f32.mrb[0].mxu0
    %v4457 = vadd.f32 %v4386, %v4456
    %4458 = vdwg.mxu0
    %4459 = vmatprep.subr.mxu0 %v4015
    %4460 = vmatpush1.msra.mxu0 %v4014
    %4461 = vmatprep.subr.mxu0 %v4023
    %4462 = vmatpush1.msra.mxu0 %v4022
    %4463 = vmatprep.subr.mxu0 %v4031
    %4464 = vmatpush1.msra.mxu0 %v4030
    %4465 = vmatprep.subr.mxu0 %v4039
    %4466 = vmatpush1.msra.mxu0 %v4038
    %4467 = vmatprep.subr.mxu0 %v4047
    %4468 = vmatpush1.msra.mxu0 %v4046
    %4469 = vmatprep.subr.mxu0 %v4055
    %4470 = vmatpush1.msra.mxu0 %v4054
    %4471 = vmatprep.subr.mxu0 %v4063
    %4472 = vmatpush1.msra.mxu0 %v4062
    %4473 = vmatprep.subr.mxu0 %v4071
    %4474 = vmatpush1.msra.mxu0 %v4070
    %4475 = vmatprep.subr.mxu0 %v4079
    %4476 = vmatpush1.msra.mxu0 %v4078
    %4477 = vmatprep.subr.mxu0 %v4087
    %4478 = vmatpush1.msra.mxu0 %v4086
    %4479 = vmatprep.subr.mxu0 %v4095
    %4480 = vmatpush1.msra.mxu0 %v4094
    %4481 = vmatprep.subr.mxu0 %v4103
    %4482 = vmatpush1.msra.mxu0 %v4102
    %4483 = vmatprep.subr.mxu0 %v4111
    %4484 = vmatpush1.msra.mxu0 %v4110
    %4485 = vmatprep.subr.mxu0 %v4119
    %4486 = vmatpush1.msra.mxu0 %v4118
    %4487 = vmatprep.subr.mxu0 %v4127
    %4488 = vmatpush1.msra.mxu0 %v4126
    %4489 = vmatprep.subr.mxu0 %v4135
    %4490 = vmatpush1.msra.mxu0 %v4134
    %4491 = vmatprep.subr.mxu0 %v4143
    %4492 = vmatpush1.msra.mxu0 %v4142
    %4493 = vmatprep.subr.mxu0 %v4151
    %4494 = vmatpush1.msra.mxu0 %v4150
    %4495 = vmatprep.subr.mxu0 %v4159
    %4496 = vmatpush1.msra.mxu0 %v4158
    %4497 = vmatprep.subr.mxu0 %v4167
    %4498 = vmatpush1.msra.mxu0 %v4166
    %4499 = vmatprep.subr.mxu0 %v4175
    %4500 = vmatpush1.msra.mxu0 %v4174
    %4501 = vmatprep.subr.mxu0 %v4183
    %4502 = vmatpush1.msra.mxu0 %v4182
    %4503 = vmatprep.subr.mxu0 %v4191
    %4504 = vmatpush1.msra.mxu0 %v4190
    %4505 = vmatprep.subr.mxu0 %v4199
    %4506 = vmatpush1.msra.mxu0 %v4198
    %4507 = vmatprep.subr.mxu0 %v4207
    %4508 = vmatpush1.msra.mxu0 %v4206
    %4509 = vmatprep.subr.mxu0 %v4215
    %4510 = vmatpush1.msra.mxu0 %v4214
    %4511 = vmatprep.subr.mxu0 %v4223
    %4512 = vmatpush1.msra.mxu0 %v4222
    %4513 = vmatprep.subr.mxu0 %v4231
    %4514 = vmatpush1.msra.mxu0 %v4230
    %4515 = vmatprep.subr.mxu0 %v4239
    %4516 = vmatpush1.msra.mxu0 %v4238
    %4517 = vmatprep.subr.mxu0 0.0
    %4518 = vmatpush1.msra.mxu0 0.0
    %4519 = vmatprep.subr.mxu0 0.0
    %4520 = vmatpush1.msra.mxu0 0.0
    %4521 = vmatprep.subr.mxu0 0.0
    %4522 = vmatpush1.msra.mxu0 0.0
    %4523 = vmatprep.mubr.f32.mxu0 %v2108
    %4524 = vmatmul.mubr.f32.gmra.mrb[0].mxu0 %v1104
    %v4525 = vpop.f32.mrb[0].mxu0
    %v4526 = vadd.f32 %v4455, %v4525
    %v4527 = vpop.f32.mrb[0].mxu0
    %v4528 = vadd.f32 %v4457, %v4527
    %4529 = vdwg.mxu0
    %4530 = vmatprep.subr.mxu0 %v3249
    %4531 = vmatpush1.msra.mxu0 %v3248
    %4532 = vmatprep.subr.mxu0 %v3257
    %4533 = vmatpush1.msra.mxu0 %v3256
    %4534 = vmatprep.subr.mxu0 %v3265
    %4535 = vmatpush1.msra.mxu0 %v3264
    %4536 = vmatprep.subr.mxu0 %v3273
    %4537 = vmatpush1.msra.mxu0 %v3272
    %4538 = vmatprep.subr.mxu0 %v3281
    %4539 = vmatpush1.msra.mxu0 %v3280
    %4540 = vmatprep.subr.mxu0 %v3289
    %4541 = vmatpush1.msra.mxu0 %v3288
    %4542 = vmatprep.subr.mxu0 %v3297
    %4543 = vmatpush1.msra.mxu0 %v3296
    %4544 = vmatprep.subr.mxu0 %v3305
    %4545 = vmatpush1.msra.mxu0 %v3304
    %4546 = vmatprep.subr.mxu0 %v3313
    %4547 = vmatpush1.msra.mxu0 %v3312
    %4548 = vmatprep.subr.mxu0 %v3321
    %4549 = vmatpush1.msra.mxu0 %v3320
    %4550 = vmatprep.subr.mxu0 %v3329
    %4551 = vmatpush1.msra.mxu0 %v3328
    %4552 = vmatprep.subr.mxu0 %v3337
    %4553 = vmatpush1.msra.mxu0 %v3336
    %4554 = vmatprep.subr.mxu0 %v3345
    %4555 = vmatpush1.msra.mxu0 %v3344
    %4556 = vmatprep.subr.mxu0 %v3353
    %4557 = vmatpush1.msra.mxu0 %v3352
    %4558 = vmatprep.subr.mxu0 %v3361
    %4559 = vmatpush1.msra.mxu0 %v3360
    %4560 = vmatprep.subr.mxu0 %v3369
    %4561 = vmatpush1.msra.mxu0 %v3368
    %4562 = vmatprep.subr.mxu0 %v3377
    %4563 = vmatpush1.msra.mxu0 %v3376
    %4564 = vmatprep.subr.mxu0 %v3385
    %4565 = vmatpush1.msra.mxu0 %v3384
    %4566 = vmatprep.subr.mxu0 %v3393
    %4567 = vmatpush1.msra.mxu0 %v3392
    %4568 = vmatprep.subr.mxu0 %v3401
    %4569 = vmatpush1.msra.mxu0 %v3400
    %4570 = vmatprep.subr.mxu0 %v3409
    %4571 = vmatpush1.msra.mxu0 %v3408
    %4572 = vmatprep.subr.mxu0 %v3417
    %4573 = vmatpush1.msra.mxu0 %v3416
    %4574 = vmatprep.subr.mxu0 %v3425
    %4575 = vmatpush1.msra.mxu0 %v3424
    %4576 = vmatprep.subr.mxu0 %v3433
    %4577 = vmatpush1.msra.mxu0 %v3432
    %4578 = vmatprep.subr.mxu0 %v3441
    %4579 = vmatpush1.msra.mxu0 %v3440
    %4580 = vmatprep.subr.mxu0 %v3449
    %4581 = vmatpush1.msra.mxu0 %v3448
    %4582 = vmatprep.subr.mxu0 %v3457
    %4583 = vmatpush1.msra.mxu0 %v3456
    %4584 = vmatprep.subr.mxu0 %v3465
    %4585 = vmatpush1.msra.mxu0 %v3464
    %4586 = vmatprep.subr.mxu0 %v3473
    %4587 = vmatpush1.msra.mxu0 %v3472
    %4588 = vmatprep.subr.mxu0 %v3481
    %4589 = vmatpush1.msra.mxu0 %v3480
    %4590 = vmatprep.subr.mxu0 %v3489
    %4591 = vmatpush1.msra.mxu0 %v3488
    %4592 = vmatprep.subr.mxu0 %v3497
    %4593 = vmatpush1.msra.mxu0 %v3496
    %4594 = vmatprep.mubr.f32.mxu0 %v1099
    %4595 = vmatmul.mubr.f32.gmra.mrb[0].mxu0 %v1098
    %v4596 = vpop.f32.mrb[0].mxu0
    %v4597 = vadd.f32 0.0, %v4596
    %v4598 = vpop.f32.mrb[0].mxu0
    %v4599 = vadd.f32 0.0, %v4598
    %4600 = vdwg.mxu0
    %4601 = vmatprep.subr.mxu0 %v3505
    %4602 = vmatpush1.msra.mxu0 %v3504
    %4603 = vmatprep.subr.mxu0 %v3513
    %4604 = vmatpush1.msra.mxu0 %v3512
    %4605 = vmatprep.subr.mxu0 %v3521
    %4606 = vmatpush1.msra.mxu0 %v3520
    %4607 = vmatprep.subr.mxu0 %v3529
    %4608 = vmatpush1.msra.mxu0 %v3528
    %4609 = vmatprep.subr.mxu0 %v3537
    %4610 = vmatpush1.msra.mxu0 %v3536
    %4611 = vmatprep.subr.mxu0 %v3545
    %4612 = vmatpush1.msra.mxu0 %v3544
    %4613 = vmatprep.subr.mxu0 %v3553
    %4614 = vmatpush1.msra.mxu0 %v3552
    %4615 = vmatprep.subr.mxu0 %v3561
    %4616 = vmatpush1.msra.mxu0 %v3560
    %4617 = vmatprep.subr.mxu0 %v3569
    %4618 = vmatpush1.msra.mxu0 %v3568
    %4619 = vmatprep.subr.mxu0 %v3577
    %4620 = vmatpush1.msra.mxu0 %v3576
    %4621 = vmatprep.subr.mxu0 %v3585
    %4622 = vmatpush1.msra.mxu0 %v3584
    %4623 = vmatprep.subr.mxu0 %v3593
    %4624 = vmatpush1.msra.mxu0 %v3592
    %4625 = vmatprep.subr.mxu0 %v3601
    %4626 = vmatpush1.msra.mxu0 %v3600
    %4627 = vmatprep.subr.mxu0 %v3609
    %4628 = vmatpush1.msra.mxu0 %v3608
    %4629 = vmatprep.subr.mxu0 %v3617
    %4630 = vmatpush1.msra.mxu0 %v3616
    %4631 = vmatprep.subr.mxu0 %v3625
    %4632 = vmatpush1.msra.mxu0 %v3624
    %4633 = vmatprep.subr.mxu0 %v3633
    %4634 = vmatpush1.msra.mxu0 %v3632
    %4635 = vmatprep.subr.mxu0 %v3641
    %4636 = vmatpush1.msra.mxu0 %v3640
    %4637 = vmatprep.subr.mxu0 %v3649
    %4638 = vmatpush1.msra.mxu0 %v3648
    %4639 = vmatprep.subr.mxu0 %v3657
    %4640 = vmatpush1.msra.mxu0 %v3656
    %4641 = vmatprep.subr.mxu0 %v3665
    %4642 = vmatpush1.msra.mxu0 %v3664
    %4643 = vmatprep.subr.mxu0 %v3673
    %4644 = vmatpush1.msra.mxu0 %v3672
    %4645 = vmatprep.subr.mxu0 %v3681
    %4646 = vmatpush1.msra.mxu0 %v3680
    %4647 = vmatprep.subr.mxu0 %v3689
    %4648 = vmatpush1.msra.mxu0 %v3688
    %4649 = vmatprep.subr.mxu0 %v3697
    %4650 = vmatpush1.msra.mxu0 %v3696
    %4651 = vmatprep.subr.mxu0 %v3705
    %4652 = vmatpush1.msra.mxu0 %v3704
    %4653 = vmatprep.subr.mxu0 %v3713
    %4654 = vmatpush1.msra.mxu0 %v3712
    %4655 = vmatprep.subr.mxu0 %v3721
    %4656 = vmatpush1.msra.mxu0 %v3720
    %4657 = vmatprep.subr.mxu0 %v3729
    %4658 = vmatpush1.msra.mxu0 %v3728
    %4659 = vmatprep.subr.mxu0 %v3737
    %4660 = vmatpush1.msra.mxu0 %v3736
    %4661 = vmatprep.subr.mxu0 %v3745
    %4662 = vmatpush1.msra.mxu0 %v3744
    %4663 = vmatprep.subr.mxu0 %v3753
    %4664 = vmatpush1.msra.mxu0 %v3752
    %4665 = vmatprep.mubr.f32.mxu0 %v1101
    %4666 = vmatmul.mubr.f32.gmra.mrb[0].mxu0 %v1100
    %v4667 = vpop.f32.mrb[0].mxu0
    %v4668 = vadd.f32 %v4597, %v4667
    %v4669 = vpop.f32.mrb[0].mxu0
    %v4670 = vadd.f32 %v4599, %v4669
    %4671 = vdwg.mxu0
    %4672 = vmatprep.subr.mxu0 %v3761
    %4673 = vmatpush1.msra.mxu0 %v3760
    %4674 = vmatprep.subr.mxu0 %v3769
    %4675 = vmatpush1.msra.mxu0 %v3768
    %4676 = vmatprep.subr.mxu0 %v3777
    %4677 = vmatpush1.msra.mxu0 %v3776
    %4678 = vmatprep.subr.mxu0 %v3785
    %4679 = vmatpush1.msra.mxu0 %v3784
    %4680 = vmatprep.subr.mxu0 %v3793
    %4681 = vmatpush1.msra.mxu0 %v3792
    %4682 = vmatprep.subr.mxu0 %v3801
    %4683 = vmatpush1.msra.mxu0 %v3800
    %4684 = vmatprep.subr.mxu0 %v3809
    %4685 = vmatpush1.msra.mxu0 %v3808
    %4686 = vmatprep.subr.mxu0 %v3817
    %4687 = vmatpush1.msra.mxu0 %v3816
    %4688 = vmatprep.subr.mxu0 %v3825
    %4689 = vmatpush1.msra.mxu0 %v3824
    %4690 = vmatprep.subr.mxu0 %v3833
    %4691 = vmatpush1.msra.mxu0 %v3832
    %4692 = vmatprep.subr.mxu0 %v3841
    %4693 = vmatpush1.msra.mxu0 %v3840
    %4694 = vmatprep.subr.mxu0 %v3849
    %4695 = vmatpush1.msra.mxu0 %v3848
    %4696 = vmatprep.subr.mxu0 %v3857
    %4697 = vmatpush1.msra.mxu0 %v3856
    %4698 = vmatprep.subr.mxu0 %v3865
    %4699 = vmatpush1.msra.mxu0 %v3864
    %4700 = vmatprep.subr.mxu0 %v3873
    %4701 = vmatpush1.msra.mxu0 %v3872
    %4702 = vmatprep.subr.mxu0 %v3881
    %4703 = vmatpush1.msra.mxu0 %v3880
    %4704 = vmatprep.subr.mxu0 %v3889
    %4705 = vmatpush1.msra.mxu0 %v3888
    %4706 = vmatprep.subr.mxu0 %v3897
    %4707 = vmatpush1.msra.mxu0 %v3896
    %4708 = vmatprep.subr.mxu0 %v3905
    %4709 = vmatpush1.msra.mxu0 %v3904
    %4710 = vmatprep.subr.mxu0 %v3913
    %4711 = vmatpush1.msra.mxu0 %v3912
    %4712 = vmatprep.subr.mxu0 %v3921
    %4713 = vmatpush1.msra.mxu0 %v3920
    %4714 = vmatprep.subr.mxu0 %v3929
    %4715 = vmatpush1.msra.mxu0 %v3928
    %4716 = vmatprep.subr.mxu0 %v3937
    %4717 = vmatpush1.msra.mxu0 %v3936
    %4718 = vmatprep.subr.mxu0 %v3945
    %4719 = vmatpush1.msra.mxu0 %v3944
    %4720 = vmatprep.subr.mxu0 %v3953
    %4721 = vmatpush1.msra.mxu0 %v3952
    %4722 = vmatprep.subr.mxu0 %v3961
    %4723 = vmatpush1.msra.mxu0 %v3960
    %4724 = vmatprep.subr.mxu0 %v3969
    %4725 = vmatpush1.msra.mxu0 %v3968
    %4726 = vmatprep.subr.mxu0 %v3977
    %4727 = vmatpush1.msra.mxu0 %v3976
    %4728 = vmatprep.subr.mxu0 %v3985
    %4729 = vmatpush1.msra.mxu0 %v3984
    %4730 = vmatprep.subr.mxu0 %v3993
    %4731 = vmatpush1.msra.mxu0 %v3992
    %4732 = vmatprep.subr.mxu0 %v4001
    %4733 = vmatpush1.msra.mxu0 %v4000
    %4734 = vmatprep.subr.mxu0 %v4009
    %4735 = vmatpush1.msra.mxu0 %v4008
    %4736 = vmatprep.mubr.f32.mxu0 %v1103
    %4737 = vmatmul.mubr.f32.gmra.mrb[0].mxu0 %v1102
    %v4738 = vpop.f32.mrb[0].mxu0
    %v4739 = vadd.f32 %v4668, %v4738
    %v4740 = vpop.f32.mrb[0].mxu0
    %v4741 = vadd.f32 %v4670, %v4740
    %4742 = vdwg.mxu0
    %4743 = vmatprep.subr.mxu0 %v4017
    %4744 = vmatpush1.msra.mxu0 %v4016
    %4745 = vmatprep.subr.mxu0 %v4025
    %4746 = vmatpush1.msra.mxu0 %v4024
    %4747 = vmatprep.subr.mxu0 %v4033
    %4748 = vmatpush1.msra.mxu0 %v4032
    %4749 = vmatprep.subr.mxu0 %v4041
    %4750 = vmatpush1.msra.mxu0 %v4040
    %4751 = vmatprep.subr.mxu0 %v4049
    %4752 = vmatpush1.msra.mxu0 %v4048
    %4753 = vmatprep.subr.mxu0 %v4057
    %4754 = vmatpush1.msra.mxu0 %v4056
    %4755 = vmatprep.subr.mxu0 %v4065
    %4756 = vmatpush1.msra.mxu0 %v4064
    %4757 = vmatprep.subr.mxu0 %v4073
    %4758 = vmatpush1.msra.mxu0 %v4072
    %4759 = vmatprep.subr.mxu0 %v4081
    %4760 = vmatpush1.msra.mxu0 %v4080
    %4761 = vmatprep.subr.mxu0 %v4089
    %4762 = vmatpush1.msra.mxu0 %v4088
    %4763 = vmatprep.subr.mxu0 %v4097
    %4764 = vmatpush1.msra.mxu0 %v4096
    %4765 = vmatprep.subr.mxu0 %v4105
    %4766 = vmatpush1.msra.mxu0 %v4104
    %4767 = vmatprep.subr.mxu0 %v4113
    %4768 = vmatpush1.msra.mxu0 %v4112
    %4769 = vmatprep.subr.mxu0 %v4121
    %4770 = vmatpush1.msra.mxu0 %v4120
    %4771 = vmatprep.subr.mxu0 %v4129
    %4772 = vmatpush1.msra.mxu0 %v4128
    %4773 = vmatprep.subr.mxu0 %v4137
    %4774 = vmatpush1.msra.mxu0 %v4136
    %4775 = vmatprep.subr.mxu0 %v4145
    %4776 = vmatpush1.msra.mxu0 %v4144
    %4777 = vmatprep.subr.mxu0 %v4153
    %4778 = vmatpush1.msra.mxu0 %v4152
    %4779 = vmatprep.subr.mxu0 %v4161
    %4780 = vmatpush1.msra.mxu0 %v4160
    %4781 = vmatprep.subr.mxu0 %v4169
    %4782 = vmatpush1.msra.mxu0 %v4168
    %4783 = vmatprep.subr.mxu0 %v4177
    %4784 = vmatpush1.msra.mxu0 %v4176
    %4785 = vmatprep.subr.mxu0 %v4185
    %4786 = vmatpush1.msra.mxu0 %v4184
    %4787 = vmatprep.subr.mxu0 %v4193
    %4788 = vmatpush1.msra.mxu0 %v4192
    %4789 = vmatprep.subr.mxu0 %v4201
    %4790 = vmatpush1.msra.mxu0 %v4200
    %4791 = vmatprep.subr.mxu0 %v4209
    %4792 = vmatpush1.msra.mxu0 %v4208
    %4793 = vmatprep.subr.mxu0 %v4217
    %4794 = vmatpush1.msra.mxu0 %v4216
    %4795 = vmatprep.subr.mxu0 %v4225
    %4796 = vmatpush1.msra.mxu0 %v4224
    %4797 = vmatprep.subr.mxu0 %v4233
    %4798 = vmatpush1.msra.mxu0 %v4232
    %4799 = vmatprep.subr.mxu0 %v4241
    %4800 = vmatpush1.msra.mxu0 %v4240
    %4801 = vmatprep.subr.mxu0 0.0
    %4802 = vmatpush1.msra.mxu0 0.0
    %4803 = vmatprep.subr.mxu0 0.0
    %4804 = vmatpush1.msra.mxu0 0.0
    %4805 = vmatprep.subr.mxu0 0.0
    %4806 = vmatpush1.msra.mxu0 0.0
    %4807 = vmatprep.mubr.f32.mxu0 %v2108
    %4808 = vmatmul.mubr.f32.gmra.mrb[0].mxu0 %v1104
    %v4809 = vpop.f32.mrb[0].mxu0
    %v4810 = vadd.f32 %v4739, %v4809
    %v4811 = vpop.f32.mrb[0].mxu0
    %v4812 = vadd.f32 %v4741, %v4811
    %4813 = vdwg.mxu0
    %4814 = vmatprep.subr.mxu0 %v3251
    %4815 = vmatpush1.msra.mxu0 %v3250
    %4816 = vmatprep.subr.mxu0 %v3259
    %4817 = vmatpush1.msra.mxu0 %v3258
    %4818 = vmatprep.subr.mxu0 %v3267
    %4819 = vmatpush1.msra.mxu0 %v3266
    %4820 = vmatprep.subr.mxu0 %v3275
    %4821 = vmatpush1.msra.mxu0 %v3274
    %4822 = vmatprep.subr.mxu0 %v3283
    %4823 = vmatpush1.msra.mxu0 %v3282
    %4824 = vmatprep.subr.mxu0 %v3291
    %4825 = vmatpush1.msra.mxu0 %v3290
    %4826 = vmatprep.subr.mxu0 %v3299
    %4827 = vmatpush1.msra.mxu0 %v3298
    %4828 = vmatprep.subr.mxu0 %v3307
    %4829 = vmatpush1.msra.mxu0 %v3306
    %4830 = vmatprep.subr.mxu0 %v3315
    %4831 = vmatpush1.msra.mxu0 %v3314
    %4832 = vmatprep.subr.mxu0 %v3323
    %4833 = vmatpush1.msra.mxu0 %v3322
    %4834 = vmatprep.subr.mxu0 %v3331
    %4835 = vmatpush1.msra.mxu0 %v3330
    %4836 = vmatprep.subr.mxu0 %v3339
    %4837 = vmatpush1.msra.mxu0 %v3338
    %4838 = vmatprep.subr.mxu0 %v3347
    %4839 = vmatpush1.msra.mxu0 %v3346
    %4840 = vmatprep.subr.mxu0 %v3355
    %4841 = vmatpush1.msra.mxu0 %v3354
    %4842 = vmatprep.subr.mxu0 %v3363
    %4843 = vmatpush1.msra.mxu0 %v3362
    %4844 = vmatprep.subr.mxu0 %v3371
    %4845 = vmatpush1.msra.mxu0 %v3370
    %4846 = vmatprep.subr.mxu0 %v3379
    %4847 = vmatpush1.msra.mxu0 %v3378
    %4848 = vmatprep.subr.mxu0 %v3387
    %4849 = vmatpush1.msra.mxu0 %v3386
    %4850 = vmatprep.subr.mxu0 %v3395
    %4851 = vmatpush1.msra.mxu0 %v3394
    %4852 = vmatprep.subr.mxu0 %v3403
    %4853 = vmatpush1.msra.mxu0 %v3402
    %4854 = vmatprep.subr.mxu0 %v3411
    %4855 = vmatpush1.msra.mxu0 %v3410
    %4856 = vmatprep.subr.mxu0 %v3419
    %4857 = vmatpush1.msra.mxu0 %v3418
    %4858 = vmatprep.subr.mxu0 %v3427
    %4859 = vmatpush1.msra.mxu0 %v3426
    %4860 = vmatprep.subr.mxu0 %v3435
    %4861 = vmatpush1.msra.mxu0 %v3434
    %4862 = vmatprep.subr.mxu0 %v3443
    %4863 = vmatpush1.msra.mxu0 %v3442
    %4864 = vmatprep.subr.mxu0 %v3451
    %4865 = vmatpush1.msra.mxu0 %v3450
    %4866 = vmatprep.subr.mxu0 %v3459
    %4867 = vmatpush1.msra.mxu0 %v3458
    %4868 = vmatprep.subr.mxu0 %v3467
    %4869 = vmatpush1.msra.mxu0 %v3466
    %4870 = vmatprep.subr.mxu0 %v3475
    %4871 = vmatpush1.msra.mxu0 %v3474
    %4872 = vmatprep.subr.mxu0 %v3483
    %4873 = vmatpush1.msra.mxu0 %v3482
    %4874 = vmatprep.subr.mxu0 %v3491
    %4875 = vmatpush1.msra.mxu0 %v3490
    %4876 = vmatprep.subr.mxu0 %v3499
    %4877 = vmatpush1.msra.mxu0 %v3498
    %4878 = vmatprep.mubr.f32.mxu0 %v1099
    %4879 = vmatmul.mubr.f32.gmra.mrb[0].mxu0 %v1098
    %v4880 = vpop.f32.mrb[0].mxu0
    %v4881 = vadd.f32 0.0, %v4880
    %v4882 = vpop.f32.mrb[0].mxu0
    %v4883 = vadd.f32 0.0, %v4882
    %4884 = vdwg.mxu0
    %4885 = vmatprep.subr.mxu0 %v3507
    %4886 = vmatpush1.msra.mxu0 %v3506
    %4887 = vmatprep.subr.mxu0 %v3515
    %4888 = vmatpush1.msra.mxu0 %v3514
    %4889 = vmatprep.subr.mxu0 %v3523
    %4890 = vmatpush1.msra.mxu0 %v3522
    %4891 = vmatprep.subr.mxu0 %v3531
    %4892 = vmatpush1.msra.mxu0 %v3530
    %4893 = vmatprep.subr.mxu0 %v3539
    %4894 = vmatpush1.msra.mxu0 %v3538
    %4895 = vmatprep.subr.mxu0 %v3547
    %4896 = vmatpush1.msra.mxu0 %v3546
    %4897 = vmatprep.subr.mxu0 %v3555
    %4898 = vmatpush1.msra.mxu0 %v3554
    %4899 = vmatprep.subr.mxu0 %v3563
    %4900 = vmatpush1.msra.mxu0 %v3562
    %4901 = vmatprep.subr.mxu0 %v3571
    %4902 = vmatpush1.msra.mxu0 %v3570
    %4903 = vmatprep.subr.mxu0 %v3579
    %4904 = vmatpush1.msra.mxu0 %v3578
    %4905 = vmatprep.subr.mxu0 %v3587
    %4906 = vmatpush1.msra.mxu0 %v3586
    %4907 = vmatprep.subr.mxu0 %v3595
    %4908 = vmatpush1.msra.mxu0 %v3594
    %4909 = vmatprep.subr.mxu0 %v3603
    %4910 = vmatpush1.msra.mxu0 %v3602
    %4911 = vmatprep.subr.mxu0 %v3611
    %4912 = vmatpush1.msra.mxu0 %v3610
    %4913 = vmatprep.subr.mxu0 %v3619
    %4914 = vmatpush1.msra.mxu0 %v3618
    %4915 = vmatprep.subr.mxu0 %v3627
    %4916 = vmatpush1.msra.mxu0 %v3626
    %4917 = vmatprep.subr.mxu0 %v3635
    %4918 = vmatpush1.msra.mxu0 %v3634
    %4919 = vmatprep.subr.mxu0 %v3643
    %4920 = vmatpush1.msra.mxu0 %v3642
    %4921 = vmatprep.subr.mxu0 %v3651
    %4922 = vmatpush1.msra.mxu0 %v3650
    %4923 = vmatprep.subr.mxu0 %v3659
    %4924 = vmatpush1.msra.mxu0 %v3658
    %4925 = vmatprep.subr.mxu0 %v3667
    %4926 = vmatpush1.msra.mxu0 %v3666
    %4927 = vmatprep.subr.mxu0 %v3675
    %4928 = vmatpush1.msra.mxu0 %v3674
    %4929 = vmatprep.subr.mxu0 %v3683
    %4930 = vmatpush1.msra.mxu0 %v3682
    %4931 = vmatprep.subr.mxu0 %v3691
    %4932 = vmatpush1.msra.mxu0 %v3690
    %4933 = vmatprep.subr.mxu0 %v3699
    %4934 = vmatpush1.msra.mxu0 %v3698
    %4935 = vmatprep.subr.mxu0 %v3707
    %4936 = vmatpush1.msra.mxu0 %v3706
    %4937 = vmatprep.subr.mxu0 %v3715
    %4938 = vmatpush1.msra.mxu0 %v3714
    %4939 = vmatprep.subr.mxu0 %v3723
    %4940 = vmatpush1.msra.mxu0 %v3722
    %4941 = vmatprep.subr.mxu0 %v3731
    %4942 = vmatpush1.msra.mxu0 %v3730
    %4943 = vmatprep.subr.mxu0 %v3739
    %4944 = vmatpush1.msra.mxu0 %v3738
    %4945 = vmatprep.subr.mxu0 %v3747
    %4946 = vmatpush1.msra.mxu0 %v3746
    %4947 = vmatprep.subr.mxu0 %v3755
    %4948 = vmatpush1.msra.mxu0 %v3754
    %4949 = vmatprep.mubr.f32.mxu0 %v1101
    %4950 = vmatmul.mubr.f32.gmra.mrb[0].mxu0 %v1100
    %v4951 = vpop.f32.mrb[0].mxu0
    %v4952 = vadd.f32 %v4881, %v4951
    %v4953 = vpop.f32.mrb[0].mxu0
    %v4954 = vadd.f32 %v4883, %v4953
    %4955 = vdwg.mxu0
    %4956 = vmatprep.subr.mxu0 %v3763
    %4957 = vmatpush1.msra.mxu0 %v3762
    %4958 = vmatprep.subr.mxu0 %v3771
    %4959 = vmatpush1.msra.mxu0 %v3770
    %4960 = vmatprep.subr.mxu0 %v3779
    %4961 = vmatpush1.msra.mxu0 %v3778
    %4962 = vmatprep.subr.mxu0 %v3787
    %4963 = vmatpush1.msra.mxu0 %v3786
    %4964 = vmatprep.subr.mxu0 %v3795
    %4965 = vmatpush1.msra.mxu0 %v3794
    %4966 = vmatprep.subr.mxu0 %v3803
    %4967 = vmatpush1.msra.mxu0 %v3802
    %4968 = vmatprep.subr.mxu0 %v3811
    %4969 = vmatpush1.msra.mxu0 %v3810
    %4970 = vmatprep.subr.mxu0 %v3819
    %4971 = vmatpush1.msra.mxu0 %v3818
    %4972 = vmatprep.subr.mxu0 %v3827
    %4973 = vmatpush1.msra.mxu0 %v3826
    %4974 = vmatprep.subr.mxu0 %v3835
    %4975 = vmatpush1.msra.mxu0 %v3834
    %4976 = vmatprep.subr.mxu0 %v3843
    %4977 = vmatpush1.msra.mxu0 %v3842
    %4978 = vmatprep.subr.mxu0 %v3851
    %4979 = vmatpush1.msra.mxu0 %v3850
    %4980 = vmatprep.subr.mxu0 %v3859
    %4981 = vmatpush1.msra.mxu0 %v3858
    %4982 = vmatprep.subr.mxu0 %v3867
    %4983 = vmatpush1.msra.mxu0 %v3866
    %4984 = vmatprep.subr.mxu0 %v3875
    %4985 = vmatpush1.msra.mxu0 %v3874
    %4986 = vmatprep.subr.mxu0 %v3883
    %4987 = vmatpush1.msra.mxu0 %v3882
    %4988 = vmatprep.subr.mxu0 %v3891
    %4989 = vmatpush1.msra.mxu0 %v3890
    %4990 = vmatprep.subr.mxu0 %v3899
    %4991 = vmatpush1.msra.mxu0 %v3898
    %4992 = vmatprep.subr.mxu0 %v3907
    %4993 = vmatpush1.msra.mxu0 %v3906
    %4994 = vmatprep.subr.mxu0 %v3915
    %4995 = vmatpush1.msra.mxu0 %v3914
    %4996 = vmatprep.subr.mxu0 %v3923
    %4997 = vmatpush1.msra.mxu0 %v3922
    %4998 = vmatprep.subr.mxu0 %v3931
    %4999 = vmatpush1.msra.mxu0 %v3930
    %5000 = vmatprep.subr.mxu0 %v3939
    %5001 = vmatpush1.msra.mxu0 %v3938
    %5002 = vmatprep.subr.mxu0 %v3947
    %5003 = vmatpush1.msra.mxu0 %v3946
    %5004 = vmatprep.subr.mxu0 %v3955
    %5005 = vmatpush1.msra.mxu0 %v3954
    %5006 = vmatprep.subr.mxu0 %v3963
    %5007 = vmatpush1.msra.mxu0 %v3962
    %5008 = vmatprep.subr.mxu0 %v3971
    %5009 = vmatpush1.msra.mxu0 %v3970
    %5010 = vmatprep.subr.mxu0 %v3979
    %5011 = vmatpush1.msra.mxu0 %v3978
    %5012 = vmatprep.subr.mxu0 %v3987
    %5013 = vmatpush1.msra.mxu0 %v3986
    %5014 = vmatprep.subr.mxu0 %v3995
    %5015 = vmatpush1.msra.mxu0 %v3994
    %5016 = vmatprep.subr.mxu0 %v4003
    %5017 = vmatpush1.msra.mxu0 %v4002
    %5018 = vmatprep.subr.mxu0 %v4011
    %5019 = vmatpush1.msra.mxu0 %v4010
    %5020 = vmatprep.mubr.f32.mxu0 %v1103
    %5021 = vmatmul.mubr.f32.gmra.mrb[0].mxu0 %v1102
    %v5022 = vpop.f32.mrb[0].mxu0
    %v5023 = vadd.f32 %v4952, %v5022
    %v5024 = vpop.f32.mrb[0].mxu0
    %v5025 = vadd.f32 %v4954, %v5024
    %5026 = vdwg.mxu0
    %5027 = vmatprep.subr.mxu0 %v4019
    %5028 = vmatpush1.msra.mxu0 %v4018
    %5029 = vmatprep.subr.mxu0 %v4027
    %5030 = vmatpush1.msra.mxu0 %v4026
    %5031 = vmatprep.subr.mxu0 %v4035
    %5032 = vmatpush1.msra.mxu0 %v4034
    %5033 = vmatprep.subr.mxu0 %v4043
    %5034 = vmatpush1.msra.mxu0 %v4042
    %5035 = vmatprep.subr.mxu0 %v4051
    %5036 = vmatpush1.msra.mxu0 %v4050
    %5037 = vmatprep.subr.mxu0 %v4059
    %5038 = vmatpush1.msra.mxu0 %v4058
    %5039 = vmatprep.subr.mxu0 %v4067
    %5040 = vmatpush1.msra.mxu0 %v4066
    %5041 = vmatprep.subr.mxu0 %v4075
    %5042 = vmatpush1.msra.mxu0 %v4074
    %5043 = vmatprep.subr.mxu0 %v4083
    %5044 = vmatpush1.msra.mxu0 %v4082
    %5045 = vmatprep.subr.mxu0 %v4091
    %5046 = vmatpush1.msra.mxu0 %v4090
    %5047 = vmatprep.subr.mxu0 %v4099
    %5048 = vmatpush1.msra.mxu0 %v4098
    %5049 = vmatprep.subr.mxu0 %v4107
    %5050 = vmatpush1.msra.mxu0 %v4106
    %5051 = vmatprep.subr.mxu0 %v4115
    %5052 = vmatpush1.msra.mxu0 %v4114
    %5053 = vmatprep.subr.mxu0 %v4123
    %5054 = vmatpush1.msra.mxu0 %v4122
    %5055 = vmatprep.subr.mxu0 %v4131
    %5056 = vmatpush1.msra.mxu0 %v4130
    %5057 = vmatprep.subr.mxu0 %v4139
    %5058 = vmatpush1.msra.mxu0 %v4138
    %5059 = vmatprep.subr.mxu0 %v4147
    %5060 = vmatpush1.msra.mxu0 %v4146
    %5061 = vmatprep.subr.mxu0 %v4155
    %5062 = vmatpush1.msra.mxu0 %v4154
    %5063 = vmatprep.subr.mxu0 %v4163
    %5064 = vmatpush1.msra.mxu0 %v4162
    %5065 = vmatprep.subr.mxu0 %v4171
    %5066 = vmatpush1.msra.mxu0 %v4170
    %5067 = vmatprep.subr.mxu0 %v4179
    %5068 = vmatpush1.msra.mxu0 %v4178
    %5069 = vmatprep.subr.mxu0 %v4187
    %5070 = vmatpush1.msra.mxu0 %v4186
    %5071 = vmatprep.subr.mxu0 %v4195
    %5072 = vmatpush1.msra.mxu0 %v4194
    %5073 = vmatprep.subr.mxu0 %v4203
    %5074 = vmatpush1.msra.mxu0 %v4202
    %5075 = vmatprep.subr.mxu0 %v4211
    %5076 = vmatpush1.msra.mxu0 %v4210
    %5077 = vmatprep.subr.mxu0 %v4219
    %5078 = vmatpush1.msra.mxu0 %v4218
    %5079 = vmatprep.subr.mxu0 %v4227
    %5080 = vmatpush1.msra.mxu0 %v4226
    %5081 = vmatprep.subr.mxu0 %v4235
    %5082 = vmatpush1.msra.mxu0 %v4234
    %5083 = vmatprep.subr.mxu0 %v4243
    %5084 = vmatpush1.msra.mxu0 %v4242
    %5085 = vmatprep.subr.mxu0 0.0
    %5086 = vmatpush1.msra.mxu0 0.0
    %5087 = vmatprep.subr.mxu0 0.0
    %5088 = vmatpush1.msra.mxu0 0.0
    %5089 = vmatprep.subr.mxu0 0.0
    %5090 = vmatpush1.msra.mxu0 0.0
    %5091 = vmatprep.mubr.f32.mxu0 %v2108
    %5092 = vmatmul.mubr.f32.gmra.mrb[0].mxu0 %v1104
    %v5093 = vpop.f32.mrb[0].mxu0
    %v5094 = vadd.f32 %v5023, %v5093
    %v5095 = vpop.f32.mrb[0].mxu0
    %v5096 = vadd.f32 %v5025, %v5095
    %5097 = vdwg.mxu0
    %5098 = vmatprep.subr.mxu0 %v3253
    %5099 = vmatpush1.msra.mxu0 %v3252
    %5100 = vmatprep.subr.mxu0 %v3261
    %5101 = vmatpush1.msra.mxu0 %v3260
    %5102 = vmatprep.subr.mxu0 %v3269
    %5103 = vmatpush1.msra.mxu0 %v3268
    %5104 = vmatprep.subr.mxu0 %v3277
    %5105 = vmatpush1.msra.mxu0 %v3276
    %5106 = vmatprep.subr.mxu0 %v3285
    %5107 = vmatpush1.msra.mxu0 %v3284
    %5108 = vmatprep.subr.mxu0 %v3293
    %5109 = vmatpush1.msra.mxu0 %v3292
    %5110 = vmatprep.subr.mxu0 %v3301
    %5111 = vmatpush1.msra.mxu0 %v3300
    %5112 = vmatprep.subr.mxu0 %v3309
    %5113 = vmatpush1.msra.mxu0 %v3308
    %5114 = vmatprep.subr.mxu0 %v3317
    %5115 = vmatpush1.msra.mxu0 %v3316
    %5116 = vmatprep.subr.mxu0 %v3325
    %5117 = vmatpush1.msra.mxu0 %v3324
    %5118 = vmatprep.subr.mxu0 %v3333
    %5119 = vmatpush1.msra.mxu0 %v3332
    %5120 = vmatprep.subr.mxu0 %v3341
    %5121 = vmatpush1.msra.mxu0 %v3340
    %5122 = vmatprep.subr.mxu0 %v3349
    %5123 = vmatpush1.msra.mxu0 %v3348
    %5124 = vmatprep.subr.mxu0 %v3357
    %5125 = vmatpush1.msra.mxu0 %v3356
    %5126 = vmatprep.subr.mxu0 %v3365
    %5127 = vmatpush1.msra.mxu0 %v3364
    %5128 = vmatprep.subr.mxu0 %v3373
    %5129 = vmatpush1.msra.mxu0 %v3372
    %5130 = vmatprep.subr.mxu0 %v3381
    %5131 = vmatpush1.msra.mxu0 %v3380
    %5132 = vmatprep.subr.mxu0 %v3389
    %5133 = vmatpush1.msra.mxu0 %v3388
    %5134 = vmatprep.subr.mxu0 %v3397
    %5135 = vmatpush1.msra.mxu0 %v3396
    %5136 = vmatprep.subr.mxu0 %v3405
    %5137 = vmatpush1.msra.mxu0 %v3404
    %5138 = vmatprep.subr.mxu0 %v3413
    %5139 = vmatpush1.msra.mxu0 %v3412
    %5140 = vmatprep.subr.mxu0 %v3421
    %5141 = vmatpush1.msra.mxu0 %v3420
    %5142 = vmatprep.subr.mxu0 %v3429
    %5143 = vmatpush1.msra.mxu0 %v3428
    %5144 = vmatprep.subr.mxu0 %v3437
    %5145 = vmatpush1.msra.mxu0 %v3436
    %5146 = vmatprep.subr.mxu0 %v3445
    %5147 = vmatpush1.msra.mxu0 %v3444
    %5148 = vmatprep.subr.mxu0 %v3453
    %5149 = vmatpush1.msra.mxu0 %v3452
    %5150 = vmatprep.subr.mxu0 %v3461
    %5151 = vmatpush1.msra.mxu0 %v3460
    %5152 = vmatprep.subr.mxu0 %v3469
    %5153 = vmatpush1.msra.mxu0 %v3468
    %5154 = vmatprep.subr.mxu0 %v3477
    %5155 = vmatpush1.msra.mxu0 %v3476
    %5156 = vmatprep.subr.mxu0 %v3485
    %5157 = vmatpush1.msra.mxu0 %v3484
    %5158 = vmatprep.subr.mxu0 %v3493
    %5159 = vmatpush1.msra.mxu0 %v3492
    %5160 = vmatprep.subr.mxu0 %v3501
    %5161 = vmatpush1.msra.mxu0 %v3500
    %5162 = vmatprep.mubr.f32.mxu0 %v1099
    %5163 = vmatmul.mubr.f32.gmra.mrb[0].mxu0 %v1098
    %v5164 = vpop.f32.mrb[0].mxu0
    %v5165 = vadd.f32 0.0, %v5164
    %v5166 = vpop.f32.mrb[0].mxu0
    %v5167 = vadd.f32 0.0, %v5166
    %5168 = vdwg.mxu0
    %5169 = vmatprep.subr.mxu0 %v3509
    %5170 = vmatpush1.msra.mxu0 %v3508
    %5171 = vmatprep.subr.mxu0 %v3517
    %5172 = vmatpush1.msra.mxu0 %v3516
    %5173 = vmatprep.subr.mxu0 %v3525
    %5174 = vmatpush1.msra.mxu0 %v3524
    %5175 = vmatprep.subr.mxu0 %v3533
    %5176 = vmatpush1.msra.mxu0 %v3532
    %5177 = vmatprep.subr.mxu0 %v3541
    %5178 = vmatpush1.msra.mxu0 %v3540
    %5179 = vmatprep.subr.mxu0 %v3549
    %5180 = vmatpush1.msra.mxu0 %v3548
    %5181 = vmatprep.subr.mxu0 %v3557
    %5182 = vmatpush1.msra.mxu0 %v3556
    %5183 = vmatprep.subr.mxu0 %v3565
    %5184 = vmatpush1.msra.mxu0 %v3564
    %5185 = vmatprep.subr.mxu0 %v3573
    %5186 = vmatpush1.msra.mxu0 %v3572
    %5187 = vmatprep.subr.mxu0 %v3581
    %5188 = vmatpush1.msra.mxu0 %v3580
    %5189 = vmatprep.subr.mxu0 %v3589
    %5190 = vmatpush1.msra.mxu0 %v3588
    %5191 = vmatprep.subr.mxu0 %v3597
    %5192 = vmatpush1.msra.mxu0 %v3596
    %5193 = vmatprep.subr.mxu0 %v3605
    %5194 = vmatpush1.msra.mxu0 %v3604
    %5195 = vmatprep.subr.mxu0 %v3613
    %5196 = vmatpush1.msra.mxu0 %v3612
    %5197 = vmatprep.subr.mxu0 %v3621
    %5198 = vmatpush1.msra.mxu0 %v3620
    %5199 = vmatprep.subr.mxu0 %v3629
    %5200 = vmatpush1.msra.mxu0 %v3628
    %5201 = vmatprep.subr.mxu0 %v3637
    %5202 = vmatpush1.msra.mxu0 %v3636
    %5203 = vmatprep.subr.mxu0 %v3645
    %5204 = vmatpush1.msra.mxu0 %v3644
    %5205 = vmatprep.subr.mxu0 %v3653
    %5206 = vmatpush1.msra.mxu0 %v3652
    %5207 = vmatprep.subr.mxu0 %v3661
    %5208 = vmatpush1.msra.mxu0 %v3660
    %5209 = vmatprep.subr.mxu0 %v3669
    %5210 = vmatpush1.msra.mxu0 %v3668
    %5211 = vmatprep.subr.mxu0 %v3677
    %5212 = vmatpush1.msra.mxu0 %v3676
    %5213 = vmatprep.subr.mxu0 %v3685
    %5214 = vmatpush1.msra.mxu0 %v3684
    %5215 = vmatprep.subr.mxu0 %v3693
    %5216 = vmatpush1.msra.mxu0 %v3692
    %5217 = vmatprep.subr.mxu0 %v3701
    %5218 = vmatpush1.msra.mxu0 %v3700
    %5219 = vmatprep.subr.mxu0 %v3709
    %5220 = vmatpush1.msra.mxu0 %v3708
    %5221 = vmatprep.subr.mxu0 %v3717
    %5222 = vmatpush1.msra.mxu0 %v3716
    %5223 = vmatprep.subr.mxu0 %v3725
    %5224 = vmatpush1.msra.mxu0 %v3724
    %5225 = vmatprep.subr.mxu0 %v3733
    %5226 = vmatpush1.msra.mxu0 %v3732
    %5227 = vmatprep.subr.mxu0 %v3741
    %5228 = vmatpush1.msra.mxu0 %v3740
    %5229 = vmatprep.subr.mxu0 %v3749
    %5230 = vmatpush1.msra.mxu0 %v3748
    %5231 = vmatprep.subr.mxu0 %v3757
    %5232 = vmatpush1.msra.mxu0 %v3756
    %5233 = vmatprep.mubr.f32.mxu0 %v1101
    %5234 = vmatmul.mubr.f32.gmra.mrb[0].mxu0 %v1100
    %v5235 = vpop.f32.mrb[0].mxu0
    %v5236 = vadd.f32 %v5165, %v5235
    %v5237 = vpop.f32.mrb[0].mxu0
    %v5238 = vadd.f32 %v5167, %v5237
    %5239 = vdwg.mxu0
    %5240 = vmatprep.subr.mxu0 %v3765
    %5241 = vmatpush1.msra.mxu0 %v3764
    %5242 = vmatprep.subr.mxu0 %v3773
    %5243 = vmatpush1.msra.mxu0 %v3772
    %5244 = vmatprep.subr.mxu0 %v3781
    %5245 = vmatpush1.msra.mxu0 %v3780
    %5246 = vmatprep.subr.mxu0 %v3789
    %5247 = vmatpush1.msra.mxu0 %v3788
    %5248 = vmatprep.subr.mxu0 %v3797
    %5249 = vmatpush1.msra.mxu0 %v3796
    %5250 = vmatprep.subr.mxu0 %v3805
    %5251 = vmatpush1.msra.mxu0 %v3804
    %5252 = vmatprep.subr.mxu0 %v3813
    %5253 = vmatpush1.msra.mxu0 %v3812
    %5254 = vmatprep.subr.mxu0 %v3821
    %5255 = vmatpush1.msra.mxu0 %v3820
    %5256 = vmatprep.subr.mxu0 %v3829
    %5257 = vmatpush1.msra.mxu0 %v3828
    %5258 = vmatprep.subr.mxu0 %v3837
    %5259 = vmatpush1.msra.mxu0 %v3836
    %5260 = vmatprep.subr.mxu0 %v3845
    %5261 = vmatpush1.msra.mxu0 %v3844
    %5262 = vmatprep.subr.mxu0 %v3853
    %5263 = vmatpush1.msra.mxu0 %v3852
    %5264 = vmatprep.subr.mxu0 %v3861
    %5265 = vmatpush1.msra.mxu0 %v3860
    %5266 = vmatprep.subr.mxu0 %v3869
    %5267 = vmatpush1.msra.mxu0 %v3868
    %5268 = vmatprep.subr.mxu0 %v3877
    %5269 = vmatpush1.msra.mxu0 %v3876
    %5270 = vmatprep.subr.mxu0 %v3885
    %5271 = vmatpush1.msra.mxu0 %v3884
    %5272 = vmatprep.subr.mxu0 %v3893
    %5273 = vmatpush1.msra.mxu0 %v3892
    %5274 = vmatprep.subr.mxu0 %v3901
    %5275 = vmatpush1.msra.mxu0 %v3900
    %5276 = vmatprep.subr.mxu0 %v3909
    %5277 = vmatpush1.msra.mxu0 %v3908
    %5278 = vmatprep.subr.mxu0 %v3917
    %5279 = vmatpush1.msra.mxu0 %v3916
    %5280 = vmatprep.subr.mxu0 %v3925
    %5281 = vmatpush1.msra.mxu0 %v3924
    %5282 = vmatprep.subr.mxu0 %v3933
    %5283 = vmatpush1.msra.mxu0 %v3932
    %5284 = vmatprep.subr.mxu0 %v3941
    %5285 = vmatpush1.msra.mxu0 %v3940
    %5286 = vmatprep.subr.mxu0 %v3949
    %5287 = vmatpush1.msra.mxu0 %v3948
    %5288 = vmatprep.subr.mxu0 %v3957
    %5289 = vmatpush1.msra.mxu0 %v3956
    %5290 = vmatprep.subr.mxu0 %v3965
    %5291 = vmatpush1.msra.mxu0 %v3964
    %5292 = vmatprep.subr.mxu0 %v3973
    %5293 = vmatpush1.msra.mxu0 %v3972
    %5294 = vmatprep.subr.mxu0 %v3981
    %5295 = vmatpush1.msra.mxu0 %v3980
    %5296 = vmatprep.subr.mxu0 %v3989
    %5297 = vmatpush1.msra.mxu0 %v3988
    %5298 = vmatprep.subr.mxu0 %v3997
    %5299 = vmatpush1.msra.mxu0 %v3996
    %5300 = vmatprep.subr.mxu0 %v4005
    %5301 = vmatpush1.msra.mxu0 %v4004
    %5302 = vmatprep.subr.mxu0 %v4013
    %5303 = vmatpush1.msra.mxu0 %v4012
    %5304 = vmatprep.mubr.f32.mxu0 %v1103
    %5305 = vmatmul.mubr.f32.gmra.mrb[0].mxu0 %v1102
    %v5306 = vpop.f32.mrb[0].mxu0
    %v5307 = vadd.f32 %v5236, %v5306
    %v5308 = vpop.f32.mrb[0].mxu0
    %v5309 = vadd.f32 %v5238, %v5308
    %5310 = vdwg.mxu0
    %5311 = vmatprep.subr.mxu0 %v4021
    %5312 = vmatpush1.msra.mxu0 %v4020
    %5313 = vmatprep.subr.mxu0 %v4029
    %5314 = vmatpush1.msra.mxu0 %v4028
    %5315 = vmatprep.subr.mxu0 %v4037
    %5316 = vmatpush1.msra.mxu0 %v4036
    %5317 = vmatprep.subr.mxu0 %v4045
    %5318 = vmatpush1.msra.mxu0 %v4044
    %5319 = vmatprep.subr.mxu0 %v4053
    %5320 = vmatpush1.msra.mxu0 %v4052
    %5321 = vmatprep.subr.mxu0 %v4061
    %5322 = vmatpush1.msra.mxu0 %v4060
    %5323 = vmatprep.subr.mxu0 %v4069
    %5324 = vmatpush1.msra.mxu0 %v4068
    %5325 = vmatprep.subr.mxu0 %v4077
    %5326 = vmatpush1.msra.mxu0 %v4076
    %5327 = vmatprep.subr.mxu0 %v4085
    %5328 = vmatpush1.msra.mxu0 %v4084
    %5329 = vmatprep.subr.mxu0 %v4093
    %5330 = vmatpush1.msra.mxu0 %v4092
    %5331 = vmatprep.subr.mxu0 %v4101
    %5332 = vmatpush1.msra.mxu0 %v4100
    %5333 = vmatprep.subr.mxu0 %v4109
    %5334 = vmatpush1.msra.mxu0 %v4108
    %5335 = vmatprep.subr.mxu0 %v4117
    %5336 = vmatpush1.msra.mxu0 %v4116
    %5337 = vmatprep.subr.mxu0 %v4125
    %5338 = vmatpush1.msra.mxu0 %v4124
    %5339 = vmatprep.subr.mxu0 %v4133
    %5340 = vmatpush1.msra.mxu0 %v4132
    %5341 = vmatprep.subr.mxu0 %v4141
    %5342 = vmatpush1.msra.mxu0 %v4140
    %5343 = vmatprep.subr.mxu0 %v4149
    %5344 = vmatpush1.msra.mxu0 %v4148
    %5345 = vmatprep.subr.mxu0 %v4157
    %5346 = vmatpush1.msra.mxu0 %v4156
    %5347 = vmatprep.subr.mxu0 %v4165
    %5348 = vmatpush1.msra.mxu0 %v4164
    %5349 = vmatprep.subr.mxu0 %v4173
    %5350 = vmatpush1.msra.mxu0 %v4172
    %5351 = vmatprep.subr.mxu0 %v4181
    %5352 = vmatpush1.msra.mxu0 %v4180
    %5353 = vmatprep.subr.mxu0 %v4189
    %5354 = vmatpush1.msra.mxu0 %v4188
    %5355 = vmatprep.subr.mxu0 %v4197
    %5356 = vmatpush1.msra.mxu0 %v4196
    %5357 = vmatprep.subr.mxu0 %v4205
    %5358 = vmatpush1.msra.mxu0 %v4204
    %5359 = vmatprep.subr.mxu0 %v4213
    %5360 = vmatpush1.msra.mxu0 %v4212
    %5361 = vmatprep.subr.mxu0 %v4221
    %5362 = vmatpush1.msra.mxu0 %v4220
    %5363 = vmatprep.subr.mxu0 %v4229
    %5364 = vmatpush1.msra.mxu0 %v4228
    %5365 = vmatprep.subr.mxu0 %v4237
    %5366 = vmatpush1.msra.mxu0 %v4236
    %5367 = vmatprep.subr.mxu0 %v4245
    %5368 = vmatpush1.msra.mxu0 %v4244
    %5369 = vmatprep.subr.mxu0 0.0
    %5370 = vmatpush1.msra.mxu0 0.0
    %5371 = vmatprep.subr.mxu0 0.0
    %5372 = vmatpush1.msra.mxu0 0.0
    %5373 = vmatprep.subr.mxu0 0.0
    %5374 = vmatpush1.msra.mxu0 0.0
    %5375 = vmatprep.mubr.f32.mxu0 %v2108
    %5376 = vmatmul.mubr.f32.gmra.mrb[0].mxu0 %v1104
    %v5377 = vpop.f32.mrb[0].mxu0
    %v5378 = vadd.f32 %v5307, %v5377
    %v5379 = vpop.f32.mrb[0].mxu0
    %v5380 = vadd.f32 %v5309, %v5379
    %5381 = vdwg.mxu0
    %v5382 = vmax.f32 %v2390, %v4526
    %v5383 = vmax.f32 %v2392, %v4528
    %v5384 = vmax.f32 %v2674, %v4810
    %v5385 = vmax.f32 %v2676, %v4812
    %v5386 = vmax.f32 %v2958, %v5094
    %v5387 = vmax.f32 %v2960, %v5096
    %v5388 = vmax.f32 %v3242, %v5378
    %v5389 = vmax.f32 %v3244, %v5380
    %v5390 = vld [vmem:[%s6] sm:$0xff]
    %v5392 = vlaneseq
    %v5393 = vshrl.u32 %v5392, 7
    %v5394 = vsub.s32 0, %v5393
    %v5395 = vrot.slane %v5390, %v5394
    %v5396 = vlaneseq
    %v5397 = vshrl.u32 %v5396, 7
    %v5398 = vsub.s32 1, %v5397
    %v5399 = vrot.slane %v5390, %v5398
    %v5400 = vlaneseq
    %v5401 = vshrl.u32 %v5400, 7
    %v5402 = vsub.s32 2, %v5401
    %v5403 = vrot.slane %v5390, %v5402
    %v5404 = vlaneseq
    %v5405 = vshrl.u32 %v5404, 7
    %v5406 = vsub.s32 3, %v5405
    %v5407 = vrot.slane %v5390, %v5406
    %v5408 = vlaneseq
    %v5409 = vshrl.u32 %v5408, 7
    %v5410 = vsub.s32 4, %v5409
    %v5411 = vrot.slane %v5390, %v5410
    %v5412 = vlaneseq
    %v5413 = vshrl.u32 %v5412, 7
    %v5414 = vsub.s32 5, %v5413
    %v5415 = vrot.slane %v5390, %v5414
    %v5416 = vlaneseq
    %v5417 = vshrl.u32 %v5416, 7
    %v5418 = vsub.s32 6, %v5417
    %v5419 = vrot.slane %v5390, %v5418
    %v5420 = vlaneseq
    %v5421 = vshrl.u32 %v5420, 7
    %v5422 = vsub.s32 7, %v5421
    %v5423 = vrot.slane %v5390, %v5422
    %v5432 = vadd.f32 %v5382, %v5395
    %v5433 = vadd.f32 %v5383, %v5399
    %v5434 = vadd.f32 %v5384, %v5403
    %v5435 = vadd.f32 %v5385, %v5407
    %v5436 = vadd.f32 %v5386, %v5411
    %v5437 = vadd.f32 %v5387, %v5415
    %v5438 = vadd.f32 %v5388, %v5419
    %v5439 = vadd.f32 %v5389, %v5423
    %v5440 = vtanh.pop %v5432
    %v5441 = vtanh.pop %v5433
    %v5442 = vtanh.pop %v5434
    %v5443 = vtanh.pop %v5435
    %v5444 = vtanh.pop %v5436
    %v5445 = vtanh.pop %v5437
    %v5446 = vtanh.pop %v5438
    %v5447 = vtanh.pop %v5439
    %v5448 = vld [vmem:[%s7] sm:$0xff]
    %v5449 = vld [vmem:[%s7 + $0x8] sm:$0xff]
    %v5450 = vld [vmem:[%s7 + $0x10] sm:$0xff]
    %v5451 = vld [vmem:[%s7 + $0x18] sm:$0xff]
    %v5452 = vld [vmem:[%s7 + $0x20] sm:$0xff]
    %v5453 = vld [vmem:[%s7 + $0x28] sm:$0xff]
    %v5454 = vld [vmem:[%s7 + $0x30] sm:$0xff]
    %v5455 = vld [vmem:[%s7 + $0x38] sm:$0xff]
    %v5456 = vld [vmem:[%s7 + $0x40] sm:$0xff]
    %v5457 = vld [vmem:[%s7 + $0x48] sm:$0xff]
    %v5458 = vld [vmem:[%s7 + $0x50] sm:$0xff]
    %v5459 = vld [vmem:[%s7 + $0x58] sm:$0xff]
    %v5460 = vld [vmem:[%s7 + $0x60] sm:$0xff]
    %v5461 = vld [vmem:[%s7 + $0x68] sm:$0xff]
    %v5462 = vld [vmem:[%s7 + $0x70] sm:$0xff]
    %v5463 = vld [vmem:[%s7 + $0x78] sm:$0xff]
    %v5464 = vld [vmem:[%s7 + $0x80] sm:$0xff]
    %v5465 = vld [vmem:[%s7 + $0x88] sm:$0xff]
    %v5466 = vld [vmem:[%s7 + $0x90] sm:$0xff]
    %v5467 = vld [vmem:[%s7 + $0x98] sm:$0xff]
    %v5468 = vld [vmem:[%s7 + $0xa0] sm:$0xff]
    %v5469 = vld [vmem:[%s7 + $0xa8] sm:$0xff]
    %v5470 = vld [vmem:[%s7 + $0xb0] sm:$0xff]
    %v5471 = vld [vmem:[%s7 + $0xb8] sm:$0xff]
    %v5472 = vld [vmem:[%s7 + $0xc0] sm:$0xff]
    %v5473 = vld [vmem:[%s7 + $0xc8] sm:$0xff]
    %v5474 = vld [vmem:[%s7 + $0xd0] sm:$0xff]
    %v5475 = vld [vmem:[%s7 + $0xd8] sm:$0xff]
    %v5476 = vld [vmem:[%s7 + $0xe0] sm:$0xff]
    %v5477 = vld [vmem:[%s7 + $0xe8] sm:$0xff]
    %v5478 = vld [vmem:[%s7 + $0xf0] sm:$0xff]
    %v5479 = vld [vmem:[%s7 + $0xf8] sm:$0xff]
    %v5480 = vld [vmem:[%s7 + $0x100] sm:$0xff]
    %v5481 = vld [vmem:[%s7 + $0x108] sm:$0xff]
    %v5482 = vld [vmem:[%s7 + $0x110] sm:$0xff]
    %v5483 = vld [vmem:[%s7 + $0x118] sm:$0xff]
    %v5484 = vld [vmem:[%s7 + $0x120] sm:$0xff]
    %v5485 = vld [vmem:[%s7 + $0x128] sm:$0xff]
    %v5486 = vld [vmem:[%s7 + $0x130] sm:$0xff]
    %v5487 = vld [vmem:[%s7 + $0x138] sm:$0xff]
    %v5488 = vld [vmem:[%s7 + $0x140] sm:$0xff]
    %v5489 = vld [vmem:[%s7 + $0x148] sm:$0xff]
    %v5490 = vld [vmem:[%s7 + $0x150] sm:$0xff]
    %v5491 = vld [vmem:[%s7 + $0x158] sm:$0xff]
    %v5492 = vld [vmem:[%s7 + $0x160] sm:$0xff]
    %v5493 = vld [vmem:[%s7 + $0x168] sm:$0xff]
    %v5494 = vld [vmem:[%s7 + $0x170] sm:$0xff]
    %v5495 = vld [vmem:[%s7 + $0x178] sm:$0xff]
    %v5496 = vld [vmem:[%s7 + $0x180] sm:$0xff]
    %v5497 = vld [vmem:[%s7 + $0x188] sm:$0xff]
    %v5498 = vld [vmem:[%s7 + $0x190] sm:$0xff]
    %v5499 = vld [vmem:[%s7 + $0x198] sm:$0xff]
    %v5500 = vld [vmem:[%s7 + $0x1a0] sm:$0xff]
    %v5501 = vld [vmem:[%s7 + $0x1a8] sm:$0xff]
    %v5502 = vld [vmem:[%s7 + $0x1b0] sm:$0xff]
    %v5503 = vld [vmem:[%s7 + $0x1b8] sm:$0xff]
    %v5504 = vld [vmem:[%s7 + $0x1c0] sm:$0xff]
    %v5505 = vld [vmem:[%s7 + $0x1c8] sm:$0xff]
    %v5506 = vld [vmem:[%s7 + $0x1d0] sm:$0xff]
    %v5507 = vld [vmem:[%s7 + $0x1d8] sm:$0xff]
    %v5508 = vld [vmem:[%s7 + $0x1e0] sm:$0xff]
    %v5509 = vld [vmem:[%s7 + $0x1e8] sm:$0xff]
    %v5510 = vld [vmem:[%s7 + $0x1f0] sm:$0xff]
    %v5511 = vld [vmem:[%s7 + $0x1f8] sm:$0xff]
    %v5512 = vld [vmem:[%s7 + $0x200] sm:$0xff]
    %v5513 = vld [vmem:[%s7 + $0x208] sm:$0xff]
    %v5514 = vld [vmem:[%s7 + $0x210] sm:$0xff]
    %v5515 = vld [vmem:[%s7 + $0x218] sm:$0xff]
    %v5516 = vld [vmem:[%s7 + $0x220] sm:$0xff]
    %v5517 = vld [vmem:[%s7 + $0x228] sm:$0xff]
    %v5518 = vld [vmem:[%s7 + $0x230] sm:$0xff]
    %v5519 = vld [vmem:[%s7 + $0x238] sm:$0xff]
    %v5520 = vld [vmem:[%s7 + $0x240] sm:$0xff]
    %v5521 = vld [vmem:[%s7 + $0x248] sm:$0xff]
    %v5522 = vld [vmem:[%s7 + $0x250] sm:$0xff]
    %v5523 = vld [vmem:[%s7 + $0x258] sm:$0xff]
    %v5524 = vld [vmem:[%s7 + $0x260] sm:$0xff]
    %v5525 = vld [vmem:[%s7 + $0x268] sm:$0xff]
    %v5526 = vld [vmem:[%s7 + $0x270] sm:$0xff]
    %v5527 = vld [vmem:[%s7 + $0x278] sm:$0xff]
    %v5528 = vld [vmem:[%s7 + $0x280] sm:$0xff]
    %v5529 = vld [vmem:[%s7 + $0x288] sm:$0xff]
    %v5530 = vld [vmem:[%s7 + $0x290] sm:$0xff]
    %v5531 = vld [vmem:[%s7 + $0x298] sm:$0xff]
    %v5532 = vld [vmem:[%s7 + $0x2a0] sm:$0xff]
    %v5533 = vld [vmem:[%s7 + $0x2a8] sm:$0xff]
    %v5534 = vld [vmem:[%s7 + $0x2b0] sm:$0xff]
    %v5535 = vld [vmem:[%s7 + $0x2b8] sm:$0xff]
    %v5536 = vld [vmem:[%s7 + $0x2c0] sm:$0xff]
    %v5537 = vld [vmem:[%s7 + $0x2c8] sm:$0xff]
    %v5538 = vld [vmem:[%s7 + $0x2d0] sm:$0xff]
    %v5539 = vld [vmem:[%s7 + $0x2d8] sm:$0xff]
    %v5540 = vld [vmem:[%s7 + $0x2e0] sm:$0xff]
    %v5541 = vld [vmem:[%s7 + $0x2e8] sm:$0xff]
    %v5542 = vld [vmem:[%s7 + $0x2f0] sm:$0xff]
    %v5543 = vld [vmem:[%s7 + $0x2f8] sm:$0xff]
    %v5544 = vld [vmem:[%s7 + $0x300] sm:$0xff]
    %v5545 = vld [vmem:[%s7 + $0x308] sm:$0xff]
    %v5546 = vld [vmem:[%s7 + $0x310] sm:$0xff]
    %v5547 = vld [vmem:[%s7 + $0x318] sm:$0xff]
    %v5548 = vld [vmem:[%s7 + $0x320] sm:$0xff]
    %v5549 = vld [vmem:[%s7 + $0x328] sm:$0xff]
    %v5550 = vld [vmem:[%s7 + $0x330] sm:$0xff]
    %v5551 = vld [vmem:[%s7 + $0x338] sm:$0xff]
    %v5552 = vld [vmem:[%s7 + $0x340] sm:$0xff]
    %v5553 = vld [vmem:[%s7 + $0x348] sm:$0xff]
    %v5554 = vld [vmem:[%s7 + $0x350] sm:$0xff]
    %v5555 = vld [vmem:[%s7 + $0x358] sm:$0xff]
    %v5556 = vld [vmem:[%s7 + $0x360] sm:$0xff]
    %v5557 = vld [vmem:[%s7 + $0x368] sm:$0xff]
    %v5558 = vld [vmem:[%s7 + $0x370] sm:$0xff]
    %v5559 = vld [vmem:[%s7 + $0x378] sm:$0xff]
    %v5560 = vld [vmem:[%s7 + $0x380] sm:$0xff]
    %v5561 = vld [vmem:[%s7 + $0x388] sm:$0xff]
    %v5562 = vld [vmem:[%s7 + $0x390] sm:$0xff]
    %v5563 = vld [vmem:[%s7 + $0x398] sm:$0xff]
    %v5564 = vld [vmem:[%s7 + $0x3a0] sm:$0xff]
    %v5565 = vld [vmem:[%s7 + $0x3a8] sm:$0xff]
    %v5566 = vld [vmem:[%s7 + $0x3b0] sm:$0xff]
    %v5567 = vld [vmem:[%s7 + $0x3b8] sm:$0xff]
    %v5568 = vld [vmem:[%s7 + $0x3c0] sm:$0xff]
    %v5569 = vld [vmem:[%s7 + $0x3c8] sm:$0xff]
    %v5570 = vld [vmem:[%s7 + $0x3d0] sm:$0xff]
    %v5571 = vld [vmem:[%s7 + $0x3d8] sm:$0xff]
    %v5572 = vld [vmem:[%s7 + $0x3e0] sm:$0xff]
    %v5573 = vld [vmem:[%s7 + $0x3e8] sm:$0xff]
    %v5574 = vld [vmem:[%s7 + $0x3f0] sm:$0xff]
    %v5575 = vld [vmem:[%s7 + $0x3f8] sm:$0xff]
    %v5576 = vld [vmem:[%s7 + $0x400] sm:$0xff]
    %v5577 = vld [vmem:[%s7 + $0x408] sm:$0xff]
    %v5578 = vld [vmem:[%s7 + $0x410] sm:$0xff]
    %v5579 = vld [vmem:[%s7 + $0x418] sm:$0xff]
    %v5580 = vld [vmem:[%s7 + $0x420] sm:$0xff]
    %v5581 = vld [vmem:[%s7 + $0x428] sm:$0xff]
    %v5582 = vld [vmem:[%s7 + $0x430] sm:$0xff]
    %v5583 = vld [vmem:[%s7 + $0x438] sm:$0xff]
    %v5584 = vld [vmem:[%s7 + $0x440] sm:$0xff]
    %v5585 = vld [vmem:[%s7 + $0x448] sm:$0xff]
    %v5586 = vld [vmem:[%s7 + $0x450] sm:$0xff]
    %v5587 = vld [vmem:[%s7 + $0x458] sm:$0xff]
    %v5588 = vld [vmem:[%s7 + $0x460] sm:$0xff]
    %v5589 = vld [vmem:[%s7 + $0x468] sm:$0xff]
    %v5590 = vld [vmem:[%s7 + $0x470] sm:$0xff]
    %v5591 = vld [vmem:[%s7 + $0x478] sm:$0xff]
    %v5592 = vld [vmem:[%s7 + $0x480] sm:$0xff]
    %v5593 = vld [vmem:[%s7 + $0x488] sm:$0xff]
    %v5594 = vld [vmem:[%s7 + $0x490] sm:$0xff]
    %v5595 = vld [vmem:[%s7 + $0x498] sm:$0xff]
    %v5596 = vld [vmem:[%s7 + $0x4a0] sm:$0xff]
    %v5597 = vld [vmem:[%s7 + $0x4a8] sm:$0xff]
    %v5598 = vld [vmem:[%s7 + $0x4b0] sm:$0xff]
    %v5599 = vld [vmem:[%s7 + $0x4b8] sm:$0xff]
    %v5600 = vld [vmem:[%s7 + $0x4c0] sm:$0xff]
    %v5601 = vld [vmem:[%s7 + $0x4c8] sm:$0xff]
    %v5602 = vld [vmem:[%s7 + $0x4d0] sm:$0xff]
    %v5603 = vld [vmem:[%s7 + $0x4d8] sm:$0xff]
    %v5604 = vld [vmem:[%s7 + $0x4e0] sm:$0xff]
    %v5605 = vld [vmem:[%s7 + $0x4e8] sm:$0xff]
    %v5606 = vld [vmem:[%s7 + $0x4f0] sm:$0xff]
    %v5607 = vld [vmem:[%s7 + $0x4f8] sm:$0xff]
    %v5608 = vld [vmem:[%s7 + $0x500] sm:$0xff]
    %v5609 = vld [vmem:[%s7 + $0x508] sm:$0xff]
    %v5610 = vld [vmem:[%s7 + $0x510] sm:$0xff]
    %v5611 = vld [vmem:[%s7 + $0x518] sm:$0xff]
    %v5612 = vld [vmem:[%s7 + $0x520] sm:$0xff]
    %v5613 = vld [vmem:[%s7 + $0x528] sm:$0xff]
    %v5614 = vld [vmem:[%s7 + $0x530] sm:$0xff]
    %v5615 = vld [vmem:[%s7 + $0x538] sm:$0xff]
    %v5616 = vld [vmem:[%s7 + $0x540] sm:$0xff]
    %v5617 = vld [vmem:[%s7 + $0x548] sm:$0xff]
    %v5618 = vld [vmem:[%s7 + $0x550] sm:$0xff]
    %v5619 = vld [vmem:[%s7 + $0x558] sm:$0xff]
    %v5620 = vld [vmem:[%s7 + $0x560] sm:$0xff]
    %v5621 = vld [vmem:[%s7 + $0x568] sm:$0xff]
    %v5622 = vld [vmem:[%s7 + $0x570] sm:$0xff]
    %v5623 = vld [vmem:[%s7 + $0x578] sm:$0xff]
    %v5624 = vld [vmem:[%s7 + $0x580] sm:$0xff]
    %v5625 = vld [vmem:[%s7 + $0x588] sm:$0xff]
    %v5626 = vld [vmem:[%s7 + $0x590] sm:$0xff]
    %v5627 = vld [vmem:[%s7 + $0x598] sm:$0xff]
    %v5628 = vld [vmem:[%s7 + $0x5a0] sm:$0xff]
    %v5629 = vld [vmem:[%s7 + $0x5a8] sm:$0xff]
    %v5630 = vld [vmem:[%s7 + $0x5b0] sm:$0xff]
    %v5631 = vld [vmem:[%s7 + $0x5b8] sm:$0xff]
    %v5632 = vld [vmem:[%s7 + $0x5c0] sm:$0xff]
    %v5633 = vld [vmem:[%s7 + $0x5c8] sm:$0xff]
    %v5634 = vld [vmem:[%s7 + $0x5d0] sm:$0xff]
    %v5635 = vld [vmem:[%s7 + $0x5d8] sm:$0xff]
    %v5636 = vld [vmem:[%s7 + $0x5e0] sm:$0xff]
    %v5637 = vld [vmem:[%s7 + $0x5e8] sm:$0xff]
    %v5638 = vld [vmem:[%s7 + $0x5f0] sm:$0xff]
    %v5639 = vld [vmem:[%s7 + $0x5f8] sm:$0xff]
    %v5640 = vld [vmem:[%s7 + $0x600] sm:$0xff]
    %v5641 = vld [vmem:[%s7 + $0x608] sm:$0xff]
    %v5642 = vld [vmem:[%s7 + $0x610] sm:$0xff]
    %v5643 = vld [vmem:[%s7 + $0x618] sm:$0xff]
    %v5644 = vld [vmem:[%s7 + $0x620] sm:$0xff]
    %v5645 = vld [vmem:[%s7 + $0x628] sm:$0xff]
    %v5646 = vld [vmem:[%s7 + $0x630] sm:$0xff]
    %v5647 = vld [vmem:[%s7 + $0x638] sm:$0xff]
    %v5648 = vld [vmem:[%s7 + $0x640] sm:$0xff]
    %v5649 = vld [vmem:[%s7 + $0x648] sm:$0xff]
    %v5650 = vld [vmem:[%s7 + $0x650] sm:$0xff]
    %v5651 = vld [vmem:[%s7 + $0x658] sm:$0xff]
    %v5652 = vld [vmem:[%s7 + $0x660] sm:$0xff]
    %v5653 = vld [vmem:[%s7 + $0x668] sm:$0xff]
    %v5654 = vld [vmem:[%s7 + $0x670] sm:$0xff]
    %v5655 = vld [vmem:[%s7 + $0x678] sm:$0xff]
    %v5656 = vld [vmem:[%s7 + $0x680] sm:$0xff]
    %v5657 = vld [vmem:[%s7 + $0x688] sm:$0xff]
    %v5658 = vld [vmem:[%s7 + $0x690] sm:$0xff]
    %v5659 = vld [vmem:[%s7 + $0x698] sm:$0xff]
    %v5660 = vld [vmem:[%s7 + $0x6a0] sm:$0xff]
    %v5661 = vld [vmem:[%s7 + $0x6a8] sm:$0xff]
    %v5662 = vld [vmem:[%s7 + $0x6b0] sm:$0xff]
    %v5663 = vld [vmem:[%s7 + $0x6b8] sm:$0xff]
    %v5664 = vld [vmem:[%s7 + $0x6c0] sm:$0xff]
    %v5665 = vld [vmem:[%s7 + $0x6c8] sm:$0xff]
    %v5666 = vld [vmem:[%s7 + $0x6d0] sm:$0xff]
    %v5667 = vld [vmem:[%s7 + $0x6d8] sm:$0xff]
    %v5668 = vld [vmem:[%s7 + $0x6e0] sm:$0xff]
    %v5669 = vld [vmem:[%s7 + $0x6e8] sm:$0xff]
    %v5670 = vld [vmem:[%s7 + $0x6f0] sm:$0xff]
    %v5671 = vld [vmem:[%s7 + $0x6f8] sm:$0xff]
    %v5672 = vld [vmem:[%s7 + $0x700] sm:$0xff]
    %v5673 = vld [vmem:[%s7 + $0x708] sm:$0xff]
    %v5674 = vld [vmem:[%s7 + $0x710] sm:$0xff]
    %v5675 = vld [vmem:[%s7 + $0x718] sm:$0xff]
    %v5676 = vld [vmem:[%s7 + $0x720] sm:$0xff]
    %v5677 = vld [vmem:[%s7 + $0x728] sm:$0xff]
    %v5678 = vld [vmem:[%s7 + $0x730] sm:$0xff]
    %v5679 = vld [vmem:[%s7 + $0x738] sm:$0xff]
    %v5680 = vld [vmem:[%s7 + $0x740] sm:$0xff]
    %v5681 = vld [vmem:[%s7 + $0x748] sm:$0xff]
    %v5682 = vld [vmem:[%s7 + $0x750] sm:$0xff]
    %v5683 = vld [vmem:[%s7 + $0x758] sm:$0xff]
    %v5684 = vld [vmem:[%s7 + $0x760] sm:$0xff]
    %v5685 = vld [vmem:[%s7 + $0x768] sm:$0xff]
    %v5686 = vld [vmem:[%s7 + $0x770] sm:$0xff]
    %v5687 = vld [vmem:[%s7 + $0x778] sm:$0xff]
    %v5688 = vld [vmem:[%s7 + $0x780] sm:$0xff]
    %v5689 = vld [vmem:[%s7 + $0x788] sm:$0xff]
    %v5690 = vld [vmem:[%s7 + $0x790] sm:$0xff]
    %v5691 = vld [vmem:[%s7 + $0x798] sm:$0xff]
    %v5692 = vld [vmem:[%s7 + $0x7a0] sm:$0xff]
    %v5693 = vld [vmem:[%s7 + $0x7a8] sm:$0xff]
    %v5694 = vld [vmem:[%s7 + $0x7b0] sm:$0xff]
    %v5695 = vld [vmem:[%s7 + $0x7b8] sm:$0xff]
    %v5696 = vld [vmem:[%s7 + $0x7c0] sm:$0xff]
    %v5697 = vld [vmem:[%s7 + $0x7c8] sm:$0xff]
    %v5698 = vld [vmem:[%s7 + $0x7d0] sm:$0xff]
    %v5699 = vld [vmem:[%s7 + $0x7d8] sm:$0xff]
    %v5700 = vld [vmem:[%s7 + $0x7e0] sm:$0xff]
    %v5701 = vld [vmem:[%s7 + $0x7e8] sm:$0xff]
    %v5702 = vld [vmem:[%s7 + $0x7f0] sm:$0xff]
    %v5703 = vld [vmem:[%s7 + $0x7f8] sm:$0xff]
    %v5704 = vld [vmem:[%s7 + $0x800] sm:$0xff]
    %v5705 = vld [vmem:[%s7 + $0x808] sm:$0xff]
    %v5706 = vld [vmem:[%s7 + $0x810] sm:$0xff]
    %v5707 = vld [vmem:[%s7 + $0x818] sm:$0xff]
    %v5708 = vld [vmem:[%s7 + $0x820] sm:$0xff]
    %v5709 = vld [vmem:[%s7 + $0x828] sm:$0xff]
    %v5710 = vld [vmem:[%s7 + $0x830] sm:$0xff]
    %v5711 = vld [vmem:[%s7 + $0x838] sm:$0xff]
    %v5712 = vld [vmem:[%s7 + $0x840] sm:$0xff]
    %v5713 = vld [vmem:[%s7 + $0x848] sm:$0xff]
    %v5714 = vld [vmem:[%s7 + $0x850] sm:$0xff]
    %v5715 = vld [vmem:[%s7 + $0x858] sm:$0xff]
    %v5716 = vld [vmem:[%s7 + $0x860] sm:$0xff]
    %v5717 = vld [vmem:[%s7 + $0x868] sm:$0xff]
    %v5718 = vld [vmem:[%s7 + $0x870] sm:$0xff]
    %v5719 = vld [vmem:[%s7 + $0x878] sm:$0xff]
    %v5720 = vld [vmem:[%s7 + $0x880] sm:$0xff]
    %v5721 = vld [vmem:[%s7 + $0x888] sm:$0xff]
    %v5722 = vld [vmem:[%s7 + $0x890] sm:$0xff]
    %v5723 = vld [vmem:[%s7 + $0x898] sm:$0xff]
    %v5724 = vld [vmem:[%s7 + $0x8a0] sm:$0xff]
    %v5725 = vld [vmem:[%s7 + $0x8a8] sm:$0xff]
    %v5726 = vld [vmem:[%s7 + $0x8b0] sm:$0xff]
    %v5727 = vld [vmem:[%s7 + $0x8b8] sm:$0xff]
    %v5728 = vld [vmem:[%s7 + $0x8c0] sm:$0xff]
    %v5729 = vld [vmem:[%s7 + $0x8c8] sm:$0xff]
    %v5730 = vld [vmem:[%s7 + $0x8d0] sm:$0xff]
    %v5731 = vld [vmem:[%s7 + $0x8d8] sm:$0xff]
    %v5732 = vld [vmem:[%s7 + $0x8e0] sm:$0xff]
    %v5733 = vld [vmem:[%s7 + $0x8e8] sm:$0xff]
    %v5734 = vld [vmem:[%s7 + $0x8f0] sm:$0xff]
    %v5735 = vld [vmem:[%s7 + $0x8f8] sm:$0xff]
    %v5736 = vld [vmem:[%s7 + $0x900] sm:$0xff]
    %v5737 = vld [vmem:[%s7 + $0x908] sm:$0xff]
    %v5738 = vld [vmem:[%s7 + $0x910] sm:$0xff]
    %v5739 = vld [vmem:[%s7 + $0x918] sm:$0xff]
    %v5740 = vld [vmem:[%s7 + $0x920] sm:$0xff]
    %v5741 = vld [vmem:[%s7 + $0x928] sm:$0xff]
    %v5742 = vld [vmem:[%s7 + $0x930] sm:$0xff]
    %v5743 = vld [vmem:[%s7 + $0x938] sm:$0xff]
    %v5744 = vld [vmem:[%s7 + $0x940] sm:$0xff]
    %v5745 = vld [vmem:[%s7 + $0x948] sm:$0xff]
    %v5746 = vld [vmem:[%s7 + $0x950] sm:$0xff]
    %v5747 = vld [vmem:[%s7 + $0x958] sm:$0xff]
    %v5748 = vld [vmem:[%s7 + $0x960] sm:$0xff]
    %v5749 = vld [vmem:[%s7 + $0x968] sm:$0xff]
    %v5750 = vld [vmem:[%s7 + $0x970] sm:$0xff]
    %v5751 = vld [vmem:[%s7 + $0x978] sm:$0xff]
    %v5752 = vld [vmem:[%s7 + $0x980] sm:$0xff]
    %v5753 = vld [vmem:[%s7 + $0x988] sm:$0xff]
    %v5754 = vld [vmem:[%s7 + $0x990] sm:$0xff]
    %v5755 = vld [vmem:[%s7 + $0x998] sm:$0xff]
    %v5756 = vld [vmem:[%s7 + $0x9a0] sm:$0xff]
    %v5757 = vld [vmem:[%s7 + $0x9a8] sm:$0xff]
    %v5758 = vld [vmem:[%s7 + $0x9b0] sm:$0xff]
    %v5759 = vld [vmem:[%s7 + $0x9b8] sm:$0xff]
    %v5760 = vld [vmem:[%s7 + $0x9c0] sm:$0xff]
    %v5761 = vld [vmem:[%s7 + $0x9c8] sm:$0xff]
    %v5762 = vld [vmem:[%s7 + $0x9d0] sm:$0xff]
    %v5763 = vld [vmem:[%s7 + $0x9d8] sm:$0xff]
    %v5764 = vld [vmem:[%s7 + $0x9e0] sm:$0xff]
    %v5765 = vld [vmem:[%s7 + $0x9e8] sm:$0xff]
    %v5766 = vld [vmem:[%s7 + $0x9f0] sm:$0xff]
    %v5767 = vld [vmem:[%s7 + $0x9f8] sm:$0xff]
    %v5768 = vld [vmem:[%s7 + $0xa00] sm:$0xff]
    %v5769 = vld [vmem:[%s7 + $0xa08] sm:$0xff]
    %v5770 = vld [vmem:[%s7 + $0xa10] sm:$0xff]
    %v5771 = vld [vmem:[%s7 + $0xa18] sm:$0xff]
    %v5772 = vld [vmem:[%s7 + $0xa20] sm:$0xff]
    %v5773 = vld [vmem:[%s7 + $0xa28] sm:$0xff]
    %v5774 = vld [vmem:[%s7 + $0xa30] sm:$0xff]
    %v5775 = vld [vmem:[%s7 + $0xa38] sm:$0xff]
    %v5776 = vld [vmem:[%s7 + $0xa40] sm:$0xff]
    %v5777 = vld [vmem:[%s7 + $0xa48] sm:$0xff]
    %v5778 = vld [vmem:[%s7 + $0xa50] sm:$0xff]
    %v5779 = vld [vmem:[%s7 + $0xa58] sm:$0xff]
    %v5780 = vld [vmem:[%s7 + $0xa60] sm:$0xff]
    %v5781 = vld [vmem:[%s7 + $0xa68] sm:$0xff]
    %v5782 = vld [vmem:[%s7 + $0xa70] sm:$0xff]
    %v5783 = vld [vmem:[%s7 + $0xa78] sm:$0xff]
    %v5784 = vld [vmem:[%s7 + $0xa80] sm:$0xff]
    %v5785 = vld [vmem:[%s7 + $0xa88] sm:$0xff]
    %v5786 = vld [vmem:[%s7 + $0xa90] sm:$0xff]
    %v5787 = vld [vmem:[%s7 + $0xa98] sm:$0xff]
    %v5788 = vld [vmem:[%s7 + $0xaa0] sm:$0xff]
    %v5789 = vld [vmem:[%s7 + $0xaa8] sm:$0xff]
    %v5790 = vld [vmem:[%s7 + $0xab0] sm:$0xff]
    %v5791 = vld [vmem:[%s7 + $0xab8] sm:$0xff]
    %v5792 = vld [vmem:[%s7 + $0xac0] sm:$0xff]
    %v5793 = vld [vmem:[%s7 + $0xac8] sm:$0xff]
    %v5794 = vld [vmem:[%s7 + $0xad0] sm:$0xff]
    %v5795 = vld [vmem:[%s7 + $0xad8] sm:$0xff]
    %v5796 = vld [vmem:[%s7 + $0xae0] sm:$0xff]
    %v5797 = vld [vmem:[%s7 + $0xae8] sm:$0xff]
    %v5798 = vld [vmem:[%s7 + $0xaf0] sm:$0xff]
    %v5799 = vld [vmem:[%s7 + $0xaf8] sm:$0xff]
    %v5800 = vld [vmem:[%s7 + $0xb00] sm:$0xff]
    %v5801 = vld [vmem:[%s7 + $0xb08] sm:$0xff]
    %v5802 = vld [vmem:[%s7 + $0xb10] sm:$0xff]
    %v5803 = vld [vmem:[%s7 + $0xb18] sm:$0xff]
    %v5804 = vld [vmem:[%s7 + $0xb20] sm:$0xff]
    %v5805 = vld [vmem:[%s7 + $0xb28] sm:$0xff]
    %v5806 = vld [vmem:[%s7 + $0xb30] sm:$0xff]
    %v5807 = vld [vmem:[%s7 + $0xb38] sm:$0xff]
    %v5808 = vld [vmem:[%s7 + $0xb40] sm:$0xff]
    %v5809 = vld [vmem:[%s7 + $0xb48] sm:$0xff]
    %v5810 = vld [vmem:[%s7 + $0xb50] sm:$0xff]
    %v5811 = vld [vmem:[%s7 + $0xb58] sm:$0xff]
    %v5812 = vld [vmem:[%s7 + $0xb60] sm:$0xff]
    %v5813 = vld [vmem:[%s7 + $0xb68] sm:$0xff]
    %v5814 = vld [vmem:[%s7 + $0xb70] sm:$0xff]
    %v5815 = vld [vmem:[%s7 + $0xb78] sm:$0xff]
    %v5816 = vld [vmem:[%s7 + $0xb80] sm:$0xff]
    %v5817 = vld [vmem:[%s7 + $0xb88] sm:$0xff]
    %v5818 = vld [vmem:[%s7 + $0xb90] sm:$0xff]
    %v5819 = vld [vmem:[%s7 + $0xb98] sm:$0xff]
    %v5820 = vld [vmem:[%s7 + $0xba0] sm:$0xff]
    %v5821 = vld [vmem:[%s7 + $0xba8] sm:$0xff]
    %v5822 = vld [vmem:[%s7 + $0xbb0] sm:$0xff]
    %v5823 = vld [vmem:[%s7 + $0xbb8] sm:$0xff]
    %v5824 = vld [vmem:[%s7 + $0xbc0] sm:$0xff]
    %v5825 = vld [vmem:[%s7 + $0xbc8] sm:$0xff]
    %v5826 = vld [vmem:[%s7 + $0xbd0] sm:$0xff]
    %v5827 = vld [vmem:[%s7 + $0xbd8] sm:$0xff]
    %v5828 = vld [vmem:[%s7 + $0xbe0] sm:$0xff]
    %v5829 = vld [vmem:[%s7 + $0xbe8] sm:$0xff]
    %v5830 = vld [vmem:[%s7 + $0xbf0] sm:$0xff]
    %v5831 = vld [vmem:[%s7 + $0xbf8] sm:$0xff]
    %v5832 = vld [vmem:[%s7 + $0xc00] sm:$0xff]
    %v5833 = vld [vmem:[%s7 + $0xc08] sm:$0xff]
    %v5834 = vld [vmem:[%s7 + $0xc10] sm:$0xff]
    %v5835 = vld [vmem:[%s7 + $0xc18] sm:$0xff]
    %v5836 = vld [vmem:[%s7 + $0xc20] sm:$0xff]
    %v5837 = vld [vmem:[%s7 + $0xc28] sm:$0xff]
    %v5838 = vld [vmem:[%s7 + $0xc30] sm:$0xff]
    %v5839 = vld [vmem:[%s7 + $0xc38] sm:$0xff]
    %v5840 = vld [vmem:[%s7 + $0xc40] sm:$0xff]
    %v5841 = vld [vmem:[%s7 + $0xc48] sm:$0xff]
    %v5842 = vld [vmem:[%s7 + $0xc50] sm:$0xff]
    %v5843 = vld [vmem:[%s7 + $0xc58] sm:$0xff]
    %v5844 = vld [vmem:[%s7 + $0xc60] sm:$0xff]
    %v5845 = vld [vmem:[%s7 + $0xc68] sm:$0xff]
    %v5846 = vld [vmem:[%s7 + $0xc70] sm:$0xff]
    %v5847 = vld [vmem:[%s7 + $0xc78] sm:$0xff]
    %v5848 = vld [vmem:[%s7 + $0xc80] sm:$0xff]
    %v5849 = vld [vmem:[%s7 + $0xc88] sm:$0xff]
    %v5850 = vld [vmem:[%s7 + $0xc90] sm:$0xff]
    %v5851 = vld [vmem:[%s7 + $0xc98] sm:$0xff]
    %v5852 = vld [vmem:[%s7 + $0xca0] sm:$0xff]
    %v5853 = vld [vmem:[%s7 + $0xca8] sm:$0xff]
    %v5854 = vld [vmem:[%s7 + $0xcb0] sm:$0xff]
    %v5855 = vld [vmem:[%s7 + $0xcb8] sm:$0xff]
    %v5856 = vld [vmem:[%s7 + $0xcc0] sm:$0xff]
    %v5857 = vld [vmem:[%s7 + $0xcc8] sm:$0xff]
    %v5858 = vld [vmem:[%s7 + $0xcd0] sm:$0xff]
    %v5859 = vld [vmem:[%s7 + $0xcd8] sm:$0xff]
    %v5860 = vld [vmem:[%s7 + $0xce0] sm:$0xff]
    %v5861 = vld [vmem:[%s7 + $0xce8] sm:$0xff]
    %v5862 = vld [vmem:[%s7 + $0xcf0] sm:$0xff]
    %v5863 = vld [vmem:[%s7 + $0xcf8] sm:$0xff]
    %v5864 = vld [vmem:[%s7 + $0xd00] sm:$0xff]
    %v5865 = vld [vmem:[%s7 + $0xd08] sm:$0xff]
    %v5866 = vld [vmem:[%s7 + $0xd10] sm:$0xff]
    %v5867 = vld [vmem:[%s7 + $0xd18] sm:$0xff]
    %v5868 = vld [vmem:[%s7 + $0xd20] sm:$0xff]
    %v5869 = vld [vmem:[%s7 + $0xd28] sm:$0xff]
    %v5870 = vld [vmem:[%s7 + $0xd30] sm:$0xff]
    %v5871 = vld [vmem:[%s7 + $0xd38] sm:$0xff]
    %v5872 = vld [vmem:[%s7 + $0xd40] sm:$0xff]
    %v5873 = vld [vmem:[%s7 + $0xd48] sm:$0xff]
    %v5874 = vld [vmem:[%s7 + $0xd50] sm:$0xff]
    %v5875 = vld [vmem:[%s7 + $0xd58] sm:$0xff]
    %v5876 = vld [vmem:[%s7 + $0xd60] sm:$0xff]
    %v5877 = vld [vmem:[%s7 + $0xd68] sm:$0xff]
    %v5878 = vld [vmem:[%s7 + $0xd70] sm:$0xff]
    %v5879 = vld [vmem:[%s7 + $0xd78] sm:$0xff]
    %v5880 = vld [vmem:[%s7 + $0xd80] sm:$0xff]
    %v5881 = vld [vmem:[%s7 + $0xd88] sm:$0xff]
    %v5882 = vld [vmem:[%s7 + $0xd90] sm:$0xff]
    %v5883 = vld [vmem:[%s7 + $0xd98] sm:$0xff]
    %v5884 = vld [vmem:[%s7 + $0xda0] sm:$0xff]
    %v5885 = vld [vmem:[%s7 + $0xda8] sm:$0xff]
    %v5886 = vld [vmem:[%s7 + $0xdb0] sm:$0xff]
    %v5887 = vld [vmem:[%s7 + $0xdb8] sm:$0xff]
    %v5888 = vld [vmem:[%s7 + $0xdc0] sm:$0xff]
    %v5889 = vld [vmem:[%s7 + $0xdc8] sm:$0xff]
    %v5890 = vld [vmem:[%s7 + $0xdd0] sm:$0xff]
    %v5891 = vld [vmem:[%s7 + $0xdd8] sm:$0xff]
    %v5892 = vld [vmem:[%s7 + $0xde0] sm:$0xff]
    %v5893 = vld [vmem:[%s7 + $0xde8] sm:$0xff]
    %v5894 = vld [vmem:[%s7 + $0xdf0] sm:$0xff]
    %v5895 = vld [vmem:[%s7 + $0xdf8] sm:$0xff]
    %v5896 = vld [vmem:[%s7 + $0xe00] sm:$0xff]
    %v5897 = vld [vmem:[%s7 + $0xe08] sm:$0xff]
    %v5898 = vld [vmem:[%s7 + $0xe10] sm:$0xff]
    %v5899 = vld [vmem:[%s7 + $0xe18] sm:$0xff]
    %v5900 = vld [vmem:[%s7 + $0xe20] sm:$0xff]
    %v5901 = vld [vmem:[%s7 + $0xe28] sm:$0xff]
    %v5902 = vld [vmem:[%s7 + $0xe30] sm:$0xff]
    %v5903 = vld [vmem:[%s7 + $0xe38] sm:$0xff]
    %v5904 = vld [vmem:[%s7 + $0xe40] sm:$0xff]
    %v5905 = vld [vmem:[%s7 + $0xe48] sm:$0xff]
    %v5906 = vld [vmem:[%s7 + $0xe50] sm:$0xff]
    %v5907 = vld [vmem:[%s7 + $0xe58] sm:$0xff]
    %v5908 = vld [vmem:[%s7 + $0xe60] sm:$0xff]
    %v5909 = vld [vmem:[%s7 + $0xe68] sm:$0xff]
    %v5910 = vld [vmem:[%s7 + $0xe70] sm:$0xff]
    %v5911 = vld [vmem:[%s7 + $0xe78] sm:$0xff]
    %v5912 = vld [vmem:[%s7 + $0xe80] sm:$0xff]
    %v5913 = vld [vmem:[%s7 + $0xe88] sm:$0xff]
    %v5914 = vld [vmem:[%s7 + $0xe90] sm:$0xff]
    %v5915 = vld [vmem:[%s7 + $0xe98] sm:$0xff]
    %v5916 = vld [vmem:[%s7 + $0xea0] sm:$0xff]
    %v5917 = vld [vmem:[%s7 + $0xea8] sm:$0xff]
    %v5918 = vld [vmem:[%s7 + $0xeb0] sm:$0xff]
    %v5919 = vld [vmem:[%s7 + $0xeb8] sm:$0xff]
    %v5920 = vld [vmem:[%s7 + $0xec0] sm:$0xff]
    %v5921 = vld [vmem:[%s7 + $0xec8] sm:$0xff]
    %v5922 = vld [vmem:[%s7 + $0xed0] sm:$0xff]
    %v5923 = vld [vmem:[%s7 + $0xed8] sm:$0xff]
    %v5924 = vld [vmem:[%s7 + $0xee0] sm:$0xff]
    %v5925 = vld [vmem:[%s7 + $0xee8] sm:$0xff]
    %v5926 = vld [vmem:[%s7 + $0xef0] sm:$0xff]
    %v5927 = vld [vmem:[%s7 + $0xef8] sm:$0xff]
    %v5928 = vld [vmem:[%s7 + $0xf00] sm:$0xff]
    %v5929 = vld [vmem:[%s7 + $0xf08] sm:$0xff]
    %v5930 = vld [vmem:[%s7 + $0xf10] sm:$0xff]
    %v5931 = vld [vmem:[%s7 + $0xf18] sm:$0xff]
    %v5932 = vld [vmem:[%s7 + $0xf20] sm:$0xff]
    %v5933 = vld [vmem:[%s7 + $0xf28] sm:$0xff]
    %v5934 = vld [vmem:[%s7 + $0xf30] sm:$0xff]
    %v5935 = vld [vmem:[%s7 + $0xf38] sm:$0xff]
    %v5936 = vld [vmem:[%s7 + $0xf40] sm:$0xff]
    %v5937 = vld [vmem:[%s7 + $0xf48] sm:$0xff]
    %v5938 = vld [vmem:[%s7 + $0xf50] sm:$0xff]
    %v5939 = vld [vmem:[%s7 + $0xf58] sm:$0xff]
    %v5940 = vld [vmem:[%s7 + $0xf60] sm:$0xff]
    %v5941 = vld [vmem:[%s7 + $0xf68] sm:$0xff]
    %v5942 = vld [vmem:[%s7 + $0xf70] sm:$0xff]
    %v5943 = vld [vmem:[%s7 + $0xf78] sm:$0xff]
    %v5944 = vld [vmem:[%s7 + $0xf80] sm:$0xff]
    %v5945 = vld [vmem:[%s7 + $0xf88] sm:$0xff]
    %v5946 = vld [vmem:[%s7 + $0xf90] sm:$0xff]
    %v5947 = vld [vmem:[%s7 + $0xf98] sm:$0xff]
    %v5948 = vld [vmem:[%s7 + $0xfa0] sm:$0xff]
    %v5949 = vld [vmem:[%s7 + $0xfa8] sm:$0xff]
    %v5950 = vld [vmem:[%s7 + $0xfb0] sm:$0xff]
    %v5951 = vld [vmem:[%s7 + $0xfb8] sm:$0xff]
    %v5952 = vld [vmem:[%s7 + $0xfc0] sm:$0xff]
    %v5953 = vld [vmem:[%s7 + $0xfc8] sm:$0xff]
    %v5954 = vld [vmem:[%s7 + $0xfd0] sm:$0xff]
    %v5955 = vld [vmem:[%s7 + $0xfd8] sm:$0xff]
    %v5956 = vld [vmem:[%s7 + $0xfe0] sm:$0xff]
    %v5957 = vld [vmem:[%s7 + $0xfe8] sm:$0xff]
    %v5958 = vld [vmem:[%s7 + $0xff0] sm:$0xff]
    %v5959 = vld [vmem:[%s7 + $0xff8] sm:$0xff]
    %v5960 = vld [vmem:[%s7 + $0x1000] sm:$0xff]
    %v5961 = vld [vmem:[%s7 + $0x1008] sm:$0xff]
    %v5962 = vld [vmem:[%s7 + $0x1010] sm:$0xff]
    %v5963 = vld [vmem:[%s7 + $0x1018] sm:$0xff]
    %v5964 = vld [vmem:[%s7 + $0x1020] sm:$0xff]
    %v5965 = vld [vmem:[%s7 + $0x1028] sm:$0xff]
    %v5966 = vld [vmem:[%s7 + $0x1030] sm:$0xff]
    %v5967 = vld [vmem:[%s7 + $0x1038] sm:$0xff]
    %v5968 = vld [vmem:[%s7 + $0x1040] sm:$0xff]
    %v5969 = vld [vmem:[%s7 + $0x1048] sm:$0xff]
    %v5970 = vld [vmem:[%s7 + $0x1050] sm:$0xff]
    %v5971 = vld [vmem:[%s7 + $0x1058] sm:$0xff]
    %v5972 = vld [vmem:[%s7 + $0x1060] sm:$0xff]
    %v5973 = vld [vmem:[%s7 + $0x1068] sm:$0xff]
    %v5974 = vld [vmem:[%s7 + $0x1070] sm:$0xff]
    %v5975 = vld [vmem:[%s7 + $0x1078] sm:$0xff]
    %v5976 = vld [vmem:[%s7 + $0x1080] sm:$0xff]
    %v5977 = vld [vmem:[%s7 + $0x1088] sm:$0xff]
    %v5978 = vld [vmem:[%s7 + $0x1090] sm:$0xff]
    %v5979 = vld [vmem:[%s7 + $0x1098] sm:$0xff]
    %v5980 = vld [vmem:[%s7 + $0x10a0] sm:$0xff]
    %v5981 = vld [vmem:[%s7 + $0x10a8] sm:$0xff]
    %v5982 = vld [vmem:[%s7 + $0x10b0] sm:$0xff]
    %v5983 = vld [vmem:[%s7 + $0x10b8] sm:$0xff]
    %v5984 = vld [vmem:[%s7 + $0x10c0] sm:$0xff]
    %v5985 = vld [vmem:[%s7 + $0x10c8] sm:$0xff]
    %v5986 = vld [vmem:[%s7 + $0x10d0] sm:$0xff]
    %v5987 = vld [vmem:[%s7 + $0x10d8] sm:$0xff]
    %v5988 = vld [vmem:[%s7 + $0x10e0] sm:$0xff]
    %v5989 = vld [vmem:[%s7 + $0x10e8] sm:$0xff]
    %v5990 = vld [vmem:[%s7 + $0x10f0] sm:$0xff]
    %v5991 = vld [vmem:[%s7 + $0x10f8] sm:$0xff]
    %v5992 = vld [vmem:[%s7 + $0x1100] sm:$0xff]
    %v5993 = vld [vmem:[%s7 + $0x1108] sm:$0xff]
    %v5994 = vld [vmem:[%s7 + $0x1110] sm:$0xff]
    %v5995 = vld [vmem:[%s7 + $0x1118] sm:$0xff]
    %v5996 = vld [vmem:[%s7 + $0x1120] sm:$0xff]
    %v5997 = vld [vmem:[%s7 + $0x1128] sm:$0xff]
    %v5998 = vld [vmem:[%s7 + $0x1130] sm:$0xff]
    %v5999 = vld [vmem:[%s7 + $0x1138] sm:$0xff]
    %v6000 = vld [vmem:[%s7 + $0x1140] sm:$0xff]
    %v6001 = vld [vmem:[%s7 + $0x1148] sm:$0xff]
    %v6002 = vld [vmem:[%s7 + $0x1150] sm:$0xff]
    %v6003 = vld [vmem:[%s7 + $0x1158] sm:$0xff]
    %v6004 = vld [vmem:[%s7 + $0x1160] sm:$0xff]
    %v6005 = vld [vmem:[%s7 + $0x1168] sm:$0xff]
    %v6006 = vld [vmem:[%s7 + $0x1170] sm:$0xff]
    %v6007 = vld [vmem:[%s7 + $0x1178] sm:$0xff]
    %v6008 = vld [vmem:[%s7 + $0x1180] sm:$0xff]
    %v6009 = vld [vmem:[%s7 + $0x1188] sm:$0xff]
    %v6010 = vld [vmem:[%s7 + $0x1190] sm:$0xff]
    %v6011 = vld [vmem:[%s7 + $0x1198] sm:$0xff]
    %v6012 = vld [vmem:[%s7 + $0x11a0] sm:$0xff]
    %v6013 = vld [vmem:[%s7 + $0x11a8] sm:$0xff]
    %v6014 = vld [vmem:[%s7 + $0x11b0] sm:$0xff]
    %v6015 = vld [vmem:[%s7 + $0x11b8] sm:$0xff]
    %v6016 = vld [vmem:[%s7 + $0x11c0] sm:$0xff]
    %v6017 = vld [vmem:[%s7 + $0x11c8] sm:$0xff]
    %v6018 = vld [vmem:[%s7 + $0x11d0] sm:$0xff]
    %v6019 = vld [vmem:[%s7 + $0x11d8] sm:$0xff]
    %v6020 = vld [vmem:[%s7 + $0x11e0] sm:$0xff]
    %v6021 = vld [vmem:[%s7 + $0x11e8] sm:$0xff]
    %v6022 = vld [vmem:[%s7 + $0x11f0] sm:$0xff]
    %v6023 = vld [vmem:[%s7 + $0x11f8] sm:$0xff]
    %v6024 = vld [vmem:[%s7 + $0x1200] sm:$0xff]
    %v6025 = vld [vmem:[%s7 + $0x1208] sm:$0xff]
    %v6026 = vld [vmem:[%s7 + $0x1210] sm:$0xff]
    %v6027 = vld [vmem:[%s7 + $0x1218] sm:$0xff]
    %v6028 = vld [vmem:[%s7 + $0x1220] sm:$0xff]
    %v6029 = vld [vmem:[%s7 + $0x1228] sm:$0xff]
    %v6030 = vld [vmem:[%s7 + $0x1230] sm:$0xff]
    %v6031 = vld [vmem:[%s7 + $0x1238] sm:$0xff]
    %v6032 = vld [vmem:[%s7 + $0x1240] sm:$0xff]
    %v6033 = vld [vmem:[%s7 + $0x1248] sm:$0xff]
    %v6034 = vld [vmem:[%s7 + $0x1250] sm:$0xff]
    %v6035 = vld [vmem:[%s7 + $0x1258] sm:$0xff]
    %v6036 = vld [vmem:[%s7 + $0x1260] sm:$0xff]
    %v6037 = vld [vmem:[%s7 + $0x1268] sm:$0xff]
    %v6038 = vld [vmem:[%s7 + $0x1270] sm:$0xff]
    %v6039 = vld [vmem:[%s7 + $0x1278] sm:$0xff]
    %v6040 = vld [vmem:[%s7 + $0x1280] sm:$0xff]
    %v6041 = vld [vmem:[%s7 + $0x1288] sm:$0xff]
    %v6042 = vld [vmem:[%s7 + $0x1290] sm:$0xff]
    %v6043 = vld [vmem:[%s7 + $0x1298] sm:$0xff]
    %v6044 = vld [vmem:[%s7 + $0x12a0] sm:$0xff]
    %v6045 = vld [vmem:[%s7 + $0x12a8] sm:$0xff]
    %v6046 = vld [vmem:[%s7 + $0x12b0] sm:$0xff]
    %v6047 = vld [vmem:[%s7 + $0x12b8] sm:$0xff]
    %v6048 = vld [vmem:[%s7 + $0x12c0] sm:$0xff]
    %v6049 = vld [vmem:[%s7 + $0x12c8] sm:$0xff]
    %v6050 = vld [vmem:[%s7 + $0x12d0] sm:$0xff]
    %v6051 = vld [vmem:[%s7 + $0x12d8] sm:$0xff]
    %v6052 = vld [vmem:[%s7 + $0x12e0] sm:$0xff]
    %v6053 = vld [vmem:[%s7 + $0x12e8] sm:$0xff]
    %v6054 = vld [vmem:[%s7 + $0x12f0] sm:$0xff]
    %v6055 = vld [vmem:[%s7 + $0x12f8] sm:$0xff]
    %v6056 = vld [vmem:[%s7 + $0x1300] sm:$0xff]
    %v6057 = vld [vmem:[%s7 + $0x1308] sm:$0xff]
    %v6058 = vld [vmem:[%s7 + $0x1310] sm:$0xff]
    %v6059 = vld [vmem:[%s7 + $0x1318] sm:$0xff]
    %v6060 = vld [vmem:[%s7 + $0x1320] sm:$0xff]
    %v6061 = vld [vmem:[%s7 + $0x1328] sm:$0xff]
    %v6062 = vld [vmem:[%s7 + $0x1330] sm:$0xff]
    %v6063 = vld [vmem:[%s7 + $0x1338] sm:$0xff]
    %v6064 = vld [vmem:[%s7 + $0x1340] sm:$0xff]
    %v6065 = vld [vmem:[%s7 + $0x1348] sm:$0xff]
    %v6066 = vld [vmem:[%s7 + $0x1350] sm:$0xff]
    %v6067 = vld [vmem:[%s7 + $0x1358] sm:$0xff]
    %v6068 = vld [vmem:[%s7 + $0x1360] sm:$0xff]
    %v6069 = vld [vmem:[%s7 + $0x1368] sm:$0xff]
    %v6070 = vld [vmem:[%s7 + $0x1370] sm:$0xff]
    %v6071 = vld [vmem:[%s7 + $0x1378] sm:$0xff]
    %v6072 = vld [vmem:[%s7 + $0x1380] sm:$0xff]
    %v6073 = vld [vmem:[%s8] sm:$0x1f]
    %v6075 = vlaneseq
    %v6076 = vshrl.u32 %v6075, 7
    %v6077 = vsub.s32 0, %v6076
    %v6078 = vrot.slane %v6073, %v6077
    %v6079 = vlaneseq
    %v6080 = vshrl.u32 %v6079, 7
    %v6081 = vsub.s32 1, %v6080
    %v6082 = vrot.slane %v6073, %v6081
    %v6083 = vlaneseq
    %v6084 = vshrl.u32 %v6083, 7
    %v6085 = vsub.s32 2, %v6084
    %v6086 = vrot.slane %v6073, %v6085
    %v6087 = vlaneseq
    %v6088 = vshrl.u32 %v6087, 7
    %v6089 = vsub.s32 3, %v6088
    %v6090 = vrot.slane %v6073, %v6089
    %v6091 = vlaneseq
    %v6092 = vshrl.u32 %v6091, 7
    %v6093 = vsub.s32 4, %v6092
    %v6094 = vrot.slane %v6073, %v6093
    %v6101 = vsel %vm2106, %v5447, 0
    %6103 = vmatprep.subr.mxu0 %v5449
    %6104 = vmatpush1.msra.mxu0 %v5448
    %6105 = vmatprep.subr.mxu0 %v5454
    %6106 = vmatpush1.msra.mxu0 %v5453
    %6107 = vmatprep.subr.mxu0 %v5459
    %6108 = vmatpush1.msra.mxu0 %v5458
    %6109 = vmatprep.subr.mxu0 %v5464
    %6110 = vmatpush1.msra.mxu0 %v5463
    %6111 = vmatprep.subr.mxu0 %v5469
    %6112 = vmatpush1.msra.mxu0 %v5468
    %6113 = vmatprep.subr.mxu0 %v5474
    %6114 = vmatpush1.msra.mxu0 %v5473
    %6115 = vmatprep.subr.mxu0 %v5479
    %6116 = vmatpush1.msra.mxu0 %v5478
    %6117 = vmatprep.subr.mxu0 %v5484
    %6118 = vmatpush1.msra.mxu0 %v5483
    %6119 = vmatprep.subr.mxu0 %v5489
    %6120 = vmatpush1.msra.mxu0 %v5488
    %6121 = vmatprep.subr.mxu0 %v5494
    %6122 = vmatpush1.msra.mxu0 %v5493
    %6123 = vmatprep.subr.mxu0 %v5499
    %6124 = vmatpush1.msra.mxu0 %v5498
    %6125 = vmatprep.subr.mxu0 %v5504
    %6126 = vmatpush1.msra.mxu0 %v5503
    %6127 = vmatprep.subr.mxu0 %v5509
    %6128 = vmatpush1.msra.mxu0 %v5508
    %6129 = vmatprep.subr.mxu0 %v5514
    %6130 = vmatpush1.msra.mxu0 %v5513
    %6131 = vmatprep.subr.mxu0 %v5519
    %6132 = vmatpush1.msra.mxu0 %v5518
    %6133 = vmatprep.subr.mxu0 %v5524
    %6134 = vmatpush1.msra.mxu0 %v5523
    %6135 = vmatprep.subr.mxu0 %v5529
    %6136 = vmatpush1.msra.mxu0 %v5528
    %6137 = vmatprep.subr.mxu0 %v5534
    %6138 = vmatpush1.msra.mxu0 %v5533
    %6139 = vmatprep.subr.mxu0 %v5539
    %6140 = vmatpush1.msra.mxu0 %v5538
    %6141 = vmatprep.subr.mxu0 %v5544
    %6142 = vmatpush1.msra.mxu0 %v5543
    %6143 = vmatprep.subr.mxu0 %v5549
    %6144 = vmatpush1.msra.mxu0 %v5548
    %6145 = vmatprep.subr.mxu0 %v5554
    %6146 = vmatpush1.msra.mxu0 %v5553
    %6147 = vmatprep.subr.mxu0 %v5559
    %6148 = vmatpush1.msra.mxu0 %v5558
    %6149 = vmatprep.subr.mxu0 %v5564
    %6150 = vmatpush1.msra.mxu0 %v5563
    %6151 = vmatprep.subr.mxu0 %v5569
    %6152 = vmatpush1.msra.mxu0 %v5568
    %6153 = vmatprep.subr.mxu0 %v5574
    %6154 = vmatpush1.msra.mxu0 %v5573
    %6155 = vmatprep.subr.mxu0 %v5579
    %6156 = vmatpush1.msra.mxu0 %v5578
    %6157 = vmatprep.subr.mxu0 %v5584
    %6158 = vmatpush1.msra.mxu0 %v5583
    %6159 = vmatprep.subr.mxu0 %v5589
    %6160 = vmatpush1.msra.mxu0 %v5588
    %6161 = vmatprep.subr.mxu0 %v5594
    %6162 = vmatpush1.msra.mxu0 %v5593
    %6163 = vmatprep.subr.mxu0 %v5599
    %6164 = vmatpush1.msra.mxu0 %v5598
    %6165 = vmatprep.subr.mxu0 %v5604
    %6166 = vmatpush1.msra.mxu0 %v5603
    %6167 = vmatprep.mubr.f32.mxu0 %v5441
    %6168 = vmatmul.mubr.f32.gmra.mrb[0].mxu0 %v5440
    %v6169 = vpop.f32.mrb[0].mxu0
    %v6170 = vadd.f32 %v6078, %v6169
    %v6171 = vpop.f32.mrb[0].mxu0
    %v6172 = vadd.f32 %v6082, %v6171
    %6173 = vdwg.mxu0
    %6174 = vmatprep.subr.mxu0 %v5609
    %6175 = vmatpush1.msra.mxu0 %v5608
    %6176 = vmatprep.subr.mxu0 %v5614
    %6177 = vmatpush1.msra.mxu0 %v5613
    %6178 = vmatprep.subr.mxu0 %v5619
    %6179 = vmatpush1.msra.mxu0 %v5618
    %6180 = vmatprep.subr.mxu0 %v5624
    %6181 = vmatpush1.msra.mxu0 %v5623
    %6182 = vmatprep.subr.mxu0 %v5629
    %6183 = vmatpush1.msra.mxu0 %v5628
    %6184 = vmatprep.subr.mxu0 %v5634
    %6185 = vmatpush1.msra.mxu0 %v5633
    %6186 = vmatprep.subr.mxu0 %v5639
    %6187 = vmatpush1.msra.mxu0 %v5638
    %6188 = vmatprep.subr.mxu0 %v5644
    %6189 = vmatpush1.msra.mxu0 %v5643
    %6190 = vmatprep.subr.mxu0 %v5649
    %6191 = vmatpush1.msra.mxu0 %v5648
    %6192 = vmatprep.subr.mxu0 %v5654
    %6193 = vmatpush1.msra.mxu0 %v5653
    %6194 = vmatprep.subr.mxu0 %v5659
    %6195 = vmatpush1.msra.mxu0 %v5658
    %6196 = vmatprep.subr.mxu0 %v5664
    %6197 = vmatpush1.msra.mxu0 %v5663
    %6198 = vmatprep.subr.mxu0 %v5669
    %6199 = vmatpush1.msra.mxu0 %v5668
    %6200 = vmatprep.subr.mxu0 %v5674
    %6201 = vmatpush1.msra.mxu0 %v5673
    %6202 = vmatprep.subr.mxu0 %v5679
    %6203 = vmatpush1.msra.mxu0 %v5678
    %6204 = vmatprep.subr.mxu0 %v5684
    %6205 = vmatpush1.msra.mxu0 %v5683
    %6206 = vmatprep.subr.mxu0 %v5689
    %6207 = vmatpush1.msra.mxu0 %v5688
    %6208 = vmatprep.subr.mxu0 %v5694
    %6209 = vmatpush1.msra.mxu0 %v5693
    %6210 = vmatprep.subr.mxu0 %v5699
    %6211 = vmatpush1.msra.mxu0 %v5698
    %6212 = vmatprep.subr.mxu0 %v5704
    %6213 = vmatpush1.msra.mxu0 %v5703
    %6214 = vmatprep.subr.mxu0 %v5709
    %6215 = vmatpush1.msra.mxu0 %v5708
    %6216 = vmatprep.subr.mxu0 %v5714
    %6217 = vmatpush1.msra.mxu0 %v5713
    %6218 = vmatprep.subr.mxu0 %v5719
    %6219 = vmatpush1.msra.mxu0 %v5718
    %6220 = vmatprep.subr.mxu0 %v5724
    %6221 = vmatpush1.msra.mxu0 %v5723
    %6222 = vmatprep.subr.mxu0 %v5729
    %6223 = vmatpush1.msra.mxu0 %v5728
    %6224 = vmatprep.subr.mxu0 %v5734
    %6225 = vmatpush1.msra.mxu0 %v5733
    %6226 = vmatprep.subr.mxu0 %v5739
    %6227 = vmatpush1.msra.mxu0 %v5738
    %6228 = vmatprep.subr.mxu0 %v5744
    %6229 = vmatpush1.msra.mxu0 %v5743
    %6230 = vmatprep.subr.mxu0 %v5749
    %6231 = vmatpush1.msra.mxu0 %v5748
    %6232 = vmatprep.subr.mxu0 %v5754
    %6233 = vmatpush1.msra.mxu0 %v5753
    %6234 = vmatprep.subr.mxu0 %v5759
    %6235 = vmatpush1.msra.mxu0 %v5758
    %6236 = vmatprep.subr.mxu0 %v5764
    %6237 = vmatpush1.msra.mxu0 %v5763
    %6238 = vmatprep.mubr.f32.mxu0 %v5443
    %6239 = vmatmul.mubr.f32.gmra.mrb[0].mxu0 %v5442
    %v6240 = vpop.f32.mrb[0].mxu0
    %v6241 = vadd.f32 %v6170, %v6240
    %v6242 = vpop.f32.mrb[0].mxu0
    %v6243 = vadd.f32 %v6172, %v6242
    %6244 = vdwg.mxu0
    %6245 = vmatprep.subr.mxu0 %v5769
    %6246 = vmatpush1.msra.mxu0 %v5768
    %6247 = vmatprep.subr.mxu0 %v5774
    %6248 = vmatpush1.msra.mxu0 %v5773
    %6249 = vmatprep.subr.mxu0 %v5779
    %6250 = vmatpush1.msra.mxu0 %v5778
    %6251 = vmatprep.subr.mxu0 %v5784
    %6252 = vmatpush1.msra.mxu0 %v5783
    %6253 = vmatprep.subr.mxu0 %v5789
    %6254 = vmatpush1.msra.mxu0 %v5788
    %6255 = vmatprep.subr.mxu0 %v5794
    %6256 = vmatpush1.msra.mxu0 %v5793
    %6257 = vmatprep.subr.mxu0 %v5799
    %6258 = vmatpush1.msra.mxu0 %v5798
    %6259 = vmatprep.subr.mxu0 %v5804
    %6260 = vmatpush1.msra.mxu0 %v5803
    %6261 = vmatprep.subr.mxu0 %v5809
    %6262 = vmatpush1.msra.mxu0 %v5808
    %6263 = vmatprep.subr.mxu0 %v5814
    %6264 = vmatpush1.msra.mxu0 %v5813
    %6265 = vmatprep.subr.mxu0 %v5819
    %6266 = vmatpush1.msra.mxu0 %v5818
    %6267 = vmatprep.subr.mxu0 %v5824
    %6268 = vmatpush1.msra.mxu0 %v5823
    %6269 = vmatprep.subr.mxu0 %v5829
    %6270 = vmatpush1.msra.mxu0 %v5828
    %6271 = vmatprep.subr.mxu0 %v5834
    %6272 = vmatpush1.msra.mxu0 %v5833
    %6273 = vmatprep.subr.mxu0 %v5839
    %6274 = vmatpush1.msra.mxu0 %v5838
    %6275 = vmatprep.subr.mxu0 %v5844
    %6276 = vmatpush1.msra.mxu0 %v5843
    %6277 = vmatprep.subr.mxu0 %v5849
    %6278 = vmatpush1.msra.mxu0 %v5848
    %6279 = vmatprep.subr.mxu0 %v5854
    %6280 = vmatpush1.msra.mxu0 %v5853
    %6281 = vmatprep.subr.mxu0 %v5859
    %6282 = vmatpush1.msra.mxu0 %v5858
    %6283 = vmatprep.subr.mxu0 %v5864
    %6284 = vmatpush1.msra.mxu0 %v5863
    %6285 = vmatprep.subr.mxu0 %v5869
    %6286 = vmatpush1.msra.mxu0 %v5868
    %6287 = vmatprep.subr.mxu0 %v5874
    %6288 = vmatpush1.msra.mxu0 %v5873
    %6289 = vmatprep.subr.mxu0 %v5879
    %6290 = vmatpush1.msra.mxu0 %v5878
    %6291 = vmatprep.subr.mxu0 %v5884
    %6292 = vmatpush1.msra.mxu0 %v5883
    %6293 = vmatprep.subr.mxu0 %v5889
    %6294 = vmatpush1.msra.mxu0 %v5888
    %6295 = vmatprep.subr.mxu0 %v5894
    %6296 = vmatpush1.msra.mxu0 %v5893
    %6297 = vmatprep.subr.mxu0 %v5899
    %6298 = vmatpush1.msra.mxu0 %v5898
    %6299 = vmatprep.subr.mxu0 %v5904
    %6300 = vmatpush1.msra.mxu0 %v5903
    %6301 = vmatprep.subr.mxu0 %v5909
    %6302 = vmatpush1.msra.mxu0 %v5908
    %6303 = vmatprep.subr.mxu0 %v5914
    %6304 = vmatpush1.msra.mxu0 %v5913
    %6305 = vmatprep.subr.mxu0 %v5919
    %6306 = vmatpush1.msra.mxu0 %v5918
    %6307 = vmatprep.subr.mxu0 %v5924
    %6308 = vmatpush1.msra.mxu0 %v5923
    %6309 = vmatprep.mubr.f32.mxu0 %v5445
    %6310 = vmatmul.mubr.f32.gmra.mrb[0].mxu0 %v5444
    %v6311 = vpop.f32.mrb[0].mxu0
    %v6312 = vadd.f32 %v6241, %v6311
    %v6313 = vpop.f32.mrb[0].mxu0
    %v6314 = vadd.f32 %v6243, %v6313
    %6315 = vdwg.mxu0
    %6316 = vmatprep.subr.mxu0 %v5929
    %6317 = vmatpush1.msra.mxu0 %v5928
    %6318 = vmatprep.subr.mxu0 %v5934
    %6319 = vmatpush1.msra.mxu0 %v5933
    %6320 = vmatprep.subr.mxu0 %v5939
    %6321 = vmatpush1.msra.mxu0 %v5938
    %6322 = vmatprep.subr.mxu0 %v5944
    %6323 = vmatpush1.msra.mxu0 %v5943
    %6324 = vmatprep.subr.mxu0 %v5949
    %6325 = vmatpush1.msra.mxu0 %v5948
    %6326 = vmatprep.subr.mxu0 %v5954
    %6327 = vmatpush1.msra.mxu0 %v5953
    %6328 = vmatprep.subr.mxu0 %v5959
    %6329 = vmatpush1.msra.mxu0 %v5958
    %6330 = vmatprep.subr.mxu0 %v5964
    %6331 = vmatpush1.msra.mxu0 %v5963
    %6332 = vmatprep.subr.mxu0 %v5969
    %6333 = vmatpush1.msra.mxu0 %v5968
    %6334 = vmatprep.subr.mxu0 %v5974
    %6335 = vmatpush1.msra.mxu0 %v5973
    %6336 = vmatprep.subr.mxu0 %v5979
    %6337 = vmatpush1.msra.mxu0 %v5978
    %6338 = vmatprep.subr.mxu0 %v5984
    %6339 = vmatpush1.msra.mxu0 %v5983
    %6340 = vmatprep.subr.mxu0 %v5989
    %6341 = vmatpush1.msra.mxu0 %v5988
    %6342 = vmatprep.subr.mxu0 %v5994
    %6343 = vmatpush1.msra.mxu0 %v5993
    %6344 = vmatprep.subr.mxu0 %v5999
    %6345 = vmatpush1.msra.mxu0 %v5998
    %6346 = vmatprep.subr.mxu0 %v6004
    %6347 = vmatpush1.msra.mxu0 %v6003
    %6348 = vmatprep.subr.mxu0 %v6009
    %6349 = vmatpush1.msra.mxu0 %v6008
    %6350 = vmatprep.subr.mxu0 %v6014
    %6351 = vmatpush1.msra.mxu0 %v6013
    %6352 = vmatprep.subr.mxu0 %v6019
    %6353 = vmatpush1.msra.mxu0 %v6018
    %6354 = vmatprep.subr.mxu0 %v6024
    %6355 = vmatpush1.msra.mxu0 %v6023
    %6356 = vmatprep.subr.mxu0 %v6029
    %6357 = vmatpush1.msra.mxu0 %v6028
    %6358 = vmatprep.subr.mxu0 %v6034
    %6359 = vmatpush1.msra.mxu0 %v6033
    %6360 = vmatprep.subr.mxu0 %v6039
    %6361 = vmatpush1.msra.mxu0 %v6038
    %6362 = vmatprep.subr.mxu0 %v6044
    %6363 = vmatpush1.msra.mxu0 %v6043
    %6364 = vmatprep.subr.mxu0 %v6049
    %6365 = vmatpush1.msra.mxu0 %v6048
    %6366 = vmatprep.subr.mxu0 %v6054
    %6367 = vmatpush1.msra.mxu0 %v6053
    %6368 = vmatprep.subr.mxu0 %v6059
    %6369 = vmatpush1.msra.mxu0 %v6058
    %6370 = vmatprep.subr.mxu0 %v6064
    %6371 = vmatpush1.msra.mxu0 %v6063
    %6372 = vmatprep.subr.mxu0 %v6069
    %6373 = vmatpush1.msra.mxu0 %v6068
    %6374 = vmatprep.subr.mxu0 0.0
    %6375 = vmatpush1.msra.mxu0 0.0
    %6376 = vmatprep.subr.mxu0 0.0
    %6377 = vmatpush1.msra.mxu0 0.0
    %6378 = vmatprep.subr.mxu0 0.0
    %6379 = vmatpush1.msra.mxu0 0.0
    %6380 = vmatprep.mubr.f32.mxu0 %v6101
    %6381 = vmatmul.mubr.f32.gmra.mrb[0].mxu0 %v5446
    %v6382 = vpop.f32.mrb[0].mxu0
    %v6383 = vadd.f32 %v6312, %v6382
    %v6384 = vpop.f32.mrb[0].mxu0
    %v6385 = vadd.f32 %v6314, %v6384
    %6386 = vdwg.mxu0
    %6387 = vmatprep.subr.mxu0 %v5451
    %6388 = vmatpush1.msra.mxu0 %v5450
    %6389 = vmatprep.subr.mxu0 %v5456
    %6390 = vmatpush1.msra.mxu0 %v5455
    %6391 = vmatprep.subr.mxu0 %v5461
    %6392 = vmatpush1.msra.mxu0 %v5460
    %6393 = vmatprep.subr.mxu0 %v5466
    %6394 = vmatpush1.msra.mxu0 %v5465
    %6395 = vmatprep.subr.mxu0 %v5471
    %6396 = vmatpush1.msra.mxu0 %v5470
    %6397 = vmatprep.subr.mxu0 %v5476
    %6398 = vmatpush1.msra.mxu0 %v5475
    %6399 = vmatprep.subr.mxu0 %v5481
    %6400 = vmatpush1.msra.mxu0 %v5480
    %6401 = vmatprep.subr.mxu0 %v5486
    %6402 = vmatpush1.msra.mxu0 %v5485
    %6403 = vmatprep.subr.mxu0 %v5491
    %6404 = vmatpush1.msra.mxu0 %v5490
    %6405 = vmatprep.subr.mxu0 %v5496
    %6406 = vmatpush1.msra.mxu0 %v5495
    %6407 = vmatprep.subr.mxu0 %v5501
    %6408 = vmatpush1.msra.mxu0 %v5500
    %6409 = vmatprep.subr.mxu0 %v5506
    %6410 = vmatpush1.msra.mxu0 %v5505
    %6411 = vmatprep.subr.mxu0 %v5511
    %6412 = vmatpush1.msra.mxu0 %v5510
    %6413 = vmatprep.subr.mxu0 %v5516
    %6414 = vmatpush1.msra.mxu0 %v5515
    %6415 = vmatprep.subr.mxu0 %v5521
    %6416 = vmatpush1.msra.mxu0 %v5520
    %6417 = vmatprep.subr.mxu0 %v5526
    %6418 = vmatpush1.msra.mxu0 %v5525
    %6419 = vmatprep.subr.mxu0 %v5531
    %6420 = vmatpush1.msra.mxu0 %v5530
    %6421 = vmatprep.subr.mxu0 %v5536
    %6422 = vmatpush1.msra.mxu0 %v5535
    %6423 = vmatprep.subr.mxu0 %v5541
    %6424 = vmatpush1.msra.mxu0 %v5540
    %6425 = vmatprep.subr.mxu0 %v5546
    %6426 = vmatpush1.msra.mxu0 %v5545
    %6427 = vmatprep.subr.mxu0 %v5551
    %6428 = vmatpush1.msra.mxu0 %v5550
    %6429 = vmatprep.subr.mxu0 %v5556
    %6430 = vmatpush1.msra.mxu0 %v5555
    %6431 = vmatprep.subr.mxu0 %v5561
    %6432 = vmatpush1.msra.mxu0 %v5560
    %6433 = vmatprep.subr.mxu0 %v5566
    %6434 = vmatpush1.msra.mxu0 %v5565
    %6435 = vmatprep.subr.mxu0 %v5571
    %6436 = vmatpush1.msra.mxu0 %v5570
    %6437 = vmatprep.subr.mxu0 %v5576
    %6438 = vmatpush1.msra.mxu0 %v5575
    %6439 = vmatprep.subr.mxu0 %v5581
    %6440 = vmatpush1.msra.mxu0 %v5580
    %6441 = vmatprep.subr.mxu0 %v5586
    %6442 = vmatpush1.msra.mxu0 %v5585
    %6443 = vmatprep.subr.mxu0 %v5591
    %6444 = vmatpush1.msra.mxu0 %v5590
    %6445 = vmatprep.subr.mxu0 %v5596
    %6446 = vmatpush1.msra.mxu0 %v5595
    %6447 = vmatprep.subr.mxu0 %v5601
    %6448 = vmatpush1.msra.mxu0 %v5600
    %6449 = vmatprep.subr.mxu0 %v5606
    %6450 = vmatpush1.msra.mxu0 %v5605
    %6451 = vmatprep.mubr.f32.mxu0 %v5441
    %6452 = vmatmul.mubr.f32.gmra.mrb[0].mxu0 %v5440
    %v6453 = vpop.f32.mrb[0].mxu0
    %v6454 = vadd.f32 %v6086, %v6453
    %v6455 = vpop.f32.mrb[0].mxu0
    %v6456 = vadd.f32 %v6090, %v6455
    %6457 = vdwg.mxu0
    %6458 = vmatprep.subr.mxu0 %v5611
    %6459 = vmatpush1.msra.mxu0 %v5610
    %6460 = vmatprep.subr.mxu0 %v5616
    %6461 = vmatpush1.msra.mxu0 %v5615
    %6462 = vmatprep.subr.mxu0 %v5621
    %6463 = vmatpush1.msra.mxu0 %v5620
    %6464 = vmatprep.subr.mxu0 %v5626
    %6465 = vmatpush1.msra.mxu0 %v5625
    %6466 = vmatprep.subr.mxu0 %v5631
    %6467 = vmatpush1.msra.mxu0 %v5630
    %6468 = vmatprep.subr.mxu0 %v5636
    %6469 = vmatpush1.msra.mxu0 %v5635
    %6470 = vmatprep.subr.mxu0 %v5641
    %6471 = vmatpush1.msra.mxu0 %v5640
    %6472 = vmatprep.subr.mxu0 %v5646
    %6473 = vmatpush1.msra.mxu0 %v5645
    %6474 = vmatprep.subr.mxu0 %v5651
    %6475 = vmatpush1.msra.mxu0 %v5650
    %6476 = vmatprep.subr.mxu0 %v5656
    %6477 = vmatpush1.msra.mxu0 %v5655
    %6478 = vmatprep.subr.mxu0 %v5661
    %6479 = vmatpush1.msra.mxu0 %v5660
    %6480 = vmatprep.subr.mxu0 %v5666
    %6481 = vmatpush1.msra.mxu0 %v5665
    %6482 = vmatprep.subr.mxu0 %v5671
    %6483 = vmatpush1.msra.mxu0 %v5670
    %6484 = vmatprep.subr.mxu0 %v5676
    %6485 = vmatpush1.msra.mxu0 %v5675
    %6486 = vmatprep.subr.mxu0 %v5681
    %6487 = vmatpush1.msra.mxu0 %v5680
    %6488 = vmatprep.subr.mxu0 %v5686
    %6489 = vmatpush1.msra.mxu0 %v5685
    %6490 = vmatprep.subr.mxu0 %v5691
    %6491 = vmatpush1.msra.mxu0 %v5690
    %6492 = vmatprep.subr.mxu0 %v5696
    %6493 = vmatpush1.msra.mxu0 %v5695
    %6494 = vmatprep.subr.mxu0 %v5701
    %6495 = vmatpush1.msra.mxu0 %v5700
    %6496 = vmatprep.subr.mxu0 %v5706
    %6497 = vmatpush1.msra.mxu0 %v5705
    %6498 = vmatprep.subr.mxu0 %v5711
    %6499 = vmatpush1.msra.mxu0 %v5710
    %6500 = vmatprep.subr.mxu0 %v5716
    %6501 = vmatpush1.msra.mxu0 %v5715
    %6502 = vmatprep.subr.mxu0 %v5721
    %6503 = vmatpush1.msra.mxu0 %v5720
    %6504 = vmatprep.subr.mxu0 %v5726
    %6505 = vmatpush1.msra.mxu0 %v5725
    %6506 = vmatprep.subr.mxu0 %v5731
    %6507 = vmatpush1.msra.mxu0 %v5730
    %6508 = vmatprep.subr.mxu0 %v5736
    %6509 = vmatpush1.msra.mxu0 %v5735
    %6510 = vmatprep.subr.mxu0 %v5741
    %6511 = vmatpush1.msra.mxu0 %v5740
    %6512 = vmatprep.subr.mxu0 %v5746
    %6513 = vmatpush1.msra.mxu0 %v5745
    %6514 = vmatprep.subr.mxu0 %v5751
    %6515 = vmatpush1.msra.mxu0 %v5750
    %6516 = vmatprep.subr.mxu0 %v5756
    %6517 = vmatpush1.msra.mxu0 %v5755
    %6518 = vmatprep.subr.mxu0 %v5761
    %6519 = vmatpush1.msra.mxu0 %v5760
    %6520 = vmatprep.subr.mxu0 %v5766
    %6521 = vmatpush1.msra.mxu0 %v5765
    %6522 = vmatprep.mubr.f32.mxu0 %v5443
    %6523 = vmatmul.mubr.f32.gmra.mrb[0].mxu0 %v5442
    %v6524 = vpop.f32.mrb[0].mxu0
    %v6525 = vadd.f32 %v6454, %v6524
    %v6526 = vpop.f32.mrb[0].mxu0
    %v6527 = vadd.f32 %v6456, %v6526
    %6528 = vdwg.mxu0
    %6529 = vmatprep.subr.mxu0 %v5771
    %6530 = vmatpush1.msra.mxu0 %v5770
    %6531 = vmatprep.subr.mxu0 %v5776
    %6532 = vmatpush1.msra.mxu0 %v5775
    %6533 = vmatprep.subr.mxu0 %v5781
    %6534 = vmatpush1.msra.mxu0 %v5780
    %6535 = vmatprep.subr.mxu0 %v5786
    %6536 = vmatpush1.msra.mxu0 %v5785
    %6537 = vmatprep.subr.mxu0 %v5791
    %6538 = vmatpush1.msra.mxu0 %v5790
    %6539 = vmatprep.subr.mxu0 %v5796
    %6540 = vmatpush1.msra.mxu0 %v5795
    %6541 = vmatprep.subr.mxu0 %v5801
    %6542 = vmatpush1.msra.mxu0 %v5800
    %6543 = vmatprep.subr.mxu0 %v5806
    %6544 = vmatpush1.msra.mxu0 %v5805
    %6545 = vmatprep.subr.mxu0 %v5811
    %6546 = vmatpush1.msra.mxu0 %v5810
    %6547 = vmatprep.subr.mxu0 %v5816
    %6548 = vmatpush1.msra.mxu0 %v5815
    %6549 = vmatprep.subr.mxu0 %v5821
    %6550 = vmatpush1.msra.mxu0 %v5820
    %6551 = vmatprep.subr.mxu0 %v5826
    %6552 = vmatpush1.msra.mxu0 %v5825
    %6553 = vmatprep.subr.mxu0 %v5831
    %6554 = vmatpush1.msra.mxu0 %v5830
    %6555 = vmatprep.subr.mxu0 %v5836
    %6556 = vmatpush1.msra.mxu0 %v5835
    %6557 = vmatprep.subr.mxu0 %v5841
    %6558 = vmatpush1.msra.mxu0 %v5840
    %6559 = vmatprep.subr.mxu0 %v5846
    %6560 = vmatpush1.msra.mxu0 %v5845
    %6561 = vmatprep.subr.mxu0 %v5851
    %6562 = vmatpush1.msra.mxu0 %v5850
    %6563 = vmatprep.subr.mxu0 %v5856
    %6564 = vmatpush1.msra.mxu0 %v5855
    %6565 = vmatprep.subr.mxu0 %v5861
    %6566 = vmatpush1.msra.mxu0 %v5860
    %6567 = vmatprep.subr.mxu0 %v5866
    %6568 = vmatpush1.msra.mxu0 %v5865
    %6569 = vmatprep.subr.mxu0 %v5871
    %6570 = vmatpush1.msra.mxu0 %v5870
    %6571 = vmatprep.subr.mxu0 %v5876
    %6572 = vmatpush1.msra.mxu0 %v5875
    %6573 = vmatprep.subr.mxu0 %v5881
    %6574 = vmatpush1.msra.mxu0 %v5880
    %6575 = vmatprep.subr.mxu0 %v5886
    %6576 = vmatpush1.msra.mxu0 %v5885
    %6577 = vmatprep.subr.mxu0 %v5891
    %6578 = vmatpush1.msra.mxu0 %v5890
    %6579 = vmatprep.subr.mxu0 %v5896
    %6580 = vmatpush1.msra.mxu0 %v5895
    %6581 = vmatprep.subr.mxu0 %v5901
    %6582 = vmatpush1.msra.mxu0 %v5900
    %6583 = vmatprep.subr.mxu0 %v5906
    %6584 = vmatpush1.msra.mxu0 %v5905
    %6585 = vmatprep.subr.mxu0 %v5911
    %6586 = vmatpush1.msra.mxu0 %v5910
    %6587 = vmatprep.subr.mxu0 %v5916
    %6588 = vmatpush1.msra.mxu0 %v5915
    %6589 = vmatprep.subr.mxu0 %v5921
    %6590 = vmatpush1.msra.mxu0 %v5920
    %6591 = vmatprep.subr.mxu0 %v5926
    %6592 = vmatpush1.msra.mxu0 %v5925
    %6593 = vmatprep.mubr.f32.mxu0 %v5445
    %6594 = vmatmul.mubr.f32.gmra.mrb[0].mxu0 %v5444
    %v6595 = vpop.f32.mrb[0].mxu0
    %v6596 = vadd.f32 %v6525, %v6595
    %v6597 = vpop.f32.mrb[0].mxu0
    %v6598 = vadd.f32 %v6527, %v6597
    %6599 = vdwg.mxu0
    %6600 = vmatprep.subr.mxu0 %v5931
    %6601 = vmatpush1.msra.mxu0 %v5930
    %6602 = vmatprep.subr.mxu0 %v5936
    %6603 = vmatpush1.msra.mxu0 %v5935
    %6604 = vmatprep.subr.mxu0 %v5941
    %6605 = vmatpush1.msra.mxu0 %v5940
    %6606 = vmatprep.subr.mxu0 %v5946
    %6607 = vmatpush1.msra.mxu0 %v5945
    %6608 = vmatprep.subr.mxu0 %v5951
    %6609 = vmatpush1.msra.mxu0 %v5950
    %6610 = vmatprep.subr.mxu0 %v5956
    %6611 = vmatpush1.msra.mxu0 %v5955
    %6612 = vmatprep.subr.mxu0 %v5961
    %6613 = vmatpush1.msra.mxu0 %v5960
    %6614 = vmatprep.subr.mxu0 %v5966
    %6615 = vmatpush1.msra.mxu0 %v5965
    %6616 = vmatprep.subr.mxu0 %v5971
    %6617 = vmatpush1.msra.mxu0 %v5970
    %6618 = vmatprep.subr.mxu0 %v5976
    %6619 = vmatpush1.msra.mxu0 %v5975
    %6620 = vmatprep.subr.mxu0 %v5981
    %6621 = vmatpush1.msra.mxu0 %v5980
    %6622 = vmatprep.subr.mxu0 %v5986
    %6623 = vmatpush1.msra.mxu0 %v5985
    %6624 = vmatprep.subr.mxu0 %v5991
    %6625 = vmatpush1.msra.mxu0 %v5990
    %6626 = vmatprep.subr.mxu0 %v5996
    %6627 = vmatpush1.msra.mxu0 %v5995
    %6628 = vmatprep.subr.mxu0 %v6001
    %6629 = vmatpush1.msra.mxu0 %v6000
    %6630 = vmatprep.subr.mxu0 %v6006
    %6631 = vmatpush1.msra.mxu0 %v6005
    %6632 = vmatprep.subr.mxu0 %v6011
    %6633 = vmatpush1.msra.mxu0 %v6010
    %6634 = vmatprep.subr.mxu0 %v6016
    %6635 = vmatpush1.msra.mxu0 %v6015
    %6636 = vmatprep.subr.mxu0 %v6021
    %6637 = vmatpush1.msra.mxu0 %v6020
    %6638 = vmatprep.subr.mxu0 %v6026
    %6639 = vmatpush1.msra.mxu0 %v6025
    %6640 = vmatprep.subr.mxu0 %v6031
    %6641 = vmatpush1.msra.mxu0 %v6030
    %6642 = vmatprep.subr.mxu0 %v6036
    %6643 = vmatpush1.msra.mxu0 %v6035
    %6644 = vmatprep.subr.mxu0 %v6041
    %6645 = vmatpush1.msra.mxu0 %v6040
    %6646 = vmatprep.subr.mxu0 %v6046
    %6647 = vmatpush1.msra.mxu0 %v6045
    %6648 = vmatprep.subr.mxu0 %v6051
    %6649 = vmatpush1.msra.mxu0 %v6050
    %6650 = vmatprep.subr.mxu0 %v6056
    %6651 = vmatpush1.msra.mxu0 %v6055
    %6652 = vmatprep.subr.mxu0 %v6061
    %6653 = vmatpush1.msra.mxu0 %v6060
    %6654 = vmatprep.subr.mxu0 %v6066
    %6655 = vmatpush1.msra.mxu0 %v6065
    %6656 = vmatprep.subr.mxu0 %v6071
    %6657 = vmatpush1.msra.mxu0 %v6070
    %6658 = vmatprep.subr.mxu0 0.0
    %6659 = vmatpush1.msra.mxu0 0.0
    %6660 = vmatprep.subr.mxu0 0.0
    %6661 = vmatpush1.msra.mxu0 0.0
    %6662 = vmatprep.subr.mxu0 0.0
    %6663 = vmatpush1.msra.mxu0 0.0
    %6664 = vmatprep.mubr.f32.mxu0 %v6101
    %6665 = vmatmul.mubr.f32.gmra.mrb[0].mxu0 %v5446
    %v6666 = vpop.f32.mrb[0].mxu0
    %v6667 = vadd.f32 %v6596, %v6666
    %v6668 = vpop.f32.mrb[0].mxu0
    %v6669 = vadd.f32 %v6598, %v6668
    %6670 = vdwg.mxu0
    %6671 = vmatprep.subr.mxu0 0.0
    %6672 = vmatpush1.msra.mxu0 %v5452
    %6673 = vmatprep.subr.mxu0 0.0
    %6674 = vmatpush1.msra.mxu0 %v5457
    %6675 = vmatprep.subr.mxu0 0.0
    %6676 = vmatpush1.msra.mxu0 %v5462
    %6677 = vmatprep.subr.mxu0 0.0
    %6678 = vmatpush1.msra.mxu0 %v5467
    %6679 = vmatprep.subr.mxu0 0.0
    %6680 = vmatpush1.msra.mxu0 %v5472
    %6681 = vmatprep.subr.mxu0 0.0
    %6682 = vmatpush1.msra.mxu0 %v5477
    %6683 = vmatprep.subr.mxu0 0.0
    %6684 = vmatpush1.msra.mxu0 %v5482
    %6685 = vmatprep.subr.mxu0 0.0
    %6686 = vmatpush1.msra.mxu0 %v5487
    %6687 = vmatprep.subr.mxu0 0.0
    %6688 = vmatpush1.msra.mxu0 %v5492
    %6689 = vmatprep.subr.mxu0 0.0
    %6690 = vmatpush1.msra.mxu0 %v5497
    %6691 = vmatprep.subr.mxu0 0.0
    %6692 = vmatpush1.msra.mxu0 %v5502
    %6693 = vmatprep.subr.mxu0 0.0
    %6694 = vmatpush1.msra.mxu0 %v5507
    %6695 = vmatprep.subr.mxu0 0.0
    %6696 = vmatpush1.msra.mxu0 %v5512
    %6697 = vmatprep.subr.mxu0 0.0
    %6698 = vmatpush1.msra.mxu0 %v5517
    %6699 = vmatprep.subr.mxu0 0.0
    %6700 = vmatpush1.msra.mxu0 %v5522
    %6701 = vmatprep.subr.mxu0 0.0
    %6702 = vmatpush1.msra.mxu0 %v5527
    %6703 = vmatprep.subr.mxu0 0.0
    %6704 = vmatpush1.msra.mxu0 %v5532
    %6705 = vmatprep.subr.mxu0 0.0
    %6706 = vmatpush1.msra.mxu0 %v5537
    %6707 = vmatprep.subr.mxu0 0.0
    %6708 = vmatpush1.msra.mxu0 %v5542
    %6709 = vmatprep.subr.mxu0 0.0
    %6710 = vmatpush1.msra.mxu0 %v5547
    %6711 = vmatprep.subr.mxu0 0.0
    %6712 = vmatpush1.msra.mxu0 %v5552
    %6713 = vmatprep.subr.mxu0 0.0
    %6714 = vmatpush1.msra.mxu0 %v5557
    %6715 = vmatprep.subr.mxu0 0.0
    %6716 = vmatpush1.msra.mxu0 %v5562
    %6717 = vmatprep.subr.mxu0 0.0
    %6718 = vmatpush1.msra.mxu0 %v5567
    %6719 = vmatprep.subr.mxu0 0.0
    %6720 = vmatpush1.msra.mxu0 %v5572
    %6721 = vmatprep.subr.mxu0 0.0
    %6722 = vmatpush1.msra.mxu0 %v5577
    %6723 = vmatprep.subr.mxu0 0.0
    %6724 = vmatpush1.msra.mxu0 %v5582
    %6725 = vmatprep.subr.mxu0 0.0
    %6726 = vmatpush1.msra.mxu0 %v5587
    %6727 = vmatprep.subr.mxu0 0.0
    %6728 = vmatpush1.msra.mxu0 %v5592
    %6729 = vmatprep.subr.mxu0 0.0
    %6730 = vmatpush1.msra.mxu0 %v5597
    %6731 = vmatprep.subr.mxu0 0.0
    %6732 = vmatpush1.msra.mxu0 %v5602
    %6733 = vmatprep.subr.mxu0 0.0
    %6734 = vmatpush1.msra.mxu0 %v5607
    %6735 = vmatprep.mubr.f32.mxu0 %v5441
    %6736 = vmatmul.mubr.f32.gmra.mrb[0].mxu0 %v5440
    %v6737 = vpop.f32.mrb[0].mxu0
    %v6738 = vadd.f32 %v6094, %v6737
    %v6739 = vpop.f32.mrb[0].mxu0
    %6740 = vdwg.mxu0
    %6741 = vmatprep.subr.mxu0 0.0
    %6742 = vmatpush1.msra.mxu0 %v5612
    %6743 = vmatprep.subr.mxu0 0.0
    %6744 = vmatpush1.msra.mxu0 %v5617
    %6745 = vmatprep.subr.mxu0 0.0
    %6746 = vmatpush1.msra.mxu0 %v5622
    %6747 = vmatprep.subr.mxu0 0.0
    %6748 = vmatpush1.msra.mxu0 %v5627
    %6749 = vmatprep.subr.mxu0 0.0
    %6750 = vmatpush1.msra.mxu0 %v5632
    %6751 = vmatprep.subr.mxu0 0.0
    %6752 = vmatpush1.msra.mxu0 %v5637
    %6753 = vmatprep.subr.mxu0 0.0
    %6754 = vmatpush1.msra.mxu0 %v5642
    %6755 = vmatprep.subr.mxu0 0.0
    %6756 = vmatpush1.msra.mxu0 %v5647
    %6757 = vmatprep.subr.mxu0 0.0
    %6758 = vmatpush1.msra.mxu0 %v5652
    %6759 = vmatprep.subr.mxu0 0.0
    %6760 = vmatpush1.msra.mxu0 %v5657
    %6761 = vmatprep.subr.mxu0 0.0
    %6762 = vmatpush1.msra.mxu0 %v5662
    %6763 = vmatprep.subr.mxu0 0.0
    %6764 = vmatpush1.msra.mxu0 %v5667
    %6765 = vmatprep.subr.mxu0 0.0
    %6766 = vmatpush1.msra.mxu0 %v5672
    %6767 = vmatprep.subr.mxu0 0.0
    %6768 = vmatpush1.msra.mxu0 %v5677
    %6769 = vmatprep.subr.mxu0 0.0
    %6770 = vmatpush1.msra.mxu0 %v5682
    %6771 = vmatprep.subr.mxu0 0.0
    %6772 = vmatpush1.msra.mxu0 %v5687
    %6773 = vmatprep.subr.mxu0 0.0
    %6774 = vmatpush1.msra.mxu0 %v5692
    %6775 = vmatprep.subr.mxu0 0.0
    %6776 = vmatpush1.msra.mxu0 %v5697
    %6777 = vmatprep.subr.mxu0 0.0
    %6778 = vmatpush1.msra.mxu0 %v5702
    %6779 = vmatprep.subr.mxu0 0.0
    %6780 = vmatpush1.msra.mxu0 %v5707
    %6781 = vmatprep.subr.mxu0 0.0
    %6782 = vmatpush1.msra.mxu0 %v5712
    %6783 = vmatprep.subr.mxu0 0.0
    %6784 = vmatpush1.msra.mxu0 %v5717
    %6785 = vmatprep.subr.mxu0 0.0
    %6786 = vmatpush1.msra.mxu0 %v5722
    %6787 = vmatprep.subr.mxu0 0.0
    %6788 = vmatpush1.msra.mxu0 %v5727
    %6789 = vmatprep.subr.mxu0 0.0
    %6790 = vmatpush1.msra.mxu0 %v5732
    %6791 = vmatprep.subr.mxu0 0.0
    %6792 = vmatpush1.msra.mxu0 %v5737
    %6793 = vmatprep.subr.mxu0 0.0
    %6794 = vmatpush1.msra.mxu0 %v5742
    %6795 = vmatprep.subr.mxu0 0.0
    %6796 = vmatpush1.msra.mxu0 %v5747
    %6797 = vmatprep.subr.mxu0 0.0
    %6798 = vmatpush1.msra.mxu0 %v5752
    %6799 = vmatprep.subr.mxu0 0.0
    %6800 = vmatpush1.msra.mxu0 %v5757
    %6801 = vmatprep.subr.mxu0 0.0
    %6802 = vmatpush1.msra.mxu0 %v5762
    %6803 = vmatprep.subr.mxu0 0.0
    %6804 = vmatpush1.msra.mxu0 %v5767
    %6805 = vmatprep.mubr.f32.mxu0 %v5443
    %6806 = vmatmul.mubr.f32.gmra.mrb[0].mxu0 %v5442
    %v6807 = vpop.f32.mrb[0].mxu0
    %v6808 = vadd.f32 %v6738, %v6807
    %v6809 = vpop.f32.mrb[0].mxu0
    %6810 = vdwg.mxu0
    %6811 = vmatprep.subr.mxu0 0.0
    %6812 = vmatpush1.msra.mxu0 %v5772
    %6813 = vmatprep.subr.mxu0 0.0
    %6814 = vmatpush1.msra.mxu0 %v5777
    %6815 = vmatprep.subr.mxu0 0.0
    %6816 = vmatpush1.msra.mxu0 %v5782
    %6817 = vmatprep.subr.mxu0 0.0
    %6818 = vmatpush1.msra.mxu0 %v5787
    %6819 = vmatprep.subr.mxu0 0.0
    %6820 = vmatpush1.msra.mxu0 %v5792
    %6821 = vmatprep.subr.mxu0 0.0
    %6822 = vmatpush1.msra.mxu0 %v5797
    %6823 = vmatprep.subr.mxu0 0.0
    %6824 = vmatpush1.msra.mxu0 %v5802
    %6825 = vmatprep.subr.mxu0 0.0
    %6826 = vmatpush1.msra.mxu0 %v5807
    %6827 = vmatprep.subr.mxu0 0.0
    %6828 = vmatpush1.msra.mxu0 %v5812
    %6829 = vmatprep.subr.mxu0 0.0
    %6830 = vmatpush1.msra.mxu0 %v5817
    %6831 = vmatprep.subr.mxu0 0.0
    %6832 = vmatpush1.msra.mxu0 %v5822
    %6833 = vmatprep.subr.mxu0 0.0
    %6834 = vmatpush1.msra.mxu0 %v5827
    %6835 = vmatprep.subr.mxu0 0.0
    %6836 = vmatpush1.msra.mxu0 %v5832
    %6837 = vmatprep.subr.mxu0 0.0
    %6838 = vmatpush1.msra.mxu0 %v5837
    %6839 = vmatprep.subr.mxu0 0.0
    %6840 = vmatpush1.msra.mxu0 %v5842
    %6841 = vmatprep.subr.mxu0 0.0
    %6842 = vmatpush1.msra.mxu0 %v5847
    %6843 = vmatprep.subr.mxu0 0.0
    %6844 = vmatpush1.msra.mxu0 %v5852
    %6845 = vmatprep.subr.mxu0 0.0
    %6846 = vmatpush1.msra.mxu0 %v5857
    %6847 = vmatprep.subr.mxu0 0.0
    %6848 = vmatpush1.msra.mxu0 %v5862
    %6849 = vmatprep.subr.mxu0 0.0
    %6850 = vmatpush1.msra.mxu0 %v5867
    %6851 = vmatprep.subr.mxu0 0.0
    %6852 = vmatpush1.msra.mxu0 %v5872
    %6853 = vmatprep.subr.mxu0 0.0
    %6854 = vmatpush1.msra.mxu0 %v5877
    %6855 = vmatprep.subr.mxu0 0.0
    %6856 = vmatpush1.msra.mxu0 %v5882
    %6857 = vmatprep.subr.mxu0 0.0
    %6858 = vmatpush1.msra.mxu0 %v5887
    %6859 = vmatprep.subr.mxu0 0.0
    %6860 = vmatpush1.msra.mxu0 %v5892
    %6861 = vmatprep.subr.mxu0 0.0
    %6862 = vmatpush1.msra.mxu0 %v5897
    %6863 = vmatprep.subr.mxu0 0.0
    %6864 = vmatpush1.msra.mxu0 %v5902
    %6865 = vmatprep.subr.mxu0 0.0
    %6866 = vmatpush1.msra.mxu0 %v5907
    %6867 = vmatprep.subr.mxu0 0.0
    %6868 = vmatpush1.msra.mxu0 %v5912
    %6869 = vmatprep.subr.mxu0 0.0
    %6870 = vmatpush1.msra.mxu0 %v5917
    %6871 = vmatprep.subr.mxu0 0.0
    %6872 = vmatpush1.msra.mxu0 %v5922
    %6873 = vmatprep.subr.mxu0 0.0
    %6874 = vmatpush1.msra.mxu0 %v5927
    %6875 = vmatprep.mubr.f32.mxu0 %v5445
    %6876 = vmatmul.mubr.f32.gmra.mrb[0].mxu0 %v5444
    %v6877 = vpop.f32.mrb[0].mxu0
    %v6878 = vadd.f32 %v6808, %v6877
    %v6879 = vpop.f32.mrb[0].mxu0
    %6880 = vdwg.mxu0
    %6881 = vmatprep.subr.mxu0 0.0
    %6882 = vmatpush1.msra.mxu0 %v5932
    %6883 = vmatprep.subr.mxu0 0.0
    %6884 = vmatpush1.msra.mxu0 %v5937
    %6885 = vmatprep.subr.mxu0 0.0
    %6886 = vmatpush1.msra.mxu0 %v5942
    %6887 = vmatprep.subr.mxu0 0.0
    %6888 = vmatpush1.msra.mxu0 %v5947
    %6889 = vmatprep.subr.mxu0 0.0
    %6890 = vmatpush1.msra.mxu0 %v5952
    %6891 = vmatprep.subr.mxu0 0.0
    %6892 = vmatpush1.msra.mxu0 %v5957
    %6893 = vmatprep.subr.mxu0 0.0
    %6894 = vmatpush1.msra.mxu0 %v5962
    %6895 = vmatprep.subr.mxu0 0.0
    %6896 = vmatpush1.msra.mxu0 %v5967
    %6897 = vmatprep.subr.mxu0 0.0
    %6898 = vmatpush1.msra.mxu0 %v5972
    %6899 = vmatprep.subr.mxu0 0.0
    %6900 = vmatpush1.msra.mxu0 %v5977
    %6901 = vmatprep.subr.mxu0 0.0
    %6902 = vmatpush1.msra.mxu0 %v5982
    %6903 = vmatprep.subr.mxu0 0.0
    %6904 = vmatpush1.msra.mxu0 %v5987
    %6905 = vmatprep.subr.mxu0 0.0
    %6906 = vmatpush1.msra.mxu0 %v5992
    %6907 = vmatprep.subr.mxu0 0.0
    %6908 = vmatpush1.msra.mxu0 %v5997
    %6909 = vmatprep.subr.mxu0 0.0
    %6910 = vmatpush1.msra.mxu0 %v6002
    %6911 = vmatprep.subr.mxu0 0.0
    %6912 = vmatpush1.msra.mxu0 %v6007
    %6913 = vmatprep.subr.mxu0 0.0
    %6914 = vmatpush1.msra.mxu0 %v6012
    %6915 = vmatprep.subr.mxu0 0.0
    %6916 = vmatpush1.msra.mxu0 %v6017
    %6917 = vmatprep.subr.mxu0 0.0
    %6918 = vmatpush1.msra.mxu0 %v6022
    %6919 = vmatprep.subr.mxu0 0.0
    %6920 = vmatpush1.msra.mxu0 %v6027
    %6921 = vmatprep.subr.mxu0 0.0
    %6922 = vmatpush1.msra.mxu0 %v6032
    %6923 = vmatprep.subr.mxu0 0.0
    %6924 = vmatpush1.msra.mxu0 %v6037
    %6925 = vmatprep.subr.mxu0 0.0
    %6926 = vmatpush1.msra.mxu0 %v6042
    %6927 = vmatprep.subr.mxu0 0.0
    %6928 = vmatpush1.msra.mxu0 %v6047
    %6929 = vmatprep.subr.mxu0 0.0
    %6930 = vmatpush1.msra.mxu0 %v6052
    %6931 = vmatprep.subr.mxu0 0.0
    %6932 = vmatpush1.msra.mxu0 %v6057
    %6933 = vmatprep.subr.mxu0 0.0
    %6934 = vmatpush1.msra.mxu0 %v6062
    %6935 = vmatprep.subr.mxu0 0.0
    %6936 = vmatpush1.msra.mxu0 %v6067
    %6937 = vmatprep.subr.mxu0 0.0
    %6938 = vmatpush1.msra.mxu0 %v6072
    %6939 = vmatprep.subr.mxu0 0.0
    %6940 = vmatpush1.msra.mxu0 0.0
    %6941 = vmatprep.subr.mxu0 0.0
    %6942 = vmatpush1.msra.mxu0 0.0
    %6943 = vmatprep.subr.mxu0 0.0
    %6944 = vmatpush1.msra.mxu0 0.0
    %6945 = vmatprep.mubr.f32.mxu0 %v6101
    %6946 = vmatmul.mubr.f32.gmra.mrb[0].mxu0 %v5446
    %v6947 = vpop.f32.mrb[0].mxu0
    %v6948 = vadd.f32 %v6878, %v6947
    %v6949 = vpop.f32.mrb[0].mxu0
    %6950 = vdwg.mxu0
    %v6951 = vtanh.pop %v6383
    %v6952 = vtanh.pop %v6385
    %v6953 = vtanh.pop %v6667
    %v6954 = vtanh.pop %v6669
    %v6955 = vtanh.pop %v6948
    %v6956 = vld [vmem:[%s9] sm:$0xff]
    %v6957 = vld [vmem:[%s9 + $0x8] sm:$0xff]
    %v6958 = vld [vmem:[%s9 + $0x10] sm:$0xff]
    %v6959 = vld [vmem:[%s9 + $0x18] sm:$0xff]
    %v6960 = vld [vmem:[%s9 + $0x20] sm:$0xff]
    %v6961 = vld [vmem:[%s9 + $0x28] sm:$0xff]
    %v6962 = vld [vmem:[%s9 + $0x30] sm:$0xff]
    %v6963 = vld [vmem:[%s9 + $0x38] sm:$0xff]
    %v6964 = vld [vmem:[%s9 + $0x40] sm:$0xff]
    %v6965 = vld [vmem:[%s9 + $0x48] sm:$0xff]
    %v6966 = vld [vmem:[%s9 + $0x50] sm:$0xff]
    %v6967 = vld [vmem:[%s9 + $0x58] sm:$0xff]
    %v6968 = vld [vmem:[%s9 + $0x60] sm:$0xff]
    %v6969 = vld [vmem:[%s9 + $0x68] sm:$0xff]
    %v6970 = vld [vmem:[%s9 + $0x70] sm:$0xff]
    %v6971 = vld [vmem:[%s9 + $0x78] sm:$0xff]
    %v6972 = vld [vmem:[%s9 + $0x80] sm:$0xff]
    %v6973 = vld [vmem:[%s9 + $0x88] sm:$0xff]
    %v6974 = vld [vmem:[%s9 + $0x90] sm:$0xff]
    %v6975 = vld [vmem:[%s9 + $0x98] sm:$0xff]
    %v6976 = vld [vmem:[%s9 + $0xa0] sm:$0xff]
    %v6977 = vld [vmem:[%s9 + $0xa8] sm:$0xff]
    %v6978 = vld [vmem:[%s9 + $0xb0] sm:$0xff]
    %v6979 = vld [vmem:[%s9 + $0xb8] sm:$0xff]
    %v6980 = vld [vmem:[%s9 + $0xc0] sm:$0xff]
    %v6981 = vld [vmem:[%s9 + $0xc8] sm:$0xff]
    %v6982 = vld [vmem:[%s9 + $0xd0] sm:$0xff]
    %v6983 = vld [vmem:[%s9 + $0xd8] sm:$0xff]
    %v6984 = vld [vmem:[%s9 + $0xe0] sm:$0xff]
    %v6985 = vld [vmem:[%s9 + $0xe8] sm:$0xff]
    %v6986 = vld [vmem:[%s9 + $0xf0] sm:$0xff]
    %v6987 = vld [vmem:[%s9 + $0xf8] sm:$0xff]
    %v6988 = vld [vmem:[%s9 + $0x100] sm:$0xff]
    %v6989 = vld [vmem:[%s9 + $0x108] sm:$0xff]
    %v6990 = vld [vmem:[%s9 + $0x110] sm:$0xff]
    %v6991 = vld [vmem:[%s9 + $0x118] sm:$0xff]
    %v6992 = vld [vmem:[%s9 + $0x120] sm:$0xff]
    %v6993 = vld [vmem:[%s9 + $0x128] sm:$0xff]
    %v6994 = vld [vmem:[%s9 + $0x130] sm:$0xff]
    %v6995 = vld [vmem:[%s9 + $0x138] sm:$0xff]
    %v6996 = vld [vmem:[%s9 + $0x140] sm:$0xff]
    %v6997 = vld [vmem:[%s9 + $0x148] sm:$0xff]
    %v6998 = vld [vmem:[%s9 + $0x150] sm:$0xff]
    %v6999 = vld [vmem:[%s9 + $0x158] sm:$0xff]
    %v7000 = vld [vmem:[%s9 + $0x160] sm:$0xff]
    %v7001 = vld [vmem:[%s9 + $0x168] sm:$0xff]
    %v7002 = vld [vmem:[%s9 + $0x170] sm:$0xff]
    %v7003 = vld [vmem:[%s9 + $0x178] sm:$0xff]
    %v7004 = vld [vmem:[%s9 + $0x180] sm:$0xff]
    %v7005 = vld [vmem:[%s9 + $0x188] sm:$0xff]
    %v7006 = vld [vmem:[%s9 + $0x190] sm:$0xff]
    %v7007 = vld [vmem:[%s9 + $0x198] sm:$0xff]
    %v7008 = vld [vmem:[%s9 + $0x1a0] sm:$0xff]
    %v7009 = vld [vmem:[%s9 + $0x1a8] sm:$0xff]
    %v7010 = vld [vmem:[%s9 + $0x1b0] sm:$0xff]
    %v7011 = vld [vmem:[%s9 + $0x1b8] sm:$0xff]
    %v7012 = vld [vmem:[%s9 + $0x1c0] sm:$0xff]
    %v7013 = vld [vmem:[%s9 + $0x1c8] sm:$0xff]
    %v7014 = vld [vmem:[%s9 + $0x1d0] sm:$0xff]
    %v7015 = vld [vmem:[%s9 + $0x1d8] sm:$0xff]
    %v7016 = vld [vmem:[%s9 + $0x1e0] sm:$0xff]
    %v7017 = vld [vmem:[%s9 + $0x1e8] sm:$0xff]
    %v7018 = vld [vmem:[%s9 + $0x1f0] sm:$0xff]
    %v7019 = vld [vmem:[%s9 + $0x1f8] sm:$0xff]
    %v7020 = vld [vmem:[%s9 + $0x200] sm:$0xff]
    %v7021 = vld [vmem:[%s9 + $0x208] sm:$0xff]
    %v7022 = vld [vmem:[%s9 + $0x210] sm:$0xff]
    %v7023 = vld [vmem:[%s9 + $0x218] sm:$0xff]
    %v7024 = vld [vmem:[%s9 + $0x220] sm:$0xff]
    %v7025 = vld [vmem:[%s9 + $0x228] sm:$0xff]
    %v7026 = vld [vmem:[%s9 + $0x230] sm:$0xff]
    %v7027 = vld [vmem:[%s9 + $0x238] sm:$0xff]
    %v7028 = vld [vmem:[%s9 + $0x240] sm:$0xff]
    %v7029 = vld [vmem:[%s9 + $0x248] sm:$0xff]
    %v7030 = vld [vmem:[%s9 + $0x250] sm:$0xff]
    %v7031 = vld [vmem:[%s10] sm:$0x1]
    %v7033 = vlaneseq
    %v7034 = vshrl.u32 %v7033, 7
    %v7035 = vsub.s32 0, %v7034
    %v7036 = vrot.slane %v7031, %v7035
    %vm7038 = vcmask 719872
    %v7040 = vsel %vm7038, %v6955, 0
    %7042 = vmatprep.subr.mxu0 0.0
    %7043 = vmatpush1.msra.mxu0 %v6956
    %7044 = vmatprep.subr.mxu0 0.0
    %7045 = vmatpush1.msra.mxu0 %v6957
    %7046 = vmatprep.subr.mxu0 0.0
    %7047 = vmatpush1.msra.mxu0 %v6958
    %7048 = vmatprep.subr.mxu0 0.0
    %7049 = vmatpush1.msra.mxu0 %v6959
    %7050 = vmatprep.subr.mxu0 0.0
    %7051 = vmatpush1.msra.mxu0 %v6960
    %7052 = vmatprep.subr.mxu0 0.0
    %7053 = vmatpush1.msra.mxu0 %v6961
    %7054 = vmatprep.subr.mxu0 0.0
    %7055 = vmatpush1.msra.mxu0 %v6962
    %7056 = vmatprep.subr.mxu0 0.0
    %7057 = vmatpush1.msra.mxu0 %v6963
    %7058 = vmatprep.subr.mxu0 0.0
    %7059 = vmatpush1.msra.mxu0 %v6964
    %7060 = vmatprep.subr.mxu0 0.0
    %7061 = vmatpush1.msra.mxu0 %v6965
    %7062 = vmatprep.subr.mxu0 0.0
    %7063 = vmatpush1.msra.mxu0 %v6966
    %7064 = vmatprep.subr.mxu0 0.0
    %7065 = vmatpush1.msra.mxu0 %v6967
    %7066 = vmatprep.subr.mxu0 0.0
    %7067 = vmatpush1.msra.mxu0 %v6968
    %7068 = vmatprep.subr.mxu0 0.0
    %7069 = vmatpush1.msra.mxu0 %v6969
    %7070 = vmatprep.subr.mxu0 0.0
    %7071 = vmatpush1.msra.mxu0 %v6970
    %7072 = vmatprep.subr.mxu0 0.0
    %7073 = vmatpush1.msra.mxu0 %v6971
    %7074 = vmatprep.subr.mxu0 0.0
    %7075 = vmatpush1.msra.mxu0 %v6972
    %7076 = vmatprep.subr.mxu0 0.0
    %7077 = vmatpush1.msra.mxu0 %v6973
    %7078 = vmatprep.subr.mxu0 0.0
    %7079 = vmatpush1.msra.mxu0 %v6974
    %7080 = vmatprep.subr.mxu0 0.0
    %7081 = vmatpush1.msra.mxu0 %v6975
    %7082 = vmatprep.subr.mxu0 0.0
    %7083 = vmatpush1.msra.mxu0 %v6976
    %7084 = vmatprep.subr.mxu0 0.0
    %7085 = vmatpush1.msra.mxu0 %v6977
    %7086 = vmatprep.subr.mxu0 0.0
    %7087 = vmatpush1.msra.mxu0 %v6978
    %7088 = vmatprep.subr.mxu0 0.0
    %7089 = vmatpush1.msra.mxu0 %v6979
    %7090 = vmatprep.subr.mxu0 0.0
    %7091 = vmatpush1.msra.mxu0 %v6980
    %7092 = vmatprep.subr.mxu0 0.0
    %7093 = vmatpush1.msra.mxu0 %v6981
    %7094 = vmatprep.subr.mxu0 0.0
    %7095 = vmatpush1.msra.mxu0 %v6982
    %7096 = vmatprep.subr.mxu0 0.0
    %7097 = vmatpush1.msra.mxu0 %v6983
    %7098 = vmatprep.subr.mxu0 0.0
    %7099 = vmatpush1.msra.mxu0 %v6984
    %7100 = vmatprep.subr.mxu0 0.0
    %7101 = vmatpush1.msra.mxu0 %v6985
    %7102 = vmatprep.subr.mxu0 0.0
    %7103 = vmatpush1.msra.mxu0 %v6986
    %7104 = vmatprep.subr.mxu0 0.0
    %7105 = vmatpush1.msra.mxu0 %v6987
    %7106 = vmatprep.mubr.f32.mxu0 %v6952
    %7107 = vmatmul.mubr.f32.gmra.mrb[0].mxu0 %v6951
    %v7108 = vpop.f32.mrb[0].mxu0
    %v7109 = vadd.f32 %v7036, %v7108
    %v7110 = vpop.f32.mrb[0].mxu0
    %7111 = vdwg.mxu0
    %7112 = vmatprep.subr.mxu0 0.0
    %7113 = vmatpush1.msra.mxu0 %v6988
    %7114 = vmatprep.subr.mxu0 0.0
    %7115 = vmatpush1.msra.mxu0 %v6989
    %7116 = vmatprep.subr.mxu0 0.0
    %7117 = vmatpush1.msra.mxu0 %v6990
    %7118 = vmatprep.subr.mxu0 0.0
    %7119 = vmatpush1.msra.mxu0 %v6991
    %7120 = vmatprep.subr.mxu0 0.0
    %7121 = vmatpush1.msra.mxu0 %v6992
    %7122 = vmatprep.subr.mxu0 0.0
    %7123 = vmatpush1.msra.mxu0 %v6993
    %7124 = vmatprep.subr.mxu0 0.0
    %7125 = vmatpush1.msra.mxu0 %v6994
    %7126 = vmatprep.subr.mxu0 0.0
    %7127 = vmatpush1.msra.mxu0 %v6995
    %7128 = vmatprep.subr.mxu0 0.0
    %7129 = vmatpush1.msra.mxu0 %v6996
    %7130 = vmatprep.subr.mxu0 0.0
    %7131 = vmatpush1.msra.mxu0 %v6997
    %7132 = vmatprep.subr.mxu0 0.0
    %7133 = vmatpush1.msra.mxu0 %v6998
    %7134 = vmatprep.subr.mxu0 0.0
    %7135 = vmatpush1.msra.mxu0 %v6999
    %7136 = vmatprep.subr.mxu0 0.0
    %7137 = vmatpush1.msra.mxu0 %v7000
    %7138 = vmatprep.subr.mxu0 0.0
    %7139 = vmatpush1.msra.mxu0 %v7001
    %7140 = vmatprep.subr.mxu0 0.0
    %7141 = vmatpush1.msra.mxu0 %v7002
    %7142 = vmatprep.subr.mxu0 0.0
    %7143 = vmatpush1.msra.mxu0 %v7003
    %7144 = vmatprep.subr.mxu0 0.0
    %7145 = vmatpush1.msra.mxu0 %v7004
    %7146 = vmatprep.subr.mxu0 0.0
    %7147 = vmatpush1.msra.mxu0 %v7005
    %7148 = vmatprep.subr.mxu0 0.0
    %7149 = vmatpush1.msra.mxu0 %v7006
    %7150 = vmatprep.subr.mxu0 0.0
    %7151 = vmatpush1.msra.mxu0 %v7007
    %7152 = vmatprep.subr.mxu0 0.0
    %7153 = vmatpush1.msra.mxu0 %v7008
    %7154 = vmatprep.subr.mxu0 0.0
    %7155 = vmatpush1.msra.mxu0 %v7009
    %7156 = vmatprep.subr.mxu0 0.0
    %7157 = vmatpush1.msra.mxu0 %v7010
    %7158 = vmatprep.subr.mxu0 0.0
    %7159 = vmatpush1.msra.mxu0 %v7011
    %7160 = vmatprep.subr.mxu0 0.0
    %7161 = vmatpush1.msra.mxu0 %v7012
    %7162 = vmatprep.subr.mxu0 0.0
    %7163 = vmatpush1.msra.mxu0 %v7013
    %7164 = vmatprep.subr.mxu0 0.0
    %7165 = vmatpush1.msra.mxu0 %v7014
    %7166 = vmatprep.subr.mxu0 0.0
    %7167 = vmatpush1.msra.mxu0 %v7015
    %7168 = vmatprep.subr.mxu0 0.0
    %7169 = vmatpush1.msra.mxu0 %v7016
    %7170 = vmatprep.subr.mxu0 0.0
    %7171 = vmatpush1.msra.mxu0 %v7017
    %7172 = vmatprep.subr.mxu0 0.0
    %7173 = vmatpush1.msra.mxu0 %v7018
    %7174 = vmatprep.subr.mxu0 0.0
    %7175 = vmatpush1.msra.mxu0 %v7019
    %7176 = vmatprep.mubr.f32.mxu0 %v6954
    %7177 = vmatmul.mubr.f32.gmra.mrb[0].mxu0 %v6953
    %v7178 = vpop.f32.mrb[0].mxu0
    %v7179 = vadd.f32 %v7109, %v7178
    %v7180 = vpop.f32.mrb[0].mxu0
    %7181 = vdwg.mxu0
    %7182 = vmatprep.subr.mxu0 0.0
    %7183 = vmatpush1.msra.mxu0 %v7020
    %7184 = vmatprep.subr.mxu0 0.0
    %7185 = vmatpush1.msra.mxu0 %v7021
    %7186 = vmatprep.subr.mxu0 0.0
    %7187 = vmatpush1.msra.mxu0 %v7022
    %7188 = vmatprep.subr.mxu0 0.0
    %7189 = vmatpush1.msra.mxu0 %v7023
    %7190 = vmatprep.subr.mxu0 0.0
    %7191 = vmatpush1.msra.mxu0 %v7024
    %7192 = vmatprep.subr.mxu0 0.0
    %7193 = vmatpush1.msra.mxu0 %v7025
    %7194 = vmatprep.subr.mxu0 0.0
    %7195 = vmatpush1.msra.mxu0 %v7026
    %7196 = vmatprep.subr.mxu0 0.0
    %7197 = vmatpush1.msra.mxu0 %v7027
    %7198 = vmatprep.subr.mxu0 0.0
    %7199 = vmatpush1.msra.mxu0 %v7028
    %7200 = vmatprep.subr.mxu0 0.0
    %7201 = vmatpush1.msra.mxu0 %v7029
    %7202 = vmatprep.subr.mxu0 0.0
    %7203 = vmatpush1.msra.mxu0 %v7030
    %7204 = vmatprep.subr.mxu0 0.0
    %7205 = vmatpush1.msra.mxu0 0.0
    %7206 = vmatprep.subr.mxu0 0.0
    %7207 = vmatpush1.msra.mxu0 0.0
    %7208 = vmatprep.subr.mxu0 0.0
    %7209 = vmatpush1.msra.mxu0 0.0
    %7210 = vmatprep.subr.mxu0 0.0
    %7211 = vmatpush1.msra.mxu0 0.0
    %7212 = vmatprep.subr.mxu0 0.0
    %7213 = vmatpush1.msra.mxu0 0.0
    %7214 = vmatprep.subr.mxu0 0.0
    %7215 = vmatpush1.msra.mxu0 0.0
    %7216 = vmatprep.subr.mxu0 0.0
    %7217 = vmatpush1.msra.mxu0 0.0
    %7218 = vmatprep.subr.mxu0 0.0
    %7219 = vmatpush1.msra.mxu0 0.0
    %7220 = vmatprep.subr.mxu0 0.0
    %7221 = vmatpush1.msra.mxu0 0.0
    %7222 = vmatprep.subr.mxu0 0.0
    %7223 = vmatpush1.msra.mxu0 0.0
    %7224 = vmatprep.subr.mxu0 0.0
    %7225 = vmatpush1.msra.mxu0 0.0
    %7226 = vmatprep.subr.mxu0 0.0
    %7227 = vmatpush1.msra.mxu0 0.0
    %7228 = vmatprep.subr.mxu0 0.0
    %7229 = vmatpush1.msra.mxu0 0.0
    %7230 = vmatprep.subr.mxu0 0.0
    %7231 = vmatpush1.msra.mxu0 0.0
    %7232 = vmatprep.subr.mxu0 0.0
    %7233 = vmatpush1.msra.mxu0 0.0
    %7234 = vmatprep.subr.mxu0 0.0
    %7235 = vmatpush1.msra.mxu0 0.0
    %7236 = vmatprep.subr.mxu0 0.0
    %7237 = vmatpush1.msra.mxu0 0.0
    %7238 = vmatprep.subr.mxu0 0.0
    %7239 = vmatpush1.msra.mxu0 0.0
    %7240 = vmatprep.subr.mxu0 0.0
    %7241 = vmatpush1.msra.mxu0 0.0
    %7242 = vmatprep.subr.mxu0 0.0
    %7243 = vmatpush1.msra.mxu0 0.0
    %7244 = vmatprep.subr.mxu0 0.0
    %7245 = vmatpush1.msra.mxu0 0.0
    %7246 = vmatprep.mubr.f32.mxu0 0.0
    %7247 = vmatmul.mubr.f32.gmra.mrb[0].mxu0 %v7040
    %v7248 = vpop.f32.mrb[0].mxu0
    %v7249 = vadd.f32 %v7179, %v7248
    %v7250 = vpop.f32.mrb[0].mxu0
    %7251 = vdwg.mxu0
    %vm7252 = vcmask 15360
    %7253 = vst.msk [vmem:[%s11] sm:$0xff] %vm7252, %v7249
    // Predicated region
    $region54: #{tpu_custom_call.1} parent=1 // pred_check
      _
    $region55: #{tpu_custom_call.1} parent=1 // pred_check_branch
      %7255 = sbr.rel (0) target = $region57
    $region56: #{tpu_custom_call.1} parent=1 // pred_region
      _
    $region57: #{tpu_custom_call.1} parent=1 // pred_fallthru
      _
    // Predicated region
    $region58: #{tpu_custom_call.1} parent=1 // pred_check
      _
    $region59: #{tpu_custom_call.1} parent=1 // pred_check_branch
      %7257 = sbr.rel (0) target = $region61
    $region60: #{tpu_custom_call.1} parent=1 // pred_region
      _
    $region61: #{tpu_custom_call.1} parent=1 // pred_fallthru
      _
    %7258 = vsyncpa [#allocation3], 1
    %7259 = vsyncpa [#allocation5], 1

</llo_original>
